<compile_context>
chip_gen: v5e
topology: v5e:2x2
jax: 0.10.0
libtpu: 0.0.40
codegen_flags: <defaults>
</compile_context>

<pallas_src>
import numpy as np

import jax
import jax.numpy as jnp
from jax.experimental import pallas as pl
from jax.experimental.pallas import tpu as pltpu


# ---------------------------------------------------------------------------
# Sub-pixel (phase) decomposition of ConvTranspose2d(k=4, stride=2, padding=1)
# ---------------------------------------------------------------------------
# With hp = input zero-padded by 1:
#   out[n, co, 2q+r, 2t+u] = sum_{ci,dq,dt} hp[n, ci, q+dq, t+dt]
#                                           * W[ci, co, kh(r,dq), kw(u,dt)]
# where kh(r, dq) follows _TAP_TO_K (taps not listed contribute zero for that
# phase).  Each phase touches a 2x2 subset of a shared 3x3 window, so the 4
# phases are stacked on the GEMM rows ((4*C_out, C_in) per tap) and the kernel
# accumulates 9 taps against lane-shifted views of the flattened activation.
_TAP_TO_K = ({0: 3, 1: 1}, {1: 2, 2: 0})   # output parity -> {window offset: kernel idx}


def _phase_stack_weight(w):
    """PyTorch ConvTranspose2d weight (C_in, C_out, 4, 4) ->
    per-tap phase-stacked GEMM LHS of shape (9, 4*C_out, C_in), bf16."""
    w = np.asarray(w, np.float32)
    cin, cout = w.shape[0], w.shape[1]
    stk = np.zeros((9, 4 * cout, cin), np.float32)
    for dq in range(3):
        for dt in range(3):
            for r in range(2):
                for u in range(2):
                    kh = _TAP_TO_K[r].get(dq)
                    kw = _TAP_TO_K[u].get(dt)
                    if kh is None or kw is None:
                        continue
                    p = r * 2 + u
                    stk[dq * 3 + dt, p * cout:(p + 1) * cout, :] = w[:, :, kh, kw].T
    return jnp.asarray(stk, jnp.bfloat16)


# ------------------------------- XLA glue -----------------------------------


def _prep_patches(h):
    """h: (N, C, H, W) bf16 -> flattened padded activation (N, C, Hp*Wp + tail).

    The tail (2*Wp + 2 zeros) lets the kernel read every tap offset as a plain
    static lane-offset slice of length Hp*Wp without running out of bounds."""
    n, c, hh, ww = h.shape
    hp_, wp_ = hh + 2, ww + 2
    hp = jnp.pad(h, ((0, 0), (0, 0), (1, 1), (1, 1)))
    flat = hp.reshape(n, c, hp_ * wp_)
    flat = jnp.pad(flat, ((0, 0), (0, 0), (0, 2 * wp_ + 2)))
    return flat, (hp_, wp_)


def _unshuffle(y, c_out, hh, ww, hp_, wp_):
    """y: (N, 4*C_out, Hp*Wp) phase-stacked kernel output ->
    (N, C_out, 2H, 2W) de-interleaved image (drops the padded/garbage cols)."""
    n = y.shape[0]
    y = y.reshape(n, 2, 2, c_out, hp_, wp_)[:, :, :, :, :hh, :ww]
    return y.transpose(0, 3, 4, 1, 5, 2).reshape(n, c_out, 2 * hh, 2 * ww)


# ----------------------------- Pallas kernels -------------------------------


def pallas_phase_convt_bn_relu(flat, wstk, gamma, beta, hh, ww, hp_, wp_):
    """Fused stride-2 ConvTranspose (sub-pixel form, in-kernel 9-tap
    accumulation) + training-mode BatchNorm (batch stats, biased var,
    eps=1e-5) + ReLU.  Emits bf16 (next layer's MXU operand dtype).

    Whole-array blocks: batch statistics need the full batch anyway and every
    operand here is tiny.
    TODO(synk): for large batches / v7x (64 MiB VMEM, 2 TCs), switch to a
    two-pass scheme (grid over M accumulating per-channel sum/sumsq into VMEM
    scratch, then a 'parallel' normalize+ReLU pass) instead of whole blocks.
    """
    n_img, c_in, lp = flat.shape
    four_cout = wstk.shape[1]
    c_out = four_cout // 4
    m_img = hp_ * wp_
    offs = [dq * wp_ + dt for dq in range(3) for dt in range(3)]
    inv_count = 1.0 / float(4 * n_img * hh * ww)   # elements per channel = N*2H*2W

    # Compile-time-constant validity mask over the Hp*Wp output columns
    # (columns with q >= H or t >= W are padding artifacts, excluded from the
    # BN statistics and sliced away by _unshuffle).
    qp = np.arange(m_img) // wp_
    tp = np.arange(m_img) % wp_
    mask = jnp.asarray(((qp < hh) & (tp < ww)).astype(np.float32).reshape(1, m_img))

    def kernel(x_ref, w_ref, g_ref, b_ref, m_ref, o_ref):
        msk = m_ref[...]                                   # (1, Mimg) f32
        accs = []
        for n in range(n_img):
            xn = x_ref[n]                                  # (C_in, Lp) bf16
            a = None
            for j, off in enumerate(offs):                 # in-kernel im2col
                d = jnp.dot(w_ref[j], xn[:, off:off + m_img],
                            preferred_element_type=jnp.float32)
                a = d if a is None else a + d
            accs.append(a * msk)                           # zero garbage columns

        # ---- training-mode BatchNorm over (batch, 4 phases, valid columns) ----
        row_sum = None
        for a in accs:
            s = jnp.sum(a, axis=1, keepdims=True)          # (4*C_out, 1)
            row_sum = s if row_sum is None else row_sum + s
        mean_c = (row_sum[0:c_out] + row_sum[c_out:2 * c_out]
                  + row_sum[2 * c_out:3 * c_out]
                  + row_sum[3 * c_out:4 * c_out]) * inv_count      # (C_out, 1)
        mean4 = jnp.concatenate([mean_c] * 4, axis=0)              # (4*C_out, 1)

        row_ss = None
        for a in accs:
            d = (a - mean4) * msk
            s = jnp.sum(d * d, axis=1, keepdims=True)
            row_ss = s if row_ss is None else row_ss + s
        var_c = (row_ss[0:c_out] + row_ss[c_out:2 * c_out]
                 + row_ss[2 * c_out:3 * c_out]
                 + row_ss[3 * c_out:4 * c_out]) * inv_count        # (C_out, 1)

        scale4 = jnp.concatenate(
            [g_ref[...] * jax.lax.rsqrt(var_c + 1e-5)] * 4, axis=0)
        beta4 = jnp.concatenate([b_ref[...]] * 4, axis=0)

        for n in range(n_img):
            y = (accs[n] - mean4) * scale4 + beta4
            o_ref[n, :, :] = jnp.maximum(y, 0.0).astype(o_ref.dtype)

    return pl.pallas_call(
        kernel,
        out_shape=jax.ShapeDtypeStruct((n_img, four_cout, m_img), jnp.bfloat16),
        compiler_params=pltpu.CompilerParams(
            vmem_limit_bytes=32 * 1024 * 1024),
    )(flat, wstk, gamma.reshape(c_out, 1), beta.reshape(c_out, 1), mask)


def pallas_phase_convt_bias_tanh(flat, wstk, bias, hp_, wp_):
    """Final layer: stride-2 ConvTranspose (sub-pixel form, in-kernel tap
    accumulation) + bias + Tanh.  Grid over the batch on a 'parallel' axis
    (>= 2 steps feed both v7x TensorCores); each step is one whole image,
    i.e. the largest possible M tile per step (best for v5e/v6e)."""
    n_img, c_in, lp = flat.shape
    four_cout = wstk.shape[1]
    m_img = hp_ * wp_
    offs = [dq * wp_ + dt for dq in range(3) for dt in range(3)]
    bias4 = jnp.tile(bias, 4).reshape(four_cout, 1).astype(jnp.float32)

    def kernel(x_ref, w_ref, b_ref, o_ref):
        xv = x_ref[0]                                      # (C_in, Lp) bf16
        a = None
        for j, off in enumerate(offs):
            d = jnp.dot(w_ref[j], xv[:, off:off + m_img],
                        preferred_element_type=jnp.float32)
            a = d if a is None else a + d
        o_ref[0, :, :] = jnp.tanh(a + b_ref[...])

    return pl.pallas_call(
        kernel,
        out_shape=jax.ShapeDtypeStruct((n_img, four_cout, m_img), jnp.float32),
        grid=(n_img,),
        in_specs=[
            pl.BlockSpec((1, c_in, lp), lambda n: (n, 0, 0)),
            pl.BlockSpec(wstk.shape, lambda n: (0, 0, 0)),
            pl.BlockSpec((four_cout, 1), lambda n: (0, 0)),
        ],
        out_specs=pl.BlockSpec((1, four_cout, m_img), lambda n: (n, 0, 0)),
        compiler_params=pltpu.CompilerParams(
            dimension_semantics=("parallel",),
            vmem_limit_bytes=32 * 1024 * 1024),
    )(flat, wstk, bias4)


# ------------------------------- Generator ----------------------------------


def init_generator_params(key, channels_noise, channels_img, features_g,
                          num_classes, embed_size, k=4):
    fg = features_g
    layer_io = [
        (channels_noise + embed_size, fg * 16),   # layer 0: stride 1, pad 0
        (fg * 16, fg * 8),                        # layers 1-4: stride 2, pad 1
        (fg * 8, fg * 4),
        (fg * 4, fg * 2),
        (fg * 2, channels_img),
    ]
    keys = jax.random.split(key, len(layer_io) + 2)
    params, raw = {}, {}
    for li, (cin, cout) in enumerate(layer_io):
        # PyTorch ConvTranspose2d weight layout: (C_in, C_out, k, k).
        w = 0.05 * jax.random.normal(keys[li], (cin, cout, k, k), jnp.float32)
        raw[li] = w
        if li == 0:
            params["w0"] = w.astype(jnp.bfloat16)           # bf16 einsum operand
        else:
            params[f"wstk{li}"] = _phase_stack_weight(w)    # precomputed once
    for li in range(4):                                     # BN affine (PyTorch init)
        cout = layer_io[li][1]
        params[f"gamma{li}"] = jnp.ones((cout,), jnp.float32)
        params[f"beta{li}"] = jnp.zeros((cout,), jnp.float32)
    params["b4"] = 0.05 * jax.random.normal(keys[-2], (channels_img,),
                                            jnp.float32)
    params["embed"] = 0.05 * jax.random.normal(
        keys[-1], (num_classes, embed_size), jnp.float32)
    return params, raw


@jax.jit
def generator_forward(params, x, labels):
    """x: (N, channels_noise, 1, 1) f32, labels: (N,) int32
    -> (N, channels_img, 64, 64) f32 in [-1, 1]."""
    n_img = x.shape[0]
    emb = jnp.take(params["embed"], labels, axis=0)               # (N, E)
    z = jnp.concatenate([x.reshape(n_img, -1), emb], axis=1)      # (N, Cn+E)

    # Layer 0: 1x1 -> 4x4 ConvTranspose == dense projection, + BN + ReLU.
    # Kept in plain XLA per perf review (a pallas_call here is pure launch
    # overhead at ~0.4 MFLOP with 16 output pixels).
    # TODO(synk): fold this projection into the layer-1 kernel prologue.
    y = jnp.einsum("nc,cohw->nohw", z.astype(jnp.bfloat16), params["w0"],
                   preferred_element_type=jnp.float32)            # (N, C0, 4, 4)
    mean = jnp.mean(y, axis=(0, 2, 3), keepdims=True)
    var = jnp.mean(jnp.square(y - mean), axis=(0, 2, 3), keepdims=True)
    y = (y - mean) * jax.lax.rsqrt(var + 1e-5)
    y = y * params["gamma0"].reshape(1, -1, 1, 1) + params["beta0"].reshape(1, -1, 1, 1)
    h = jnp.maximum(y, 0.0).astype(jnp.bfloat16)                  # (N, C0, 4, 4)

    # Layers 1-4: stride-2 ConvTranspose in sub-pixel (4-phase) form, one fused
    # Pallas kernel per layer with in-kernel tap accumulation.
    for li in range(1, 5):
        _, _, hh, ww = h.shape
        flat, (hp_, wp_) = _prep_patches(h)
        wstk = params[f"wstk{li}"]
        c_out = wstk.shape[1] // 4
        if li < 4:
            y = pallas_phase_convt_bn_relu(flat, wstk, params[f"gamma{li}"],
                                           params[f"beta{li}"], hh, ww, hp_, wp_)
        else:
            y = pallas_phase_convt_bias_tanh(flat, wstk, params["b4"], hp_, wp_)
        # TODO(synk): emit the interleaved NCHW layout straight from the kernel
        # (strided phase stores) to drop this small XLA pixel-shuffle.
        h = _unshuffle(y, c_out, hh, ww, hp_, wp_)                # (N, C_out, 2H, 2W)
    return h


# ------------------------------ reference -----------------------------------


def reference_forward(params, raw_w, x, labels):
    """Pure-XLA reference (lax.conv_general_dilated with lhs_dilation),
    training-mode BatchNorm, with the same bf16 operand quantisation as the
    Pallas path so the comparison isolates kernel math."""
    def q(a):
        return a.astype(jnp.bfloat16).astype(jnp.float32)

    emb = jnp.take(params["embed"], labels, axis=0)
    h = jnp.concatenate([x, emb[:, :, None, None]], axis=1)
    cfg = [(1, 0), (2, 1), (2, 1), (2, 1), (2, 1)]                # (stride, pad)
    for li, (s, p) in enumerate(cfg):
        w = raw_w[li]
        wflip = jnp.transpose(w, (1, 0, 2, 3))[:, :, ::-1, ::-1]  # (C_out, C_in, k, k)
        pad = 4 - 1 - p
        y = jax.lax.conv_general_dilated(
            q(h), q(wflip), window_strides=(1, 1),
            padding=[(pad, pad), (pad, pad)], lhs_dilation=(s, s),
            dimension_numbers=("NCHW", "OIHW", "NCHW"),
            precision=jax.lax.Precision.HIGHEST)
        if li < 4:
            mean = jnp.mean(y, axis=(0, 2, 3), keepdims=True)
            var = jnp.mean(jnp.square(y - mean), axis=(0, 2, 3), keepdims=True)
            y = (y - mean) * jax.lax.rsqrt(var + 1e-5)
            y = y * params[f"gamma{li}"].reshape(1, -1, 1, 1) \
                + params[f"beta{li}"].reshape(1, -1, 1, 1)
            h = jnp.maximum(y, 0.0)
        else:
            h = jnp.tanh(y + params["b4"].reshape(1, -1, 1, 1))
    return h


# --------------------------------- main --------------------------------------


if __name__ == "__main__":
    channels_noise = 8
    channels_img = 3
    features_g = 4
    num_classes = 10
    img_size = 64    # implied by the 5 conv-transpose stages: 1->4->8->16->32->64
    embed_size = 4
    batch = 2

    key = jax.random.PRNGKey(0)
    kp, kx, kl = jax.random.split(key, 3)
    params, raw_w = init_generator_params(kp, channels_noise, channels_img,
                                          features_g, num_classes, embed_size)
    x = jax.random.normal(kx, (batch, channels_noise, 1, 1), jnp.float32)
    labels = jax.random.randint(kl, (batch,), 0, num_classes, jnp.int32)

    out = jax.block_until_ready(generator_forward(params, x, labels))

    assert out.shape == (batch, channels_img, img_size, img_size), out.shape
    assert bool(jnp.all(jnp.isfinite(out)))
    assert bool(jnp.all(jnp.abs(out) <= 1.0 + 1e-6))   # tanh output range

    # Cross-check against a straight lax-conv reference (same bf16 operand
    # quantisation; residual differences are accumulation-order only).
    ref = jax.block_until_ready(jax.jit(reference_forward)(params, raw_w, x, labels))
    max_err = float(jnp.max(jnp.abs(out - ref)))
    assert max_err < 5e-2, f"mismatch vs reference: max|diff|={max_err}"

    print("KERNEL_OK")
</pallas_src>

<mosaic_0001>
module attributes {stable_mosaic.version = 11 : i64} {
  func.func @kernel(%arg0: memref<2x64x50xbf16, #tpu.memory_space<vmem>>, %arg1: memref<9x128x64xbf16, #tpu.memory_space<vmem>>, %arg2: memref<32x1xf32, #tpu.memory_space<vmem>>, %arg3: memref<32x1xf32, #tpu.memory_space<vmem>>, %arg4: memref<1x36xf32, #tpu.memory_space<vmem>>, %arg5: memref<2x128x36xbf16, #tpu.memory_space<vmem>>) attributes {dimension_semantics = [], scalar_prefetch = 0 : i64, scratch_operands = 0 : i64, tpu.core_type = #tpu.core_type<tc>} {
    %c0 = arith.constant 0 : index
    %c0_0 = arith.constant 0 : index
    %0 = vector.load %arg4[%c0, %c0_0] : memref<1x36xf32, #tpu.memory_space<vmem>>, vector<1x36xf32>
    %c0_1 = arith.constant 0 : index
    %c0_2 = arith.constant 0 : index
    %c0_3 = arith.constant 0 : index
    %1 = vector.load %arg0[%c0_1, %c0_2, %c0_3] : memref<2x64x50xbf16, #tpu.memory_space<vmem>>, vector<1x64x50xbf16>
    %2 = vector.shape_cast %1 : vector<1x64x50xbf16> to vector<64x50xbf16>
    %c0_4 = arith.constant 0 : index
    %c0_5 = arith.constant 0 : index
    %c0_6 = arith.constant 0 : index
    %3 = vector.load %arg1[%c0_4, %c0_5, %c0_6] : memref<9x128x64xbf16, #tpu.memory_space<vmem>>, vector<1x128x64xbf16>
    %4 = vector.shape_cast %3 : vector<1x128x64xbf16> to vector<128x64xbf16>
    %5 = vector.extract_strided_slice %2 {offsets = [0, 0], sizes = [64, 36], strides = [1, 1]} : vector<64x50xbf16> to vector<64x36xbf16>
    %cst = arith.constant dense<0.000000e+00> : vector<128x36xf32>
    %6 = tpu.matmul %4, %5, %cst {dimension_numbers = #tpu.dot_dimension_numbers<[1], [0], [0], [1], [0, 0, 1, 1], [], []>} : vector<128x64xbf16>, vector<64x36xbf16>, vector<128x36xf32> -> vector<128x36xf32>
    %c1 = arith.constant 1 : index
    %c0_7 = arith.constant 0 : index
    %c0_8 = arith.constant 0 : index
    %7 = vector.load %arg1[%c1, %c0_7, %c0_8] : memref<9x128x64xbf16, #tpu.memory_space<vmem>>, vector<1x128x64xbf16>
    %8 = vector.shape_cast %7 : vector<1x128x64xbf16> to vector<128x64xbf16>
    %9 = vector.extract_strided_slice %2 {offsets = [0, 1], sizes = [64, 36], strides = [1, 1]} : vector<64x50xbf16> to vector<64x36xbf16>
    %cst_9 = arith.constant dense<0.000000e+00> : vector<128x36xf32>
    %10 = tpu.matmul %8, %9, %cst_9 {dimension_numbers = #tpu.dot_dimension_numbers<[1], [0], [0], [1], [0, 0, 1, 1], [], []>} : vector<128x64xbf16>, vector<64x36xbf16>, vector<128x36xf32> -> vector<128x36xf32>
    %11 = arith.addf %6, %10 : vector<128x36xf32>
    %c2 = arith.constant 2 : index
    %c0_10 = arith.constant 0 : index
    %c0_11 = arith.constant 0 : index
    %12 = vector.load %arg1[%c2, %c0_10, %c0_11] : memref<9x128x64xbf16, #tpu.memory_space<vmem>>, vector<1x128x64xbf16>
    %13 = vector.shape_cast %12 : vector<1x128x64xbf16> to vector<128x64xbf16>
    %14 = vector.extract_strided_slice %2 {offsets = [0, 2], sizes = [64, 36], strides = [1, 1]} : vector<64x50xbf16> to vector<64x36xbf16>
    %cst_12 = arith.constant dense<0.000000e+00> : vector<128x36xf32>
    %15 = tpu.matmul %13, %14, %cst_12 {dimension_numbers = #tpu.dot_dimension_numbers<[1], [0], [0], [1], [0, 0, 1, 1], [], []>} : vector<128x64xbf16>, vector<64x36xbf16>, vector<128x36xf32> -> vector<128x36xf32>
    %16 = arith.addf %11, %15 : vector<128x36xf32>
    %c3 = arith.constant 3 : index
    %c0_13 = arith.constant 0 : index
    %c0_14 = arith.constant 0 : index
    %17 = vector.load %arg1[%c3, %c0_13, %c0_14] : memref<9x128x64xbf16, #tpu.memory_space<vmem>>, vector<1x128x64xbf16>
    %18 = vector.shape_cast %17 : vector<1x128x64xbf16> to vector<128x64xbf16>
    %19 = vector.extract_strided_slice %2 {offsets = [0, 6], sizes = [64, 36], strides = [1, 1]} : vector<64x50xbf16> to vector<64x36xbf16>
    %cst_15 = arith.constant dense<0.000000e+00> : vector<128x36xf32>
    %20 = tpu.matmul %18, %19, %cst_15 {dimension_numbers = #tpu.dot_dimension_numbers<[1], [0], [0], [1], [0, 0, 1, 1], [], []>} : vector<128x64xbf16>, vector<64x36xbf16>, vector<128x36xf32> -> vector<128x36xf32>
    %21 = arith.addf %16, %20 : vector<128x36xf32>
    %c4 = arith.constant 4 : index
    %c0_16 = arith.constant 0 : index
    %c0_17 = arith.constant 0 : index
    %22 = vector.load %arg1[%c4, %c0_16, %c0_17] : memref<9x128x64xbf16, #tpu.memory_space<vmem>>, vector<1x128x64xbf16>
    %23 = vector.shape_cast %22 : vector<1x128x64xbf16> to vector<128x64xbf16>
    %24 = vector.extract_strided_slice %2 {offsets = [0, 7], sizes = [64, 36], strides = [1, 1]} : vector<64x50xbf16> to vector<64x36xbf16>
    %cst_18 = arith.constant dense<0.000000e+00> : vector<128x36xf32>
    %25 = tpu.matmul %23, %24, %cst_18 {dimension_numbers = #tpu.dot_dimension_numbers<[1], [0], [0], [1], [0, 0, 1, 1], [], []>} : vector<128x64xbf16>, vector<64x36xbf16>, vector<128x36xf32> -> vector<128x36xf32>
    %26 = arith.addf %21, %25 : vector<128x36xf32>
    %c5 = arith.constant 5 : index
    %c0_19 = arith.constant 0 : index
    %c0_20 = arith.constant 0 : index
    %27 = vector.load %arg1[%c5, %c0_19, %c0_20] : memref<9x128x64xbf16, #tpu.memory_space<vmem>>, vector<1x128x64xbf16>
    %28 = vector.shape_cast %27 : vector<1x128x64xbf16> to vector<128x64xbf16>
    %29 = vector.extract_strided_slice %2 {offsets = [0, 8], sizes = [64, 36], strides = [1, 1]} : vector<64x50xbf16> to vector<64x36xbf16>
    %cst_21 = arith.constant dense<0.000000e+00> : vector<128x36xf32>
    %30 = tpu.matmul %28, %29, %cst_21 {dimension_numbers = #tpu.dot_dimension_numbers<[1], [0], [0], [1], [0, 0, 1, 1], [], []>} : vector<128x64xbf16>, vector<64x36xbf16>, vector<128x36xf32> -> vector<128x36xf32>
    %31 = arith.addf %26, %30 : vector<128x36xf32>
    %c6 = arith.constant 6 : index
    %c0_22 = arith.constant 0 : index
    %c0_23 = arith.constant 0 : index
    %32 = vector.load %arg1[%c6, %c0_22, %c0_23] : memref<9x128x64xbf16, #tpu.memory_space<vmem>>, vector<1x128x64xbf16>
    %33 = vector.shape_cast %32 : vector<1x128x64xbf16> to vector<128x64xbf16>
    %34 = vector.extract_strided_slice %2 {offsets = [0, 12], sizes = [64, 36], strides = [1, 1]} : vector<64x50xbf16> to vector<64x36xbf16>
    %cst_24 = arith.constant dense<0.000000e+00> : vector<128x36xf32>
    %35 = tpu.matmul %33, %34, %cst_24 {dimension_numbers = #tpu.dot_dimension_numbers<[1], [0], [0], [1], [0, 0, 1, 1], [], []>} : vector<128x64xbf16>, vector<64x36xbf16>, vector<128x36xf32> -> vector<128x36xf32>
    %36 = arith.addf %31, %35 : vector<128x36xf32>
    %c7 = arith.constant 7 : index
    %c0_25 = arith.constant 0 : index
    %c0_26 = arith.constant 0 : index
    %37 = vector.load %arg1[%c7, %c0_25, %c0_26] : memref<9x128x64xbf16, #tpu.memory_space<vmem>>, vector<1x128x64xbf16>
    %38 = vector.shape_cast %37 : vector<1x128x64xbf16> to vector<128x64xbf16>
    %39 = vector.extract_strided_slice %2 {offsets = [0, 13], sizes = [64, 36], strides = [1, 1]} : vector<64x50xbf16> to vector<64x36xbf16>
    %cst_27 = arith.constant dense<0.000000e+00> : vector<128x36xf32>
    %40 = tpu.matmul %38, %39, %cst_27 {dimension_numbers = #tpu.dot_dimension_numbers<[1], [0], [0], [1], [0, 0, 1, 1], [], []>} : vector<128x64xbf16>, vector<64x36xbf16>, vector<128x36xf32> -> vector<128x36xf32>
    %41 = arith.addf %36, %40 : vector<128x36xf32>
    %c8 = arith.constant 8 : index
    %c0_28 = arith.constant 0 : index
    %c0_29 = arith.constant 0 : index
    %42 = vector.load %arg1[%c8, %c0_28, %c0_29] : memref<9x128x64xbf16, #tpu.memory_space<vmem>>, vector<1x128x64xbf16>
    %43 = vector.shape_cast %42 : vector<1x128x64xbf16> to vector<128x64xbf16>
    %44 = vector.extract_strided_slice %2 {offsets = [0, 14], sizes = [64, 36], strides = [1, 1]} : vector<64x50xbf16> to vector<64x36xbf16>
    %cst_30 = arith.constant dense<0.000000e+00> : vector<128x36xf32>
    %45 = tpu.matmul %43, %44, %cst_30 {dimension_numbers = #tpu.dot_dimension_numbers<[1], [0], [0], [1], [0, 0, 1, 1], [], []>} : vector<128x64xbf16>, vector<64x36xbf16>, vector<128x36xf32> -> vector<128x36xf32>
    %46 = arith.addf %41, %45 : vector<128x36xf32>
    %47 = vector.broadcast %0 : vector<1x36xf32> to vector<128x36xf32>
    %48 = arith.mulf %46, %47 : vector<128x36xf32>
    %c1_31 = arith.constant 1 : index
    %c0_32 = arith.constant 0 : index
    %c0_33 = arith.constant 0 : index
    %49 = vector.load %arg0[%c1_31, %c0_32, %c0_33] : memref<2x64x50xbf16, #tpu.memory_space<vmem>>, vector<1x64x50xbf16>
    %50 = vector.shape_cast %49 : vector<1x64x50xbf16> to vector<64x50xbf16>
    %c0_34 = arith.constant 0 : index
    %c0_35 = arith.constant 0 : index
    %c0_36 = arith.constant 0 : index
    %51 = vector.load %arg1[%c0_34, %c0_35, %c0_36] : memref<9x128x64xbf16, #tpu.memory_space<vmem>>, vector<1x128x64xbf16>
    %52 = vector.shape_cast %51 : vector<1x128x64xbf16> to vector<128x64xbf16>
    %53 = vector.extract_strided_slice %50 {offsets = [0, 0], sizes = [64, 36], strides = [1, 1]} : vector<64x50xbf16> to vector<64x36xbf16>
    %cst_37 = arith.constant dense<0.000000e+00> : vector<128x36xf32>
    %54 = tpu.matmul %52, %53, %cst_37 {dimension_numbers = #tpu.dot_dimension_numbers<[1], [0], [0], [1], [0, 0, 1, 1], [], []>} : vector<128x64xbf16>, vector<64x36xbf16>, vector<128x36xf32> -> vector<128x36xf32>
    %c1_38 = arith.constant 1 : index
    %c0_39 = arith.constant 0 : index
    %c0_40 = arith.constant 0 : index
    %55 = vector.load %arg1[%c1_38, %c0_39, %c0_40] : memref<9x128x64xbf16, #tpu.memory_space<vmem>>, vector<1x128x64xbf16>
    %56 = vector.shape_cast %55 : vector<1x128x64xbf16> to vector<128x64xbf16>
    %57 = vector.extract_strided_slice %50 {offsets = [0, 1], sizes = [64, 36], strides = [1, 1]} : vector<64x50xbf16> to vector<64x36xbf16>
    %cst_41 = arith.constant dense<0.000000e+00> : vector<128x36xf32>
    %58 = tpu.matmul %56, %57, %cst_41 {dimension_numbers = #tpu.dot_dimension_numbers<[1], [0], [0], [1], [0, 0, 1, 1], [], []>} : vector<128x64xbf16>, vector<64x36xbf16>, vector<128x36xf32> -> vector<128x36xf32>
    %59 = arith.addf %54, %58 : vector<128x36xf32>
    %c2_42 = arith.constant 2 : index
    %c0_43 = arith.constant 0 : index
    %c0_44 = arith.constant 0 : index
    %60 = vector.load %arg1[%c2_42, %c0_43, %c0_44] : memref<9x128x64xbf16, #tpu.memory_space<vmem>>, vector<1x128x64xbf16>
    %61 = vector.shape_cast %60 : vector<1x128x64xbf16> to vector<128x64xbf16>
    %62 = vector.extract_strided_slice %50 {offsets = [0, 2], sizes = [64, 36], strides = [1, 1]} : vector<64x50xbf16> to vector<64x36xbf16>
    %cst_45 = arith.constant dense<0.000000e+00> : vector<128x36xf32>
    %63 = tpu.matmul %61, %62, %cst_45 {dimension_numbers = #tpu.dot_dimension_numbers<[1], [0], [0], [1], [0, 0, 1, 1], [], []>} : vector<128x64xbf16>, vector<64x36xbf16>, vector<128x36xf32> -> vector<128x36xf32>
    %64 = arith.addf %59, %63 : vector<128x36xf32>
    %c3_46 = arith.constant 3 : index
    %c0_47 = arith.constant 0 : index
    %c0_48 = arith.constant 0 : index
    %65 = vector.load %arg1[%c3_46, %c0_47, %c0_48] : memref<9x128x64xbf16, #tpu.memory_space<vmem>>, vector<1x128x64xbf16>
    %66 = vector.shape_cast %65 : vector<1x128x64xbf16> to vector<128x64xbf16>
    %67 = vector.extract_strided_slice %50 {offsets = [0, 6], sizes = [64, 36], strides = [1, 1]} : vector<64x50xbf16> to vector<64x36xbf16>
    %cst_49 = arith.constant dense<0.000000e+00> : vector<128x36xf32>
    %68 = tpu.matmul %66, %67, %cst_49 {dimension_numbers = #tpu.dot_dimension_numbers<[1], [0], [0], [1], [0, 0, 1, 1], [], []>} : vector<128x64xbf16>, vector<64x36xbf16>, vector<128x36xf32> -> vector<128x36xf32>
    %69 = arith.addf %64, %68 : vector<128x36xf32>
    %c4_50 = arith.constant 4 : index
    %c0_51 = arith.constant 0 : index
    %c0_52 = arith.constant 0 : index
    %70 = vector.load %arg1[%c4_50, %c0_51, %c0_52] : memref<9x128x64xbf16, #tpu.memory_space<vmem>>, vector<1x128x64xbf16>
    %71 = vector.shape_cast %70 : vector<1x128x64xbf16> to vector<128x64xbf16>
    %72 = vector.extract_strided_slice %50 {offsets = [0, 7], sizes = [64, 36], strides = [1, 1]} : vector<64x50xbf16> to vector<64x36xbf16>
    %cst_53 = arith.constant dense<0.000000e+00> : vector<128x36xf32>
    %73 = tpu.matmul %71, %72, %cst_53 {dimension_numbers = #tpu.dot_dimension_numbers<[1], [0], [0], [1], [0, 0, 1, 1], [], []>} : vector<128x64xbf16>, vector<64x36xbf16>, vector<128x36xf32> -> vector<128x36xf32>
    %74 = arith.addf %69, %73 : vector<128x36xf32>
    %c5_54 = arith.constant 5 : index
    %c0_55 = arith.constant 0 : index
    %c0_56 = arith.constant 0 : index
    %75 = vector.load %arg1[%c5_54, %c0_55, %c0_56] : memref<9x128x64xbf16, #tpu.memory_space<vmem>>, vector<1x128x64xbf16>
    %76 = vector.shape_cast %75 : vector<1x128x64xbf16> to vector<128x64xbf16>
    %77 = vector.extract_strided_slice %50 {offsets = [0, 8], sizes = [64, 36], strides = [1, 1]} : vector<64x50xbf16> to vector<64x36xbf16>
    %cst_57 = arith.constant dense<0.000000e+00> : vector<128x36xf32>
    %78 = tpu.matmul %76, %77, %cst_57 {dimension_numbers = #tpu.dot_dimension_numbers<[1], [0], [0], [1], [0, 0, 1, 1], [], []>} : vector<128x64xbf16>, vector<64x36xbf16>, vector<128x36xf32> -> vector<128x36xf32>
    %79 = arith.addf %74, %78 : vector<128x36xf32>
    %c6_58 = arith.constant 6 : index
    %c0_59 = arith.constant 0 : index
    %c0_60 = arith.constant 0 : index
    %80 = vector.load %arg1[%c6_58, %c0_59, %c0_60] : memref<9x128x64xbf16, #tpu.memory_space<vmem>>, vector<1x128x64xbf16>
    %81 = vector.shape_cast %80 : vector<1x128x64xbf16> to vector<128x64xbf16>
    %82 = vector.extract_strided_slice %50 {offsets = [0, 12], sizes = [64, 36], strides = [1, 1]} : vector<64x50xbf16> to vector<64x36xbf16>
    %cst_61 = arith.constant dense<0.000000e+00> : vector<128x36xf32>
    %83 = tpu.matmul %81, %82, %cst_61 {dimension_numbers = #tpu.dot_dimension_numbers<[1], [0], [0], [1], [0, 0, 1, 1], [], []>} : vector<128x64xbf16>, vector<64x36xbf16>, vector<128x36xf32> -> vector<128x36xf32>
    %84 = arith.addf %79, %83 : vector<128x36xf32>
    %c7_62 = arith.constant 7 : index
    %c0_63 = arith.constant 0 : index
    %c0_64 = arith.constant 0 : index
    %85 = vector.load %arg1[%c7_62, %c0_63, %c0_64] : memref<9x128x64xbf16, #tpu.memory_space<vmem>>, vector<1x128x64xbf16>
    %86 = vector.shape_cast %85 : vector<1x128x64xbf16> to vector<128x64xbf16>
    %87 = vector.extract_strided_slice %50 {offsets = [0, 13], sizes = [64, 36], strides = [1, 1]} : vector<64x50xbf16> to vector<64x36xbf16>
    %cst_65 = arith.constant dense<0.000000e+00> : vector<128x36xf32>
    %88 = tpu.matmul %86, %87, %cst_65 {dimension_numbers = #tpu.dot_dimension_numbers<[1], [0], [0], [1], [0, 0, 1, 1], [], []>} : vector<128x64xbf16>, vector<64x36xbf16>, vector<128x36xf32> -> vector<128x36xf32>
    %89 = arith.addf %84, %88 : vector<128x36xf32>
    %c8_66 = arith.constant 8 : index
    %c0_67 = arith.constant 0 : index
    %c0_68 = arith.constant 0 : index
    %90 = vector.load %arg1[%c8_66, %c0_67, %c0_68] : memref<9x128x64xbf16, #tpu.memory_space<vmem>>, vector<1x128x64xbf16>
    %91 = vector.shape_cast %90 : vector<1x128x64xbf16> to vector<128x64xbf16>
    %92 = vector.extract_strided_slice %50 {offsets = [0, 14], sizes = [64, 36], strides = [1, 1]} : vector<64x50xbf16> to vector<64x36xbf16>
    %cst_69 = arith.constant dense<0.000000e+00> : vector<128x36xf32>
    %93 = tpu.matmul %91, %92, %cst_69 {dimension_numbers = #tpu.dot_dimension_numbers<[1], [0], [0], [1], [0, 0, 1, 1], [], []>} : vector<128x64xbf16>, vector<64x36xbf16>, vector<128x36xf32> -> vector<128x36xf32>
    %94 = arith.addf %89, %93 : vector<128x36xf32>
    %95 = vector.broadcast %0 : vector<1x36xf32> to vector<128x36xf32>
    %96 = arith.mulf %94, %95 : vector<128x36xf32>
    %cst_70 = arith.constant dense<0.000000e+00> : vector<128xf32>
    %97 = vector.multi_reduction <add>, %48, %cst_70 [1] : vector<128x36xf32> to vector<128xf32>
    %98 = vector.shape_cast %97 : vector<128xf32> to vector<128x1xf32>
    %cst_71 = arith.constant dense<0.000000e+00> : vector<128xf32>
    %99 = vector.multi_reduction <add>, %96, %cst_71 [1] : vector<128x36xf32> to vector<128xf32>
    %100 = vector.shape_cast %99 : vector<128xf32> to vector<128x1xf32>
    %101 = arith.addf %98, %100 : vector<128x1xf32>
    %102 = vector.extract_strided_slice %101 {offsets = [0, 0], sizes = [32, 1], strides = [1, 1]} : vector<128x1xf32> to vector<32x1xf32>
    %103 = vector.extract_strided_slice %101 {offsets = [32, 0], sizes = [32, 1], strides = [1, 1]} : vector<128x1xf32> to vector<32x1xf32>
    %104 = arith.addf %102, %103 : vector<32x1xf32>
    %105 = vector.extract_strided_slice %101 {offsets = [64, 0], sizes = [32, 1], strides = [1, 1]} : vector<128x1xf32> to vector<32x1xf32>
    %106 = arith.addf %104, %105 : vector<32x1xf32>
    %107 = vector.extract_strided_slice %101 {offsets = [96, 0], sizes = [32, 1], strides = [1, 1]} : vector<128x1xf32> to vector<32x1xf32>
    %108 = arith.addf %106, %107 : vector<32x1xf32>
    %cst_72 = arith.constant 7.812500e-03 : f32
    %109 = vector.broadcast %cst_72 : f32 to vector<32x1xf32>
    %110 = arith.mulf %108, %109 : vector<32x1xf32>
    %111 = tpu.concatenate %110, %110, %110, %110 in 0 : vector<32x1xf32>, vector<32x1xf32>, vector<32x1xf32>, vector<32x1xf32> -> vector<128x1xf32>
    %112 = vector.broadcast %111 : vector<128x1xf32> to vector<128x36xf32>
    %113 = arith.subf %48, %112 : vector<128x36xf32>
    %114 = vector.broadcast %0 : vector<1x36xf32> to vector<128x36xf32>
    %115 = arith.mulf %113, %114 : vector<128x36xf32>
    %116 = arith.mulf %115, %115 : vector<128x36xf32>
    %cst_73 = arith.constant dense<0.000000e+00> : vector<128xf32>
    %117 = vector.multi_reduction <add>, %116, %cst_73 [1] : vector<128x36xf32> to vector<128xf32>
    %118 = vector.shape_cast %117 : vector<128xf32> to vector<128x1xf32>
    %119 = vector.broadcast %111 : vector<128x1xf32> to vector<128x36xf32>
    %120 = arith.subf %96, %119 : vector<128x36xf32>
    %121 = vector.broadcast %0 : vector<1x36xf32> to vector<128x36xf32>
    %122 = arith.mulf %120, %121 : vector<128x36xf32>
    %123 = arith.mulf %122, %122 : vector<128x36xf32>
    %cst_74 = arith.constant dense<0.000000e+00> : vector<128xf32>
    %124 = vector.multi_reduction <add>, %123, %cst_74 [1] : vector<128x36xf32> to vector<128xf32>
    %125 = vector.shape_cast %124 : vector<128xf32> to vector<128x1xf32>
    %126 = arith.addf %118, %125 : vector<128x1xf32>
    %127 = vector.extract_strided_slice %126 {offsets = [0, 0], sizes = [32, 1], strides = [1, 1]} : vector<128x1xf32> to vector<32x1xf32>
    %128 = vector.extract_strided_slice %126 {offsets = [32, 0], sizes = [32, 1], strides = [1, 1]} : vector<128x1xf32> to vector<32x1xf32>
    %129 = arith.addf %127, %128 : vector<32x1xf32>
    %130 = vector.extract_strided_slice %126 {offsets = [64, 0], sizes = [32, 1], strides = [1, 1]} : vector<128x1xf32> to vector<32x1xf32>
    %131 = arith.addf %129, %130 : vector<32x1xf32>
    %132 = vector.extract_strided_slice %126 {offsets = [96, 0], sizes = [32, 1], strides = [1, 1]} : vector<128x1xf32> to vector<32x1xf32>
    %133 = arith.addf %131, %132 : vector<32x1xf32>
    %cst_75 = arith.constant 7.812500e-03 : f32
    %134 = vector.broadcast %cst_75 : f32 to vector<32x1xf32>
    %135 = arith.mulf %133, %134 : vector<32x1xf32>
    %c0_76 = arith.constant 0 : index
    %c0_77 = arith.constant 0 : index
    %136 = vector.load %arg2[%c0_76, %c0_77] : memref<32x1xf32, #tpu.memory_space<vmem>>, vector<32x1xf32>
    %cst_78 = arith.constant 9.99999974E-6 : f32
    %137 = vector.broadcast %cst_78 : f32 to vector<32x1xf32>
    %138 = arith.addf %135, %137 : vector<32x1xf32>
    %139 = math.rsqrt %138 : vector<32x1xf32>
    %140 = arith.mulf %136, %139 : vector<32x1xf32>
    %141 = tpu.concatenate %140, %140, %140, %140 in 0 : vector<32x1xf32>, vector<32x1xf32>, vector<32x1xf32>, vector<32x1xf32> -> vector<128x1xf32>
    %c0_79 = arith.constant 0 : index
    %c0_80 = arith.constant 0 : index
    %142 = vector.load %arg3[%c0_79, %c0_80] : memref<32x1xf32, #tpu.memory_space<vmem>>, vector<32x1xf32>
    %143 = tpu.concatenate %142, %142, %142, %142 in 0 : vector<32x1xf32>, vector<32x1xf32>, vector<32x1xf32>, vector<32x1xf32> -> vector<128x1xf32>
    %144 = vector.broadcast %111 : vector<128x1xf32> to vector<128x36xf32>
    %145 = arith.subf %48, %144 : vector<128x36xf32>
    %146 = vector.broadcast %141 : vector<128x1xf32> to vector<128x36xf32>
    %147 = arith.mulf %145, %146 : vector<128x36xf32>
    %148 = vector.broadcast %143 : vector<128x1xf32> to vector<128x36xf32>
    %149 = arith.addf %147, %148 : vector<128x36xf32>
    %cst_81 = arith.constant 0.000000e+00 : f32
    %150 = vector.broadcast %cst_81 : f32 to vector<128x36xf32>
    %151 = arith.maximumf %149, %150 : vector<128x36xf32>
    %152 = arith.truncf %151 : vector<128x36xf32> to vector<128x36xbf16>
    %c0_82 = arith.constant 0 : index
    %c0_83 = arith.constant 0 : index
    %c0_84 = arith.constant 0 : index
    %153 = vector.load %arg5[%c0_82, %c0_83, %c0_84] : memref<2x128x36xbf16, #tpu.memory_space<vmem>>, vector<1x128x36xbf16>
    %154 = vector.shape_cast %153 : vector<1x128x36xbf16> to vector<128x36xbf16>
    %155 = vector.shape_cast %152 : vector<128x36xbf16> to vector<1x128x36xbf16>
    tpu.vector_store %arg5[%c0_82, %c0_83, %c0_84], %155 {strides = array<i32>} : memref<2x128x36xbf16, #tpu.memory_space<vmem>>, vector<1x128x36xbf16>,
    %156 = vector.broadcast %111 : vector<128x1xf32> to vector<128x36xf32>
    %157 = arith.subf %96, %156 : vector<128x36xf32>
    %158 = vector.broadcast %141 : vector<128x1xf32> to vector<128x36xf32>
    %159 = arith.mulf %157, %158 : vector<128x36xf32>
    %160 = vector.broadcast %143 : vector<128x1xf32> to vector<128x36xf32>
    %161 = arith.addf %159, %160 : vector<128x36xf32>
    %cst_85 = arith.constant 0.000000e+00 : f32
    %162 = vector.broadcast %cst_85 : f32 to vector<128x36xf32>
    %163 = arith.maximumf %161, %162 : vector<128x36xf32>
    %164 = arith.truncf %163 : vector<128x36xf32> to vector<128x36xbf16>
    %c1_86 = arith.constant 1 : index
    %c0_87 = arith.constant 0 : index
    %c0_88 = arith.constant 0 : index
    %165 = vector.load %arg5[%c1_86, %c0_87, %c0_88] : memref<2x128x36xbf16, #tpu.memory_space<vmem>>, vector<1x128x36xbf16>
    %166 = vector.shape_cast %165 : vector<1x128x36xbf16> to vector<128x36xbf16>
    %167 = vector.shape_cast %164 : vector<128x36xbf16> to vector<1x128x36xbf16>
    tpu.vector_store %arg5[%c1_86, %c0_87, %c0_88], %167 {strides = array<i32>} : memref<2x128x36xbf16, #tpu.memory_space<vmem>>, vector<1x128x36xbf16>,
    return
  }
}

module attributes {stable_mosaic.version = 11 : i64} {
  func.func @kernel(%arg0: memref<2x32x122xbf16, #tpu.memory_space<vmem>>, %arg1: memref<9x64x32xbf16, #tpu.memory_space<vmem>>, %arg2: memref<16x1xf32, #tpu.memory_space<vmem>>, %arg3: memref<16x1xf32, #tpu.memory_space<vmem>>, %arg4: memref<1x100xf32, #tpu.memory_space<vmem>>, %arg5: memref<2x64x100xbf16, #tpu.memory_space<vmem>>) attributes {dimension_semantics = [], scalar_prefetch = 0 : i64, scratch_operands = 0 : i64, tpu.core_type = #tpu.core_type<tc>} {
    %c0 = arith.constant 0 : index
    %c0_0 = arith.constant 0 : index
    %0 = vector.load %arg4[%c0, %c0_0] : memref<1x100xf32, #tpu.memory_space<vmem>>, vector<1x100xf32>
    %c0_1 = arith.constant 0 : index
    %c0_2 = arith.constant 0 : index
    %c0_3 = arith.constant 0 : index
    %1 = vector.load %arg0[%c0_1, %c0_2, %c0_3] : memref<2x32x122xbf16, #tpu.memory_space<vmem>>, vector<1x32x122xbf16>
    %2 = vector.shape_cast %1 : vector<1x32x122xbf16> to vector<32x122xbf16>
    %c0_4 = arith.constant 0 : index
    %c0_5 = arith.constant 0 : index
    %c0_6 = arith.constant 0 : index
    %3 = vector.load %arg1[%c0_4, %c0_5, %c0_6] : memref<9x64x32xbf16, #tpu.memory_space<vmem>>, vector<1x64x32xbf16>
    %4 = vector.shape_cast %3 : vector<1x64x32xbf16> to vector<64x32xbf16>
    %5 = vector.extract_strided_slice %2 {offsets = [0, 0], sizes = [32, 100], strides = [1, 1]} : vector<32x122xbf16> to vector<32x100xbf16>
    %cst = arith.constant dense<0.000000e+00> : vector<64x100xf32>
    %6 = tpu.matmul %4, %5, %cst {dimension_numbers = #tpu.dot_dimension_numbers<[1], [0], [0], [1], [0, 0, 1, 1], [], []>} : vector<64x32xbf16>, vector<32x100xbf16>, vector<64x100xf32> -> vector<64x100xf32>
    %c1 = arith.constant 1 : index
    %c0_7 = arith.constant 0 : index
    %c0_8 = arith.constant 0 : index
    %7 = vector.load %arg1[%c1, %c0_7, %c0_8] : memref<9x64x32xbf16, #tpu.memory_space<vmem>>, vector<1x64x32xbf16>
    %8 = vector.shape_cast %7 : vector<1x64x32xbf16> to vector<64x32xbf16>
    %9 = vector.extract_strided_slice %2 {offsets = [0, 1], sizes = [32, 100], strides = [1, 1]} : vector<32x122xbf16> to vector<32x100xbf16>
    %cst_9 = arith.constant dense<0.000000e+00> : vector<64x100xf32>
    %10 = tpu.matmul %8, %9, %cst_9 {dimension_numbers = #tpu.dot_dimension_numbers<[1], [0], [0], [1], [0, 0, 1, 1], [], []>} : vector<64x32xbf16>, vector<32x100xbf16>, vector<64x100xf32> -> vector<64x100xf32>
    %11 = arith.addf %6, %10 : vector<64x100xf32>
    %c2 = arith.constant 2 : index
    %c0_10 = arith.constant 0 : index
    %c0_11 = arith.constant 0 : index
    %12 = vector.load %arg1[%c2, %c0_10, %c0_11] : memref<9x64x32xbf16, #tpu.memory_space<vmem>>, vector<1x64x32xbf16>
    %13 = vector.shape_cast %12 : vector<1x64x32xbf16> to vector<64x32xbf16>
    %14 = vector.extract_strided_slice %2 {offsets = [0, 2], sizes = [32, 100], strides = [1, 1]} : vector<32x122xbf16> to vector<32x100xbf16>
    %cst_12 = arith.constant dense<0.000000e+00> : vector<64x100xf32>
    %15 = tpu.matmul %13, %14, %cst_12 {dimension_numbers = #tpu.dot_dimension_numbers<[1], [0], [0], [1], [0, 0, 1, 1], [], []>} : vector<64x32xbf16>, vector<32x100xbf16>, vector<64x100xf32> -> vector<64x100xf32>
    %16 = arith.addf %11, %15 : vector<64x100xf32>
    %c3 = arith.constant 3 : index
    %c0_13 = arith.constant 0 : index
    %c0_14 = arith.constant 0 : index
    %17 = vector.load %arg1[%c3, %c0_13, %c0_14] : memref<9x64x32xbf16, #tpu.memory_space<vmem>>, vector<1x64x32xbf16>
    %18 = vector.shape_cast %17 : vector<1x64x32xbf16> to vector<64x32xbf16>
    %19 = vector.extract_strided_slice %2 {offsets = [0, 10], sizes = [32, 100], strides = [1, 1]} : vector<32x122xbf16> to vector<32x100xbf16>
    %cst_15 = arith.constant dense<0.000000e+00> : vector<64x100xf32>
    %20 = tpu.matmul %18, %19, %cst_15 {dimension_numbers = #tpu.dot_dimension_numbers<[1], [0], [0], [1], [0, 0, 1, 1], [], []>} : vector<64x32xbf16>, vector<32x100xbf16>, vector<64x100xf32> -> vector<64x100xf32>
    %21 = arith.addf %16, %20 : vector<64x100xf32>
    %c4 = arith.constant 4 : index
    %c0_16 = arith.constant 0 : index
    %c0_17 = arith.constant 0 : index
    %22 = vector.load %arg1[%c4, %c0_16, %c0_17] : memref<9x64x32xbf16, #tpu.memory_space<vmem>>, vector<1x64x32xbf16>
    %23 = vector.shape_cast %22 : vector<1x64x32xbf16> to vector<64x32xbf16>
    %24 = vector.extract_strided_slice %2 {offsets = [0, 11], sizes = [32, 100], strides = [1, 1]} : vector<32x122xbf16> to vector<32x100xbf16>
    %cst_18 = arith.constant dense<0.000000e+00> : vector<64x100xf32>
    %25 = tpu.matmul %23, %24, %cst_18 {dimension_numbers = #tpu.dot_dimension_numbers<[1], [0], [0], [1], [0, 0, 1, 1], [], []>} : vector<64x32xbf16>, vector<32x100xbf16>, vector<64x100xf32> -> vector<64x100xf32>
    %26 = arith.addf %21, %25 : vector<64x100xf32>
    %c5 = arith.constant 5 : index
    %c0_19 = arith.constant 0 : index
    %c0_20 = arith.constant 0 : index
    %27 = vector.load %arg1[%c5, %c0_19, %c0_20] : memref<9x64x32xbf16, #tpu.memory_space<vmem>>, vector<1x64x32xbf16>
    %28 = vector.shape_cast %27 : vector<1x64x32xbf16> to vector<64x32xbf16>
    %29 = vector.extract_strided_slice %2 {offsets = [0, 12], sizes = [32, 100], strides = [1, 1]} : vector<32x122xbf16> to vector<32x100xbf16>
    %cst_21 = arith.constant dense<0.000000e+00> : vector<64x100xf32>
    %30 = tpu.matmul %28, %29, %cst_21 {dimension_numbers = #tpu.dot_dimension_numbers<[1], [0], [0], [1], [0, 0, 1, 1], [], []>} : vector<64x32xbf16>, vector<32x100xbf16>, vector<64x100xf32> -> vector<64x100xf32>
    %31 = arith.addf %26, %30 : vector<64x100xf32>
    %c6 = arith.constant 6 : index
    %c0_22 = arith.constant 0 : index
    %c0_23 = arith.constant 0 : index
    %32 = vector.load %arg1[%c6, %c0_22, %c0_23] : memref<9x64x32xbf16, #tpu.memory_space<vmem>>, vector<1x64x32xbf16>
    %33 = vector.shape_cast %32 : vector<1x64x32xbf16> to vector<64x32xbf16>
    %34 = vector.extract_strided_slice %2 {offsets = [0, 20], sizes = [32, 100], strides = [1, 1]} : vector<32x122xbf16> to vector<32x100xbf16>
    %cst_24 = arith.constant dense<0.000000e+00> : vector<64x100xf32>
    %35 = tpu.matmul %33, %34, %cst_24 {dimension_numbers = #tpu.dot_dimension_numbers<[1], [0], [0], [1], [0, 0, 1, 1], [], []>} : vector<64x32xbf16>, vector<32x100xbf16>, vector<64x100xf32> -> vector<64x100xf32>
    %36 = arith.addf %31, %35 : vector<64x100xf32>
    %c7 = arith.constant 7 : index
    %c0_25 = arith.constant 0 : index
    %c0_26 = arith.constant 0 : index
    %37 = vector.load %arg1[%c7, %c0_25, %c0_26] : memref<9x64x32xbf16, #tpu.memory_space<vmem>>, vector<1x64x32xbf16>
    %38 = vector.shape_cast %37 : vector<1x64x32xbf16> to vector<64x32xbf16>
    %39 = vector.extract_strided_slice %2 {offsets = [0, 21], sizes = [32, 100], strides = [1, 1]} : vector<32x122xbf16> to vector<32x100xbf16>
    %cst_27 = arith.constant dense<0.000000e+00> : vector<64x100xf32>
    %40 = tpu.matmul %38, %39, %cst_27 {dimension_numbers = #tpu.dot_dimension_numbers<[1], [0], [0], [1], [0, 0, 1, 1], [], []>} : vector<64x32xbf16>, vector<32x100xbf16>, vector<64x100xf32> -> vector<64x100xf32>
    %41 = arith.addf %36, %40 : vector<64x100xf32>
    %c8 = arith.constant 8 : index
    %c0_28 = arith.constant 0 : index
    %c0_29 = arith.constant 0 : index
    %42 = vector.load %arg1[%c8, %c0_28, %c0_29] : memref<9x64x32xbf16, #tpu.memory_space<vmem>>, vector<1x64x32xbf16>
    %43 = vector.shape_cast %42 : vector<1x64x32xbf16> to vector<64x32xbf16>
    %44 = vector.extract_strided_slice %2 {offsets = [0, 22], sizes = [32, 100], strides = [1, 1]} : vector<32x122xbf16> to vector<32x100xbf16>
    %cst_30 = arith.constant dense<0.000000e+00> : vector<64x100xf32>
    %45 = tpu.matmul %43, %44, %cst_30 {dimension_numbers = #tpu.dot_dimension_numbers<[1], [0], [0], [1], [0, 0, 1, 1], [], []>} : vector<64x32xbf16>, vector<32x100xbf16>, vector<64x100xf32> -> vector<64x100xf32>
    %46 = arith.addf %41, %45 : vector<64x100xf32>
    %47 = vector.broadcast %0 : vector<1x100xf32> to vector<64x100xf32>
    %48 = arith.mulf %46, %47 : vector<64x100xf32>
    %c1_31 = arith.constant 1 : index
    %c0_32 = arith.constant 0 : index
    %c0_33 = arith.constant 0 : index
    %49 = vector.load %arg0[%c1_31, %c0_32, %c0_33] : memref<2x32x122xbf16, #tpu.memory_space<vmem>>, vector<1x32x122xbf16>
    %50 = vector.shape_cast %49 : vector<1x32x122xbf16> to vector<32x122xbf16>
    %c0_34 = arith.constant 0 : index
    %c0_35 = arith.constant 0 : index
    %c0_36 = arith.constant 0 : index
    %51 = vector.load %arg1[%c0_34, %c0_35, %c0_36] : memref<9x64x32xbf16, #tpu.memory_space<vmem>>, vector<1x64x32xbf16>
    %52 = vector.shape_cast %51 : vector<1x64x32xbf16> to vector<64x32xbf16>
    %53 = vector.extract_strided_slice %50 {offsets = [0, 0], sizes = [32, 100], strides = [1, 1]} : vector<32x122xbf16> to vector<32x100xbf16>
    %cst_37 = arith.constant dense<0.000000e+00> : vector<64x100xf32>
    %54 = tpu.matmul %52, %53, %cst_37 {dimension_numbers = #tpu.dot_dimension_numbers<[1], [0], [0], [1], [0, 0, 1, 1], [], []>} : vector<64x32xbf16>, vector<32x100xbf16>, vector<64x100xf32> -> vector<64x100xf32>
    %c1_38 = arith.constant 1 : index
    %c0_39 = arith.constant 0 : index
    %c0_40 = arith.constant 0 : index
    %55 = vector.load %arg1[%c1_38, %c0_39, %c0_40] : memref<9x64x32xbf16, #tpu.memory_space<vmem>>, vector<1x64x32xbf16>
    %56 = vector.shape_cast %55 : vector<1x64x32xbf16> to vector<64x32xbf16>
    %57 = vector.extract_strided_slice %50 {offsets = [0, 1], sizes = [32, 100], strides = [1, 1]} : vector<32x122xbf16> to vector<32x100xbf16>
    %cst_41 = arith.constant dense<0.000000e+00> : vector<64x100xf32>
    %58 = tpu.matmul %56, %57, %cst_41 {dimension_numbers = #tpu.dot_dimension_numbers<[1], [0], [0], [1], [0, 0, 1, 1], [], []>} : vector<64x32xbf16>, vector<32x100xbf16>, vector<64x100xf32> -> vector<64x100xf32>
    %59 = arith.addf %54, %58 : vector<64x100xf32>
    %c2_42 = arith.constant 2 : index
    %c0_43 = arith.constant 0 : index
    %c0_44 = arith.constant 0 : index
    %60 = vector.load %arg1[%c2_42, %c0_43, %c0_44] : memref<9x64x32xbf16, #tpu.memory_space<vmem>>, vector<1x64x32xbf16>
    %61 = vector.shape_cast %60 : vector<1x64x32xbf16> to vector<64x32xbf16>
    %62 = vector.extract_strided_slice %50 {offsets = [0, 2], sizes = [32, 100], strides = [1, 1]} : vector<32x122xbf16> to vector<32x100xbf16>
    %cst_45 = arith.constant dense<0.000000e+00> : vector<64x100xf32>
    %63 = tpu.matmul %61, %62, %cst_45 {dimension_numbers = #tpu.dot_dimension_numbers<[1], [0], [0], [1], [0, 0, 1, 1], [], []>} : vector<64x32xbf16>, vector<32x100xbf16>, vector<64x100xf32> -> vector<64x100xf32>
    %64 = arith.addf %59, %63 : vector<64x100xf32>
    %c3_46 = arith.constant 3 : index
    %c0_47 = arith.constant 0 : index
    %c0_48 = arith.constant 0 : index
    %65 = vector.load %arg1[%c3_46, %c0_47, %c0_48] : memref<9x64x32xbf16, #tpu.memory_space<vmem>>, vector<1x64x32xbf16>
    %66 = vector.shape_cast %65 : vector<1x64x32xbf16> to vector<64x32xbf16>
    %67 = vector.extract_strided_slice %50 {offsets = [0, 10], sizes = [32, 100], strides = [1, 1]} : vector<32x122xbf16> to vector<32x100xbf16>
    %cst_49 = arith.constant dense<0.000000e+00> : vector<64x100xf32>
    %68 = tpu.matmul %66, %67, %cst_49 {dimension_numbers = #tpu.dot_dimension_numbers<[1], [0], [0], [1], [0, 0, 1, 1], [], []>} : vector<64x32xbf16>, vector<32x100xbf16>, vector<64x100xf32> -> vector<64x100xf32>
    %69 = arith.addf %64, %68 : vector<64x100xf32>
    %c4_50 = arith.constant 4 : index
    %c0_51 = arith.constant 0 : index
    %c0_52 = arith.constant 0 : index
    %70 = vector.load %arg1[%c4_50, %c0_51, %c0_52] : memref<9x64x32xbf16, #tpu.memory_space<vmem>>, vector<1x64x32xbf16>
    %71 = vector.shape_cast %70 : vector<1x64x32xbf16> to vector<64x32xbf16>
    %72 = vector.extract_strided_slice %50 {offsets = [0, 11], sizes = [32, 100], strides = [1, 1]} : vector<32x122xbf16> to vector<32x100xbf16>
    %cst_53 = arith.constant dense<0.000000e+00> : vector<64x100xf32>
    %73 = tpu.matmul %71, %72, %cst_53 {dimension_numbers = #tpu.dot_dimension_numbers<[1], [0], [0], [1], [0, 0, 1, 1], [], []>} : vector<64x32xbf16>, vector<32x100xbf16>, vector<64x100xf32> -> vector<64x100xf32>
    %74 = arith.addf %69, %73 : vector<64x100xf32>
    %c5_54 = arith.constant 5 : index
    %c0_55 = arith.constant 0 : index
    %c0_56 = arith.constant 0 : index
    %75 = vector.load %arg1[%c5_54, %c0_55, %c0_56] : memref<9x64x32xbf16, #tpu.memory_space<vmem>>, vector<1x64x32xbf16>
    %76 = vector.shape_cast %75 : vector<1x64x32xbf16> to vector<64x32xbf16>
    %77 = vector.extract_strided_slice %50 {offsets = [0, 12], sizes = [32, 100], strides = [1, 1]} : vector<32x122xbf16> to vector<32x100xbf16>
    %cst_57 = arith.constant dense<0.000000e+00> : vector<64x100xf32>
    %78 = tpu.matmul %76, %77, %cst_57 {dimension_numbers = #tpu.dot_dimension_numbers<[1], [0], [0], [1], [0, 0, 1, 1], [], []>} : vector<64x32xbf16>, vector<32x100xbf16>, vector<64x100xf32> -> vector<64x100xf32>
    %79 = arith.addf %74, %78 : vector<64x100xf32>
    %c6_58 = arith.constant 6 : index
    %c0_59 = arith.constant 0 : index
    %c0_60 = arith.constant 0 : index
    %80 = vector.load %arg1[%c6_58, %c0_59, %c0_60] : memref<9x64x32xbf16, #tpu.memory_space<vmem>>, vector<1x64x32xbf16>
    %81 = vector.shape_cast %80 : vector<1x64x32xbf16> to vector<64x32xbf16>
    %82 = vector.extract_strided_slice %50 {offsets = [0, 20], sizes = [32, 100], strides = [1, 1]} : vector<32x122xbf16> to vector<32x100xbf16>
    %cst_61 = arith.constant dense<0.000000e+00> : vector<64x100xf32>
    %83 = tpu.matmul %81, %82, %cst_61 {dimension_numbers = #tpu.dot_dimension_numbers<[1], [0], [0], [1], [0, 0, 1, 1], [], []>} : vector<64x32xbf16>, vector<32x100xbf16>, vector<64x100xf32> -> vector<64x100xf32>
    %84 = arith.addf %79, %83 : vector<64x100xf32>
    %c7_62 = arith.constant 7 : index
    %c0_63 = arith.constant 0 : index
    %c0_64 = arith.constant 0 : index
    %85 = vector.load %arg1[%c7_62, %c0_63, %c0_64] : memref<9x64x32xbf16, #tpu.memory_space<vmem>>, vector<1x64x32xbf16>
    %86 = vector.shape_cast %85 : vector<1x64x32xbf16> to vector<64x32xbf16>
    %87 = vector.extract_strided_slice %50 {offsets = [0, 21], sizes = [32, 100], strides = [1, 1]} : vector<32x122xbf16> to vector<32x100xbf16>
    %cst_65 = arith.constant dense<0.000000e+00> : vector<64x100xf32>
    %88 = tpu.matmul %86, %87, %cst_65 {dimension_numbers = #tpu.dot_dimension_numbers<[1], [0], [0], [1], [0, 0, 1, 1], [], []>} : vector<64x32xbf16>, vector<32x100xbf16>, vector<64x100xf32> -> vector<64x100xf32>
    %89 = arith.addf %84, %88 : vector<64x100xf32>
    %c8_66 = arith.constant 8 : index
    %c0_67 = arith.constant 0 : index
    %c0_68 = arith.constant 0 : index
    %90 = vector.load %arg1[%c8_66, %c0_67, %c0_68] : memref<9x64x32xbf16, #tpu.memory_space<vmem>>, vector<1x64x32xbf16>
    %91 = vector.shape_cast %90 : vector<1x64x32xbf16> to vector<64x32xbf16>
    %92 = vector.extract_strided_slice %50 {offsets = [0, 22], sizes = [32, 100], strides = [1, 1]} : vector<32x122xbf16> to vector<32x100xbf16>
    %cst_69 = arith.constant dense<0.000000e+00> : vector<64x100xf32>
    %93 = tpu.matmul %91, %92, %cst_69 {dimension_numbers = #tpu.dot_dimension_numbers<[1], [0], [0], [1], [0, 0, 1, 1], [], []>} : vector<64x32xbf16>, vector<32x100xbf16>, vector<64x100xf32> -> vector<64x100xf32>
    %94 = arith.addf %89, %93 : vector<64x100xf32>
    %95 = vector.broadcast %0 : vector<1x100xf32> to vector<64x100xf32>
    %96 = arith.mulf %94, %95 : vector<64x100xf32>
    %cst_70 = arith.constant dense<0.000000e+00> : vector<64xf32>
    %97 = vector.multi_reduction <add>, %48, %cst_70 [1] : vector<64x100xf32> to vector<64xf32>
    %98 = vector.shape_cast %97 : vector<64xf32> to vector<64x1xf32>
    %cst_71 = arith.constant dense<0.000000e+00> : vector<64xf32>
    %99 = vector.multi_reduction <add>, %96, %cst_71 [1] : vector<64x100xf32> to vector<64xf32>
    %100 = vector.shape_cast %99 : vector<64xf32> to vector<64x1xf32>
    %101 = arith.addf %98, %100 : vector<64x1xf32>
    %102 = vector.extract_strided_slice %101 {offsets = [0, 0], sizes = [16, 1], strides = [1, 1]} : vector<64x1xf32> to vector<16x1xf32>
    %103 = vector.extract_strided_slice %101 {offsets = [16, 0], sizes = [16, 1], strides = [1, 1]} : vector<64x1xf32> to vector<16x1xf32>
    %104 = arith.addf %102, %103 : vector<16x1xf32>
    %105 = vector.extract_strided_slice %101 {offsets = [32, 0], sizes = [16, 1], strides = [1, 1]} : vector<64x1xf32> to vector<16x1xf32>
    %106 = arith.addf %104, %105 : vector<16x1xf32>
    %107 = vector.extract_strided_slice %101 {offsets = [48, 0], sizes = [16, 1], strides = [1, 1]} : vector<64x1xf32> to vector<16x1xf32>
    %108 = arith.addf %106, %107 : vector<16x1xf32>
    %cst_72 = arith.constant 0.001953125 : f32
    %109 = vector.broadcast %cst_72 : f32 to vector<16x1xf32>
    %110 = arith.mulf %108, %109 : vector<16x1xf32>
    %111 = tpu.concatenate %110, %110, %110, %110 in 0 : vector<16x1xf32>, vector<16x1xf32>, vector<16x1xf32>, vector<16x1xf32> -> vector<64x1xf32>
    %112 = vector.broadcast %111 : vector<64x1xf32> to vector<64x100xf32>
    %113 = arith.subf %48, %112 : vector<64x100xf32>
    %114 = vector.broadcast %0 : vector<1x100xf32> to vector<64x100xf32>
    %115 = arith.mulf %113, %114 : vector<64x100xf32>
    %116 = arith.mulf %115, %115 : vector<64x100xf32>
    %cst_73 = arith.constant dense<0.000000e+00> : vector<64xf32>
    %117 = vector.multi_reduction <add>, %116, %cst_73 [1] : vector<64x100xf32> to vector<64xf32>
    %118 = vector.shape_cast %117 : vector<64xf32> to vector<64x1xf32>
    %119 = vector.broadcast %111 : vector<64x1xf32> to vector<64x100xf32>
    %120 = arith.subf %96, %119 : vector<64x100xf32>
    %121 = vector.broadcast %0 : vector<1x100xf32> to vector<64x100xf32>
    %122 = arith.mulf %120, %121 : vector<64x100xf32>
    %123 = arith.mulf %122, %122 : vector<64x100xf32>
    %cst_74 = arith.constant dense<0.000000e+00> : vector<64xf32>
    %124 = vector.multi_reduction <add>, %123, %cst_74 [1] : vector<64x100xf32> to vector<64xf32>
    %125 = vector.shape_cast %124 : vector<64xf32> to vector<64x1xf32>
    %126 = arith.addf %118, %125 : vector<64x1xf32>
    %127 = vector.extract_strided_slice %126 {offsets = [0, 0], sizes = [16, 1], strides = [1, 1]} : vector<64x1xf32> to vector<16x1xf32>
    %128 = vector.extract_strided_slice %126 {offsets = [16, 0], sizes = [16, 1], strides = [1, 1]} : vector<64x1xf32> to vector<16x1xf32>
    %129 = arith.addf %127, %128 : vector<16x1xf32>
    %130 = vector.extract_strided_slice %126 {offsets = [32, 0], sizes = [16, 1], strides = [1, 1]} : vector<64x1xf32> to vector<16x1xf32>
    %131 = arith.addf %129, %130 : vector<16x1xf32>
    %132 = vector.extract_strided_slice %126 {offsets = [48, 0], sizes = [16, 1], strides = [1, 1]} : vector<64x1xf32> to vector<16x1xf32>
    %133 = arith.addf %131, %132 : vector<16x1xf32>
    %cst_75 = arith.constant 0.001953125 : f32
    %134 = vector.broadcast %cst_75 : f32 to vector<16x1xf32>
    %135 = arith.mulf %133, %134 : vector<16x1xf32>
    %c0_76 = arith.constant 0 : index
    %c0_77 = arith.constant 0 : index
    %136 = vector.load %arg2[%c0_76, %c0_77] : memref<16x1xf32, #tpu.memory_space<vmem>>, vector<16x1xf32>
    %cst_78 = arith.constant 9.99999974E-6 : f32
    %137 = vector.broadcast %cst_78 : f32 to vector<16x1xf32>
    %138 = arith.addf %135, %137 : vector<16x1xf32>
    %139 = math.rsqrt %138 : vector<16x1xf32>
    %140 = arith.mulf %136, %139 : vector<16x1xf32>
    %141 = tpu.concatenate %140, %140, %140, %140 in 0 : vector<16x1xf32>, vector<16x1xf32>, vector<16x1xf32>, vector<16x1xf32> -> vector<64x1xf32>
    %c0_79 = arith.constant 0 : index
    %c0_80 = arith.constant 0 : index
    %142 = vector.load %arg3[%c0_79, %c0_80] : memref<16x1xf32, #tpu.memory_space<vmem>>, vector<16x1xf32>
    %143 = tpu.concatenate %142, %142, %142, %142 in 0 : vector<16x1xf32>, vector<16x1xf32>, vector<16x1xf32>, vector<16x1xf32> -> vector<64x1xf32>
    %144 = vector.broadcast %111 : vector<64x1xf32> to vector<64x100xf32>
    %145 = arith.subf %48, %144 : vector<64x100xf32>
    %146 = vector.broadcast %141 : vector<64x1xf32> to vector<64x100xf32>
    %147 = arith.mulf %145, %146 : vector<64x100xf32>
    %148 = vector.broadcast %143 : vector<64x1xf32> to vector<64x100xf32>
    %149 = arith.addf %147, %148 : vector<64x100xf32>
    %cst_81 = arith.constant 0.000000e+00 : f32
    %150 = vector.broadcast %cst_81 : f32 to vector<64x100xf32>
    %151 = arith.maximumf %149, %150 : vector<64x100xf32>
    %152 = arith.truncf %151 : vector<64x100xf32> to vector<64x100xbf16>
    %c0_82 = arith.constant 0 : index
    %c0_83 = arith.constant 0 : index
    %c0_84 = arith.constant 0 : index
    %153 = vector.load %arg5[%c0_82, %c0_83, %c0_84] : memref<2x64x100xbf16, #tpu.memory_space<vmem>>, vector<1x64x100xbf16>
    %154 = vector.shape_cast %153 : vector<1x64x100xbf16> to vector<64x100xbf16>
    %155 = vector.shape_cast %152 : vector<64x100xbf16> to vector<1x64x100xbf16>
    tpu.vector_store %arg5[%c0_82, %c0_83, %c0_84], %155 {strides = array<i32>} : memref<2x64x100xbf16, #tpu.memory_space<vmem>>, vector<1x64x100xbf16>,
    %156 = vector.broadcast %111 : vector<64x1xf32> to vector<64x100xf32>
    %157 = arith.subf %96, %156 : vector<64x100xf32>
    %158 = vector.broadcast %141 : vector<64x1xf32> to vector<64x100xf32>
    %159 = arith.mulf %157, %158 : vector<64x100xf32>
    %160 = vector.broadcast %143 : vector<64x1xf32> to vector<64x100xf32>
    %161 = arith.addf %159, %160 : vector<64x100xf32>
    %cst_85 = arith.constant 0.000000e+00 : f32
    %162 = vector.broadcast %cst_85 : f32 to vector<64x100xf32>
    %163 = arith.maximumf %161, %162 : vector<64x100xf32>
    %164 = arith.truncf %163 : vector<64x100xf32> to vector<64x100xbf16>
    %c1_86 = arith.constant 1 : index
    %c0_87 = arith.constant 0 : index
    %c0_88 = arith.constant 0 : index
    %165 = vector.load %arg5[%c1_86, %c0_87, %c0_88] : memref<2x64x100xbf16, #tpu.memory_space<vmem>>, vector<1x64x100xbf16>
    %166 = vector.shape_cast %165 : vector<1x64x100xbf16> to vector<64x100xbf16>
    %167 = vector.shape_cast %164 : vector<64x100xbf16> to vector<1x64x100xbf16>
    tpu.vector_store %arg5[%c1_86, %c0_87, %c0_88], %167 {strides = array<i32>} : memref<2x64x100xbf16, #tpu.memory_space<vmem>>, vector<1x64x100xbf16>,
    return
  }
}

module attributes {stable_mosaic.version = 11 : i64} {
  func.func @kernel(%arg0: memref<2x16x362xbf16, #tpu.memory_space<vmem>>, %arg1: memref<9x32x16xbf16, #tpu.memory_space<vmem>>, %arg2: memref<8x1xf32, #tpu.memory_space<vmem>>, %arg3: memref<8x1xf32, #tpu.memory_space<vmem>>, %arg4: memref<1x324xf32, #tpu.memory_space<vmem>>, %arg5: memref<2x32x324xbf16, #tpu.memory_space<vmem>>) attributes {dimension_semantics = [], scalar_prefetch = 0 : i64, scratch_operands = 0 : i64, tpu.core_type = #tpu.core_type<tc>} {
    %c0 = arith.constant 0 : index
    %c0_0 = arith.constant 0 : index
    %0 = vector.load %arg4[%c0, %c0_0] : memref<1x324xf32, #tpu.memory_space<vmem>>, vector<1x324xf32>
    %c0_1 = arith.constant 0 : index
    %c0_2 = arith.constant 0 : index
    %c0_3 = arith.constant 0 : index
    %1 = vector.load %arg0[%c0_1, %c0_2, %c0_3] : memref<2x16x362xbf16, #tpu.memory_space<vmem>>, vector<1x16x362xbf16>
    %2 = vector.shape_cast %1 : vector<1x16x362xbf16> to vector<16x362xbf16>
    %c0_4 = arith.constant 0 : index
    %c0_5 = arith.constant 0 : index
    %c0_6 = arith.constant 0 : index
    %3 = vector.load %arg1[%c0_4, %c0_5, %c0_6] : memref<9x32x16xbf16, #tpu.memory_space<vmem>>, vector<1x32x16xbf16>
    %4 = vector.shape_cast %3 : vector<1x32x16xbf16> to vector<32x16xbf16>
    %5 = vector.extract_strided_slice %2 {offsets = [0, 0], sizes = [16, 324], strides = [1, 1]} : vector<16x362xbf16> to vector<16x324xbf16>
    %cst = arith.constant dense<0.000000e+00> : vector<32x324xf32>
    %6 = tpu.matmul %4, %5, %cst {dimension_numbers = #tpu.dot_dimension_numbers<[1], [0], [0], [1], [0, 0, 1, 1], [], []>} : vector<32x16xbf16>, vector<16x324xbf16>, vector<32x324xf32> -> vector<32x324xf32>
    %c1 = arith.constant 1 : index
    %c0_7 = arith.constant 0 : index
    %c0_8 = arith.constant 0 : index
    %7 = vector.load %arg1[%c1, %c0_7, %c0_8] : memref<9x32x16xbf16, #tpu.memory_space<vmem>>, vector<1x32x16xbf16>
    %8 = vector.shape_cast %7 : vector<1x32x16xbf16> to vector<32x16xbf16>
    %9 = vector.extract_strided_slice %2 {offsets = [0, 1], sizes = [16, 324], strides = [1, 1]} : vector<16x362xbf16> to vector<16x324xbf16>
    %cst_9 = arith.constant dense<0.000000e+00> : vector<32x324xf32>
    %10 = tpu.matmul %8, %9, %cst_9 {dimension_numbers = #tpu.dot_dimension_numbers<[1], [0], [0], [1], [0, 0, 1, 1], [], []>} : vector<32x16xbf16>, vector<16x324xbf16>, vector<32x324xf32> -> vector<32x324xf32>
    %11 = arith.addf %6, %10 : vector<32x324xf32>
    %c2 = arith.constant 2 : index
    %c0_10 = arith.constant 0 : index
    %c0_11 = arith.constant 0 : index
    %12 = vector.load %arg1[%c2, %c0_10, %c0_11] : memref<9x32x16xbf16, #tpu.memory_space<vmem>>, vector<1x32x16xbf16>
    %13 = vector.shape_cast %12 : vector<1x32x16xbf16> to vector<32x16xbf16>
    %14 = vector.extract_strided_slice %2 {offsets = [0, 2], sizes = [16, 324], strides = [1, 1]} : vector<16x362xbf16> to vector<16x324xbf16>
    %cst_12 = arith.constant dense<0.000000e+00> : vector<32x324xf32>
    %15 = tpu.matmul %13, %14, %cst_12 {dimension_numbers = #tpu.dot_dimension_numbers<[1], [0], [0], [1], [0, 0, 1, 1], [], []>} : vector<32x16xbf16>, vector<16x324xbf16>, vector<32x324xf32> -> vector<32x324xf32>
    %16 = arith.addf %11, %15 : vector<32x324xf32>
    %c3 = arith.constant 3 : index
    %c0_13 = arith.constant 0 : index
    %c0_14 = arith.constant 0 : index
    %17 = vector.load %arg1[%c3, %c0_13, %c0_14] : memref<9x32x16xbf16, #tpu.memory_space<vmem>>, vector<1x32x16xbf16>
    %18 = vector.shape_cast %17 : vector<1x32x16xbf16> to vector<32x16xbf16>
    %19 = vector.extract_strided_slice %2 {offsets = [0, 18], sizes = [16, 324], strides = [1, 1]} : vector<16x362xbf16> to vector<16x324xbf16>
    %cst_15 = arith.constant dense<0.000000e+00> : vector<32x324xf32>
    %20 = tpu.matmul %18, %19, %cst_15 {dimension_numbers = #tpu.dot_dimension_numbers<[1], [0], [0], [1], [0, 0, 1, 1], [], []>} : vector<32x16xbf16>, vector<16x324xbf16>, vector<32x324xf32> -> vector<32x324xf32>
    %21 = arith.addf %16, %20 : vector<32x324xf32>
    %c4 = arith.constant 4 : index
    %c0_16 = arith.constant 0 : index
    %c0_17 = arith.constant 0 : index
    %22 = vector.load %arg1[%c4, %c0_16, %c0_17] : memref<9x32x16xbf16, #tpu.memory_space<vmem>>, vector<1x32x16xbf16>
    %23 = vector.shape_cast %22 : vector<1x32x16xbf16> to vector<32x16xbf16>
    %24 = vector.extract_strided_slice %2 {offsets = [0, 19], sizes = [16, 324], strides = [1, 1]} : vector<16x362xbf16> to vector<16x324xbf16>
    %cst_18 = arith.constant dense<0.000000e+00> : vector<32x324xf32>
    %25 = tpu.matmul %23, %24, %cst_18 {dimension_numbers = #tpu.dot_dimension_numbers<[1], [0], [0], [1], [0, 0, 1, 1], [], []>} : vector<32x16xbf16>, vector<16x324xbf16>, vector<32x324xf32> -> vector<32x324xf32>
    %26 = arith.addf %21, %25 : vector<32x324xf32>
    %c5 = arith.constant 5 : index
    %c0_19 = arith.constant 0 : index
    %c0_20 = arith.constant 0 : index
    %27 = vector.load %arg1[%c5, %c0_19, %c0_20] : memref<9x32x16xbf16, #tpu.memory_space<vmem>>, vector<1x32x16xbf16>
    %28 = vector.shape_cast %27 : vector<1x32x16xbf16> to vector<32x16xbf16>
    %29 = vector.extract_strided_slice %2 {offsets = [0, 20], sizes = [16, 324], strides = [1, 1]} : vector<16x362xbf16> to vector<16x324xbf16>
    %cst_21 = arith.constant dense<0.000000e+00> : vector<32x324xf32>
    %30 = tpu.matmul %28, %29, %cst_21 {dimension_numbers = #tpu.dot_dimension_numbers<[1], [0], [0], [1], [0, 0, 1, 1], [], []>} : vector<32x16xbf16>, vector<16x324xbf16>, vector<32x324xf32> -> vector<32x324xf32>
    %31 = arith.addf %26, %30 : vector<32x324xf32>
    %c6 = arith.constant 6 : index
    %c0_22 = arith.constant 0 : index
    %c0_23 = arith.constant 0 : index
    %32 = vector.load %arg1[%c6, %c0_22, %c0_23] : memref<9x32x16xbf16, #tpu.memory_space<vmem>>, vector<1x32x16xbf16>
    %33 = vector.shape_cast %32 : vector<1x32x16xbf16> to vector<32x16xbf16>
    %34 = vector.extract_strided_slice %2 {offsets = [0, 36], sizes = [16, 324], strides = [1, 1]} : vector<16x362xbf16> to vector<16x324xbf16>
    %cst_24 = arith.constant dense<0.000000e+00> : vector<32x324xf32>
    %35 = tpu.matmul %33, %34, %cst_24 {dimension_numbers = #tpu.dot_dimension_numbers<[1], [0], [0], [1], [0, 0, 1, 1], [], []>} : vector<32x16xbf16>, vector<16x324xbf16>, vector<32x324xf32> -> vector<32x324xf32>
    %36 = arith.addf %31, %35 : vector<32x324xf32>
    %c7 = arith.constant 7 : index
    %c0_25 = arith.constant 0 : index
    %c0_26 = arith.constant 0 : index
    %37 = vector.load %arg1[%c7, %c0_25, %c0_26] : memref<9x32x16xbf16, #tpu.memory_space<vmem>>, vector<1x32x16xbf16>
    %38 = vector.shape_cast %37 : vector<1x32x16xbf16> to vector<32x16xbf16>
    %39 = vector.extract_strided_slice %2 {offsets = [0, 37], sizes = [16, 324], strides = [1, 1]} : vector<16x362xbf16> to vector<16x324xbf16>
    %cst_27 = arith.constant dense<0.000000e+00> : vector<32x324xf32>
    %40 = tpu.matmul %38, %39, %cst_27 {dimension_numbers = #tpu.dot_dimension_numbers<[1], [0], [0], [1], [0, 0, 1, 1], [], []>} : vector<32x16xbf16>, vector<16x324xbf16>, vector<32x324xf32> -> vector<32x324xf32>
    %41 = arith.addf %36, %40 : vector<32x324xf32>
    %c8 = arith.constant 8 : index
    %c0_28 = arith.constant 0 : index
    %c0_29 = arith.constant 0 : index
    %42 = vector.load %arg1[%c8, %c0_28, %c0_29] : memref<9x32x16xbf16, #tpu.memory_space<vmem>>, vector<1x32x16xbf16>
    %43 = vector.shape_cast %42 : vector<1x32x16xbf16> to vector<32x16xbf16>
    %44 = vector.extract_strided_slice %2 {offsets = [0, 38], sizes = [16, 324], strides = [1, 1]} : vector<16x362xbf16> to vector<16x324xbf16>
    %cst_30 = arith.constant dense<0.000000e+00> : vector<32x324xf32>
    %45 = tpu.matmul %43, %44, %cst_30 {dimension_numbers = #tpu.dot_dimension_numbers<[1], [0], [0], [1], [0, 0, 1, 1], [], []>} : vector<32x16xbf16>, vector<16x324xbf16>, vector<32x324xf32> -> vector<32x324xf32>
    %46 = arith.addf %41, %45 : vector<32x324xf32>
    %47 = vector.broadcast %0 : vector<1x324xf32> to vector<32x324xf32>
    %48 = arith.mulf %46, %47 : vector<32x324xf32>
    %c1_31 = arith.constant 1 : index
    %c0_32 = arith.constant 0 : index
    %c0_33 = arith.constant 0 : index
    %49 = vector.load %arg0[%c1_31, %c0_32, %c0_33] : memref<2x16x362xbf16, #tpu.memory_space<vmem>>, vector<1x16x362xbf16>
    %50 = vector.shape_cast %49 : vector<1x16x362xbf16> to vector<16x362xbf16>
    %c0_34 = arith.constant 0 : index
    %c0_35 = arith.constant 0 : index
    %c0_36 = arith.constant 0 : index
    %51 = vector.load %arg1[%c0_34, %c0_35, %c0_36] : memref<9x32x16xbf16, #tpu.memory_space<vmem>>, vector<1x32x16xbf16>
    %52 = vector.shape_cast %51 : vector<1x32x16xbf16> to vector<32x16xbf16>
    %53 = vector.extract_strided_slice %50 {offsets = [0, 0], sizes = [16, 324], strides = [1, 1]} : vector<16x362xbf16> to vector<16x324xbf16>
    %cst_37 = arith.constant dense<0.000000e+00> : vector<32x324xf32>
    %54 = tpu.matmul %52, %53, %cst_37 {dimension_numbers = #tpu.dot_dimension_numbers<[1], [0], [0], [1], [0, 0, 1, 1], [], []>} : vector<32x16xbf16>, vector<16x324xbf16>, vector<32x324xf32> -> vector<32x324xf32>
    %c1_38 = arith.constant 1 : index
    %c0_39 = arith.constant 0 : index
    %c0_40 = arith.constant 0 : index
    %55 = vector.load %arg1[%c1_38, %c0_39, %c0_40] : memref<9x32x16xbf16, #tpu.memory_space<vmem>>, vector<1x32x16xbf16>
    %56 = vector.shape_cast %55 : vector<1x32x16xbf16> to vector<32x16xbf16>
    %57 = vector.extract_strided_slice %50 {offsets = [0, 1], sizes = [16, 324], strides = [1, 1]} : vector<16x362xbf16> to vector<16x324xbf16>
    %cst_41 = arith.constant dense<0.000000e+00> : vector<32x324xf32>
    %58 = tpu.matmul %56, %57, %cst_41 {dimension_numbers = #tpu.dot_dimension_numbers<[1], [0], [0], [1], [0, 0, 1, 1], [], []>} : vector<32x16xbf16>, vector<16x324xbf16>, vector<32x324xf32> -> vector<32x324xf32>
    %59 = arith.addf %54, %58 : vector<32x324xf32>
    %c2_42 = arith.constant 2 : index
    %c0_43 = arith.constant 0 : index
    %c0_44 = arith.constant 0 : index
    %60 = vector.load %arg1[%c2_42, %c0_43, %c0_44] : memref<9x32x16xbf16, #tpu.memory_space<vmem>>, vector<1x32x16xbf16>
    %61 = vector.shape_cast %60 : vector<1x32x16xbf16> to vector<32x16xbf16>
    %62 = vector.extract_strided_slice %50 {offsets = [0, 2], sizes = [16, 324], strides = [1, 1]} : vector<16x362xbf16> to vector<16x324xbf16>
    %cst_45 = arith.constant dense<0.000000e+00> : vector<32x324xf32>
    %63 = tpu.matmul %61, %62, %cst_45 {dimension_numbers = #tpu.dot_dimension_numbers<[1], [0], [0], [1], [0, 0, 1, 1], [], []>} : vector<32x16xbf16>, vector<16x324xbf16>, vector<32x324xf32> -> vector<32x324xf32>
    %64 = arith.addf %59, %63 : vector<32x324xf32>
    %c3_46 = arith.constant 3 : index
    %c0_47 = arith.constant 0 : index
    %c0_48 = arith.constant 0 : index
    %65 = vector.load %arg1[%c3_46, %c0_47, %c0_48] : memref<9x32x16xbf16, #tpu.memory_space<vmem>>, vector<1x32x16xbf16>
    %66 = vector.shape_cast %65 : vector<1x32x16xbf16> to vector<32x16xbf16>
    %67 = vector.extract_strided_slice %50 {offsets = [0, 18], sizes = [16, 324], strides = [1, 1]} : vector<16x362xbf16> to vector<16x324xbf16>
    %cst_49 = arith.constant dense<0.000000e+00> : vector<32x324xf32>
    %68 = tpu.matmul %66, %67, %cst_49 {dimension_numbers = #tpu.dot_dimension_numbers<[1], [0], [0], [1], [0, 0, 1, 1], [], []>} : vector<32x16xbf16>, vector<16x324xbf16>, vector<32x324xf32> -> vector<32x324xf32>
    %69 = arith.addf %64, %68 : vector<32x324xf32>
    %c4_50 = arith.constant 4 : index
    %c0_51 = arith.constant 0 : index
    %c0_52 = arith.constant 0 : index
    %70 = vector.load %arg1[%c4_50, %c0_51, %c0_52] : memref<9x32x16xbf16, #tpu.memory_space<vmem>>, vector<1x32x16xbf16>
    %71 = vector.shape_cast %70 : vector<1x32x16xbf16> to vector<32x16xbf16>
    %72 = vector.extract_strided_slice %50 {offsets = [0, 19], sizes = [16, 324], strides = [1, 1]} : vector<16x362xbf16> to vector<16x324xbf16>
    %cst_53 = arith.constant dense<0.000000e+00> : vector<32x324xf32>
    %73 = tpu.matmul %71, %72, %cst_53 {dimension_numbers = #tpu.dot_dimension_numbers<[1], [0], [0], [1], [0, 0, 1, 1], [], []>} : vector<32x16xbf16>, vector<16x324xbf16>, vector<32x324xf32> -> vector<32x324xf32>
    %74 = arith.addf %69, %73 : vector<32x324xf32>
    %c5_54 = arith.constant 5 : index
    %c0_55 = arith.constant 0 : index
    %c0_56 = arith.constant 0 : index
    %75 = vector.load %arg1[%c5_54, %c0_55, %c0_56] : memref<9x32x16xbf16, #tpu.memory_space<vmem>>, vector<1x32x16xbf16>
    %76 = vector.shape_cast %75 : vector<1x32x16xbf16> to vector<32x16xbf16>
    %77 = vector.extract_strided_slice %50 {offsets = [0, 20], sizes = [16, 324], strides = [1, 1]} : vector<16x362xbf16> to vector<16x324xbf16>
    %cst_57 = arith.constant dense<0.000000e+00> : vector<32x324xf32>
    %78 = tpu.matmul %76, %77, %cst_57 {dimension_numbers = #tpu.dot_dimension_numbers<[1], [0], [0], [1], [0, 0, 1, 1], [], []>} : vector<32x16xbf16>, vector<16x324xbf16>, vector<32x324xf32> -> vector<32x324xf32>
    %79 = arith.addf %74, %78 : vector<32x324xf32>
    %c6_58 = arith.constant 6 : index
    %c0_59 = arith.constant 0 : index
    %c0_60 = arith.constant 0 : index
    %80 = vector.load %arg1[%c6_58, %c0_59, %c0_60] : memref<9x32x16xbf16, #tpu.memory_space<vmem>>, vector<1x32x16xbf16>
    %81 = vector.shape_cast %80 : vector<1x32x16xbf16> to vector<32x16xbf16>
    %82 = vector.extract_strided_slice %50 {offsets = [0, 36], sizes = [16, 324], strides = [1, 1]} : vector<16x362xbf16> to vector<16x324xbf16>
    %cst_61 = arith.constant dense<0.000000e+00> : vector<32x324xf32>
    %83 = tpu.matmul %81, %82, %cst_61 {dimension_numbers = #tpu.dot_dimension_numbers<[1], [0], [0], [1], [0, 0, 1, 1], [], []>} : vector<32x16xbf16>, vector<16x324xbf16>, vector<32x324xf32> -> vector<32x324xf32>
    %84 = arith.addf %79, %83 : vector<32x324xf32>
    %c7_62 = arith.constant 7 : index
    %c0_63 = arith.constant 0 : index
    %c0_64 = arith.constant 0 : index
    %85 = vector.load %arg1[%c7_62, %c0_63, %c0_64] : memref<9x32x16xbf16, #tpu.memory_space<vmem>>, vector<1x32x16xbf16>
    %86 = vector.shape_cast %85 : vector<1x32x16xbf16> to vector<32x16xbf16>
    %87 = vector.extract_strided_slice %50 {offsets = [0, 37], sizes = [16, 324], strides = [1, 1]} : vector<16x362xbf16> to vector<16x324xbf16>
    %cst_65 = arith.constant dense<0.000000e+00> : vector<32x324xf32>
    %88 = tpu.matmul %86, %87, %cst_65 {dimension_numbers = #tpu.dot_dimension_numbers<[1], [0], [0], [1], [0, 0, 1, 1], [], []>} : vector<32x16xbf16>, vector<16x324xbf16>, vector<32x324xf32> -> vector<32x324xf32>
    %89 = arith.addf %84, %88 : vector<32x324xf32>
    %c8_66 = arith.constant 8 : index
    %c0_67 = arith.constant 0 : index
    %c0_68 = arith.constant 0 : index
    %90 = vector.load %arg1[%c8_66, %c0_67, %c0_68] : memref<9x32x16xbf16, #tpu.memory_space<vmem>>, vector<1x32x16xbf16>
    %91 = vector.shape_cast %90 : vector<1x32x16xbf16> to vector<32x16xbf16>
    %92 = vector.extract_strided_slice %50 {offsets = [0, 38], sizes = [16, 324], strides = [1, 1]} : vector<16x362xbf16> to vector<16x324xbf16>
    %cst_69 = arith.constant dense<0.000000e+00> : vector<32x324xf32>
    %93 = tpu.matmul %91, %92, %cst_69 {dimension_numbers = #tpu.dot_dimension_numbers<[1], [0], [0], [1], [0, 0, 1, 1], [], []>} : vector<32x16xbf16>, vector<16x324xbf16>, vector<32x324xf32> -> vector<32x324xf32>
    %94 = arith.addf %89, %93 : vector<32x324xf32>
    %95 = vector.broadcast %0 : vector<1x324xf32> to vector<32x324xf32>
    %96 = arith.mulf %94, %95 : vector<32x324xf32>
    %cst_70 = arith.constant dense<0.000000e+00> : vector<32xf32>
    %97 = vector.multi_reduction <add>, %48, %cst_70 [1] : vector<32x324xf32> to vector<32xf32>
    %98 = vector.shape_cast %97 : vector<32xf32> to vector<32x1xf32>
    %cst_71 = arith.constant dense<0.000000e+00> : vector<32xf32>
    %99 = vector.multi_reduction <add>, %96, %cst_71 [1] : vector<32x324xf32> to vector<32xf32>
    %100 = vector.shape_cast %99 : vector<32xf32> to vector<32x1xf32>
    %101 = arith.addf %98, %100 : vector<32x1xf32>
    %102 = vector.extract_strided_slice %101 {offsets = [0, 0], sizes = [8, 1], strides = [1, 1]} : vector<32x1xf32> to vector<8x1xf32>
    %103 = vector.extract_strided_slice %101 {offsets = [8, 0], sizes = [8, 1], strides = [1, 1]} : vector<32x1xf32> to vector<8x1xf32>
    %104 = arith.addf %102, %103 : vector<8x1xf32>
    %105 = vector.extract_strided_slice %101 {offsets = [16, 0], sizes = [8, 1], strides = [1, 1]} : vector<32x1xf32> to vector<8x1xf32>
    %106 = arith.addf %104, %105 : vector<8x1xf32>
    %107 = vector.extract_strided_slice %101 {offsets = [24, 0], sizes = [8, 1], strides = [1, 1]} : vector<32x1xf32> to vector<8x1xf32>
    %108 = arith.addf %106, %107 : vector<8x1xf32>
    %cst_72 = arith.constant 4.8828125E-4 : f32
    %109 = vector.broadcast %cst_72 : f32 to vector<8x1xf32>
    %110 = arith.mulf %108, %109 : vector<8x1xf32>
    %111 = tpu.concatenate %110, %110, %110, %110 in 0 : vector<8x1xf32>, vector<8x1xf32>, vector<8x1xf32>, vector<8x1xf32> -> vector<32x1xf32>
    %112 = vector.broadcast %111 : vector<32x1xf32> to vector<32x324xf32>
    %113 = arith.subf %48, %112 : vector<32x324xf32>
    %114 = vector.broadcast %0 : vector<1x324xf32> to vector<32x324xf32>
    %115 = arith.mulf %113, %114 : vector<32x324xf32>
    %116 = arith.mulf %115, %115 : vector<32x324xf32>
    %cst_73 = arith.constant dense<0.000000e+00> : vector<32xf32>
    %117 = vector.multi_reduction <add>, %116, %cst_73 [1] : vector<32x324xf32> to vector<32xf32>
    %118 = vector.shape_cast %117 : vector<32xf32> to vector<32x1xf32>
    %119 = vector.broadcast %111 : vector<32x1xf32> to vector<32x324xf32>
    %120 = arith.subf %96, %119 : vector<32x324xf32>
    %121 = vector.broadcast %0 : vector<1x324xf32> to vector<32x324xf32>
    %122 = arith.mulf %120, %121 : vector<32x324xf32>
    %123 = arith.mulf %122, %122 : vector<32x324xf32>
    %cst_74 = arith.constant dense<0.000000e+00> : vector<32xf32>
    %124 = vector.multi_reduction <add>, %123, %cst_74 [1] : vector<32x324xf32> to vector<32xf32>
    %125 = vector.shape_cast %124 : vector<32xf32> to vector<32x1xf32>
    %126 = arith.addf %118, %125 : vector<32x1xf32>
    %127 = vector.extract_strided_slice %126 {offsets = [0, 0], sizes = [8, 1], strides = [1, 1]} : vector<32x1xf32> to vector<8x1xf32>
    %128 = vector.extract_strided_slice %126 {offsets = [8, 0], sizes = [8, 1], strides = [1, 1]} : vector<32x1xf32> to vector<8x1xf32>
    %129 = arith.addf %127, %128 : vector<8x1xf32>
    %130 = vector.extract_strided_slice %126 {offsets = [16, 0], sizes = [8, 1], strides = [1, 1]} : vector<32x1xf32> to vector<8x1xf32>
    %131 = arith.addf %129, %130 : vector<8x1xf32>
    %132 = vector.extract_strided_slice %126 {offsets = [24, 0], sizes = [8, 1], strides = [1, 1]} : vector<32x1xf32> to vector<8x1xf32>
    %133 = arith.addf %131, %132 : vector<8x1xf32>
    %cst_75 = arith.constant 4.8828125E-4 : f32
    %134 = vector.broadcast %cst_75 : f32 to vector<8x1xf32>
    %135 = arith.mulf %133, %134 : vector<8x1xf32>
    %c0_76 = arith.constant 0 : index
    %c0_77 = arith.constant 0 : index
    %136 = vector.load %arg2[%c0_76, %c0_77] : memref<8x1xf32, #tpu.memory_space<vmem>>, vector<8x1xf32>
    %cst_78 = arith.constant 9.99999974E-6 : f32
    %137 = vector.broadcast %cst_78 : f32 to vector<8x1xf32>
    %138 = arith.addf %135, %137 : vector<8x1xf32>
    %139 = math.rsqrt %138 : vector<8x1xf32>
    %140 = arith.mulf %136, %139 : vector<8x1xf32>
    %141 = tpu.concatenate %140, %140, %140, %140 in 0 : vector<8x1xf32>, vector<8x1xf32>, vector<8x1xf32>, vector<8x1xf32> -> vector<32x1xf32>
    %c0_79 = arith.constant 0 : index
    %c0_80 = arith.constant 0 : index
    %142 = vector.load %arg3[%c0_79, %c0_80] : memref<8x1xf32, #tpu.memory_space<vmem>>, vector<8x1xf32>
    %143 = tpu.concatenate %142, %142, %142, %142 in 0 : vector<8x1xf32>, vector<8x1xf32>, vector<8x1xf32>, vector<8x1xf32> -> vector<32x1xf32>
    %144 = vector.broadcast %111 : vector<32x1xf32> to vector<32x324xf32>
    %145 = arith.subf %48, %144 : vector<32x324xf32>
    %146 = vector.broadcast %141 : vector<32x1xf32> to vector<32x324xf32>
    %147 = arith.mulf %145, %146 : vector<32x324xf32>
    %148 = vector.broadcast %143 : vector<32x1xf32> to vector<32x324xf32>
    %149 = arith.addf %147, %148 : vector<32x324xf32>
    %cst_81 = arith.constant 0.000000e+00 : f32
    %150 = vector.broadcast %cst_81 : f32 to vector<32x324xf32>
    %151 = arith.maximumf %149, %150 : vector<32x324xf32>
    %152 = arith.truncf %151 : vector<32x324xf32> to vector<32x324xbf16>
    %c0_82 = arith.constant 0 : index
    %c0_83 = arith.constant 0 : index
    %c0_84 = arith.constant 0 : index
    %153 = vector.load %arg5[%c0_82, %c0_83, %c0_84] : memref<2x32x324xbf16, #tpu.memory_space<vmem>>, vector<1x32x324xbf16>
    %154 = vector.shape_cast %153 : vector<1x32x324xbf16> to vector<32x324xbf16>
    %155 = vector.shape_cast %152 : vector<32x324xbf16> to vector<1x32x324xbf16>
    tpu.vector_store %arg5[%c0_82, %c0_83, %c0_84], %155 {strides = array<i32>} : memref<2x32x324xbf16, #tpu.memory_space<vmem>>, vector<1x32x324xbf16>,
    %156 = vector.broadcast %111 : vector<32x1xf32> to vector<32x324xf32>
    %157 = arith.subf %96, %156 : vector<32x324xf32>
    %158 = vector.broadcast %141 : vector<32x1xf32> to vector<32x324xf32>
    %159 = arith.mulf %157, %158 : vector<32x324xf32>
    %160 = vector.broadcast %143 : vector<32x1xf32> to vector<32x324xf32>
    %161 = arith.addf %159, %160 : vector<32x324xf32>
    %cst_85 = arith.constant 0.000000e+00 : f32
    %162 = vector.broadcast %cst_85 : f32 to vector<32x324xf32>
    %163 = arith.maximumf %161, %162 : vector<32x324xf32>
    %164 = arith.truncf %163 : vector<32x324xf32> to vector<32x324xbf16>
    %c1_86 = arith.constant 1 : index
    %c0_87 = arith.constant 0 : index
    %c0_88 = arith.constant 0 : index
    %165 = vector.load %arg5[%c1_86, %c0_87, %c0_88] : memref<2x32x324xbf16, #tpu.memory_space<vmem>>, vector<1x32x324xbf16>
    %166 = vector.shape_cast %165 : vector<1x32x324xbf16> to vector<32x324xbf16>
    %167 = vector.shape_cast %164 : vector<32x324xbf16> to vector<1x32x324xbf16>
    tpu.vector_store %arg5[%c1_86, %c0_87, %c0_88], %167 {strides = array<i32>} : memref<2x32x324xbf16, #tpu.memory_space<vmem>>, vector<1x32x324xbf16>,
    return
  }
}

module attributes {stable_mosaic.version = 11 : i64} {
  func.func @kernel(%arg0: i32, %arg1: memref<1x8x1226xbf16, #tpu.memory_space<vmem>>, %arg2: memref<9x12x8xbf16, #tpu.memory_space<vmem>>, %arg3: memref<12x1xf32, #tpu.memory_space<vmem>>, %arg4: memref<1x12x1156xf32, #tpu.memory_space<vmem>>) attributes {dimension_semantics = [#tpu.dimension_semantics<parallel>], iteration_bounds = array<i64: 2>, scalar_prefetch = 0 : i64, scratch_operands = 0 : i64, tpu.core_type = #tpu.core_type<tc>, window_params = [{transform_indices = @transform_0, window_bounds = array<i64: 1, 8, 1226>}, {pipeline_mode = #tpu.pipeline_mode<synchronous>, transform_indices = @transform_1, window_bounds = array<i64: 9, 12, 8>}, {pipeline_mode = #tpu.pipeline_mode<synchronous>, transform_indices = @transform_2, window_bounds = array<i64: 12, 1>}, {transform_indices = @transform_3, window_bounds = array<i64: 1, 12, 1156>}]} {
    %c0 = arith.constant 0 : index
    %c0_0 = arith.constant 0 : index
    %c0_1 = arith.constant 0 : index
    %0 = vector.load %arg1[%c0, %c0_0, %c0_1] : memref<1x8x1226xbf16, #tpu.memory_space<vmem>>, vector<1x8x1226xbf16>
    %1 = vector.shape_cast %0 : vector<1x8x1226xbf16> to vector<8x1226xbf16>
    %c0_2 = arith.constant 0 : index
    %c0_3 = arith.constant 0 : index
    %c0_4 = arith.constant 0 : index
    %2 = vector.load %arg2[%c0_2, %c0_3, %c0_4] : memref<9x12x8xbf16, #tpu.memory_space<vmem>>, vector<1x12x8xbf16>
    %3 = vector.shape_cast %2 : vector<1x12x8xbf16> to vector<12x8xbf16>
    %4 = vector.extract_strided_slice %1 {offsets = [0, 0], sizes = [8, 1156], strides = [1, 1]} : vector<8x1226xbf16> to vector<8x1156xbf16>
    %cst = arith.constant dense<0.000000e+00> : vector<12x1156xf32>
    %5 = tpu.matmul %3, %4, %cst {dimension_numbers = #tpu.dot_dimension_numbers<[1], [0], [0], [1], [0, 0, 1, 1], [], []>} : vector<12x8xbf16>, vector<8x1156xbf16>, vector<12x1156xf32> -> vector<12x1156xf32>
    %c1 = arith.constant 1 : index
    %c0_5 = arith.constant 0 : index
    %c0_6 = arith.constant 0 : index
    %6 = vector.load %arg2[%c1, %c0_5, %c0_6] : memref<9x12x8xbf16, #tpu.memory_space<vmem>>, vector<1x12x8xbf16>
    %7 = vector.shape_cast %6 : vector<1x12x8xbf16> to vector<12x8xbf16>
    %8 = vector.extract_strided_slice %1 {offsets = [0, 1], sizes = [8, 1156], strides = [1, 1]} : vector<8x1226xbf16> to vector<8x1156xbf16>
    %cst_7 = arith.constant dense<0.000000e+00> : vector<12x1156xf32>
    %9 = tpu.matmul %7, %8, %cst_7 {dimension_numbers = #tpu.dot_dimension_numbers<[1], [0], [0], [1], [0, 0, 1, 1], [], []>} : vector<12x8xbf16>, vector<8x1156xbf16>, vector<12x1156xf32> -> vector<12x1156xf32>
    %10 = arith.addf %5, %9 : vector<12x1156xf32>
    %c2 = arith.constant 2 : index
    %c0_8 = arith.constant 0 : index
    %c0_9 = arith.constant 0 : index
    %11 = vector.load %arg2[%c2, %c0_8, %c0_9] : memref<9x12x8xbf16, #tpu.memory_space<vmem>>, vector<1x12x8xbf16>
    %12 = vector.shape_cast %11 : vector<1x12x8xbf16> to vector<12x8xbf16>
    %13 = vector.extract_strided_slice %1 {offsets = [0, 2], sizes = [8, 1156], strides = [1, 1]} : vector<8x1226xbf16> to vector<8x1156xbf16>
    %cst_10 = arith.constant dense<0.000000e+00> : vector<12x1156xf32>
    %14 = tpu.matmul %12, %13, %cst_10 {dimension_numbers = #tpu.dot_dimension_numbers<[1], [0], [0], [1], [0, 0, 1, 1], [], []>} : vector<12x8xbf16>, vector<8x1156xbf16>, vector<12x1156xf32> -> vector<12x1156xf32>
    %15 = arith.addf %10, %14 : vector<12x1156xf32>
    %c3 = arith.constant 3 : index
    %c0_11 = arith.constant 0 : index
    %c0_12 = arith.constant 0 : index
    %16 = vector.load %arg2[%c3, %c0_11, %c0_12] : memref<9x12x8xbf16, #tpu.memory_space<vmem>>, vector<1x12x8xbf16>
    %17 = vector.shape_cast %16 : vector<1x12x8xbf16> to vector<12x8xbf16>
    %18 = vector.extract_strided_slice %1 {offsets = [0, 34], sizes = [8, 1156], strides = [1, 1]} : vector<8x1226xbf16> to vector<8x1156xbf16>
    %cst_13 = arith.constant dense<0.000000e+00> : vector<12x1156xf32>
    %19 = tpu.matmul %17, %18, %cst_13 {dimension_numbers = #tpu.dot_dimension_numbers<[1], [0], [0], [1], [0, 0, 1, 1], [], []>} : vector<12x8xbf16>, vector<8x1156xbf16>, vector<12x1156xf32> -> vector<12x1156xf32>
    %20 = arith.addf %15, %19 : vector<12x1156xf32>
    %c4 = arith.constant 4 : index
    %c0_14 = arith.constant 0 : index
    %c0_15 = arith.constant 0 : index
    %21 = vector.load %arg2[%c4, %c0_14, %c0_15] : memref<9x12x8xbf16, #tpu.memory_space<vmem>>, vector<1x12x8xbf16>
    %22 = vector.shape_cast %21 : vector<1x12x8xbf16> to vector<12x8xbf16>
    %23 = vector.extract_strided_slice %1 {offsets = [0, 35], sizes = [8, 1156], strides = [1, 1]} : vector<8x1226xbf16> to vector<8x1156xbf16>
    %cst_16 = arith.constant dense<0.000000e+00> : vector<12x1156xf32>
    %24 = tpu.matmul %22, %23, %cst_16 {dimension_numbers = #tpu.dot_dimension_numbers<[1], [0], [0], [1], [0, 0, 1, 1], [], []>} : vector<12x8xbf16>, vector<8x1156xbf16>, vector<12x1156xf32> -> vector<12x1156xf32>
    %25 = arith.addf %20, %24 : vector<12x1156xf32>
    %c5 = arith.constant 5 : index
    %c0_17 = arith.constant 0 : index
    %c0_18 = arith.constant 0 : index
    %26 = vector.load %arg2[%c5, %c0_17, %c0_18] : memref<9x12x8xbf16, #tpu.memory_space<vmem>>, vector<1x12x8xbf16>
    %27 = vector.shape_cast %26 : vector<1x12x8xbf16> to vector<12x8xbf16>
    %28 = vector.extract_strided_slice %1 {offsets = [0, 36], sizes = [8, 1156], strides = [1, 1]} : vector<8x1226xbf16> to vector<8x1156xbf16>
    %cst_19 = arith.constant dense<0.000000e+00> : vector<12x1156xf32>
    %29 = tpu.matmul %27, %28, %cst_19 {dimension_numbers = #tpu.dot_dimension_numbers<[1], [0], [0], [1], [0, 0, 1, 1], [], []>} : vector<12x8xbf16>, vector<8x1156xbf16>, vector<12x1156xf32> -> vector<12x1156xf32>
    %30 = arith.addf %25, %29 : vector<12x1156xf32>
    %c6 = arith.constant 6 : index
    %c0_20 = arith.constant 0 : index
    %c0_21 = arith.constant 0 : index
    %31 = vector.load %arg2[%c6, %c0_20, %c0_21] : memref<9x12x8xbf16, #tpu.memory_space<vmem>>, vector<1x12x8xbf16>
    %32 = vector.shape_cast %31 : vector<1x12x8xbf16> to vector<12x8xbf16>
    %33 = vector.extract_strided_slice %1 {offsets = [0, 68], sizes = [8, 1156], strides = [1, 1]} : vector<8x1226xbf16> to vector<8x1156xbf16>
    %cst_22 = arith.constant dense<0.000000e+00> : vector<12x1156xf32>
    %34 = tpu.matmul %32, %33, %cst_22 {dimension_numbers = #tpu.dot_dimension_numbers<[1], [0], [0], [1], [0, 0, 1, 1], [], []>} : vector<12x8xbf16>, vector<8x1156xbf16>, vector<12x1156xf32> -> vector<12x1156xf32>
    %35 = arith.addf %30, %34 : vector<12x1156xf32>
    %c7 = arith.constant 7 : index
    %c0_23 = arith.constant 0 : index
    %c0_24 = arith.constant 0 : index
    %36 = vector.load %arg2[%c7, %c0_23, %c0_24] : memref<9x12x8xbf16, #tpu.memory_space<vmem>>, vector<1x12x8xbf16>
    %37 = vector.shape_cast %36 : vector<1x12x8xbf16> to vector<12x8xbf16>
    %38 = vector.extract_strided_slice %1 {offsets = [0, 69], sizes = [8, 1156], strides = [1, 1]} : vector<8x1226xbf16> to vector<8x1156xbf16>
    %cst_25 = arith.constant dense<0.000000e+00> : vector<12x1156xf32>
    %39 = tpu.matmul %37, %38, %cst_25 {dimension_numbers = #tpu.dot_dimension_numbers<[1], [0], [0], [1], [0, 0, 1, 1], [], []>} : vector<12x8xbf16>, vector<8x1156xbf16>, vector<12x1156xf32> -> vector<12x1156xf32>
    %40 = arith.addf %35, %39 : vector<12x1156xf32>
    %c8 = arith.constant 8 : index
    %c0_26 = arith.constant 0 : index
    %c0_27 = arith.constant 0 : index
    %41 = vector.load %arg2[%c8, %c0_26, %c0_27] : memref<9x12x8xbf16, #tpu.memory_space<vmem>>, vector<1x12x8xbf16>
    %42 = vector.shape_cast %41 : vector<1x12x8xbf16> to vector<12x8xbf16>
    %43 = vector.extract_strided_slice %1 {offsets = [0, 70], sizes = [8, 1156], strides = [1, 1]} : vector<8x1226xbf16> to vector<8x1156xbf16>
    %cst_28 = arith.constant dense<0.000000e+00> : vector<12x1156xf32>
    %44 = tpu.matmul %42, %43, %cst_28 {dimension_numbers = #tpu.dot_dimension_numbers<[1], [0], [0], [1], [0, 0, 1, 1], [], []>} : vector<12x8xbf16>, vector<8x1156xbf16>, vector<12x1156xf32> -> vector<12x1156xf32>
    %45 = arith.addf %40, %44 : vector<12x1156xf32>
    %c0_29 = arith.constant 0 : index
    %c0_30 = arith.constant 0 : index
    %46 = vector.load %arg3[%c0_29, %c0_30] : memref<12x1xf32, #tpu.memory_space<vmem>>, vector<12x1xf32>
    %47 = vector.broadcast %46 : vector<12x1xf32> to vector<12x1156xf32>
    %48 = arith.addf %45, %47 : vector<12x1156xf32>
    %49 = math.tanh %48 : vector<12x1156xf32>
    %c0_31 = arith.constant 0 : index
    %c0_32 = arith.constant 0 : index
    %c0_33 = arith.constant 0 : index
    %50 = vector.load %arg4[%c0_31, %c0_32, %c0_33] : memref<1x12x1156xf32, #tpu.memory_space<vmem>>, vector<1x12x1156xf32>
    %51 = vector.shape_cast %50 : vector<1x12x1156xf32> to vector<12x1156xf32>
    %52 = vector.shape_cast %49 : vector<12x1156xf32> to vector<1x12x1156xf32>
    tpu.vector_store %arg4[%c0_31, %c0_32, %c0_33], %52 {strides = array<i32>} : memref<1x12x1156xf32, #tpu.memory_space<vmem>>, vector<1x12x1156xf32>,
    return
  }
  func.func @transform_0(%arg0: i32) -> (i32, i32, i32) {
    %c0_i32 = arith.constant 0 : i32
    %c0_i32_0 = arith.constant 0 : i32
    %c0_i32_1 = arith.constant 0 : i32
    return %arg0, %c0_i32, %c0_i32_0 : i32, i32, i32
  }
  func.func @transform_1(%arg0: i32) -> (i32, i32, i32) {
    %c0_i32 = arith.constant 0 : i32
    %c0_i32_0 = arith.constant 0 : i32
    %c0_i32_1 = arith.constant 0 : i32
    %c0_i32_2 = arith.constant 0 : i32
    return %c0_i32, %c0_i32_0, %c0_i32_1 : i32, i32, i32
  }
  func.func @transform_2(%arg0: i32) -> (i32, i32) {
    %c0_i32 = arith.constant 0 : i32
    %c0_i32_0 = arith.constant 0 : i32
    %c0_i32_1 = arith.constant 0 : i32
    return %c0_i32, %c0_i32_0 : i32, i32
  }
  func.func @transform_3(%arg0: i32) -> (i32, i32, i32) {
    %c0_i32 = arith.constant 0 : i32
    %c0_i32_0 = arith.constant 0 : i32
    %c0_i32_1 = arith.constant 0 : i32
    return %arg0, %c0_i32, %c0_i32_0 : i32, i32, i32
  }
}

</mosaic_0001>

<llo_original>
// kernel: tile.8
$region0: #{tile.8}
  #allocation2 [shape = 's32[1]{0}', space=sflag, size = 0x4, scoped, tag = 'scoped memory for tile.8']
  %s0 = inlined_call_operand.hbm [shape: f32[3], index: 0, kind: input, shape index: {}]
  %s1 = inlined_call_operand.vmem [shape: f32[4,3], index: 1, kind: output, shape index: {}]
  $region1: #{tile.8} parent=0
    #allocation0 [shape = 'u8[512]{0}', space=vmem, size = 0x400, scoped, tag = 'operand span for operand 0']
    #allocation1 [shape = 's32[1]{0}', space=sflag, size = 0x4, scoped, tag = 'scoped memory for tile.8']
    %2 = vsyncpa [#allocation1], 0
    // Predicated region
    $region2: #{tile.8} parent=1 // pred_check
      _
    $region3: #{tile.8} parent=1 // pred_check_branch
      %4 = sbr.rel (0) target = $region5
    $region4: #{tile.8} parent=1 // pred_region
      %6 = vsyncadd [#allocation1], 0
      %s8 = sshll.u32 %s0, 4
      %s9 = int_to_ptr.hbm [resolvable:$true] %s8
      %s10 = sshll.u32 [#allocation0], 4
      %s11 = int_to_ptr.vmem [resolvable:$true] %s10
      %13 = dma.hbm_to_vmem [thread:$0]  %s9, 16, %s11, [#allocation1]
    $region5: #{tile.8} parent=1 // pred_fallthru
      _
    // Predicated region
    $region6: #{tile.8} parent=1 // pred_check
      _
    $region7: #{tile.8} parent=1 // pred_check_branch
      %15 = sbr.rel (0) target = $region9
    $region8: #{tile.8} parent=1 // pred_region
      %17 = dma.done [#allocation1], 16
    $region9: #{tile.8} parent=1 // pred_fallthru
      _
    %v18 = vld [vmem:[#allocation0] ss:$0 sm:$0xff]
    %19 = vst [vmem:[%s1] sm:$0xf] %v18
    %20 = vsyncpa [#allocation1], 1

// kernel: tile.0
$region0: #{tile.0}
  %s0 = inlined_call_operand.vmem [shape: f32[4,3], index: 0, kind: input, shape index: {}]
  %s1 = inlined_call_operand.vmem [shape: f32[12,1], index: 1, kind: output, shape index: {}]
  $region1: #{tile.0} parent=0
    #allocation0 [shape = 'u8[4096]{0}', space=vmem, size = 0x1000, scoped, tag = 'scoped mem for input reshape']
    %s3 = ssub.s32 16, 1
    %v4 = vld [vmem:[%s0] sm:%s3]
    %5 = vst [vmem:[#allocation0] sm:%s3] %v4
    %v6 = vld [vmem:[#allocation0] sm:$0xf]
    %vm7 = vcmask 7168
    %8 = vst.msk [vmem:[%s1] ss:$3 sm:$0xf] %vm7, %v6
    %v9 = vld [vmem:[#allocation0] sm:$0xf]
    %10 = vrot.lane.b32.xlu0 %v9, 127
    %v11 = vpop.permute.xlu0 %10
    %vm12 = vcmask 7168
    %s13 = scalar_lea.vmem %s1, 1
    %14 = vst.msk [vmem:[%s13] ss:$3 sm:$0xf] %vm12, %v11
    %v15 = vld [vmem:[#allocation0] sm:$0xf]
    %16 = vrot.lane.b32.xlu0 %v15, 126
    %v17 = vpop.permute.xlu0 %16
    %vm18 = vcmask 7168
    %s19 = scalar_lea.vmem %s1, 2
    %20 = vst.msk [vmem:[%s19] ss:$3 sm:$0xf] %vm18, %v17

// kernel: generator_forward.4
$region0: #{generator_forward.4}
  #allocation0 [shape = 'u32[]', space=smem, size = 0x4, offset = 0x4, fixed_abs, tag = 'smem constant byte address 0x4 - core index']
  #allocation1 [shape = 'u32[72,128]{1,0:T(1,128)}', space=vmem, size = 0x9000, scoped, tag = 'internal scratch']
  %s0 = inlined_call_operand.vmem [shape: bf16[2,64,50], index: 0, kind: input, shape index: {}]
  %s1 = inlined_call_operand.vmem [shape: bf16[9,128,64], index: 1, kind: input, shape index: {}]
  %s2 = inlined_call_operand.vmem [shape: f32[32,1], index: 2, kind: input, shape index: {}]
  %s3 = inlined_call_operand.vmem [shape: f32[32,1], index: 3, kind: input, shape index: {}]
  %s4 = inlined_call_operand.hbm [shape: f32[1,36], index: 4, kind: input, shape index: {}]
  %s5 = inlined_call_operand.vmem [shape: bf16[2,128,36], index: 5, kind: output, shape index: {}]
  %s6 = sld [smem:[#allocation0]]
  $region34: #{generator_forward.4} parent=0
    _
  %s8 = ssub.s32 1, %s6
  %s9 = scalar_select 0, %s8, %s6
  $region1: #{generator_forward.4} parent=0
    #allocation2 [shape = 'u8[512]{0}', space=vmem, size = 0x400, scoped, tag = 'input window, operand 4, single buffered']
    #allocation3 [shape = 's32[1]{0}', space=sflag, size = 0x4, scoped, tag = 'scoped memory for generator_forward.4']
    %10 = vsyncpa [#allocation3], 0
    // Predicated region
    $region2: #{generator_forward.4} parent=1 // pred_check
      _
    $region3: #{generator_forward.4} parent=1 // pred_check_branch
      %12 = sbr.rel (0) target = $region5
    $region4: #{generator_forward.4} parent=1 // pred_region
      _
    $region5: #{generator_forward.4} parent=1 // pred_fallthru
      _
    // Predicated region
    $region6: #{generator_forward.4} parent=1 // pred_check
      _
    $region7: #{generator_forward.4} parent=1 // pred_check_branch
      %14 = sbr.rel (0) target = $region9
    $region8: #{generator_forward.4} parent=1 // pred_region
      _
    $region9: #{generator_forward.4} parent=1 // pred_fallthru
      _
    // Predicated region
    $region10: #{generator_forward.4} parent=1 // pred_check
      _
    $region11: #{generator_forward.4} parent=1 // pred_check_branch
      %16 = sbr.rel (0) target = $region13
    $region12: #{generator_forward.4} parent=1 // pred_region
      _
    $region13: #{generator_forward.4} parent=1 // pred_fallthru
      _
    // Predicated region
    $region14: #{generator_forward.4} parent=1 // pred_check
      _
    $region15: #{generator_forward.4} parent=1 // pred_check_branch
      %18 = sbr.rel (0) target = $region17
    $region16: #{generator_forward.4} parent=1 // pred_region
      _
    $region17: #{generator_forward.4} parent=1 // pred_fallthru
      _
    // Predicated region
    $region18: #{generator_forward.4} parent=1 // pred_check
      _
    $region19: #{generator_forward.4} parent=1 // pred_check_branch
      %20 = sbr.rel (0) target = $region21
    $region20: #{generator_forward.4} parent=1 // pred_region
      %22 = vsyncadd [#allocation3], 0
      %s24 = sshll.u32 %s4, 4
      %s25 = int_to_ptr.hbm [resolvable:$true] %s24
      %s26 = sshll.u32 [#allocation2], 4
      %s27 = int_to_ptr.vmem [resolvable:$true] %s26
      %29 = dma.hbm_to_vmem [thread:$0]  %s25, 16, %s27, [#allocation3]
    $region21: #{generator_forward.4} parent=1 // pred_fallthru
      _
    // Predicated region
    $region22: #{generator_forward.4} parent=1 // pred_check
      _
    $region23: #{generator_forward.4} parent=1 // pred_check_branch
      %31 = sbr.rel (0) target = $region25
    $region24: #{generator_forward.4} parent=1 // pred_region
      %33 = dma.done [#allocation3], 16
    $region25: #{generator_forward.4} parent=1 // pred_fallthru
      _
    %v35 = vld [vmem:[#allocation2] sm:$0x1]
    %v36 = vld [vmem:[%s0] sm:$0xf]
    %v37 = vld [vmem:[%s0 + $0x4] sm:$0xf]
    %v38 = vld [vmem:[%s0 + $0x8] sm:$0xf]
    %v39 = vld [vmem:[%s0 + $0xc] sm:$0xf]
    %v40 = vld [vmem:[%s0 + $0x10] sm:$0xf]
    %v41 = vld [vmem:[%s0 + $0x14] sm:$0xf]
    %v42 = vld [vmem:[%s0 + $0x18] sm:$0xf]
    %v43 = vld [vmem:[%s0 + $0x1c] sm:$0xf]
    %v44 = vld [vmem:[%s1] sm:$0xf]
    %v45 = vld [vmem:[%s1 + $0x4] sm:$0xf]
    %v46 = vld [vmem:[%s1 + $0x8] sm:$0xf]
    %v47 = vld [vmem:[%s1 + $0xc] sm:$0xf]
    %v48 = vld [vmem:[%s1 + $0x10] sm:$0xf]
    %v49 = vld [vmem:[%s1 + $0x14] sm:$0xf]
    %v50 = vld [vmem:[%s1 + $0x18] sm:$0xf]
    %v51 = vld [vmem:[%s1 + $0x1c] sm:$0xf]
    %v52 = vld [vmem:[%s1 + $0x20] sm:$0xf]
    %v53 = vld [vmem:[%s1 + $0x24] sm:$0xf]
    %v54 = vld [vmem:[%s1 + $0x28] sm:$0xf]
    %v55 = vld [vmem:[%s1 + $0x2c] sm:$0xf]
    %v56 = vld [vmem:[%s1 + $0x30] sm:$0xf]
    %v57 = vld [vmem:[%s1 + $0x34] sm:$0xf]
    %v58 = vld [vmem:[%s1 + $0x38] sm:$0xf]
    %v59 = vld [vmem:[%s1 + $0x3c] sm:$0xf]
    %s60 = scalar_lea.vmem %s1, 64
    %v61 = vld [vmem:[%s60] sm:$0xf]
    %v62 = vld [vmem:[%s60 + $0x4] sm:$0xf]
    %v63 = vld [vmem:[%s60 + $0x8] sm:$0xf]
    %v64 = vld [vmem:[%s60 + $0xc] sm:$0xf]
    %v65 = vld [vmem:[%s60 + $0x10] sm:$0xf]
    %v66 = vld [vmem:[%s60 + $0x14] sm:$0xf]
    %v67 = vld [vmem:[%s60 + $0x18] sm:$0xf]
    %v68 = vld [vmem:[%s60 + $0x1c] sm:$0xf]
    %v69 = vld [vmem:[%s60 + $0x20] sm:$0xf]
    %v70 = vld [vmem:[%s60 + $0x24] sm:$0xf]
    %v71 = vld [vmem:[%s60 + $0x28] sm:$0xf]
    %v72 = vld [vmem:[%s60 + $0x2c] sm:$0xf]
    %v73 = vld [vmem:[%s60 + $0x30] sm:$0xf]
    %v74 = vld [vmem:[%s60 + $0x34] sm:$0xf]
    %v75 = vld [vmem:[%s60 + $0x38] sm:$0xf]
    %v76 = vld [vmem:[%s60 + $0x3c] sm:$0xf]
    %v93 = vunpack.c.l.b16 %v61
    %v94 = vunpack.c.l.b16 %v62
    %v95 = vunpack.c.l.b16 %v63
    %v96 = vunpack.c.l.b16 %v64
    %v97 = vunpack.c.l.b16 %v65
    %v98 = vunpack.c.l.b16 %v66
    %v99 = vunpack.c.l.b16 %v67
    %v100 = vunpack.c.l.b16 %v68
    %v101 = vunpack.c.l.b16 %v69
    %v102 = vunpack.c.l.b16 %v70
    %v103 = vunpack.c.l.b16 %v71
    %v104 = vunpack.c.l.b16 %v72
    %v105 = vunpack.c.l.b16 %v73
    %v106 = vunpack.c.l.b16 %v74
    %v107 = vunpack.c.l.b16 %v75
    %v108 = vunpack.c.l.b16 %v76
    %v109 = vpack.c.b16 %v94, %v93
    %v110 = vpack.c.b16 %v96, %v95
    %v111 = vpack.c.b16 %v98, %v97
    %v112 = vpack.c.b16 %v100, %v99
    %v113 = vpack.c.b16 %v102, %v101
    %v114 = vpack.c.b16 %v104, %v103
    %v115 = vpack.c.b16 %v106, %v105
    %v116 = vpack.c.b16 %v108, %v107
    %v125 = vunpack.c.l.b16 %v36
    %v126 = vunpack.c.l.b16 %v37
    %v127 = vunpack.c.l.b16 %v38
    %v128 = vunpack.c.l.b16 %v39
    %v129 = vunpack.c.l.b16 %v40
    %v130 = vunpack.c.l.b16 %v41
    %v131 = vunpack.c.l.b16 %v42
    %v132 = vunpack.c.l.b16 %v43
    %v133 = vpack.c.b16 %v126, %v125
    %v134 = vpack.c.b16 %v128, %v127
    %v135 = vpack.c.b16 %v130, %v129
    %v136 = vpack.c.b16 %v132, %v131
    %137 = vrot.lane.b32.xlu0 %v133, 127
    %v138 = vpop.permute.xlu0 %137
    %139 = vrot.lane.b32.xlu0 %v134, 127
    %v140 = vpop.permute.xlu0 %139
    %141 = vrot.lane.b32.xlu0 %v135, 127
    %v142 = vpop.permute.xlu0 %141
    %143 = vrot.lane.b32.xlu0 %v136, 127
    %v144 = vpop.permute.xlu0 %143
    %vm149 = vcmask 523264
    %v151 = vsel %vm149, %v109, 0
    %v154 = vsel %vm149, %v110, 0
    %v157 = vsel %vm149, %v111, 0
    %v160 = vsel %vm149, %v112, 0
    %v163 = vsel %vm149, %v113, 0
    %v166 = vsel %vm149, %v114, 0
    %v169 = vsel %vm149, %v115, 0
    %v172 = vsel %vm149, %v116, 0
    %174 = vmatpush.bf16.msra.mxu0 0
    %175 = vmatpush.bf16.msra.mxu0 0
    %176 = vmatpush.bf16.msra.mxu0 0
    %177 = vmatpush.bf16.msra.mxu0 0
    %178 = vmatpush.bf16.msra.mxu0 %v144
    %179 = vmatpush.bf16.msra.mxu0 %v142
    %180 = vmatpush.bf16.msra.mxu0 %v140
    %181 = vmatpush.bf16.msra.mxu0 %v138
    %182 = vmatmul.bf16.gmra.mxu0 %v151
    %v183 = vpop.f32.mrf.mxu0
    %v184 = vadd.f32 0.0, %v183
    %v185 = vpop.f32.mrf.mxu0
    %v186 = vadd.f32 0.0, %v185
    %187 = vmatmul.bf16.gmra.mxu0 %v154
    %v188 = vpop.f32.mrf.mxu0
    %v189 = vadd.f32 0.0, %v188
    %v190 = vpop.f32.mrf.mxu0
    %v191 = vadd.f32 0.0, %v190
    %192 = vmatmul.bf16.gmra.mxu0 %v157
    %v193 = vpop.f32.mrf.mxu0
    %v194 = vadd.f32 0.0, %v193
    %v195 = vpop.f32.mrf.mxu0
    %v196 = vadd.f32 0.0, %v195
    %197 = vmatmul.bf16.gmra.mxu0 %v160
    %v198 = vpop.f32.mrf.mxu0
    %v199 = vadd.f32 0.0, %v198
    %v200 = vpop.f32.mrf.mxu0
    %v201 = vadd.f32 0.0, %v200
    %202 = vmatmul.bf16.gmra.mxu0 %v163
    %v203 = vpop.f32.mrf.mxu0
    %v204 = vadd.f32 0.0, %v203
    %v205 = vpop.f32.mrf.mxu0
    %v206 = vadd.f32 0.0, %v205
    %207 = vmatmul.bf16.gmra.mxu0 %v166
    %v208 = vpop.f32.mrf.mxu0
    %v209 = vadd.f32 0.0, %v208
    %v210 = vpop.f32.mrf.mxu0
    %v211 = vadd.f32 0.0, %v210
    %212 = vmatmul.bf16.gmra.mxu0 %v169
    %v213 = vpop.f32.mrf.mxu0
    %v214 = vadd.f32 0.0, %v213
    %v215 = vpop.f32.mrf.mxu0
    %v216 = vadd.f32 0.0, %v215
    %217 = vmatmul.bf16.gmra.mxu0 %v172
    %v218 = vpop.f32.mrf.mxu0
    %v219 = vadd.f32 0.0, %v218
    %v220 = vpop.f32.mrf.mxu0
    %v221 = vadd.f32 0.0, %v220
    %222 = vdwg.mxu0
    %v239 = vunpack.c.l.b16 %v44
    %v240 = vunpack.c.l.b16 %v45
    %v241 = vunpack.c.l.b16 %v46
    %v242 = vunpack.c.l.b16 %v47
    %v243 = vunpack.c.l.b16 %v48
    %v244 = vunpack.c.l.b16 %v49
    %v245 = vunpack.c.l.b16 %v50
    %v246 = vunpack.c.l.b16 %v51
    %v247 = vunpack.c.l.b16 %v52
    %v248 = vunpack.c.l.b16 %v53
    %v249 = vunpack.c.l.b16 %v54
    %v250 = vunpack.c.l.b16 %v55
    %v251 = vunpack.c.l.b16 %v56
    %v252 = vunpack.c.l.b16 %v57
    %v253 = vunpack.c.l.b16 %v58
    %v254 = vunpack.c.l.b16 %v59
    %v255 = vpack.c.b16 %v240, %v239
    %v256 = vpack.c.b16 %v242, %v241
    %v257 = vpack.c.b16 %v244, %v243
    %v258 = vpack.c.b16 %v246, %v245
    %v259 = vpack.c.b16 %v248, %v247
    %v260 = vpack.c.b16 %v250, %v249
    %v261 = vpack.c.b16 %v252, %v251
    %v262 = vpack.c.b16 %v254, %v253
    %v268 = vsel %vm149, %v255, 0
    %v271 = vsel %vm149, %v256, 0
    %v274 = vsel %vm149, %v257, 0
    %v277 = vsel %vm149, %v258, 0
    %v280 = vsel %vm149, %v259, 0
    %v283 = vsel %vm149, %v260, 0
    %v286 = vsel %vm149, %v261, 0
    %v289 = vsel %vm149, %v262, 0
    %291 = vmatpush.bf16.msra.mxu0 0
    %292 = vmatpush.bf16.msra.mxu0 0
    %293 = vmatpush.bf16.msra.mxu0 0
    %294 = vmatpush.bf16.msra.mxu0 0
    %295 = vmatpush.bf16.msra.mxu0 %v136
    %296 = vmatpush.bf16.msra.mxu0 %v135
    %297 = vmatpush.bf16.msra.mxu0 %v134
    %298 = vmatpush.bf16.msra.mxu0 %v133
    %299 = vmatmul.bf16.gmra.mxu0 %v268
    %v300 = vpop.f32.mrf.mxu0
    %v301 = vadd.f32 %v184, %v300
    %v302 = vpop.f32.mrf.mxu0
    %v303 = vadd.f32 %v186, %v302
    %304 = vmatmul.bf16.gmra.mxu0 %v271
    %v305 = vpop.f32.mrf.mxu0
    %v306 = vadd.f32 %v189, %v305
    %v307 = vpop.f32.mrf.mxu0
    %v308 = vadd.f32 %v191, %v307
    %309 = vmatmul.bf16.gmra.mxu0 %v274
    %v310 = vpop.f32.mrf.mxu0
    %v311 = vadd.f32 %v194, %v310
    %v312 = vpop.f32.mrf.mxu0
    %v313 = vadd.f32 %v196, %v312
    %314 = vmatmul.bf16.gmra.mxu0 %v277
    %v315 = vpop.f32.mrf.mxu0
    %v316 = vadd.f32 %v199, %v315
    %v317 = vpop.f32.mrf.mxu0
    %v318 = vadd.f32 %v201, %v317
    %319 = vmatmul.bf16.gmra.mxu0 %v280
    %v320 = vpop.f32.mrf.mxu0
    %v321 = vadd.f32 %v204, %v320
    %v322 = vpop.f32.mrf.mxu0
    %v323 = vadd.f32 %v206, %v322
    %324 = vmatmul.bf16.gmra.mxu0 %v283
    %v325 = vpop.f32.mrf.mxu0
    %v326 = vadd.f32 %v209, %v325
    %v327 = vpop.f32.mrf.mxu0
    %v328 = vadd.f32 %v211, %v327
    %329 = vmatmul.bf16.gmra.mxu0 %v286
    %v330 = vpop.f32.mrf.mxu0
    %v331 = vadd.f32 %v214, %v330
    %v332 = vpop.f32.mrf.mxu0
    %v333 = vadd.f32 %v216, %v332
    %334 = vmatmul.bf16.gmra.mxu0 %v289
    %v335 = vpop.f32.mrf.mxu0
    %v336 = vadd.f32 %v219, %v335
    %v337 = vpop.f32.mrf.mxu0
    %v338 = vadd.f32 %v221, %v337
    %339 = vdwg.mxu0
    %s340 = scalar_lea.vmem %s1, 128
    %v341 = vld [vmem:[%s340] sm:$0xf]
    %v342 = vld [vmem:[%s340 + $0x4] sm:$0xf]
    %v343 = vld [vmem:[%s340 + $0x8] sm:$0xf]
    %v344 = vld [vmem:[%s340 + $0xc] sm:$0xf]
    %v345 = vld [vmem:[%s340 + $0x10] sm:$0xf]
    %v346 = vld [vmem:[%s340 + $0x14] sm:$0xf]
    %v347 = vld [vmem:[%s340 + $0x18] sm:$0xf]
    %v348 = vld [vmem:[%s340 + $0x1c] sm:$0xf]
    %v349 = vld [vmem:[%s340 + $0x20] sm:$0xf]
    %v350 = vld [vmem:[%s340 + $0x24] sm:$0xf]
    %v351 = vld [vmem:[%s340 + $0x28] sm:$0xf]
    %v352 = vld [vmem:[%s340 + $0x2c] sm:$0xf]
    %v353 = vld [vmem:[%s340 + $0x30] sm:$0xf]
    %v354 = vld [vmem:[%s340 + $0x34] sm:$0xf]
    %v355 = vld [vmem:[%s340 + $0x38] sm:$0xf]
    %v356 = vld [vmem:[%s340 + $0x3c] sm:$0xf]
    %v373 = vunpack.c.l.b16 %v341
    %v374 = vunpack.c.l.b16 %v342
    %v375 = vunpack.c.l.b16 %v343
    %v376 = vunpack.c.l.b16 %v344
    %v377 = vunpack.c.l.b16 %v345
    %v378 = vunpack.c.l.b16 %v346
    %v379 = vunpack.c.l.b16 %v347
    %v380 = vunpack.c.l.b16 %v348
    %v381 = vunpack.c.l.b16 %v349
    %v382 = vunpack.c.l.b16 %v350
    %v383 = vunpack.c.l.b16 %v351
    %v384 = vunpack.c.l.b16 %v352
    %v385 = vunpack.c.l.b16 %v353
    %v386 = vunpack.c.l.b16 %v354
    %v387 = vunpack.c.l.b16 %v355
    %v388 = vunpack.c.l.b16 %v356
    %v389 = vpack.c.b16 %v374, %v373
    %v390 = vpack.c.b16 %v376, %v375
    %v391 = vpack.c.b16 %v378, %v377
    %v392 = vpack.c.b16 %v380, %v379
    %v393 = vpack.c.b16 %v382, %v381
    %v394 = vpack.c.b16 %v384, %v383
    %v395 = vpack.c.b16 %v386, %v385
    %v396 = vpack.c.b16 %v388, %v387
    %397 = vrot.lane.b32.xlu0 %v133, 126
    %v398 = vpop.permute.xlu0 %397
    %399 = vrot.lane.b32.xlu0 %v134, 126
    %v400 = vpop.permute.xlu0 %399
    %401 = vrot.lane.b32.xlu0 %v135, 126
    %v402 = vpop.permute.xlu0 %401
    %403 = vrot.lane.b32.xlu0 %v136, 126
    %v404 = vpop.permute.xlu0 %403
    %v410 = vsel %vm149, %v389, 0
    %v413 = vsel %vm149, %v390, 0
    %v416 = vsel %vm149, %v391, 0
    %v419 = vsel %vm149, %v392, 0
    %v422 = vsel %vm149, %v393, 0
    %v425 = vsel %vm149, %v394, 0
    %v428 = vsel %vm149, %v395, 0
    %v431 = vsel %vm149, %v396, 0
    %433 = vmatpush.bf16.msra.mxu0 0
    %434 = vmatpush.bf16.msra.mxu0 0
    %435 = vmatpush.bf16.msra.mxu0 0
    %436 = vmatpush.bf16.msra.mxu0 0
    %437 = vmatpush.bf16.msra.mxu0 %v404
    %438 = vmatpush.bf16.msra.mxu0 %v402
    %439 = vmatpush.bf16.msra.mxu0 %v400
    %440 = vmatpush.bf16.msra.mxu0 %v398
    %441 = vmatmul.bf16.gmra.mxu0 %v410
    %v442 = vpop.f32.mrf.mxu0
    %v443 = vadd.f32 0.0, %v442
    %v444 = vpop.f32.mrf.mxu0
    %v445 = vadd.f32 0.0, %v444
    %446 = vmatmul.bf16.gmra.mxu0 %v413
    %v447 = vpop.f32.mrf.mxu0
    %v448 = vadd.f32 0.0, %v447
    %v449 = vpop.f32.mrf.mxu0
    %v450 = vadd.f32 0.0, %v449
    %451 = vmatmul.bf16.gmra.mxu0 %v416
    %v452 = vpop.f32.mrf.mxu0
    %v453 = vadd.f32 0.0, %v452
    %v454 = vpop.f32.mrf.mxu0
    %v455 = vadd.f32 0.0, %v454
    %456 = vmatmul.bf16.gmra.mxu0 %v419
    %v457 = vpop.f32.mrf.mxu0
    %v458 = vadd.f32 0.0, %v457
    %v459 = vpop.f32.mrf.mxu0
    %v460 = vadd.f32 0.0, %v459
    %461 = vmatmul.bf16.gmra.mxu0 %v422
    %v462 = vpop.f32.mrf.mxu0
    %v463 = vadd.f32 0.0, %v462
    %v464 = vpop.f32.mrf.mxu0
    %v465 = vadd.f32 0.0, %v464
    %466 = vmatmul.bf16.gmra.mxu0 %v425
    %v467 = vpop.f32.mrf.mxu0
    %v468 = vadd.f32 0.0, %v467
    %v469 = vpop.f32.mrf.mxu0
    %v470 = vadd.f32 0.0, %v469
    %471 = vmatmul.bf16.gmra.mxu0 %v428
    %v472 = vpop.f32.mrf.mxu0
    %v473 = vadd.f32 0.0, %v472
    %v474 = vpop.f32.mrf.mxu0
    %v475 = vadd.f32 0.0, %v474
    %476 = vmatmul.bf16.gmra.mxu0 %v431
    %v477 = vpop.f32.mrf.mxu0
    %v478 = vadd.f32 0.0, %v477
    %v479 = vpop.f32.mrf.mxu0
    %v480 = vadd.f32 0.0, %v479
    %481 = vdwg.mxu0
    %v482 = vadd.f32 %v301, %v443
    %v483 = vadd.f32 %v303, %v445
    %v484 = vadd.f32 %v306, %v448
    %v485 = vadd.f32 %v308, %v450
    %v486 = vadd.f32 %v311, %v453
    %v487 = vadd.f32 %v313, %v455
    %v488 = vadd.f32 %v316, %v458
    %v489 = vadd.f32 %v318, %v460
    %v490 = vadd.f32 %v321, %v463
    %v491 = vadd.f32 %v323, %v465
    %v492 = vadd.f32 %v326, %v468
    %v493 = vadd.f32 %v328, %v470
    %v494 = vadd.f32 %v331, %v473
    %v495 = vadd.f32 %v333, %v475
    %v496 = vadd.f32 %v336, %v478
    %v497 = vadd.f32 %v338, %v480
    %s498 = scalar_lea.vmem %s1, 192
    %v499 = vld [vmem:[%s498] sm:$0xf]
    %v500 = vld [vmem:[%s498 + $0x4] sm:$0xf]
    %v501 = vld [vmem:[%s498 + $0x8] sm:$0xf]
    %v502 = vld [vmem:[%s498 + $0xc] sm:$0xf]
    %v503 = vld [vmem:[%s498 + $0x10] sm:$0xf]
    %v504 = vld [vmem:[%s498 + $0x14] sm:$0xf]
    %v505 = vld [vmem:[%s498 + $0x18] sm:$0xf]
    %v506 = vld [vmem:[%s498 + $0x1c] sm:$0xf]
    %v507 = vld [vmem:[%s498 + $0x20] sm:$0xf]
    %v508 = vld [vmem:[%s498 + $0x24] sm:$0xf]
    %v509 = vld [vmem:[%s498 + $0x28] sm:$0xf]
    %v510 = vld [vmem:[%s498 + $0x2c] sm:$0xf]
    %v511 = vld [vmem:[%s498 + $0x30] sm:$0xf]
    %v512 = vld [vmem:[%s498 + $0x34] sm:$0xf]
    %v513 = vld [vmem:[%s498 + $0x38] sm:$0xf]
    %v514 = vld [vmem:[%s498 + $0x3c] sm:$0xf]
    %v531 = vunpack.c.l.b16 %v499
    %v532 = vunpack.c.l.b16 %v500
    %v533 = vunpack.c.l.b16 %v501
    %v534 = vunpack.c.l.b16 %v502
    %v535 = vunpack.c.l.b16 %v503
    %v536 = vunpack.c.l.b16 %v504
    %v537 = vunpack.c.l.b16 %v505
    %v538 = vunpack.c.l.b16 %v506
    %v539 = vunpack.c.l.b16 %v507
    %v540 = vunpack.c.l.b16 %v508
    %v541 = vunpack.c.l.b16 %v509
    %v542 = vunpack.c.l.b16 %v510
    %v543 = vunpack.c.l.b16 %v511
    %v544 = vunpack.c.l.b16 %v512
    %v545 = vunpack.c.l.b16 %v513
    %v546 = vunpack.c.l.b16 %v514
    %v547 = vpack.c.b16 %v532, %v531
    %v548 = vpack.c.b16 %v534, %v533
    %v549 = vpack.c.b16 %v536, %v535
    %v550 = vpack.c.b16 %v538, %v537
    %v551 = vpack.c.b16 %v540, %v539
    %v552 = vpack.c.b16 %v542, %v541
    %v553 = vpack.c.b16 %v544, %v543
    %v554 = vpack.c.b16 %v546, %v545
    %555 = vrot.lane.b32.xlu0 %v133, 122
    %v556 = vpop.permute.xlu0 %555
    %557 = vrot.lane.b32.xlu0 %v134, 122
    %v558 = vpop.permute.xlu0 %557
    %559 = vrot.lane.b32.xlu0 %v135, 122
    %v560 = vpop.permute.xlu0 %559
    %561 = vrot.lane.b32.xlu0 %v136, 122
    %v562 = vpop.permute.xlu0 %561
    %v568 = vsel %vm149, %v547, 0
    %v571 = vsel %vm149, %v548, 0
    %v574 = vsel %vm149, %v549, 0
    %v577 = vsel %vm149, %v550, 0
    %v580 = vsel %vm149, %v551, 0
    %v583 = vsel %vm149, %v552, 0
    %v586 = vsel %vm149, %v553, 0
    %v589 = vsel %vm149, %v554, 0
    %591 = vmatpush.bf16.msra.mxu0 0
    %592 = vmatpush.bf16.msra.mxu0 0
    %593 = vmatpush.bf16.msra.mxu0 0
    %594 = vmatpush.bf16.msra.mxu0 0
    %595 = vmatpush.bf16.msra.mxu0 %v562
    %596 = vmatpush.bf16.msra.mxu0 %v560
    %597 = vmatpush.bf16.msra.mxu0 %v558
    %598 = vmatpush.bf16.msra.mxu0 %v556
    %599 = vmatmul.bf16.gmra.mxu0 %v568
    %v600 = vpop.f32.mrf.mxu0
    %v601 = vadd.f32 0.0, %v600
    %v602 = vpop.f32.mrf.mxu0
    %v603 = vadd.f32 0.0, %v602
    %604 = vmatmul.bf16.gmra.mxu0 %v571
    %v605 = vpop.f32.mrf.mxu0
    %v606 = vadd.f32 0.0, %v605
    %v607 = vpop.f32.mrf.mxu0
    %v608 = vadd.f32 0.0, %v607
    %609 = vmatmul.bf16.gmra.mxu0 %v574
    %v610 = vpop.f32.mrf.mxu0
    %v611 = vadd.f32 0.0, %v610
    %v612 = vpop.f32.mrf.mxu0
    %v613 = vadd.f32 0.0, %v612
    %614 = vmatmul.bf16.gmra.mxu0 %v577
    %v615 = vpop.f32.mrf.mxu0
    %v616 = vadd.f32 0.0, %v615
    %v617 = vpop.f32.mrf.mxu0
    %v618 = vadd.f32 0.0, %v617
    %619 = vmatmul.bf16.gmra.mxu0 %v580
    %v620 = vpop.f32.mrf.mxu0
    %v621 = vadd.f32 0.0, %v620
    %v622 = vpop.f32.mrf.mxu0
    %v623 = vadd.f32 0.0, %v622
    %624 = vmatmul.bf16.gmra.mxu0 %v583
    %v625 = vpop.f32.mrf.mxu0
    %v626 = vadd.f32 0.0, %v625
    %v627 = vpop.f32.mrf.mxu0
    %v628 = vadd.f32 0.0, %v627
    %629 = vmatmul.bf16.gmra.mxu0 %v586
    %v630 = vpop.f32.mrf.mxu0
    %v631 = vadd.f32 0.0, %v630
    %v632 = vpop.f32.mrf.mxu0
    %v633 = vadd.f32 0.0, %v632
    %634 = vmatmul.bf16.gmra.mxu0 %v589
    %v635 = vpop.f32.mrf.mxu0
    %v636 = vadd.f32 0.0, %v635
    %v637 = vpop.f32.mrf.mxu0
    %v638 = vadd.f32 0.0, %v637
    %639 = vdwg.mxu0
    %v640 = vadd.f32 %v482, %v601
    %v641 = vadd.f32 %v483, %v603
    %v642 = vadd.f32 %v484, %v606
    %v643 = vadd.f32 %v485, %v608
    %v644 = vadd.f32 %v486, %v611
    %v645 = vadd.f32 %v487, %v613
    %v646 = vadd.f32 %v488, %v616
    %v647 = vadd.f32 %v489, %v618
    %v648 = vadd.f32 %v490, %v621
    %v649 = vadd.f32 %v491, %v623
    %v650 = vadd.f32 %v492, %v626
    %v651 = vadd.f32 %v493, %v628
    %v652 = vadd.f32 %v494, %v631
    %v653 = vadd.f32 %v495, %v633
    %v654 = vadd.f32 %v496, %v636
    %v655 = vadd.f32 %v497, %v638
    %s656 = scalar_lea.vmem %s1, 256
    %v657 = vld [vmem:[%s656] sm:$0xf]
    %v658 = vld [vmem:[%s656 + $0x4] sm:$0xf]
    %v659 = vld [vmem:[%s656 + $0x8] sm:$0xf]
    %v660 = vld [vmem:[%s656 + $0xc] sm:$0xf]
    %v661 = vld [vmem:[%s656 + $0x10] sm:$0xf]
    %v662 = vld [vmem:[%s656 + $0x14] sm:$0xf]
    %v663 = vld [vmem:[%s656 + $0x18] sm:$0xf]
    %v664 = vld [vmem:[%s656 + $0x1c] sm:$0xf]
    %v665 = vld [vmem:[%s656 + $0x20] sm:$0xf]
    %v666 = vld [vmem:[%s656 + $0x24] sm:$0xf]
    %v667 = vld [vmem:[%s656 + $0x28] sm:$0xf]
    %v668 = vld [vmem:[%s656 + $0x2c] sm:$0xf]
    %v669 = vld [vmem:[%s656 + $0x30] sm:$0xf]
    %v670 = vld [vmem:[%s656 + $0x34] sm:$0xf]
    %v671 = vld [vmem:[%s656 + $0x38] sm:$0xf]
    %v672 = vld [vmem:[%s656 + $0x3c] sm:$0xf]
    %v689 = vunpack.c.l.b16 %v657
    %v690 = vunpack.c.l.b16 %v658
    %v691 = vunpack.c.l.b16 %v659
    %v692 = vunpack.c.l.b16 %v660
    %v693 = vunpack.c.l.b16 %v661
    %v694 = vunpack.c.l.b16 %v662
    %v695 = vunpack.c.l.b16 %v663
    %v696 = vunpack.c.l.b16 %v664
    %v697 = vunpack.c.l.b16 %v665
    %v698 = vunpack.c.l.b16 %v666
    %v699 = vunpack.c.l.b16 %v667
    %v700 = vunpack.c.l.b16 %v668
    %v701 = vunpack.c.l.b16 %v669
    %v702 = vunpack.c.l.b16 %v670
    %v703 = vunpack.c.l.b16 %v671
    %v704 = vunpack.c.l.b16 %v672
    %v705 = vpack.c.b16 %v690, %v689
    %v706 = vpack.c.b16 %v692, %v691
    %v707 = vpack.c.b16 %v694, %v693
    %v708 = vpack.c.b16 %v696, %v695
    %v709 = vpack.c.b16 %v698, %v697
    %v710 = vpack.c.b16 %v700, %v699
    %v711 = vpack.c.b16 %v702, %v701
    %v712 = vpack.c.b16 %v704, %v703
    %713 = vrot.lane.b32.xlu0 %v133, 121
    %v714 = vpop.permute.xlu0 %713
    %715 = vrot.lane.b32.xlu0 %v134, 121
    %v716 = vpop.permute.xlu0 %715
    %717 = vrot.lane.b32.xlu0 %v135, 121
    %v718 = vpop.permute.xlu0 %717
    %719 = vrot.lane.b32.xlu0 %v136, 121
    %v720 = vpop.permute.xlu0 %719
    %v726 = vsel %vm149, %v705, 0
    %v729 = vsel %vm149, %v706, 0
    %v732 = vsel %vm149, %v707, 0
    %v735 = vsel %vm149, %v708, 0
    %v738 = vsel %vm149, %v709, 0
    %v741 = vsel %vm149, %v710, 0
    %v744 = vsel %vm149, %v711, 0
    %v747 = vsel %vm149, %v712, 0
    %749 = vmatpush.bf16.msra.mxu0 0
    %750 = vmatpush.bf16.msra.mxu0 0
    %751 = vmatpush.bf16.msra.mxu0 0
    %752 = vmatpush.bf16.msra.mxu0 0
    %753 = vmatpush.bf16.msra.mxu0 %v720
    %754 = vmatpush.bf16.msra.mxu0 %v718
    %755 = vmatpush.bf16.msra.mxu0 %v716
    %756 = vmatpush.bf16.msra.mxu0 %v714
    %757 = vmatmul.bf16.gmra.mxu0 %v726
    %v758 = vpop.f32.mrf.mxu0
    %v759 = vadd.f32 0.0, %v758
    %v760 = vpop.f32.mrf.mxu0
    %v761 = vadd.f32 0.0, %v760
    %762 = vmatmul.bf16.gmra.mxu0 %v729
    %v763 = vpop.f32.mrf.mxu0
    %v764 = vadd.f32 0.0, %v763
    %v765 = vpop.f32.mrf.mxu0
    %v766 = vadd.f32 0.0, %v765
    %767 = vmatmul.bf16.gmra.mxu0 %v732
    %v768 = vpop.f32.mrf.mxu0
    %v769 = vadd.f32 0.0, %v768
    %v770 = vpop.f32.mrf.mxu0
    %v771 = vadd.f32 0.0, %v770
    %772 = vmatmul.bf16.gmra.mxu0 %v735
    %v773 = vpop.f32.mrf.mxu0
    %v774 = vadd.f32 0.0, %v773
    %v775 = vpop.f32.mrf.mxu0
    %v776 = vadd.f32 0.0, %v775
    %777 = vmatmul.bf16.gmra.mxu0 %v738
    %v778 = vpop.f32.mrf.mxu0
    %v779 = vadd.f32 0.0, %v778
    %v780 = vpop.f32.mrf.mxu0
    %v781 = vadd.f32 0.0, %v780
    %782 = vmatmul.bf16.gmra.mxu0 %v741
    %v783 = vpop.f32.mrf.mxu0
    %v784 = vadd.f32 0.0, %v783
    %v785 = vpop.f32.mrf.mxu0
    %v786 = vadd.f32 0.0, %v785
    %787 = vmatmul.bf16.gmra.mxu0 %v744
    %v788 = vpop.f32.mrf.mxu0
    %v789 = vadd.f32 0.0, %v788
    %v790 = vpop.f32.mrf.mxu0
    %v791 = vadd.f32 0.0, %v790
    %792 = vmatmul.bf16.gmra.mxu0 %v747
    %v793 = vpop.f32.mrf.mxu0
    %v794 = vadd.f32 0.0, %v793
    %v795 = vpop.f32.mrf.mxu0
    %v796 = vadd.f32 0.0, %v795
    %797 = vdwg.mxu0
    %v798 = vadd.f32 %v640, %v759
    %v799 = vadd.f32 %v641, %v761
    %v800 = vadd.f32 %v642, %v764
    %v801 = vadd.f32 %v643, %v766
    %v802 = vadd.f32 %v644, %v769
    %v803 = vadd.f32 %v645, %v771
    %v804 = vadd.f32 %v646, %v774
    %v805 = vadd.f32 %v647, %v776
    %v806 = vadd.f32 %v648, %v779
    %v807 = vadd.f32 %v649, %v781
    %v808 = vadd.f32 %v650, %v784
    %v809 = vadd.f32 %v651, %v786
    %v810 = vadd.f32 %v652, %v789
    %v811 = vadd.f32 %v653, %v791
    %v812 = vadd.f32 %v654, %v794
    %v813 = vadd.f32 %v655, %v796
    %s814 = scalar_lea.vmem %s1, 320
    %v815 = vld [vmem:[%s814] sm:$0xf]
    %v816 = vld [vmem:[%s814 + $0x4] sm:$0xf]
    %v817 = vld [vmem:[%s814 + $0x8] sm:$0xf]
    %v818 = vld [vmem:[%s814 + $0xc] sm:$0xf]
    %v819 = vld [vmem:[%s814 + $0x10] sm:$0xf]
    %v820 = vld [vmem:[%s814 + $0x14] sm:$0xf]
    %v821 = vld [vmem:[%s814 + $0x18] sm:$0xf]
    %v822 = vld [vmem:[%s814 + $0x1c] sm:$0xf]
    %v823 = vld [vmem:[%s814 + $0x20] sm:$0xf]
    %v824 = vld [vmem:[%s814 + $0x24] sm:$0xf]
    %v825 = vld [vmem:[%s814 + $0x28] sm:$0xf]
    %v826 = vld [vmem:[%s814 + $0x2c] sm:$0xf]
    %v827 = vld [vmem:[%s814 + $0x30] sm:$0xf]
    %v828 = vld [vmem:[%s814 + $0x34] sm:$0xf]
    %v829 = vld [vmem:[%s814 + $0x38] sm:$0xf]
    %v830 = vld [vmem:[%s814 + $0x3c] sm:$0xf]
    %v847 = vunpack.c.l.b16 %v815
    %v848 = vunpack.c.l.b16 %v816
    %v849 = vunpack.c.l.b16 %v817
    %v850 = vunpack.c.l.b16 %v818
    %v851 = vunpack.c.l.b16 %v819
    %v852 = vunpack.c.l.b16 %v820
    %v853 = vunpack.c.l.b16 %v821
    %v854 = vunpack.c.l.b16 %v822
    %v855 = vunpack.c.l.b16 %v823
    %v856 = vunpack.c.l.b16 %v824
    %v857 = vunpack.c.l.b16 %v825
    %v858 = vunpack.c.l.b16 %v826
    %v859 = vunpack.c.l.b16 %v827
    %v860 = vunpack.c.l.b16 %v828
    %v861 = vunpack.c.l.b16 %v829
    %v862 = vunpack.c.l.b16 %v830
    %v863 = vpack.c.b16 %v848, %v847
    %v864 = vpack.c.b16 %v850, %v849
    %v865 = vpack.c.b16 %v852, %v851
    %v866 = vpack.c.b16 %v854, %v853
    %v867 = vpack.c.b16 %v856, %v855
    %v868 = vpack.c.b16 %v858, %v857
    %v869 = vpack.c.b16 %v860, %v859
    %v870 = vpack.c.b16 %v862, %v861
    %871 = vrot.lane.b32.xlu0 %v133, 120
    %v872 = vpop.permute.xlu0 %871
    %873 = vrot.lane.b32.xlu0 %v134, 120
    %v874 = vpop.permute.xlu0 %873
    %875 = vrot.lane.b32.xlu0 %v135, 120
    %v876 = vpop.permute.xlu0 %875
    %877 = vrot.lane.b32.xlu0 %v136, 120
    %v878 = vpop.permute.xlu0 %877
    %v884 = vsel %vm149, %v863, 0
    %v887 = vsel %vm149, %v864, 0
    %v890 = vsel %vm149, %v865, 0
    %v893 = vsel %vm149, %v866, 0
    %v896 = vsel %vm149, %v867, 0
    %v899 = vsel %vm149, %v868, 0
    %v902 = vsel %vm149, %v869, 0
    %v905 = vsel %vm149, %v870, 0
    %907 = vmatpush.bf16.msra.mxu0 0
    %908 = vmatpush.bf16.msra.mxu0 0
    %909 = vmatpush.bf16.msra.mxu0 0
    %910 = vmatpush.bf16.msra.mxu0 0
    %911 = vmatpush.bf16.msra.mxu0 %v878
    %912 = vmatpush.bf16.msra.mxu0 %v876
    %913 = vmatpush.bf16.msra.mxu0 %v874
    %914 = vmatpush.bf16.msra.mxu0 %v872
    %915 = vmatmul.bf16.gmra.mxu0 %v884
    %v916 = vpop.f32.mrf.mxu0
    %v917 = vadd.f32 0.0, %v916
    %v918 = vpop.f32.mrf.mxu0
    %v919 = vadd.f32 0.0, %v918
    %920 = vmatmul.bf16.gmra.mxu0 %v887
    %v921 = vpop.f32.mrf.mxu0
    %v922 = vadd.f32 0.0, %v921
    %v923 = vpop.f32.mrf.mxu0
    %v924 = vadd.f32 0.0, %v923
    %925 = vmatmul.bf16.gmra.mxu0 %v890
    %v926 = vpop.f32.mrf.mxu0
    %v927 = vadd.f32 0.0, %v926
    %v928 = vpop.f32.mrf.mxu0
    %v929 = vadd.f32 0.0, %v928
    %930 = vmatmul.bf16.gmra.mxu0 %v893
    %v931 = vpop.f32.mrf.mxu0
    %v932 = vadd.f32 0.0, %v931
    %v933 = vpop.f32.mrf.mxu0
    %v934 = vadd.f32 0.0, %v933
    %935 = vmatmul.bf16.gmra.mxu0 %v896
    %v936 = vpop.f32.mrf.mxu0
    %v937 = vadd.f32 0.0, %v936
    %v938 = vpop.f32.mrf.mxu0
    %v939 = vadd.f32 0.0, %v938
    %940 = vmatmul.bf16.gmra.mxu0 %v899
    %v941 = vpop.f32.mrf.mxu0
    %v942 = vadd.f32 0.0, %v941
    %v943 = vpop.f32.mrf.mxu0
    %v944 = vadd.f32 0.0, %v943
    %945 = vmatmul.bf16.gmra.mxu0 %v902
    %v946 = vpop.f32.mrf.mxu0
    %v947 = vadd.f32 0.0, %v946
    %v948 = vpop.f32.mrf.mxu0
    %v949 = vadd.f32 0.0, %v948
    %950 = vmatmul.bf16.gmra.mxu0 %v905
    %v951 = vpop.f32.mrf.mxu0
    %v952 = vadd.f32 0.0, %v951
    %v953 = vpop.f32.mrf.mxu0
    %v954 = vadd.f32 0.0, %v953
    %955 = vdwg.mxu0
    %v956 = vadd.f32 %v798, %v917
    %v957 = vadd.f32 %v799, %v919
    %v958 = vadd.f32 %v800, %v922
    %v959 = vadd.f32 %v801, %v924
    %v960 = vadd.f32 %v802, %v927
    %v961 = vadd.f32 %v803, %v929
    %v962 = vadd.f32 %v804, %v932
    %v963 = vadd.f32 %v805, %v934
    %v964 = vadd.f32 %v806, %v937
    %v965 = vadd.f32 %v807, %v939
    %v966 = vadd.f32 %v808, %v942
    %v967 = vadd.f32 %v809, %v944
    %v968 = vadd.f32 %v810, %v947
    %v969 = vadd.f32 %v811, %v949
    %v970 = vadd.f32 %v812, %v952
    %v971 = vadd.f32 %v813, %v954
    %s972 = scalar_lea.vmem %s1, 384
    %v973 = vld [vmem:[%s972] sm:$0xf]
    %v974 = vld [vmem:[%s972 + $0x4] sm:$0xf]
    %v975 = vld [vmem:[%s972 + $0x8] sm:$0xf]
    %v976 = vld [vmem:[%s972 + $0xc] sm:$0xf]
    %v977 = vld [vmem:[%s972 + $0x10] sm:$0xf]
    %v978 = vld [vmem:[%s972 + $0x14] sm:$0xf]
    %v979 = vld [vmem:[%s972 + $0x18] sm:$0xf]
    %v980 = vld [vmem:[%s972 + $0x1c] sm:$0xf]
    %v981 = vld [vmem:[%s972 + $0x20] sm:$0xf]
    %v982 = vld [vmem:[%s972 + $0x24] sm:$0xf]
    %v983 = vld [vmem:[%s972 + $0x28] sm:$0xf]
    %v984 = vld [vmem:[%s972 + $0x2c] sm:$0xf]
    %v985 = vld [vmem:[%s972 + $0x30] sm:$0xf]
    %v986 = vld [vmem:[%s972 + $0x34] sm:$0xf]
    %v987 = vld [vmem:[%s972 + $0x38] sm:$0xf]
    %v988 = vld [vmem:[%s972 + $0x3c] sm:$0xf]
    %v1005 = vunpack.c.l.b16 %v973
    %v1006 = vunpack.c.l.b16 %v974
    %v1007 = vunpack.c.l.b16 %v975
    %v1008 = vunpack.c.l.b16 %v976
    %v1009 = vunpack.c.l.b16 %v977
    %v1010 = vunpack.c.l.b16 %v978
    %v1011 = vunpack.c.l.b16 %v979
    %v1012 = vunpack.c.l.b16 %v980
    %v1013 = vunpack.c.l.b16 %v981
    %v1014 = vunpack.c.l.b16 %v982
    %v1015 = vunpack.c.l.b16 %v983
    %v1016 = vunpack.c.l.b16 %v984
    %v1017 = vunpack.c.l.b16 %v985
    %v1018 = vunpack.c.l.b16 %v986
    %v1019 = vunpack.c.l.b16 %v987
    %v1020 = vunpack.c.l.b16 %v988
    %v1021 = vpack.c.b16 %v1006, %v1005
    %v1022 = vpack.c.b16 %v1008, %v1007
    %v1023 = vpack.c.b16 %v1010, %v1009
    %v1024 = vpack.c.b16 %v1012, %v1011
    %v1025 = vpack.c.b16 %v1014, %v1013
    %v1026 = vpack.c.b16 %v1016, %v1015
    %v1027 = vpack.c.b16 %v1018, %v1017
    %v1028 = vpack.c.b16 %v1020, %v1019
    %1029 = vrot.lane.b32.xlu0 %v133, 116
    %v1030 = vpop.permute.xlu0 %1029
    %1031 = vrot.lane.b32.xlu0 %v134, 116
    %v1032 = vpop.permute.xlu0 %1031
    %1033 = vrot.lane.b32.xlu0 %v135, 116
    %v1034 = vpop.permute.xlu0 %1033
    %1035 = vrot.lane.b32.xlu0 %v136, 116
    %v1036 = vpop.permute.xlu0 %1035
    %v1042 = vsel %vm149, %v1021, 0
    %v1045 = vsel %vm149, %v1022, 0
    %v1048 = vsel %vm149, %v1023, 0
    %v1051 = vsel %vm149, %v1024, 0
    %v1054 = vsel %vm149, %v1025, 0
    %v1057 = vsel %vm149, %v1026, 0
    %v1060 = vsel %vm149, %v1027, 0
    %v1063 = vsel %vm149, %v1028, 0
    %1065 = vmatpush.bf16.msra.mxu0 0
    %1066 = vmatpush.bf16.msra.mxu0 0
    %1067 = vmatpush.bf16.msra.mxu0 0
    %1068 = vmatpush.bf16.msra.mxu0 0
    %1069 = vmatpush.bf16.msra.mxu0 %v1036
    %1070 = vmatpush.bf16.msra.mxu0 %v1034
    %1071 = vmatpush.bf16.msra.mxu0 %v1032
    %1072 = vmatpush.bf16.msra.mxu0 %v1030
    %1073 = vmatmul.bf16.gmra.mxu0 %v1042
    %v1074 = vpop.f32.mrf.mxu0
    %v1075 = vadd.f32 0.0, %v1074
    %v1076 = vpop.f32.mrf.mxu0
    %v1077 = vadd.f32 0.0, %v1076
    %1078 = vmatmul.bf16.gmra.mxu0 %v1045
    %v1079 = vpop.f32.mrf.mxu0
    %v1080 = vadd.f32 0.0, %v1079
    %v1081 = vpop.f32.mrf.mxu0
    %v1082 = vadd.f32 0.0, %v1081
    %1083 = vmatmul.bf16.gmra.mxu0 %v1048
    %v1084 = vpop.f32.mrf.mxu0
    %v1085 = vadd.f32 0.0, %v1084
    %v1086 = vpop.f32.mrf.mxu0
    %v1087 = vadd.f32 0.0, %v1086
    %1088 = vmatmul.bf16.gmra.mxu0 %v1051
    %v1089 = vpop.f32.mrf.mxu0
    %v1090 = vadd.f32 0.0, %v1089
    %v1091 = vpop.f32.mrf.mxu0
    %v1092 = vadd.f32 0.0, %v1091
    %1093 = vmatmul.bf16.gmra.mxu0 %v1054
    %v1094 = vpop.f32.mrf.mxu0
    %v1095 = vadd.f32 0.0, %v1094
    %v1096 = vpop.f32.mrf.mxu0
    %v1097 = vadd.f32 0.0, %v1096
    %1098 = vmatmul.bf16.gmra.mxu0 %v1057
    %v1099 = vpop.f32.mrf.mxu0
    %v1100 = vadd.f32 0.0, %v1099
    %v1101 = vpop.f32.mrf.mxu0
    %v1102 = vadd.f32 0.0, %v1101
    %1103 = vmatmul.bf16.gmra.mxu0 %v1060
    %v1104 = vpop.f32.mrf.mxu0
    %v1105 = vadd.f32 0.0, %v1104
    %v1106 = vpop.f32.mrf.mxu0
    %v1107 = vadd.f32 0.0, %v1106
    %1108 = vmatmul.bf16.gmra.mxu0 %v1063
    %v1109 = vpop.f32.mrf.mxu0
    %v1110 = vadd.f32 0.0, %v1109
    %v1111 = vpop.f32.mrf.mxu0
    %v1112 = vadd.f32 0.0, %v1111
    %1113 = vdwg.mxu0
    %v1114 = vadd.f32 %v956, %v1075
    %v1115 = vadd.f32 %v957, %v1077
    %v1116 = vadd.f32 %v958, %v1080
    %v1117 = vadd.f32 %v959, %v1082
    %v1118 = vadd.f32 %v960, %v1085
    %v1119 = vadd.f32 %v961, %v1087
    %v1120 = vadd.f32 %v962, %v1090
    %v1121 = vadd.f32 %v963, %v1092
    %v1122 = vadd.f32 %v964, %v1095
    %v1123 = vadd.f32 %v965, %v1097
    %v1124 = vadd.f32 %v966, %v1100
    %v1125 = vadd.f32 %v967, %v1102
    %v1126 = vadd.f32 %v968, %v1105
    %v1127 = vadd.f32 %v969, %v1107
    %v1128 = vadd.f32 %v970, %v1110
    %v1129 = vadd.f32 %v971, %v1112
    %s1130 = scalar_lea.vmem %s1, 448
    %v1131 = vld [vmem:[%s1130] sm:$0xf]
    %v1132 = vld [vmem:[%s1130 + $0x4] sm:$0xf]
    %v1133 = vld [vmem:[%s1130 + $0x8] sm:$0xf]
    %v1134 = vld [vmem:[%s1130 + $0xc] sm:$0xf]
    %v1135 = vld [vmem:[%s1130 + $0x10] sm:$0xf]
    %v1136 = vld [vmem:[%s1130 + $0x14] sm:$0xf]
    %v1137 = vld [vmem:[%s1130 + $0x18] sm:$0xf]
    %v1138 = vld [vmem:[%s1130 + $0x1c] sm:$0xf]
    %v1139 = vld [vmem:[%s1130 + $0x20] sm:$0xf]
    %v1140 = vld [vmem:[%s1130 + $0x24] sm:$0xf]
    %v1141 = vld [vmem:[%s1130 + $0x28] sm:$0xf]
    %v1142 = vld [vmem:[%s1130 + $0x2c] sm:$0xf]
    %v1143 = vld [vmem:[%s1130 + $0x30] sm:$0xf]
    %v1144 = vld [vmem:[%s1130 + $0x34] sm:$0xf]
    %v1145 = vld [vmem:[%s1130 + $0x38] sm:$0xf]
    %v1146 = vld [vmem:[%s1130 + $0x3c] sm:$0xf]
    %v1163 = vunpack.c.l.b16 %v1131
    %v1164 = vunpack.c.l.b16 %v1132
    %v1165 = vunpack.c.l.b16 %v1133
    %v1166 = vunpack.c.l.b16 %v1134
    %v1167 = vunpack.c.l.b16 %v1135
    %v1168 = vunpack.c.l.b16 %v1136
    %v1169 = vunpack.c.l.b16 %v1137
    %v1170 = vunpack.c.l.b16 %v1138
    %v1171 = vunpack.c.l.b16 %v1139
    %v1172 = vunpack.c.l.b16 %v1140
    %v1173 = vunpack.c.l.b16 %v1141
    %v1174 = vunpack.c.l.b16 %v1142
    %v1175 = vunpack.c.l.b16 %v1143
    %v1176 = vunpack.c.l.b16 %v1144
    %v1177 = vunpack.c.l.b16 %v1145
    %v1178 = vunpack.c.l.b16 %v1146
    %v1179 = vpack.c.b16 %v1164, %v1163
    %v1180 = vpack.c.b16 %v1166, %v1165
    %v1181 = vpack.c.b16 %v1168, %v1167
    %v1182 = vpack.c.b16 %v1170, %v1169
    %v1183 = vpack.c.b16 %v1172, %v1171
    %v1184 = vpack.c.b16 %v1174, %v1173
    %v1185 = vpack.c.b16 %v1176, %v1175
    %v1186 = vpack.c.b16 %v1178, %v1177
    %1187 = vrot.lane.b32.xlu0 %v133, 115
    %v1188 = vpop.permute.xlu0 %1187
    %1189 = vrot.lane.b32.xlu0 %v134, 115
    %v1190 = vpop.permute.xlu0 %1189
    %1191 = vrot.lane.b32.xlu0 %v135, 115
    %v1192 = vpop.permute.xlu0 %1191
    %1193 = vrot.lane.b32.xlu0 %v136, 115
    %v1194 = vpop.permute.xlu0 %1193
    %v1200 = vsel %vm149, %v1179, 0
    %v1203 = vsel %vm149, %v1180, 0
    %v1206 = vsel %vm149, %v1181, 0
    %v1209 = vsel %vm149, %v1182, 0
    %v1212 = vsel %vm149, %v1183, 0
    %v1215 = vsel %vm149, %v1184, 0
    %v1218 = vsel %vm149, %v1185, 0
    %v1221 = vsel %vm149, %v1186, 0
    %1223 = vmatpush.bf16.msra.mxu0 0
    %1224 = vmatpush.bf16.msra.mxu0 0
    %1225 = vmatpush.bf16.msra.mxu0 0
    %1226 = vmatpush.bf16.msra.mxu0 0
    %1227 = vmatpush.bf16.msra.mxu0 %v1194
    %1228 = vmatpush.bf16.msra.mxu0 %v1192
    %1229 = vmatpush.bf16.msra.mxu0 %v1190
    %1230 = vmatpush.bf16.msra.mxu0 %v1188
    %1231 = vmatmul.bf16.gmra.mxu0 %v1200
    %v1232 = vpop.f32.mrf.mxu0
    %v1233 = vadd.f32 0.0, %v1232
    %v1234 = vpop.f32.mrf.mxu0
    %v1235 = vadd.f32 0.0, %v1234
    %1236 = vmatmul.bf16.gmra.mxu0 %v1203
    %v1237 = vpop.f32.mrf.mxu0
    %v1238 = vadd.f32 0.0, %v1237
    %v1239 = vpop.f32.mrf.mxu0
    %v1240 = vadd.f32 0.0, %v1239
    %1241 = vmatmul.bf16.gmra.mxu0 %v1206
    %v1242 = vpop.f32.mrf.mxu0
    %v1243 = vadd.f32 0.0, %v1242
    %v1244 = vpop.f32.mrf.mxu0
    %v1245 = vadd.f32 0.0, %v1244
    %1246 = vmatmul.bf16.gmra.mxu0 %v1209
    %v1247 = vpop.f32.mrf.mxu0
    %v1248 = vadd.f32 0.0, %v1247
    %v1249 = vpop.f32.mrf.mxu0
    %v1250 = vadd.f32 0.0, %v1249
    %1251 = vmatmul.bf16.gmra.mxu0 %v1212
    %v1252 = vpop.f32.mrf.mxu0
    %v1253 = vadd.f32 0.0, %v1252
    %v1254 = vpop.f32.mrf.mxu0
    %v1255 = vadd.f32 0.0, %v1254
    %1256 = vmatmul.bf16.gmra.mxu0 %v1215
    %v1257 = vpop.f32.mrf.mxu0
    %v1258 = vadd.f32 0.0, %v1257
    %v1259 = vpop.f32.mrf.mxu0
    %v1260 = vadd.f32 0.0, %v1259
    %1261 = vmatmul.bf16.gmra.mxu0 %v1218
    %v1262 = vpop.f32.mrf.mxu0
    %v1263 = vadd.f32 0.0, %v1262
    %v1264 = vpop.f32.mrf.mxu0
    %v1265 = vadd.f32 0.0, %v1264
    %1266 = vmatmul.bf16.gmra.mxu0 %v1221
    %v1267 = vpop.f32.mrf.mxu0
    %v1268 = vadd.f32 0.0, %v1267
    %v1269 = vpop.f32.mrf.mxu0
    %v1270 = vadd.f32 0.0, %v1269
    %1271 = vdwg.mxu0
    %v1272 = vadd.f32 %v1114, %v1233
    %v1273 = vadd.f32 %v1115, %v1235
    %v1274 = vadd.f32 %v1116, %v1238
    %v1275 = vadd.f32 %v1117, %v1240
    %v1276 = vadd.f32 %v1118, %v1243
    %v1277 = vadd.f32 %v1119, %v1245
    %v1278 = vadd.f32 %v1120, %v1248
    %v1279 = vadd.f32 %v1121, %v1250
    %v1280 = vadd.f32 %v1122, %v1253
    %v1281 = vadd.f32 %v1123, %v1255
    %v1282 = vadd.f32 %v1124, %v1258
    %v1283 = vadd.f32 %v1125, %v1260
    %v1284 = vadd.f32 %v1126, %v1263
    %v1285 = vadd.f32 %v1127, %v1265
    %v1286 = vadd.f32 %v1128, %v1268
    %v1287 = vadd.f32 %v1129, %v1270
    %s1288 = scalar_lea.vmem %s1, 512
    %v1289 = vld [vmem:[%s1288] sm:$0xf]
    %v1290 = vld [vmem:[%s1288 + $0x4] sm:$0xf]
    %v1291 = vld [vmem:[%s1288 + $0x8] sm:$0xf]
    %v1292 = vld [vmem:[%s1288 + $0xc] sm:$0xf]
    %v1293 = vld [vmem:[%s1288 + $0x10] sm:$0xf]
    %v1294 = vld [vmem:[%s1288 + $0x14] sm:$0xf]
    %v1295 = vld [vmem:[%s1288 + $0x18] sm:$0xf]
    %v1296 = vld [vmem:[%s1288 + $0x1c] sm:$0xf]
    %v1297 = vld [vmem:[%s1288 + $0x20] sm:$0xf]
    %v1298 = vld [vmem:[%s1288 + $0x24] sm:$0xf]
    %v1299 = vld [vmem:[%s1288 + $0x28] sm:$0xf]
    %v1300 = vld [vmem:[%s1288 + $0x2c] sm:$0xf]
    %v1301 = vld [vmem:[%s1288 + $0x30] sm:$0xf]
    %v1302 = vld [vmem:[%s1288 + $0x34] sm:$0xf]
    %v1303 = vld [vmem:[%s1288 + $0x38] sm:$0xf]
    %v1304 = vld [vmem:[%s1288 + $0x3c] sm:$0xf]
    %v1321 = vunpack.c.l.b16 %v1289
    %v1322 = vunpack.c.l.b16 %v1290
    %v1323 = vunpack.c.l.b16 %v1291
    %v1324 = vunpack.c.l.b16 %v1292
    %v1325 = vunpack.c.l.b16 %v1293
    %v1326 = vunpack.c.l.b16 %v1294
    %v1327 = vunpack.c.l.b16 %v1295
    %v1328 = vunpack.c.l.b16 %v1296
    %v1329 = vunpack.c.l.b16 %v1297
    %v1330 = vunpack.c.l.b16 %v1298
    %v1331 = vunpack.c.l.b16 %v1299
    %v1332 = vunpack.c.l.b16 %v1300
    %v1333 = vunpack.c.l.b16 %v1301
    %v1334 = vunpack.c.l.b16 %v1302
    %v1335 = vunpack.c.l.b16 %v1303
    %v1336 = vunpack.c.l.b16 %v1304
    %v1337 = vpack.c.b16 %v1322, %v1321
    %v1338 = vpack.c.b16 %v1324, %v1323
    %v1339 = vpack.c.b16 %v1326, %v1325
    %v1340 = vpack.c.b16 %v1328, %v1327
    %v1341 = vpack.c.b16 %v1330, %v1329
    %v1342 = vpack.c.b16 %v1332, %v1331
    %v1343 = vpack.c.b16 %v1334, %v1333
    %v1344 = vpack.c.b16 %v1336, %v1335
    %1345 = vrot.lane.b32.xlu0 %v133, 114
    %v1346 = vpop.permute.xlu0 %1345
    %1347 = vrot.lane.b32.xlu0 %v134, 114
    %v1348 = vpop.permute.xlu0 %1347
    %1349 = vrot.lane.b32.xlu0 %v135, 114
    %v1350 = vpop.permute.xlu0 %1349
    %1351 = vrot.lane.b32.xlu0 %v136, 114
    %v1352 = vpop.permute.xlu0 %1351
    %v1358 = vsel %vm149, %v1337, 0
    %v1361 = vsel %vm149, %v1338, 0
    %v1364 = vsel %vm149, %v1339, 0
    %v1367 = vsel %vm149, %v1340, 0
    %v1370 = vsel %vm149, %v1341, 0
    %v1373 = vsel %vm149, %v1342, 0
    %v1376 = vsel %vm149, %v1343, 0
    %v1379 = vsel %vm149, %v1344, 0
    %1381 = vmatpush.bf16.msra.mxu0 0
    %1382 = vmatpush.bf16.msra.mxu0 0
    %1383 = vmatpush.bf16.msra.mxu0 0
    %1384 = vmatpush.bf16.msra.mxu0 0
    %1385 = vmatpush.bf16.msra.mxu0 %v1352
    %1386 = vmatpush.bf16.msra.mxu0 %v1350
    %1387 = vmatpush.bf16.msra.mxu0 %v1348
    %1388 = vmatpush.bf16.msra.mxu0 %v1346
    %1389 = vmatmul.bf16.gmra.mxu0 %v1358
    %v1390 = vpop.f32.mrf.mxu0
    %v1391 = vadd.f32 0.0, %v1390
    %v1392 = vpop.f32.mrf.mxu0
    %v1393 = vadd.f32 0.0, %v1392
    %1394 = vmatmul.bf16.gmra.mxu0 %v1361
    %v1395 = vpop.f32.mrf.mxu0
    %v1396 = vadd.f32 0.0, %v1395
    %v1397 = vpop.f32.mrf.mxu0
    %v1398 = vadd.f32 0.0, %v1397
    %1399 = vmatmul.bf16.gmra.mxu0 %v1364
    %v1400 = vpop.f32.mrf.mxu0
    %v1401 = vadd.f32 0.0, %v1400
    %v1402 = vpop.f32.mrf.mxu0
    %v1403 = vadd.f32 0.0, %v1402
    %1404 = vmatmul.bf16.gmra.mxu0 %v1367
    %v1405 = vpop.f32.mrf.mxu0
    %v1406 = vadd.f32 0.0, %v1405
    %v1407 = vpop.f32.mrf.mxu0
    %v1408 = vadd.f32 0.0, %v1407
    %1409 = vmatmul.bf16.gmra.mxu0 %v1370
    %v1410 = vpop.f32.mrf.mxu0
    %v1411 = vadd.f32 0.0, %v1410
    %v1412 = vpop.f32.mrf.mxu0
    %v1413 = vadd.f32 0.0, %v1412
    %1414 = vmatmul.bf16.gmra.mxu0 %v1373
    %v1415 = vpop.f32.mrf.mxu0
    %v1416 = vadd.f32 0.0, %v1415
    %v1417 = vpop.f32.mrf.mxu0
    %v1418 = vadd.f32 0.0, %v1417
    %1419 = vmatmul.bf16.gmra.mxu0 %v1376
    %v1420 = vpop.f32.mrf.mxu0
    %v1421 = vadd.f32 0.0, %v1420
    %v1422 = vpop.f32.mrf.mxu0
    %v1423 = vadd.f32 0.0, %v1422
    %1424 = vmatmul.bf16.gmra.mxu0 %v1379
    %v1425 = vpop.f32.mrf.mxu0
    %v1426 = vadd.f32 0.0, %v1425
    %v1427 = vpop.f32.mrf.mxu0
    %v1428 = vadd.f32 0.0, %v1427
    %1429 = vdwg.mxu0
    %v1430 = vadd.f32 %v1272, %v1391
    %v1431 = vadd.f32 %v1273, %v1393
    %v1432 = vadd.f32 %v1274, %v1396
    %v1433 = vadd.f32 %v1275, %v1398
    %v1434 = vadd.f32 %v1276, %v1401
    %v1435 = vadd.f32 %v1277, %v1403
    %v1436 = vadd.f32 %v1278, %v1406
    %v1437 = vadd.f32 %v1279, %v1408
    %v1438 = vadd.f32 %v1280, %v1411
    %v1439 = vadd.f32 %v1281, %v1413
    %v1440 = vadd.f32 %v1282, %v1416
    %v1441 = vadd.f32 %v1283, %v1418
    %v1442 = vadd.f32 %v1284, %v1421
    %v1443 = vadd.f32 %v1285, %v1423
    %v1444 = vadd.f32 %v1286, %v1426
    %v1445 = vadd.f32 %v1287, %v1428
    %v1447 = vperm.slane %v35, 0
    %v1449 = vmul.f32 %v1430, %v1447
    %v1450 = vmul.f32 %v1431, %v1447
    %v1451 = vmul.f32 %v1432, %v1447
    %v1452 = vmul.f32 %v1433, %v1447
    %v1453 = vmul.f32 %v1434, %v1447
    %v1454 = vmul.f32 %v1435, %v1447
    %v1455 = vmul.f32 %v1436, %v1447
    %v1456 = vmul.f32 %v1437, %v1447
    %v1457 = vmul.f32 %v1438, %v1447
    %v1458 = vmul.f32 %v1439, %v1447
    %v1459 = vmul.f32 %v1440, %v1447
    %v1460 = vmul.f32 %v1441, %v1447
    %v1461 = vmul.f32 %v1442, %v1447
    %v1462 = vmul.f32 %v1443, %v1447
    %v1463 = vmul.f32 %v1444, %v1447
    %v1464 = vmul.f32 %v1445, %v1447
    %s1465 = scalar_lea.vmem %s0, 32
    %v1466 = vld [vmem:[%s1465] sm:$0xf]
    %v1467 = vld [vmem:[%s1465 + $0x4] sm:$0xf]
    %v1468 = vld [vmem:[%s1465 + $0x8] sm:$0xf]
    %v1469 = vld [vmem:[%s1465 + $0xc] sm:$0xf]
    %v1470 = vld [vmem:[%s1465 + $0x10] sm:$0xf]
    %v1471 = vld [vmem:[%s1465 + $0x14] sm:$0xf]
    %v1472 = vld [vmem:[%s1465 + $0x18] sm:$0xf]
    %v1473 = vld [vmem:[%s1465 + $0x1c] sm:$0xf]
    %v1482 = vunpack.c.l.b16 %v1466
    %v1483 = vunpack.c.l.b16 %v1467
    %v1484 = vunpack.c.l.b16 %v1468
    %v1485 = vunpack.c.l.b16 %v1469
    %v1486 = vunpack.c.l.b16 %v1470
    %v1487 = vunpack.c.l.b16 %v1471
    %v1488 = vunpack.c.l.b16 %v1472
    %v1489 = vunpack.c.l.b16 %v1473
    %v1490 = vpack.c.b16 %v1483, %v1482
    %v1491 = vpack.c.b16 %v1485, %v1484
    %v1492 = vpack.c.b16 %v1487, %v1486
    %v1493 = vpack.c.b16 %v1489, %v1488
    %1494 = vrot.lane.b32.xlu0 %v1490, 127
    %v1495 = vpop.permute.xlu0 %1494
    %1496 = vrot.lane.b32.xlu0 %v1491, 127
    %v1497 = vpop.permute.xlu0 %1496
    %1498 = vrot.lane.b32.xlu0 %v1492, 127
    %v1499 = vpop.permute.xlu0 %1498
    %1500 = vrot.lane.b32.xlu0 %v1493, 127
    %v1501 = vpop.permute.xlu0 %1500
    %1506 = vmatpush.bf16.msra.mxu0 0
    %1507 = vmatpush.bf16.msra.mxu0 0
    %1508 = vmatpush.bf16.msra.mxu0 0
    %1509 = vmatpush.bf16.msra.mxu0 0
    %1510 = vmatpush.bf16.msra.mxu0 %v1501
    %1511 = vmatpush.bf16.msra.mxu0 %v1499
    %1512 = vmatpush.bf16.msra.mxu0 %v1497
    %1513 = vmatpush.bf16.msra.mxu0 %v1495
    %1514 = vmatmul.bf16.gmra.mxu0 %v151
    %v1515 = vpop.f32.mrf.mxu0
    %v1516 = vadd.f32 0.0, %v1515
    %v1517 = vpop.f32.mrf.mxu0
    %v1518 = vadd.f32 0.0, %v1517
    %1519 = vmatmul.bf16.gmra.mxu0 %v154
    %v1520 = vpop.f32.mrf.mxu0
    %v1521 = vadd.f32 0.0, %v1520
    %v1522 = vpop.f32.mrf.mxu0
    %v1523 = vadd.f32 0.0, %v1522
    %1524 = vmatmul.bf16.gmra.mxu0 %v157
    %v1525 = vpop.f32.mrf.mxu0
    %v1526 = vadd.f32 0.0, %v1525
    %v1527 = vpop.f32.mrf.mxu0
    %v1528 = vadd.f32 0.0, %v1527
    %1529 = vmatmul.bf16.gmra.mxu0 %v160
    %v1530 = vpop.f32.mrf.mxu0
    %v1531 = vadd.f32 0.0, %v1530
    %v1532 = vpop.f32.mrf.mxu0
    %v1533 = vadd.f32 0.0, %v1532
    %1534 = vmatmul.bf16.gmra.mxu0 %v163
    %v1535 = vpop.f32.mrf.mxu0
    %v1536 = vadd.f32 0.0, %v1535
    %v1537 = vpop.f32.mrf.mxu0
    %v1538 = vadd.f32 0.0, %v1537
    %1539 = vmatmul.bf16.gmra.mxu0 %v166
    %v1540 = vpop.f32.mrf.mxu0
    %v1541 = vadd.f32 0.0, %v1540
    %v1542 = vpop.f32.mrf.mxu0
    %v1543 = vadd.f32 0.0, %v1542
    %1544 = vmatmul.bf16.gmra.mxu0 %v169
    %v1545 = vpop.f32.mrf.mxu0
    %v1546 = vadd.f32 0.0, %v1545
    %v1547 = vpop.f32.mrf.mxu0
    %v1548 = vadd.f32 0.0, %v1547
    %1549 = vmatmul.bf16.gmra.mxu0 %v172
    %v1550 = vpop.f32.mrf.mxu0
    %v1551 = vadd.f32 0.0, %v1550
    %v1552 = vpop.f32.mrf.mxu0
    %v1553 = vadd.f32 0.0, %v1552
    %1554 = vdwg.mxu0
    %1559 = vmatpush.bf16.msra.mxu0 0
    %1560 = vmatpush.bf16.msra.mxu0 0
    %1561 = vmatpush.bf16.msra.mxu0 0
    %1562 = vmatpush.bf16.msra.mxu0 0
    %1563 = vmatpush.bf16.msra.mxu0 %v1493
    %1564 = vmatpush.bf16.msra.mxu0 %v1492
    %1565 = vmatpush.bf16.msra.mxu0 %v1491
    %1566 = vmatpush.bf16.msra.mxu0 %v1490
    %1567 = vmatmul.bf16.gmra.mxu0 %v268
    %v1568 = vpop.f32.mrf.mxu0
    %v1569 = vadd.f32 %v1516, %v1568
    %v1570 = vpop.f32.mrf.mxu0
    %v1571 = vadd.f32 %v1518, %v1570
    %1572 = vmatmul.bf16.gmra.mxu0 %v271
    %v1573 = vpop.f32.mrf.mxu0
    %v1574 = vadd.f32 %v1521, %v1573
    %v1575 = vpop.f32.mrf.mxu0
    %v1576 = vadd.f32 %v1523, %v1575
    %1577 = vmatmul.bf16.gmra.mxu0 %v274
    %v1578 = vpop.f32.mrf.mxu0
    %v1579 = vadd.f32 %v1526, %v1578
    %v1580 = vpop.f32.mrf.mxu0
    %v1581 = vadd.f32 %v1528, %v1580
    %1582 = vmatmul.bf16.gmra.mxu0 %v277
    %v1583 = vpop.f32.mrf.mxu0
    %v1584 = vadd.f32 %v1531, %v1583
    %v1585 = vpop.f32.mrf.mxu0
    %v1586 = vadd.f32 %v1533, %v1585
    %1587 = vmatmul.bf16.gmra.mxu0 %v280
    %v1588 = vpop.f32.mrf.mxu0
    %v1589 = vadd.f32 %v1536, %v1588
    %v1590 = vpop.f32.mrf.mxu0
    %v1591 = vadd.f32 %v1538, %v1590
    %1592 = vmatmul.bf16.gmra.mxu0 %v283
    %v1593 = vpop.f32.mrf.mxu0
    %v1594 = vadd.f32 %v1541, %v1593
    %v1595 = vpop.f32.mrf.mxu0
    %v1596 = vadd.f32 %v1543, %v1595
    %1597 = vmatmul.bf16.gmra.mxu0 %v286
    %v1598 = vpop.f32.mrf.mxu0
    %v1599 = vadd.f32 %v1546, %v1598
    %v1600 = vpop.f32.mrf.mxu0
    %v1601 = vadd.f32 %v1548, %v1600
    %1602 = vmatmul.bf16.gmra.mxu0 %v289
    %v1603 = vpop.f32.mrf.mxu0
    %v1604 = vadd.f32 %v1551, %v1603
    %v1605 = vpop.f32.mrf.mxu0
    %v1606 = vadd.f32 %v1553, %v1605
    %1607 = vdwg.mxu0
    %1608 = vrot.lane.b32.xlu0 %v1490, 126
    %v1609 = vpop.permute.xlu0 %1608
    %1610 = vrot.lane.b32.xlu0 %v1491, 126
    %v1611 = vpop.permute.xlu0 %1610
    %1612 = vrot.lane.b32.xlu0 %v1492, 126
    %v1613 = vpop.permute.xlu0 %1612
    %1614 = vrot.lane.b32.xlu0 %v1493, 126
    %v1615 = vpop.permute.xlu0 %1614
    %1620 = vmatpush.bf16.msra.mxu0 0
    %1621 = vmatpush.bf16.msra.mxu0 0
    %1622 = vmatpush.bf16.msra.mxu0 0
    %1623 = vmatpush.bf16.msra.mxu0 0
    %1624 = vmatpush.bf16.msra.mxu0 %v1615
    %1625 = vmatpush.bf16.msra.mxu0 %v1613
    %1626 = vmatpush.bf16.msra.mxu0 %v1611
    %1627 = vmatpush.bf16.msra.mxu0 %v1609
    %1628 = vmatmul.bf16.gmra.mxu0 %v410
    %v1629 = vpop.f32.mrf.mxu0
    %v1630 = vadd.f32 0.0, %v1629
    %v1631 = vpop.f32.mrf.mxu0
    %v1632 = vadd.f32 0.0, %v1631
    %1633 = vmatmul.bf16.gmra.mxu0 %v413
    %v1634 = vpop.f32.mrf.mxu0
    %v1635 = vadd.f32 0.0, %v1634
    %v1636 = vpop.f32.mrf.mxu0
    %v1637 = vadd.f32 0.0, %v1636
    %1638 = vmatmul.bf16.gmra.mxu0 %v416
    %v1639 = vpop.f32.mrf.mxu0
    %v1640 = vadd.f32 0.0, %v1639
    %v1641 = vpop.f32.mrf.mxu0
    %v1642 = vadd.f32 0.0, %v1641
    %1643 = vmatmul.bf16.gmra.mxu0 %v419
    %v1644 = vpop.f32.mrf.mxu0
    %v1645 = vadd.f32 0.0, %v1644
    %v1646 = vpop.f32.mrf.mxu0
    %v1647 = vadd.f32 0.0, %v1646
    %1648 = vmatmul.bf16.gmra.mxu0 %v422
    %v1649 = vpop.f32.mrf.mxu0
    %v1650 = vadd.f32 0.0, %v1649
    %v1651 = vpop.f32.mrf.mxu0
    %v1652 = vadd.f32 0.0, %v1651
    %1653 = vmatmul.bf16.gmra.mxu0 %v425
    %v1654 = vpop.f32.mrf.mxu0
    %v1655 = vadd.f32 0.0, %v1654
    %v1656 = vpop.f32.mrf.mxu0
    %v1657 = vadd.f32 0.0, %v1656
    %1658 = vmatmul.bf16.gmra.mxu0 %v428
    %v1659 = vpop.f32.mrf.mxu0
    %v1660 = vadd.f32 0.0, %v1659
    %v1661 = vpop.f32.mrf.mxu0
    %v1662 = vadd.f32 0.0, %v1661
    %1663 = vmatmul.bf16.gmra.mxu0 %v431
    %v1664 = vpop.f32.mrf.mxu0
    %v1665 = vadd.f32 0.0, %v1664
    %v1666 = vpop.f32.mrf.mxu0
    %v1667 = vadd.f32 0.0, %v1666
    %1668 = vdwg.mxu0
    %v1669 = vadd.f32 %v1569, %v1630
    %v1670 = vadd.f32 %v1571, %v1632
    %v1671 = vadd.f32 %v1574, %v1635
    %v1672 = vadd.f32 %v1576, %v1637
    %v1673 = vadd.f32 %v1579, %v1640
    %v1674 = vadd.f32 %v1581, %v1642
    %v1675 = vadd.f32 %v1584, %v1645
    %v1676 = vadd.f32 %v1586, %v1647
    %v1677 = vadd.f32 %v1589, %v1650
    %v1678 = vadd.f32 %v1591, %v1652
    %v1679 = vadd.f32 %v1594, %v1655
    %v1680 = vadd.f32 %v1596, %v1657
    %v1681 = vadd.f32 %v1599, %v1660
    %v1682 = vadd.f32 %v1601, %v1662
    %v1683 = vadd.f32 %v1604, %v1665
    %v1684 = vadd.f32 %v1606, %v1667
    %1685 = vrot.lane.b32.xlu0 %v1490, 122
    %v1686 = vpop.permute.xlu0 %1685
    %1687 = vrot.lane.b32.xlu0 %v1491, 122
    %v1688 = vpop.permute.xlu0 %1687
    %1689 = vrot.lane.b32.xlu0 %v1492, 122
    %v1690 = vpop.permute.xlu0 %1689
    %1691 = vrot.lane.b32.xlu0 %v1493, 122
    %v1692 = vpop.permute.xlu0 %1691
    %1697 = vmatpush.bf16.msra.mxu0 0
    %1698 = vmatpush.bf16.msra.mxu0 0
    %1699 = vmatpush.bf16.msra.mxu0 0
    %1700 = vmatpush.bf16.msra.mxu0 0
    %1701 = vmatpush.bf16.msra.mxu0 %v1692
    %1702 = vmatpush.bf16.msra.mxu0 %v1690
    %1703 = vmatpush.bf16.msra.mxu0 %v1688
    %1704 = vmatpush.bf16.msra.mxu0 %v1686
    %1705 = vmatmul.bf16.gmra.mxu0 %v568
    %v1706 = vpop.f32.mrf.mxu0
    %v1707 = vadd.f32 0.0, %v1706
    %v1708 = vpop.f32.mrf.mxu0
    %v1709 = vadd.f32 0.0, %v1708
    %1710 = vmatmul.bf16.gmra.mxu0 %v571
    %v1711 = vpop.f32.mrf.mxu0
    %v1712 = vadd.f32 0.0, %v1711
    %v1713 = vpop.f32.mrf.mxu0
    %v1714 = vadd.f32 0.0, %v1713
    %1715 = vmatmul.bf16.gmra.mxu0 %v574
    %v1716 = vpop.f32.mrf.mxu0
    %v1717 = vadd.f32 0.0, %v1716
    %v1718 = vpop.f32.mrf.mxu0
    %v1719 = vadd.f32 0.0, %v1718
    %1720 = vmatmul.bf16.gmra.mxu0 %v577
    %v1721 = vpop.f32.mrf.mxu0
    %v1722 = vadd.f32 0.0, %v1721
    %v1723 = vpop.f32.mrf.mxu0
    %v1724 = vadd.f32 0.0, %v1723
    %1725 = vmatmul.bf16.gmra.mxu0 %v580
    %v1726 = vpop.f32.mrf.mxu0
    %v1727 = vadd.f32 0.0, %v1726
    %v1728 = vpop.f32.mrf.mxu0
    %v1729 = vadd.f32 0.0, %v1728
    %1730 = vmatmul.bf16.gmra.mxu0 %v583
    %v1731 = vpop.f32.mrf.mxu0
    %v1732 = vadd.f32 0.0, %v1731
    %v1733 = vpop.f32.mrf.mxu0
    %v1734 = vadd.f32 0.0, %v1733
    %1735 = vmatmul.bf16.gmra.mxu0 %v586
    %v1736 = vpop.f32.mrf.mxu0
    %v1737 = vadd.f32 0.0, %v1736
    %v1738 = vpop.f32.mrf.mxu0
    %v1739 = vadd.f32 0.0, %v1738
    %1740 = vmatmul.bf16.gmra.mxu0 %v589
    %v1741 = vpop.f32.mrf.mxu0
    %v1742 = vadd.f32 0.0, %v1741
    %v1743 = vpop.f32.mrf.mxu0
    %v1744 = vadd.f32 0.0, %v1743
    %1745 = vdwg.mxu0
    %v1746 = vadd.f32 %v1669, %v1707
    %v1747 = vadd.f32 %v1670, %v1709
    %v1748 = vadd.f32 %v1671, %v1712
    %v1749 = vadd.f32 %v1672, %v1714
    %v1750 = vadd.f32 %v1673, %v1717
    %v1751 = vadd.f32 %v1674, %v1719
    %v1752 = vadd.f32 %v1675, %v1722
    %v1753 = vadd.f32 %v1676, %v1724
    %v1754 = vadd.f32 %v1677, %v1727
    %v1755 = vadd.f32 %v1678, %v1729
    %v1756 = vadd.f32 %v1679, %v1732
    %v1757 = vadd.f32 %v1680, %v1734
    %v1758 = vadd.f32 %v1681, %v1737
    %v1759 = vadd.f32 %v1682, %v1739
    %v1760 = vadd.f32 %v1683, %v1742
    %v1761 = vadd.f32 %v1684, %v1744
    %1762 = vrot.lane.b32.xlu0 %v1490, 121
    %v1763 = vpop.permute.xlu0 %1762
    %1764 = vrot.lane.b32.xlu0 %v1491, 121
    %v1765 = vpop.permute.xlu0 %1764
    %1766 = vrot.lane.b32.xlu0 %v1492, 121
    %v1767 = vpop.permute.xlu0 %1766
    %1768 = vrot.lane.b32.xlu0 %v1493, 121
    %v1769 = vpop.permute.xlu0 %1768
    %1774 = vmatpush.bf16.msra.mxu0 0
    %1775 = vmatpush.bf16.msra.mxu0 0
    %1776 = vmatpush.bf16.msra.mxu0 0
    %1777 = vmatpush.bf16.msra.mxu0 0
    %1778 = vmatpush.bf16.msra.mxu0 %v1769
    %1779 = vmatpush.bf16.msra.mxu0 %v1767
    %1780 = vmatpush.bf16.msra.mxu0 %v1765
    %1781 = vmatpush.bf16.msra.mxu0 %v1763
    %1782 = vmatmul.bf16.gmra.mxu0 %v726
    %v1783 = vpop.f32.mrf.mxu0
    %v1784 = vadd.f32 0.0, %v1783
    %v1785 = vpop.f32.mrf.mxu0
    %v1786 = vadd.f32 0.0, %v1785
    %1787 = vmatmul.bf16.gmra.mxu0 %v729
    %v1788 = vpop.f32.mrf.mxu0
    %v1789 = vadd.f32 0.0, %v1788
    %v1790 = vpop.f32.mrf.mxu0
    %v1791 = vadd.f32 0.0, %v1790
    %1792 = vmatmul.bf16.gmra.mxu0 %v732
    %v1793 = vpop.f32.mrf.mxu0
    %v1794 = vadd.f32 0.0, %v1793
    %v1795 = vpop.f32.mrf.mxu0
    %v1796 = vadd.f32 0.0, %v1795
    %1797 = vmatmul.bf16.gmra.mxu0 %v735
    %v1798 = vpop.f32.mrf.mxu0
    %v1799 = vadd.f32 0.0, %v1798
    %v1800 = vpop.f32.mrf.mxu0
    %v1801 = vadd.f32 0.0, %v1800
    %1802 = vmatmul.bf16.gmra.mxu0 %v738
    %v1803 = vpop.f32.mrf.mxu0
    %v1804 = vadd.f32 0.0, %v1803
    %v1805 = vpop.f32.mrf.mxu0
    %v1806 = vadd.f32 0.0, %v1805
    %1807 = vmatmul.bf16.gmra.mxu0 %v741
    %v1808 = vpop.f32.mrf.mxu0
    %v1809 = vadd.f32 0.0, %v1808
    %v1810 = vpop.f32.mrf.mxu0
    %v1811 = vadd.f32 0.0, %v1810
    %1812 = vmatmul.bf16.gmra.mxu0 %v744
    %v1813 = vpop.f32.mrf.mxu0
    %v1814 = vadd.f32 0.0, %v1813
    %v1815 = vpop.f32.mrf.mxu0
    %v1816 = vadd.f32 0.0, %v1815
    %1817 = vmatmul.bf16.gmra.mxu0 %v747
    %v1818 = vpop.f32.mrf.mxu0
    %v1819 = vadd.f32 0.0, %v1818
    %v1820 = vpop.f32.mrf.mxu0
    %v1821 = vadd.f32 0.0, %v1820
    %1822 = vdwg.mxu0
    %v1823 = vadd.f32 %v1746, %v1784
    %v1824 = vadd.f32 %v1747, %v1786
    %v1825 = vadd.f32 %v1748, %v1789
    %v1826 = vadd.f32 %v1749, %v1791
    %v1827 = vadd.f32 %v1750, %v1794
    %v1828 = vadd.f32 %v1751, %v1796
    %v1829 = vadd.f32 %v1752, %v1799
    %v1830 = vadd.f32 %v1753, %v1801
    %v1831 = vadd.f32 %v1754, %v1804
    %v1832 = vadd.f32 %v1755, %v1806
    %v1833 = vadd.f32 %v1756, %v1809
    %v1834 = vadd.f32 %v1757, %v1811
    %v1835 = vadd.f32 %v1758, %v1814
    %v1836 = vadd.f32 %v1759, %v1816
    %v1837 = vadd.f32 %v1760, %v1819
    %v1838 = vadd.f32 %v1761, %v1821
    %1839 = vrot.lane.b32.xlu0 %v1490, 120
    %v1840 = vpop.permute.xlu0 %1839
    %1841 = vrot.lane.b32.xlu0 %v1491, 120
    %v1842 = vpop.permute.xlu0 %1841
    %1843 = vrot.lane.b32.xlu0 %v1492, 120
    %v1844 = vpop.permute.xlu0 %1843
    %1845 = vrot.lane.b32.xlu0 %v1493, 120
    %v1846 = vpop.permute.xlu0 %1845
    %1851 = vmatpush.bf16.msra.mxu0 0
    %1852 = vmatpush.bf16.msra.mxu0 0
    %1853 = vmatpush.bf16.msra.mxu0 0
    %1854 = vmatpush.bf16.msra.mxu0 0
    %1855 = vmatpush.bf16.msra.mxu0 %v1846
    %1856 = vmatpush.bf16.msra.mxu0 %v1844
    %1857 = vmatpush.bf16.msra.mxu0 %v1842
    %1858 = vmatpush.bf16.msra.mxu0 %v1840
    %1859 = vmatmul.bf16.gmra.mxu0 %v884
    %v1860 = vpop.f32.mrf.mxu0
    %v1861 = vadd.f32 0.0, %v1860
    %v1862 = vpop.f32.mrf.mxu0
    %v1863 = vadd.f32 0.0, %v1862
    %1864 = vmatmul.bf16.gmra.mxu0 %v887
    %v1865 = vpop.f32.mrf.mxu0
    %v1866 = vadd.f32 0.0, %v1865
    %v1867 = vpop.f32.mrf.mxu0
    %v1868 = vadd.f32 0.0, %v1867
    %1869 = vmatmul.bf16.gmra.mxu0 %v890
    %v1870 = vpop.f32.mrf.mxu0
    %v1871 = vadd.f32 0.0, %v1870
    %v1872 = vpop.f32.mrf.mxu0
    %v1873 = vadd.f32 0.0, %v1872
    %1874 = vmatmul.bf16.gmra.mxu0 %v893
    %v1875 = vpop.f32.mrf.mxu0
    %v1876 = vadd.f32 0.0, %v1875
    %v1877 = vpop.f32.mrf.mxu0
    %v1878 = vadd.f32 0.0, %v1877
    %1879 = vmatmul.bf16.gmra.mxu0 %v896
    %v1880 = vpop.f32.mrf.mxu0
    %v1881 = vadd.f32 0.0, %v1880
    %v1882 = vpop.f32.mrf.mxu0
    %v1883 = vadd.f32 0.0, %v1882
    %1884 = vmatmul.bf16.gmra.mxu0 %v899
    %v1885 = vpop.f32.mrf.mxu0
    %v1886 = vadd.f32 0.0, %v1885
    %v1887 = vpop.f32.mrf.mxu0
    %v1888 = vadd.f32 0.0, %v1887
    %1889 = vmatmul.bf16.gmra.mxu0 %v902
    %v1890 = vpop.f32.mrf.mxu0
    %v1891 = vadd.f32 0.0, %v1890
    %v1892 = vpop.f32.mrf.mxu0
    %v1893 = vadd.f32 0.0, %v1892
    %1894 = vmatmul.bf16.gmra.mxu0 %v905
    %v1895 = vpop.f32.mrf.mxu0
    %v1896 = vadd.f32 0.0, %v1895
    %v1897 = vpop.f32.mrf.mxu0
    %v1898 = vadd.f32 0.0, %v1897
    %1899 = vdwg.mxu0
    %v1900 = vadd.f32 %v1823, %v1861
    %v1901 = vadd.f32 %v1824, %v1863
    %v1902 = vadd.f32 %v1825, %v1866
    %v1903 = vadd.f32 %v1826, %v1868
    %v1904 = vadd.f32 %v1827, %v1871
    %v1905 = vadd.f32 %v1828, %v1873
    %v1906 = vadd.f32 %v1829, %v1876
    %v1907 = vadd.f32 %v1830, %v1878
    %v1908 = vadd.f32 %v1831, %v1881
    %v1909 = vadd.f32 %v1832, %v1883
    %v1910 = vadd.f32 %v1833, %v1886
    %v1911 = vadd.f32 %v1834, %v1888
    %v1912 = vadd.f32 %v1835, %v1891
    %v1913 = vadd.f32 %v1836, %v1893
    %v1914 = vadd.f32 %v1837, %v1896
    %v1915 = vadd.f32 %v1838, %v1898
    %1916 = vrot.lane.b32.xlu0 %v1490, 116
    %v1917 = vpop.permute.xlu0 %1916
    %1918 = vrot.lane.b32.xlu0 %v1491, 116
    %v1919 = vpop.permute.xlu0 %1918
    %1920 = vrot.lane.b32.xlu0 %v1492, 116
    %v1921 = vpop.permute.xlu0 %1920
    %1922 = vrot.lane.b32.xlu0 %v1493, 116
    %v1923 = vpop.permute.xlu0 %1922
    %1928 = vmatpush.bf16.msra.mxu0 0
    %1929 = vmatpush.bf16.msra.mxu0 0
    %1930 = vmatpush.bf16.msra.mxu0 0
    %1931 = vmatpush.bf16.msra.mxu0 0
    %1932 = vmatpush.bf16.msra.mxu0 %v1923
    %1933 = vmatpush.bf16.msra.mxu0 %v1921
    %1934 = vmatpush.bf16.msra.mxu0 %v1919
    %1935 = vmatpush.bf16.msra.mxu0 %v1917
    %1936 = vmatmul.bf16.gmra.mxu0 %v1042
    %v1937 = vpop.f32.mrf.mxu0
    %v1938 = vadd.f32 0.0, %v1937
    %v1939 = vpop.f32.mrf.mxu0
    %v1940 = vadd.f32 0.0, %v1939
    %1941 = vmatmul.bf16.gmra.mxu0 %v1045
    %v1942 = vpop.f32.mrf.mxu0
    %v1943 = vadd.f32 0.0, %v1942
    %v1944 = vpop.f32.mrf.mxu0
    %v1945 = vadd.f32 0.0, %v1944
    %1946 = vmatmul.bf16.gmra.mxu0 %v1048
    %v1947 = vpop.f32.mrf.mxu0
    %v1948 = vadd.f32 0.0, %v1947
    %v1949 = vpop.f32.mrf.mxu0
    %v1950 = vadd.f32 0.0, %v1949
    %1951 = vmatmul.bf16.gmra.mxu0 %v1051
    %v1952 = vpop.f32.mrf.mxu0
    %v1953 = vadd.f32 0.0, %v1952
    %v1954 = vpop.f32.mrf.mxu0
    %v1955 = vadd.f32 0.0, %v1954
    %1956 = vmatmul.bf16.gmra.mxu0 %v1054
    %v1957 = vpop.f32.mrf.mxu0
    %v1958 = vadd.f32 0.0, %v1957
    %v1959 = vpop.f32.mrf.mxu0
    %v1960 = vadd.f32 0.0, %v1959
    %1961 = vmatmul.bf16.gmra.mxu0 %v1057
    %v1962 = vpop.f32.mrf.mxu0
    %v1963 = vadd.f32 0.0, %v1962
    %v1964 = vpop.f32.mrf.mxu0
    %v1965 = vadd.f32 0.0, %v1964
    %1966 = vmatmul.bf16.gmra.mxu0 %v1060
    %v1967 = vpop.f32.mrf.mxu0
    %v1968 = vadd.f32 0.0, %v1967
    %v1969 = vpop.f32.mrf.mxu0
    %v1970 = vadd.f32 0.0, %v1969
    %1971 = vmatmul.bf16.gmra.mxu0 %v1063
    %v1972 = vpop.f32.mrf.mxu0
    %v1973 = vadd.f32 0.0, %v1972
    %v1974 = vpop.f32.mrf.mxu0
    %v1975 = vadd.f32 0.0, %v1974
    %1976 = vdwg.mxu0
    %v1977 = vadd.f32 %v1900, %v1938
    %v1978 = vadd.f32 %v1901, %v1940
    %v1979 = vadd.f32 %v1902, %v1943
    %v1980 = vadd.f32 %v1903, %v1945
    %v1981 = vadd.f32 %v1904, %v1948
    %v1982 = vadd.f32 %v1905, %v1950
    %v1983 = vadd.f32 %v1906, %v1953
    %v1984 = vadd.f32 %v1907, %v1955
    %v1985 = vadd.f32 %v1908, %v1958
    %v1986 = vadd.f32 %v1909, %v1960
    %v1987 = vadd.f32 %v1910, %v1963
    %v1988 = vadd.f32 %v1911, %v1965
    %v1989 = vadd.f32 %v1912, %v1968
    %v1990 = vadd.f32 %v1913, %v1970
    %v1991 = vadd.f32 %v1914, %v1973
    %v1992 = vadd.f32 %v1915, %v1975
    %1993 = vrot.lane.b32.xlu0 %v1490, 115
    %v1994 = vpop.permute.xlu0 %1993
    %1995 = vrot.lane.b32.xlu0 %v1491, 115
    %v1996 = vpop.permute.xlu0 %1995
    %1997 = vrot.lane.b32.xlu0 %v1492, 115
    %v1998 = vpop.permute.xlu0 %1997
    %1999 = vrot.lane.b32.xlu0 %v1493, 115
    %v2000 = vpop.permute.xlu0 %1999
    %2005 = vmatpush.bf16.msra.mxu0 0
    %2006 = vmatpush.bf16.msra.mxu0 0
    %2007 = vmatpush.bf16.msra.mxu0 0
    %2008 = vmatpush.bf16.msra.mxu0 0
    %2009 = vmatpush.bf16.msra.mxu0 %v2000
    %2010 = vmatpush.bf16.msra.mxu0 %v1998
    %2011 = vmatpush.bf16.msra.mxu0 %v1996
    %2012 = vmatpush.bf16.msra.mxu0 %v1994
    %2013 = vmatmul.bf16.gmra.mxu0 %v1200
    %v2014 = vpop.f32.mrf.mxu0
    %v2015 = vadd.f32 0.0, %v2014
    %v2016 = vpop.f32.mrf.mxu0
    %v2017 = vadd.f32 0.0, %v2016
    %2018 = vmatmul.bf16.gmra.mxu0 %v1203
    %v2019 = vpop.f32.mrf.mxu0
    %v2020 = vadd.f32 0.0, %v2019
    %v2021 = vpop.f32.mrf.mxu0
    %v2022 = vadd.f32 0.0, %v2021
    %2023 = vmatmul.bf16.gmra.mxu0 %v1206
    %v2024 = vpop.f32.mrf.mxu0
    %v2025 = vadd.f32 0.0, %v2024
    %v2026 = vpop.f32.mrf.mxu0
    %v2027 = vadd.f32 0.0, %v2026
    %2028 = vmatmul.bf16.gmra.mxu0 %v1209
    %v2029 = vpop.f32.mrf.mxu0
    %v2030 = vadd.f32 0.0, %v2029
    %v2031 = vpop.f32.mrf.mxu0
    %v2032 = vadd.f32 0.0, %v2031
    %2033 = vmatmul.bf16.gmra.mxu0 %v1212
    %v2034 = vpop.f32.mrf.mxu0
    %v2035 = vadd.f32 0.0, %v2034
    %v2036 = vpop.f32.mrf.mxu0
    %v2037 = vadd.f32 0.0, %v2036
    %2038 = vmatmul.bf16.gmra.mxu0 %v1215
    %v2039 = vpop.f32.mrf.mxu0
    %v2040 = vadd.f32 0.0, %v2039
    %v2041 = vpop.f32.mrf.mxu0
    %v2042 = vadd.f32 0.0, %v2041
    %2043 = vmatmul.bf16.gmra.mxu0 %v1218
    %v2044 = vpop.f32.mrf.mxu0
    %v2045 = vadd.f32 0.0, %v2044
    %v2046 = vpop.f32.mrf.mxu0
    %v2047 = vadd.f32 0.0, %v2046
    %2048 = vmatmul.bf16.gmra.mxu0 %v1221
    %v2049 = vpop.f32.mrf.mxu0
    %v2050 = vadd.f32 0.0, %v2049
    %v2051 = vpop.f32.mrf.mxu0
    %v2052 = vadd.f32 0.0, %v2051
    %2053 = vdwg.mxu0
    %v2054 = vadd.f32 %v1977, %v2015
    %v2055 = vadd.f32 %v1978, %v2017
    %v2056 = vadd.f32 %v1979, %v2020
    %v2057 = vadd.f32 %v1980, %v2022
    %v2058 = vadd.f32 %v1981, %v2025
    %v2059 = vadd.f32 %v1982, %v2027
    %v2060 = vadd.f32 %v1983, %v2030
    %v2061 = vadd.f32 %v1984, %v2032
    %v2062 = vadd.f32 %v1985, %v2035
    %v2063 = vadd.f32 %v1986, %v2037
    %v2064 = vadd.f32 %v1987, %v2040
    %v2065 = vadd.f32 %v1988, %v2042
    %v2066 = vadd.f32 %v1989, %v2045
    %v2067 = vadd.f32 %v1990, %v2047
    %v2068 = vadd.f32 %v1991, %v2050
    %v2069 = vadd.f32 %v1992, %v2052
    %2070 = vrot.lane.b32.xlu0 %v1490, 114
    %v2071 = vpop.permute.xlu0 %2070
    %2072 = vrot.lane.b32.xlu0 %v1491, 114
    %v2073 = vpop.permute.xlu0 %2072
    %2074 = vrot.lane.b32.xlu0 %v1492, 114
    %v2075 = vpop.permute.xlu0 %2074
    %2076 = vrot.lane.b32.xlu0 %v1493, 114
    %v2077 = vpop.permute.xlu0 %2076
    %2082 = vmatpush.bf16.msra.mxu0 0
    %2083 = vmatpush.bf16.msra.mxu0 0
    %2084 = vmatpush.bf16.msra.mxu0 0
    %2085 = vmatpush.bf16.msra.mxu0 0
    %2086 = vmatpush.bf16.msra.mxu0 %v2077
    %2087 = vmatpush.bf16.msra.mxu0 %v2075
    %2088 = vmatpush.bf16.msra.mxu0 %v2073
    %2089 = vmatpush.bf16.msra.mxu0 %v2071
    %2090 = vmatmul.bf16.gmra.mxu0 %v1358
    %v2091 = vpop.f32.mrf.mxu0
    %v2092 = vadd.f32 0.0, %v2091
    %v2093 = vpop.f32.mrf.mxu0
    %v2094 = vadd.f32 0.0, %v2093
    %2095 = vmatmul.bf16.gmra.mxu0 %v1361
    %v2096 = vpop.f32.mrf.mxu0
    %v2097 = vadd.f32 0.0, %v2096
    %v2098 = vpop.f32.mrf.mxu0
    %v2099 = vadd.f32 0.0, %v2098
    %2100 = vmatmul.bf16.gmra.mxu0 %v1364
    %v2101 = vpop.f32.mrf.mxu0
    %v2102 = vadd.f32 0.0, %v2101
    %v2103 = vpop.f32.mrf.mxu0
    %v2104 = vadd.f32 0.0, %v2103
    %2105 = vmatmul.bf16.gmra.mxu0 %v1367
    %v2106 = vpop.f32.mrf.mxu0
    %v2107 = vadd.f32 0.0, %v2106
    %v2108 = vpop.f32.mrf.mxu0
    %v2109 = vadd.f32 0.0, %v2108
    %2110 = vmatmul.bf16.gmra.mxu0 %v1370
    %v2111 = vpop.f32.mrf.mxu0
    %v2112 = vadd.f32 0.0, %v2111
    %v2113 = vpop.f32.mrf.mxu0
    %v2114 = vadd.f32 0.0, %v2113
    %2115 = vmatmul.bf16.gmra.mxu0 %v1373
    %v2116 = vpop.f32.mrf.mxu0
    %v2117 = vadd.f32 0.0, %v2116
    %v2118 = vpop.f32.mrf.mxu0
    %v2119 = vadd.f32 0.0, %v2118
    %2120 = vmatmul.bf16.gmra.mxu0 %v1376
    %v2121 = vpop.f32.mrf.mxu0
    %v2122 = vadd.f32 0.0, %v2121
    %v2123 = vpop.f32.mrf.mxu0
    %v2124 = vadd.f32 0.0, %v2123
    %2125 = vmatmul.bf16.gmra.mxu0 %v1379
    %v2126 = vpop.f32.mrf.mxu0
    %v2127 = vadd.f32 0.0, %v2126
    %v2128 = vpop.f32.mrf.mxu0
    %v2129 = vadd.f32 0.0, %v2128
    %2130 = vdwg.mxu0
    %v2131 = vadd.f32 %v2054, %v2092
    %v2132 = vadd.f32 %v2055, %v2094
    %v2133 = vadd.f32 %v2056, %v2097
    %v2134 = vadd.f32 %v2057, %v2099
    %v2135 = vadd.f32 %v2058, %v2102
    %v2136 = vadd.f32 %v2059, %v2104
    %v2137 = vadd.f32 %v2060, %v2107
    %v2138 = vadd.f32 %v2061, %v2109
    %v2139 = vadd.f32 %v2062, %v2112
    %v2140 = vadd.f32 %v2063, %v2114
    %v2141 = vadd.f32 %v2064, %v2117
    %v2142 = vadd.f32 %v2065, %v2119
    %v2143 = vadd.f32 %v2066, %v2122
    %v2144 = vadd.f32 %v2067, %v2124
    %v2145 = vadd.f32 %v2068, %v2127
    %v2146 = vadd.f32 %v2069, %v2129
    %v2147 = vmul.f32 %v2131, %v1447
    %v2148 = vmul.f32 %v2132, %v1447
    %v2149 = vmul.f32 %v2133, %v1447
    %v2150 = vmul.f32 %v2134, %v1447
    %v2151 = vmul.f32 %v2135, %v1447
    %v2152 = vmul.f32 %v2136, %v1447
    %v2153 = vmul.f32 %v2137, %v1447
    %v2154 = vmul.f32 %v2138, %v1447
    %v2155 = vmul.f32 %v2139, %v1447
    %v2156 = vmul.f32 %v2140, %v1447
    %v2157 = vmul.f32 %v2141, %v1447
    %v2158 = vmul.f32 %v2142, %v1447
    %v2159 = vmul.f32 %v2143, %v1447
    %v2160 = vmul.f32 %v2144, %v1447
    %v2161 = vmul.f32 %v2145, %v1447
    %v2162 = vmul.f32 %v2146, %v1447
    %vm2163 = vcmask 293888
    %v2164 = vsel %vm2163, %v1449, 0.0
    %2165 = vadd.xlane.f32.xlu0 %v2164
    %v2166 = vpop.xlane.xlu0 %2165
    %v2167 = vsel %vm2163, %v1450, 0.0
    %2168 = vadd.xlane.f32.xlu0 %v2167
    %v2169 = vpop.xlane.xlu0 %2168
    %v2170 = vsel %vm2163, %v1451, 0.0
    %2171 = vadd.xlane.f32.xlu0 %v2170
    %v2172 = vpop.xlane.xlu0 %2171
    %v2173 = vsel %vm2163, %v1452, 0.0
    %2174 = vadd.xlane.f32.xlu0 %v2173
    %v2175 = vpop.xlane.xlu0 %2174
    %v2176 = vsel %vm2163, %v1453, 0.0
    %2177 = vadd.xlane.f32.xlu0 %v2176
    %v2178 = vpop.xlane.xlu0 %2177
    %v2179 = vsel %vm2163, %v1454, 0.0
    %2180 = vadd.xlane.f32.xlu0 %v2179
    %v2181 = vpop.xlane.xlu0 %2180
    %v2182 = vsel %vm2163, %v1455, 0.0
    %2183 = vadd.xlane.f32.xlu0 %v2182
    %v2184 = vpop.xlane.xlu0 %2183
    %v2185 = vsel %vm2163, %v1456, 0.0
    %2186 = vadd.xlane.f32.xlu0 %v2185
    %v2187 = vpop.xlane.xlu0 %2186
    %v2188 = vsel %vm2163, %v1457, 0.0
    %2189 = vadd.xlane.f32.xlu0 %v2188
    %v2190 = vpop.xlane.xlu0 %2189
    %v2191 = vsel %vm2163, %v1458, 0.0
    %2192 = vadd.xlane.f32.xlu0 %v2191
    %v2193 = vpop.xlane.xlu0 %2192
    %v2194 = vsel %vm2163, %v1459, 0.0
    %2195 = vadd.xlane.f32.xlu0 %v2194
    %v2196 = vpop.xlane.xlu0 %2195
    %v2197 = vsel %vm2163, %v1460, 0.0
    %2198 = vadd.xlane.f32.xlu0 %v2197
    %v2199 = vpop.xlane.xlu0 %2198
    %v2200 = vsel %vm2163, %v1461, 0.0
    %2201 = vadd.xlane.f32.xlu0 %v2200
    %v2202 = vpop.xlane.xlu0 %2201
    %v2203 = vsel %vm2163, %v1462, 0.0
    %2204 = vadd.xlane.f32.xlu0 %v2203
    %v2205 = vpop.xlane.xlu0 %2204
    %v2206 = vsel %vm2163, %v1463, 0.0
    %2207 = vadd.xlane.f32.xlu0 %v2206
    %v2208 = vpop.xlane.xlu0 %2207
    %v2209 = vsel %vm2163, %v1464, 0.0
    %2210 = vadd.xlane.f32.xlu0 %v2209
    %v2211 = vpop.xlane.xlu0 %2210
    %v2212 = vsel %vm2163, %v2147, 0.0
    %2213 = vadd.xlane.f32.xlu0 %v2212
    %v2214 = vpop.xlane.xlu0 %2213
    %v2215 = vsel %vm2163, %v2148, 0.0
    %2216 = vadd.xlane.f32.xlu0 %v2215
    %v2217 = vpop.xlane.xlu0 %2216
    %v2218 = vsel %vm2163, %v2149, 0.0
    %2219 = vadd.xlane.f32.xlu0 %v2218
    %v2220 = vpop.xlane.xlu0 %2219
    %v2221 = vsel %vm2163, %v2150, 0.0
    %2222 = vadd.xlane.f32.xlu0 %v2221
    %v2223 = vpop.xlane.xlu0 %2222
    %v2224 = vsel %vm2163, %v2151, 0.0
    %2225 = vadd.xlane.f32.xlu0 %v2224
    %v2226 = vpop.xlane.xlu0 %2225
    %v2227 = vsel %vm2163, %v2152, 0.0
    %2228 = vadd.xlane.f32.xlu0 %v2227
    %v2229 = vpop.xlane.xlu0 %2228
    %v2230 = vsel %vm2163, %v2153, 0.0
    %2231 = vadd.xlane.f32.xlu0 %v2230
    %v2232 = vpop.xlane.xlu0 %2231
    %v2233 = vsel %vm2163, %v2154, 0.0
    %2234 = vadd.xlane.f32.xlu0 %v2233
    %v2235 = vpop.xlane.xlu0 %2234
    %v2236 = vsel %vm2163, %v2155, 0.0
    %2237 = vadd.xlane.f32.xlu0 %v2236
    %v2238 = vpop.xlane.xlu0 %2237
    %v2239 = vsel %vm2163, %v2156, 0.0
    %2240 = vadd.xlane.f32.xlu0 %v2239
    %v2241 = vpop.xlane.xlu0 %2240
    %v2242 = vsel %vm2163, %v2157, 0.0
    %2243 = vadd.xlane.f32.xlu0 %v2242
    %v2244 = vpop.xlane.xlu0 %2243
    %v2245 = vsel %vm2163, %v2158, 0.0
    %2246 = vadd.xlane.f32.xlu0 %v2245
    %v2247 = vpop.xlane.xlu0 %2246
    %v2248 = vsel %vm2163, %v2159, 0.0
    %2249 = vadd.xlane.f32.xlu0 %v2248
    %v2250 = vpop.xlane.xlu0 %2249
    %v2251 = vsel %vm2163, %v2160, 0.0
    %2252 = vadd.xlane.f32.xlu0 %v2251
    %v2253 = vpop.xlane.xlu0 %2252
    %v2254 = vsel %vm2163, %v2161, 0.0
    %2255 = vadd.xlane.f32.xlu0 %v2254
    %v2256 = vpop.xlane.xlu0 %2255
    %v2257 = vsel %vm2163, %v2162, 0.0
    %2258 = vadd.xlane.f32.xlu0 %v2257
    %v2259 = vpop.xlane.xlu0 %2258
    %v2260 = vadd.f32 %v2166, %v2214
    %v2261 = vadd.f32 %v2169, %v2217
    %v2262 = vadd.f32 %v2172, %v2220
    %v2263 = vadd.f32 %v2175, %v2223
    %v2264 = vadd.f32 %v2178, %v2226
    %v2265 = vadd.f32 %v2181, %v2229
    %v2266 = vadd.f32 %v2184, %v2232
    %v2267 = vadd.f32 %v2187, %v2235
    %v2268 = vadd.f32 %v2190, %v2238
    %v2269 = vadd.f32 %v2193, %v2241
    %v2270 = vadd.f32 %v2196, %v2244
    %v2271 = vadd.f32 %v2199, %v2247
    %v2272 = vadd.f32 %v2202, %v2250
    %v2273 = vadd.f32 %v2205, %v2253
    %v2274 = vadd.f32 %v2208, %v2256
    %v2275 = vadd.f32 %v2211, %v2259
    %v2276 = vadd.f32 %v2260, %v2264
    %v2277 = vadd.f32 %v2261, %v2265
    %v2278 = vadd.f32 %v2262, %v2266
    %v2279 = vadd.f32 %v2263, %v2267
    %v2280 = vadd.f32 %v2276, %v2268
    %v2281 = vadd.f32 %v2277, %v2269
    %v2282 = vadd.f32 %v2278, %v2270
    %v2283 = vadd.f32 %v2279, %v2271
    %v2284 = vadd.f32 %v2280, %v2272
    %v2285 = vadd.f32 %v2281, %v2273
    %v2286 = vadd.f32 %v2282, %v2274
    %v2287 = vadd.f32 %v2283, %v2275
    %v2288 = vmul.f32 %v2284, 0.0078125
    %v2289 = vmul.f32 %v2285, 0.0078125
    %v2290 = vmul.f32 %v2286, 0.0078125
    %v2291 = vmul.f32 %v2287, 0.0078125
    %2293 = vset.pattern.permute.xlu0 0
    %2294 = vperm.xlu0 %2293, %v2288
    %v2295 = vpop.permute.xlu0 %2294
    %2298 = vset.pattern.permute.xlu0 0
    %2299 = vperm.xlu0 %2298, %v2289
    %v2300 = vpop.permute.xlu0 %2299
    %2303 = vset.pattern.permute.xlu0 0
    %2304 = vperm.xlu0 %2303, %v2290
    %v2305 = vpop.permute.xlu0 %2304
    %2308 = vset.pattern.permute.xlu0 0
    %2309 = vperm.xlu0 %2308, %v2291
    %v2310 = vpop.permute.xlu0 %2309
    %v2312 = vsub.f32 %v1449, %v2295
    %v2313 = vsub.f32 %v1450, %v2300
    %v2314 = vsub.f32 %v1451, %v2305
    %v2315 = vsub.f32 %v1452, %v2310
    %v2316 = vsub.f32 %v1453, %v2295
    %v2317 = vsub.f32 %v1454, %v2300
    %v2318 = vsub.f32 %v1455, %v2305
    %v2319 = vsub.f32 %v1456, %v2310
    %v2320 = vsub.f32 %v1457, %v2295
    %v2321 = vsub.f32 %v1458, %v2300
    %v2322 = vsub.f32 %v1459, %v2305
    %v2323 = vsub.f32 %v1460, %v2310
    %v2324 = vsub.f32 %v1461, %v2295
    %v2325 = vsub.f32 %v1462, %v2300
    %v2326 = vsub.f32 %v1463, %v2305
    %v2327 = vsub.f32 %v1464, %v2310
    %v2328 = vmul.f32 %v2312, %v1447
    %v2329 = vmul.f32 %v2313, %v1447
    %v2330 = vmul.f32 %v2314, %v1447
    %v2331 = vmul.f32 %v2315, %v1447
    %v2332 = vmul.f32 %v2316, %v1447
    %v2333 = vmul.f32 %v2317, %v1447
    %v2334 = vmul.f32 %v2318, %v1447
    %v2335 = vmul.f32 %v2319, %v1447
    %v2336 = vmul.f32 %v2320, %v1447
    %v2337 = vmul.f32 %v2321, %v1447
    %v2338 = vmul.f32 %v2322, %v1447
    %v2339 = vmul.f32 %v2323, %v1447
    %v2340 = vmul.f32 %v2324, %v1447
    %v2341 = vmul.f32 %v2325, %v1447
    %v2342 = vmul.f32 %v2326, %v1447
    %v2343 = vmul.f32 %v2327, %v1447
    %v2344 = vmul.f32 %v2328, %v2328
    %v2345 = vmul.f32 %v2329, %v2329
    %v2346 = vmul.f32 %v2330, %v2330
    %v2347 = vmul.f32 %v2331, %v2331
    %v2348 = vmul.f32 %v2332, %v2332
    %v2349 = vmul.f32 %v2333, %v2333
    %v2350 = vmul.f32 %v2334, %v2334
    %v2351 = vmul.f32 %v2335, %v2335
    %v2352 = vmul.f32 %v2336, %v2336
    %v2353 = vmul.f32 %v2337, %v2337
    %v2354 = vmul.f32 %v2338, %v2338
    %v2355 = vmul.f32 %v2339, %v2339
    %v2356 = vmul.f32 %v2340, %v2340
    %v2357 = vmul.f32 %v2341, %v2341
    %v2358 = vmul.f32 %v2342, %v2342
    %v2359 = vmul.f32 %v2343, %v2343
    %v2360 = vsel %vm2163, %v2344, 0.0
    %2361 = vadd.xlane.f32.xlu0 %v2360
    %v2362 = vpop.xlane.xlu0 %2361
    %v2363 = vsel %vm2163, %v2345, 0.0
    %2364 = vadd.xlane.f32.xlu0 %v2363
    %v2365 = vpop.xlane.xlu0 %2364
    %v2366 = vsel %vm2163, %v2346, 0.0
    %2367 = vadd.xlane.f32.xlu0 %v2366
    %v2368 = vpop.xlane.xlu0 %2367
    %v2369 = vsel %vm2163, %v2347, 0.0
    %2370 = vadd.xlane.f32.xlu0 %v2369
    %v2371 = vpop.xlane.xlu0 %2370
    %v2372 = vsel %vm2163, %v2348, 0.0
    %2373 = vadd.xlane.f32.xlu0 %v2372
    %v2374 = vpop.xlane.xlu0 %2373
    %v2375 = vsel %vm2163, %v2349, 0.0
    %2376 = vadd.xlane.f32.xlu0 %v2375
    %v2377 = vpop.xlane.xlu0 %2376
    %v2378 = vsel %vm2163, %v2350, 0.0
    %2379 = vadd.xlane.f32.xlu0 %v2378
    %v2380 = vpop.xlane.xlu0 %2379
    %v2381 = vsel %vm2163, %v2351, 0.0
    %2382 = vadd.xlane.f32.xlu0 %v2381
    %v2383 = vpop.xlane.xlu0 %2382
    %v2384 = vsel %vm2163, %v2352, 0.0
    %2385 = vadd.xlane.f32.xlu0 %v2384
    %v2386 = vpop.xlane.xlu0 %2385
    %v2387 = vsel %vm2163, %v2353, 0.0
    %2388 = vadd.xlane.f32.xlu0 %v2387
    %v2389 = vpop.xlane.xlu0 %2388
    %v2390 = vsel %vm2163, %v2354, 0.0
    %2391 = vadd.xlane.f32.xlu0 %v2390
    %v2392 = vpop.xlane.xlu0 %2391
    %v2393 = vsel %vm2163, %v2355, 0.0
    %2394 = vadd.xlane.f32.xlu0 %v2393
    %v2395 = vpop.xlane.xlu0 %2394
    %v2396 = vsel %vm2163, %v2356, 0.0
    %2397 = vadd.xlane.f32.xlu0 %v2396
    %v2398 = vpop.xlane.xlu0 %2397
    %v2399 = vsel %vm2163, %v2357, 0.0
    %2400 = vadd.xlane.f32.xlu0 %v2399
    %v2401 = vpop.xlane.xlu0 %2400
    %v2402 = vsel %vm2163, %v2358, 0.0
    %2403 = vadd.xlane.f32.xlu0 %v2402
    %v2404 = vpop.xlane.xlu0 %2403
    %v2405 = vsel %vm2163, %v2359, 0.0
    %2406 = vadd.xlane.f32.xlu0 %v2405
    %v2407 = vpop.xlane.xlu0 %2406
    %v2408 = vsub.f32 %v2147, %v2295
    %v2409 = vsub.f32 %v2148, %v2300
    %v2410 = vsub.f32 %v2149, %v2305
    %v2411 = vsub.f32 %v2150, %v2310
    %v2412 = vsub.f32 %v2151, %v2295
    %v2413 = vsub.f32 %v2152, %v2300
    %v2414 = vsub.f32 %v2153, %v2305
    %v2415 = vsub.f32 %v2154, %v2310
    %v2416 = vsub.f32 %v2155, %v2295
    %v2417 = vsub.f32 %v2156, %v2300
    %v2418 = vsub.f32 %v2157, %v2305
    %v2419 = vsub.f32 %v2158, %v2310
    %v2420 = vsub.f32 %v2159, %v2295
    %v2421 = vsub.f32 %v2160, %v2300
    %v2422 = vsub.f32 %v2161, %v2305
    %v2423 = vsub.f32 %v2162, %v2310
    %v2424 = vmul.f32 %v2408, %v1447
    %v2425 = vmul.f32 %v2409, %v1447
    %v2426 = vmul.f32 %v2410, %v1447
    %v2427 = vmul.f32 %v2411, %v1447
    %v2428 = vmul.f32 %v2412, %v1447
    %v2429 = vmul.f32 %v2413, %v1447
    %v2430 = vmul.f32 %v2414, %v1447
    %v2431 = vmul.f32 %v2415, %v1447
    %v2432 = vmul.f32 %v2416, %v1447
    %v2433 = vmul.f32 %v2417, %v1447
    %v2434 = vmul.f32 %v2418, %v1447
    %v2435 = vmul.f32 %v2419, %v1447
    %v2436 = vmul.f32 %v2420, %v1447
    %v2437 = vmul.f32 %v2421, %v1447
    %v2438 = vmul.f32 %v2422, %v1447
    %v2439 = vmul.f32 %v2423, %v1447
    %v2440 = vmul.f32 %v2424, %v2424
    %v2441 = vmul.f32 %v2425, %v2425
    %v2442 = vmul.f32 %v2426, %v2426
    %v2443 = vmul.f32 %v2427, %v2427
    %v2444 = vmul.f32 %v2428, %v2428
    %v2445 = vmul.f32 %v2429, %v2429
    %v2446 = vmul.f32 %v2430, %v2430
    %v2447 = vmul.f32 %v2431, %v2431
    %v2448 = vmul.f32 %v2432, %v2432
    %v2449 = vmul.f32 %v2433, %v2433
    %v2450 = vmul.f32 %v2434, %v2434
    %v2451 = vmul.f32 %v2435, %v2435
    %v2452 = vmul.f32 %v2436, %v2436
    %v2453 = vmul.f32 %v2437, %v2437
    %v2454 = vmul.f32 %v2438, %v2438
    %v2455 = vmul.f32 %v2439, %v2439
    %v2456 = vsel %vm2163, %v2440, 0.0
    %2457 = vadd.xlane.f32.xlu0 %v2456
    %v2458 = vpop.xlane.xlu0 %2457
    %v2459 = vsel %vm2163, %v2441, 0.0
    %2460 = vadd.xlane.f32.xlu0 %v2459
    %v2461 = vpop.xlane.xlu0 %2460
    %v2462 = vsel %vm2163, %v2442, 0.0
    %2463 = vadd.xlane.f32.xlu0 %v2462
    %v2464 = vpop.xlane.xlu0 %2463
    %v2465 = vsel %vm2163, %v2443, 0.0
    %2466 = vadd.xlane.f32.xlu0 %v2465
    %v2467 = vpop.xlane.xlu0 %2466
    %v2468 = vsel %vm2163, %v2444, 0.0
    %2469 = vadd.xlane.f32.xlu0 %v2468
    %v2470 = vpop.xlane.xlu0 %2469
    %v2471 = vsel %vm2163, %v2445, 0.0
    %2472 = vadd.xlane.f32.xlu0 %v2471
    %v2473 = vpop.xlane.xlu0 %2472
    %v2474 = vsel %vm2163, %v2446, 0.0
    %2475 = vadd.xlane.f32.xlu0 %v2474
    %v2476 = vpop.xlane.xlu0 %2475
    %v2477 = vsel %vm2163, %v2447, 0.0
    %2478 = vadd.xlane.f32.xlu0 %v2477
    %v2479 = vpop.xlane.xlu0 %2478
    %v2480 = vsel %vm2163, %v2448, 0.0
    %2481 = vadd.xlane.f32.xlu0 %v2480
    %v2482 = vpop.xlane.xlu0 %2481
    %v2483 = vsel %vm2163, %v2449, 0.0
    %2484 = vadd.xlane.f32.xlu0 %v2483
    %v2485 = vpop.xlane.xlu0 %2484
    %v2486 = vsel %vm2163, %v2450, 0.0
    %2487 = vadd.xlane.f32.xlu0 %v2486
    %v2488 = vpop.xlane.xlu0 %2487
    %v2489 = vsel %vm2163, %v2451, 0.0
    %2490 = vadd.xlane.f32.xlu0 %v2489
    %v2491 = vpop.xlane.xlu0 %2490
    %v2492 = vsel %vm2163, %v2452, 0.0
    %2493 = vadd.xlane.f32.xlu0 %v2492
    %v2494 = vpop.xlane.xlu0 %2493
    %v2495 = vsel %vm2163, %v2453, 0.0
    %2496 = vadd.xlane.f32.xlu0 %v2495
    %v2497 = vpop.xlane.xlu0 %2496
    %v2498 = vsel %vm2163, %v2454, 0.0
    %2499 = vadd.xlane.f32.xlu0 %v2498
    %v2500 = vpop.xlane.xlu0 %2499
    %v2501 = vsel %vm2163, %v2455, 0.0
    %2502 = vadd.xlane.f32.xlu0 %v2501
    %v2503 = vpop.xlane.xlu0 %2502
    %v2504 = vadd.f32 %v2362, %v2458
    %v2505 = vadd.f32 %v2365, %v2461
    %v2506 = vadd.f32 %v2368, %v2464
    %v2507 = vadd.f32 %v2371, %v2467
    %v2508 = vadd.f32 %v2374, %v2470
    %v2509 = vadd.f32 %v2377, %v2473
    %v2510 = vadd.f32 %v2380, %v2476
    %v2511 = vadd.f32 %v2383, %v2479
    %v2512 = vadd.f32 %v2386, %v2482
    %v2513 = vadd.f32 %v2389, %v2485
    %v2514 = vadd.f32 %v2392, %v2488
    %v2515 = vadd.f32 %v2395, %v2491
    %v2516 = vadd.f32 %v2398, %v2494
    %v2517 = vadd.f32 %v2401, %v2497
    %v2518 = vadd.f32 %v2404, %v2500
    %v2519 = vadd.f32 %v2407, %v2503
    %v2520 = vadd.f32 %v2504, %v2508
    %v2521 = vadd.f32 %v2505, %v2509
    %v2522 = vadd.f32 %v2506, %v2510
    %v2523 = vadd.f32 %v2507, %v2511
    %v2524 = vadd.f32 %v2520, %v2512
    %v2525 = vadd.f32 %v2521, %v2513
    %v2526 = vadd.f32 %v2522, %v2514
    %v2527 = vadd.f32 %v2523, %v2515
    %v2528 = vadd.f32 %v2524, %v2516
    %v2529 = vadd.f32 %v2525, %v2517
    %v2530 = vadd.f32 %v2526, %v2518
    %v2531 = vadd.f32 %v2527, %v2519
    %v2532 = vmul.f32 %v2528, 0.0078125
    %v2533 = vmul.f32 %v2529, 0.0078125
    %v2534 = vmul.f32 %v2530, 0.0078125
    %v2535 = vmul.f32 %v2531, 0.0078125
    %v2536 = vld [vmem:[%s2] sm:$0xff]
    %v2537 = vld [vmem:[%s2 + $0x8] sm:$0xff]
    %v2538 = vld [vmem:[%s2 + $0x10] sm:$0xff]
    %v2539 = vld [vmem:[%s2 + $0x18] sm:$0xff]
    %v2540 = vadd.f32 %v2532, 1e-05
    %v2541 = vadd.f32 %v2533, 1e-05
    %v2542 = vadd.f32 %v2534, 1e-05
    %v2543 = vadd.f32 %v2535, 1e-05
    %v2544 = vrsqrt.pop %v2540
    %v2545 = vmul.f32 %v2544, %v2540
    %v2546 = vmul.f32 %v2545, %v2544
    %v2547 = vmul.f32 0.5, %v2546
    %v2548 = vsub.f32 1.5, %v2547
    %v2549 = vmul.f32 %v2544, %v2548
    %vm2550 = vweird.f32 %v2540
    %vm2551 = vweird.f32 %v2544
    %vm2552 = vmor %vm2550, %vm2551
    %v2553 = vsel %vm2552, %v2544, %v2549
    %v2554 = vrsqrt.pop %v2541
    %v2555 = vmul.f32 %v2554, %v2541
    %v2556 = vmul.f32 %v2555, %v2554
    %v2557 = vmul.f32 0.5, %v2556
    %v2558 = vsub.f32 1.5, %v2557
    %v2559 = vmul.f32 %v2554, %v2558
    %vm2560 = vweird.f32 %v2541
    %vm2561 = vweird.f32 %v2554
    %vm2562 = vmor %vm2560, %vm2561
    %v2563 = vsel %vm2562, %v2554, %v2559
    %v2564 = vrsqrt.pop %v2542
    %v2565 = vmul.f32 %v2564, %v2542
    %v2566 = vmul.f32 %v2565, %v2564
    %v2567 = vmul.f32 0.5, %v2566
    %v2568 = vsub.f32 1.5, %v2567
    %v2569 = vmul.f32 %v2564, %v2568
    %vm2570 = vweird.f32 %v2542
    %vm2571 = vweird.f32 %v2564
    %vm2572 = vmor %vm2570, %vm2571
    %v2573 = vsel %vm2572, %v2564, %v2569
    %v2574 = vrsqrt.pop %v2543
    %v2575 = vmul.f32 %v2574, %v2543
    %v2576 = vmul.f32 %v2575, %v2574
    %v2577 = vmul.f32 0.5, %v2576
    %v2578 = vsub.f32 1.5, %v2577
    %v2579 = vmul.f32 %v2574, %v2578
    %vm2580 = vweird.f32 %v2543
    %vm2581 = vweird.f32 %v2574
    %vm2582 = vmor %vm2580, %vm2581
    %v2583 = vsel %vm2582, %v2574, %v2579
    %v2584 = vmul.f32 %v2536, %v2553
    %v2585 = vmul.f32 %v2537, %v2563
    %v2586 = vmul.f32 %v2538, %v2573
    %v2587 = vmul.f32 %v2539, %v2583
    %v2588 = vld [vmem:[%s3] sm:$0xff]
    %v2589 = vld [vmem:[%s3 + $0x8] sm:$0xff]
    %v2590 = vld [vmem:[%s3 + $0x10] sm:$0xff]
    %v2591 = vld [vmem:[%s3 + $0x18] sm:$0xff]
    %2593 = vset.pattern.permute.xlu0 0
    %2594 = vperm.xlu0 %2593, %v2584
    %v2595 = vpop.permute.xlu0 %2594
    %2598 = vset.pattern.permute.xlu0 0
    %2599 = vperm.xlu0 %2598, %v2585
    %v2600 = vpop.permute.xlu0 %2599
    %2603 = vset.pattern.permute.xlu0 0
    %2604 = vperm.xlu0 %2603, %v2586
    %v2605 = vpop.permute.xlu0 %2604
    %2608 = vset.pattern.permute.xlu0 0
    %2609 = vperm.xlu0 %2608, %v2587
    %v2610 = vpop.permute.xlu0 %2609
    %v2612 = vmul.f32 %v2312, %v2595
    %v2613 = vmul.f32 %v2313, %v2600
    %v2614 = vmul.f32 %v2314, %v2605
    %v2615 = vmul.f32 %v2315, %v2610
    %v2616 = vmul.f32 %v2316, %v2595
    %v2617 = vmul.f32 %v2317, %v2600
    %v2618 = vmul.f32 %v2318, %v2605
    %v2619 = vmul.f32 %v2319, %v2610
    %v2620 = vmul.f32 %v2320, %v2595
    %v2621 = vmul.f32 %v2321, %v2600
    %v2622 = vmul.f32 %v2322, %v2605
    %v2623 = vmul.f32 %v2323, %v2610
    %v2624 = vmul.f32 %v2324, %v2595
    %v2625 = vmul.f32 %v2325, %v2600
    %v2626 = vmul.f32 %v2326, %v2605
    %v2627 = vmul.f32 %v2327, %v2610
    %2629 = vset.pattern.permute.xlu0 0
    %2630 = vperm.xlu0 %2629, %v2588
    %v2631 = vpop.permute.xlu0 %2630
    %2634 = vset.pattern.permute.xlu0 0
    %2635 = vperm.xlu0 %2634, %v2589
    %v2636 = vpop.permute.xlu0 %2635
    %2639 = vset.pattern.permute.xlu0 0
    %2640 = vperm.xlu0 %2639, %v2590
    %v2641 = vpop.permute.xlu0 %2640
    %2644 = vset.pattern.permute.xlu0 0
    %2645 = vperm.xlu0 %2644, %v2591
    %v2646 = vpop.permute.xlu0 %2645
    %v2648 = vadd.f32 %v2612, %v2631
    %v2649 = vadd.f32 %v2613, %v2636
    %v2650 = vadd.f32 %v2614, %v2641
    %v2651 = vadd.f32 %v2615, %v2646
    %v2652 = vadd.f32 %v2616, %v2631
    %v2653 = vadd.f32 %v2617, %v2636
    %v2654 = vadd.f32 %v2618, %v2641
    %v2655 = vadd.f32 %v2619, %v2646
    %v2656 = vadd.f32 %v2620, %v2631
    %v2657 = vadd.f32 %v2621, %v2636
    %v2658 = vadd.f32 %v2622, %v2641
    %v2659 = vadd.f32 %v2623, %v2646
    %v2660 = vadd.f32 %v2624, %v2631
    %v2661 = vadd.f32 %v2625, %v2636
    %v2662 = vadd.f32 %v2626, %v2641
    %v2663 = vadd.f32 %v2627, %v2646
    %v2664 = vmax.f32 %v2648, 0.0
    %v2665 = vmax.f32 %v2649, 0.0
    %v2666 = vmax.f32 %v2650, 0.0
    %v2667 = vmax.f32 %v2651, 0.0
    %v2668 = vmax.f32 %v2652, 0.0
    %v2669 = vmax.f32 %v2653, 0.0
    %v2670 = vmax.f32 %v2654, 0.0
    %v2671 = vmax.f32 %v2655, 0.0
    %v2672 = vmax.f32 %v2656, 0.0
    %v2673 = vmax.f32 %v2657, 0.0
    %v2674 = vmax.f32 %v2658, 0.0
    %v2675 = vmax.f32 %v2659, 0.0
    %v2676 = vmax.f32 %v2660, 0.0
    %v2677 = vmax.f32 %v2661, 0.0
    %v2678 = vmax.f32 %v2662, 0.0
    %v2679 = vmax.f32 %v2663, 0.0
    %v2680 = vpack.c.bf16 %v2664, %v2664
    %v2681 = vpack.c.bf16 %v2665, %v2665
    %v2682 = vpack.c.bf16 %v2666, %v2666
    %v2683 = vpack.c.bf16 %v2667, %v2667
    %v2684 = vpack.c.bf16 %v2668, %v2668
    %v2685 = vpack.c.bf16 %v2669, %v2669
    %v2686 = vpack.c.bf16 %v2670, %v2670
    %v2687 = vpack.c.bf16 %v2671, %v2671
    %v2688 = vpack.c.bf16 %v2672, %v2672
    %v2689 = vpack.c.bf16 %v2673, %v2673
    %v2690 = vpack.c.bf16 %v2674, %v2674
    %v2691 = vpack.c.bf16 %v2675, %v2675
    %v2692 = vpack.c.bf16 %v2676, %v2676
    %v2693 = vpack.c.bf16 %v2677, %v2677
    %v2694 = vpack.c.bf16 %v2678, %v2678
    %v2695 = vpack.c.bf16 %v2679, %v2679
    %vm2696 = vcmask 289792
    %2697 = vst.msk [vmem:[%s5] sm:$0xf] %vm2696, %v2680
    %2698 = vst.msk [vmem:[%s5 + $0x4] sm:$0xf] %vm2696, %v2681
    %2699 = vst.msk [vmem:[%s5 + $0x8] sm:$0xf] %vm2696, %v2682
    %2700 = vst.msk [vmem:[%s5 + $0xc] sm:$0xf] %vm2696, %v2683
    %2701 = vst.msk [vmem:[%s5 + $0x10] sm:$0xf] %vm2696, %v2684
    %2702 = vst.msk [vmem:[%s5 + $0x14] sm:$0xf] %vm2696, %v2685
    %2703 = vst.msk [vmem:[%s5 + $0x18] sm:$0xf] %vm2696, %v2686
    %2704 = vst.msk [vmem:[%s5 + $0x1c] sm:$0xf] %vm2696, %v2687
    %2705 = vst.msk [vmem:[%s5 + $0x20] sm:$0xf] %vm2696, %v2688
    %2706 = vst.msk [vmem:[%s5 + $0x24] sm:$0xf] %vm2696, %v2689
    %2707 = vst.msk [vmem:[%s5 + $0x28] sm:$0xf] %vm2696, %v2690
    %2708 = vst.msk [vmem:[%s5 + $0x2c] sm:$0xf] %vm2696, %v2691
    %2709 = vst.msk [vmem:[%s5 + $0x30] sm:$0xf] %vm2696, %v2692
    %2710 = vst.msk [vmem:[%s5 + $0x34] sm:$0xf] %vm2696, %v2693
    %2711 = vst.msk [vmem:[%s5 + $0x38] sm:$0xf] %vm2696, %v2694
    %2712 = vst.msk [vmem:[%s5 + $0x3c] sm:$0xf] %vm2696, %v2695
    %v2713 = vmul.f32 %v2408, %v2595
    %v2714 = vmul.f32 %v2409, %v2600
    %v2715 = vmul.f32 %v2410, %v2605
    %v2716 = vmul.f32 %v2411, %v2610
    %v2717 = vmul.f32 %v2412, %v2595
    %v2718 = vmul.f32 %v2413, %v2600
    %v2719 = vmul.f32 %v2414, %v2605
    %v2720 = vmul.f32 %v2415, %v2610
    %v2721 = vmul.f32 %v2416, %v2595
    %v2722 = vmul.f32 %v2417, %v2600
    %v2723 = vmul.f32 %v2418, %v2605
    %v2724 = vmul.f32 %v2419, %v2610
    %v2725 = vmul.f32 %v2420, %v2595
    %v2726 = vmul.f32 %v2421, %v2600
    %v2727 = vmul.f32 %v2422, %v2605
    %v2728 = vmul.f32 %v2423, %v2610
    %v2729 = vadd.f32 %v2713, %v2631
    %v2730 = vadd.f32 %v2714, %v2636
    %v2731 = vadd.f32 %v2715, %v2641
    %v2732 = vadd.f32 %v2716, %v2646
    %v2733 = vadd.f32 %v2717, %v2631
    %v2734 = vadd.f32 %v2718, %v2636
    %v2735 = vadd.f32 %v2719, %v2641
    %v2736 = vadd.f32 %v2720, %v2646
    %v2737 = vadd.f32 %v2721, %v2631
    %v2738 = vadd.f32 %v2722, %v2636
    %v2739 = vadd.f32 %v2723, %v2641
    %v2740 = vadd.f32 %v2724, %v2646
    %v2741 = vadd.f32 %v2725, %v2631
    %v2742 = vadd.f32 %v2726, %v2636
    %v2743 = vadd.f32 %v2727, %v2641
    %v2744 = vadd.f32 %v2728, %v2646
    %v2745 = vmax.f32 %v2729, 0.0
    %v2746 = vmax.f32 %v2730, 0.0
    %v2747 = vmax.f32 %v2731, 0.0
    %v2748 = vmax.f32 %v2732, 0.0
    %v2749 = vmax.f32 %v2733, 0.0
    %v2750 = vmax.f32 %v2734, 0.0
    %v2751 = vmax.f32 %v2735, 0.0
    %v2752 = vmax.f32 %v2736, 0.0
    %v2753 = vmax.f32 %v2737, 0.0
    %v2754 = vmax.f32 %v2738, 0.0
    %v2755 = vmax.f32 %v2739, 0.0
    %v2756 = vmax.f32 %v2740, 0.0
    %v2757 = vmax.f32 %v2741, 0.0
    %v2758 = vmax.f32 %v2742, 0.0
    %v2759 = vmax.f32 %v2743, 0.0
    %v2760 = vmax.f32 %v2744, 0.0
    %v2761 = vpack.c.bf16 %v2745, %v2745
    %v2762 = vpack.c.bf16 %v2746, %v2746
    %v2763 = vpack.c.bf16 %v2747, %v2747
    %v2764 = vpack.c.bf16 %v2748, %v2748
    %v2765 = vpack.c.bf16 %v2749, %v2749
    %v2766 = vpack.c.bf16 %v2750, %v2750
    %v2767 = vpack.c.bf16 %v2751, %v2751
    %v2768 = vpack.c.bf16 %v2752, %v2752
    %v2769 = vpack.c.bf16 %v2753, %v2753
    %v2770 = vpack.c.bf16 %v2754, %v2754
    %v2771 = vpack.c.bf16 %v2755, %v2755
    %v2772 = vpack.c.bf16 %v2756, %v2756
    %v2773 = vpack.c.bf16 %v2757, %v2757
    %v2774 = vpack.c.bf16 %v2758, %v2758
    %v2775 = vpack.c.bf16 %v2759, %v2759
    %v2776 = vpack.c.bf16 %v2760, %v2760
    %s2777 = scalar_lea.vmem %s5, 64
    %2778 = vst.msk [vmem:[%s2777] sm:$0xf] %vm2696, %v2761
    %2779 = vst.msk [vmem:[%s2777 + $0x4] sm:$0xf] %vm2696, %v2762
    %2780 = vst.msk [vmem:[%s2777 + $0x8] sm:$0xf] %vm2696, %v2763
    %2781 = vst.msk [vmem:[%s2777 + $0xc] sm:$0xf] %vm2696, %v2764
    %2782 = vst.msk [vmem:[%s2777 + $0x10] sm:$0xf] %vm2696, %v2765
    %2783 = vst.msk [vmem:[%s2777 + $0x14] sm:$0xf] %vm2696, %v2766
    %2784 = vst.msk [vmem:[%s2777 + $0x18] sm:$0xf] %vm2696, %v2767
    %2785 = vst.msk [vmem:[%s2777 + $0x1c] sm:$0xf] %vm2696, %v2768
    %2786 = vst.msk [vmem:[%s2777 + $0x20] sm:$0xf] %vm2696, %v2769
    %2787 = vst.msk [vmem:[%s2777 + $0x24] sm:$0xf] %vm2696, %v2770
    %2788 = vst.msk [vmem:[%s2777 + $0x28] sm:$0xf] %vm2696, %v2771
    %2789 = vst.msk [vmem:[%s2777 + $0x2c] sm:$0xf] %vm2696, %v2772
    %2790 = vst.msk [vmem:[%s2777 + $0x30] sm:$0xf] %vm2696, %v2773
    %2791 = vst.msk [vmem:[%s2777 + $0x34] sm:$0xf] %vm2696, %v2774
    %2792 = vst.msk [vmem:[%s2777 + $0x38] sm:$0xf] %vm2696, %v2775
    %2793 = vst.msk [vmem:[%s2777 + $0x3c] sm:$0xf] %vm2696, %v2776
    // Predicated region
    $region26: #{generator_forward.4} parent=1 // pred_check
      _
    $region27: #{generator_forward.4} parent=1 // pred_check_branch
      %2795 = sbr.rel (0) target = $region29
    $region28: #{generator_forward.4} parent=1 // pred_region
      _
    $region29: #{generator_forward.4} parent=1 // pred_fallthru
      _
    // Predicated region
    $region30: #{generator_forward.4} parent=1 // pred_check
      _
    $region31: #{generator_forward.4} parent=1 // pred_check_branch
      %2797 = sbr.rel (0) target = $region33
    $region32: #{generator_forward.4} parent=1 // pred_region
      _
    $region33: #{generator_forward.4} parent=1 // pred_fallthru
      _
    %2798 = vsyncpa [#allocation3], 1

// kernel: generator_forward.5
$region0: #{generator_forward.5}
  #allocation0 [shape = 'u32[]', space=smem, size = 0x4, offset = 0x4, fixed_abs, tag = 'smem constant byte address 0x4 - core index']
  #allocation1 [shape = 'u32[72,128]{1,0:T(1,128)}', space=vmem, size = 0x9000, scoped, tag = 'internal scratch']
  %s0 = inlined_call_operand.vmem [shape: bf16[2,32,122], index: 0, kind: input, shape index: {}]
  %s1 = inlined_call_operand.vmem [shape: bf16[9,64,32], index: 1, kind: input, shape index: {}]
  %s2 = inlined_call_operand.vmem [shape: f32[16,1], index: 2, kind: input, shape index: {}]
  %s3 = inlined_call_operand.vmem [shape: f32[16,1], index: 3, kind: input, shape index: {}]
  %s4 = inlined_call_operand.hbm [shape: f32[1,100], index: 4, kind: input, shape index: {}]
  %s5 = inlined_call_operand.vmem [shape: bf16[2,64,100], index: 5, kind: output, shape index: {}]
  %s6 = sld [smem:[#allocation0]]
  $region34: #{generator_forward.5} parent=0
    _
  %s8 = ssub.s32 1, %s6
  %s9 = scalar_select 0, %s8, %s6
  $region1: #{generator_forward.5} parent=0
    #allocation2 [shape = 'u8[512]{0}', space=vmem, size = 0x400, scoped, tag = 'input window, operand 4, single buffered']
    #allocation3 [shape = 's32[1]{0}', space=sflag, size = 0x4, scoped, tag = 'scoped memory for generator_forward.5']
    %10 = vsyncpa [#allocation3], 0
    // Predicated region
    $region2: #{generator_forward.5} parent=1 // pred_check
      _
    $region3: #{generator_forward.5} parent=1 // pred_check_branch
      %12 = sbr.rel (0) target = $region5
    $region4: #{generator_forward.5} parent=1 // pred_region
      _
    $region5: #{generator_forward.5} parent=1 // pred_fallthru
      _
    // Predicated region
    $region6: #{generator_forward.5} parent=1 // pred_check
      _
    $region7: #{generator_forward.5} parent=1 // pred_check_branch
      %14 = sbr.rel (0) target = $region9
    $region8: #{generator_forward.5} parent=1 // pred_region
      _
    $region9: #{generator_forward.5} parent=1 // pred_fallthru
      _
    // Predicated region
    $region10: #{generator_forward.5} parent=1 // pred_check
      _
    $region11: #{generator_forward.5} parent=1 // pred_check_branch
      %16 = sbr.rel (0) target = $region13
    $region12: #{generator_forward.5} parent=1 // pred_region
      _
    $region13: #{generator_forward.5} parent=1 // pred_fallthru
      _
    // Predicated region
    $region14: #{generator_forward.5} parent=1 // pred_check
      _
    $region15: #{generator_forward.5} parent=1 // pred_check_branch
      %18 = sbr.rel (0) target = $region17
    $region16: #{generator_forward.5} parent=1 // pred_region
      _
    $region17: #{generator_forward.5} parent=1 // pred_fallthru
      _
    // Predicated region
    $region18: #{generator_forward.5} parent=1 // pred_check
      _
    $region19: #{generator_forward.5} parent=1 // pred_check_branch
      %20 = sbr.rel (0) target = $region21
    $region20: #{generator_forward.5} parent=1 // pred_region
      %22 = vsyncadd [#allocation3], 0
      %s24 = sshll.u32 %s4, 4
      %s25 = int_to_ptr.hbm [resolvable:$true] %s24
      %s26 = sshll.u32 [#allocation2], 4
      %s27 = int_to_ptr.vmem [resolvable:$true] %s26
      %29 = dma.hbm_to_vmem [thread:$0]  %s25, 16, %s27, [#allocation3]
    $region21: #{generator_forward.5} parent=1 // pred_fallthru
      _
    // Predicated region
    $region22: #{generator_forward.5} parent=1 // pred_check
      _
    $region23: #{generator_forward.5} parent=1 // pred_check_branch
      %31 = sbr.rel (0) target = $region25
    $region24: #{generator_forward.5} parent=1 // pred_region
      %33 = dma.done [#allocation3], 16
    $region25: #{generator_forward.5} parent=1 // pred_fallthru
      _
    %v35 = vld [vmem:[#allocation2] sm:$0x1]
    %v36 = vld [vmem:[%s0] sm:$0xf]
    %v37 = vld [vmem:[%s0 + $0x4] sm:$0xf]
    %v38 = vld [vmem:[%s0 + $0x8] sm:$0xf]
    %v39 = vld [vmem:[%s0 + $0xc] sm:$0xf]
    %v40 = vld [vmem:[%s1] sm:$0xf]
    %v41 = vld [vmem:[%s1 + $0x4] sm:$0xf]
    %v42 = vld [vmem:[%s1 + $0x8] sm:$0xf]
    %v43 = vld [vmem:[%s1 + $0xc] sm:$0xf]
    %v44 = vld [vmem:[%s1 + $0x10] sm:$0xf]
    %v45 = vld [vmem:[%s1 + $0x14] sm:$0xf]
    %v46 = vld [vmem:[%s1 + $0x18] sm:$0xf]
    %v47 = vld [vmem:[%s1 + $0x1c] sm:$0xf]
    %s48 = scalar_lea.vmem %s1, 32
    %v49 = vld [vmem:[%s48] sm:$0xf]
    %v50 = vld [vmem:[%s48 + $0x4] sm:$0xf]
    %v51 = vld [vmem:[%s48 + $0x8] sm:$0xf]
    %v52 = vld [vmem:[%s48 + $0xc] sm:$0xf]
    %v53 = vld [vmem:[%s48 + $0x10] sm:$0xf]
    %v54 = vld [vmem:[%s48 + $0x14] sm:$0xf]
    %v55 = vld [vmem:[%s48 + $0x18] sm:$0xf]
    %v56 = vld [vmem:[%s48 + $0x1c] sm:$0xf]
    %v65 = vunpack.c.l.b16 %v49
    %v66 = vunpack.c.l.b16 %v50
    %v67 = vunpack.c.l.b16 %v51
    %v68 = vunpack.c.l.b16 %v52
    %v69 = vunpack.c.l.b16 %v53
    %v70 = vunpack.c.l.b16 %v54
    %v71 = vunpack.c.l.b16 %v55
    %v72 = vunpack.c.l.b16 %v56
    %v73 = vpack.c.b16 %v66, %v65
    %v74 = vpack.c.b16 %v68, %v67
    %v75 = vpack.c.b16 %v70, %v69
    %v76 = vpack.c.b16 %v72, %v71
    %v81 = vunpack.c.l.b16 %v36
    %v82 = vunpack.c.l.b16 %v37
    %v83 = vunpack.c.l.b16 %v38
    %v84 = vunpack.c.l.b16 %v39
    %v85 = vpack.c.b16 %v82, %v81
    %v86 = vpack.c.b16 %v84, %v83
    %87 = vrot.lane.b32.xlu0 %v85, 127
    %v88 = vpop.permute.xlu0 %87
    %89 = vrot.lane.b32.xlu0 %v86, 127
    %v90 = vpop.permute.xlu0 %89
    %vm93 = vcmask 261120
    %v95 = vsel %vm93, %v73, 0
    %v98 = vsel %vm93, %v74, 0
    %v101 = vsel %vm93, %v75, 0
    %v104 = vsel %vm93, %v76, 0
    %106 = vmatpush.bf16.msra.mxu0 0
    %107 = vmatpush.bf16.msra.mxu0 0
    %108 = vmatpush.bf16.msra.mxu0 0
    %109 = vmatpush.bf16.msra.mxu0 0
    %110 = vmatpush.bf16.msra.mxu0 0
    %111 = vmatpush.bf16.msra.mxu0 0
    %112 = vmatpush.bf16.msra.mxu0 %v90
    %113 = vmatpush.bf16.msra.mxu0 %v88
    %114 = vmatmul.bf16.gmra.mxu0 %v95
    %v115 = vpop.f32.mrf.mxu0
    %v116 = vadd.f32 0.0, %v115
    %v117 = vpop.f32.mrf.mxu0
    %v118 = vadd.f32 0.0, %v117
    %119 = vmatmul.bf16.gmra.mxu0 %v98
    %v120 = vpop.f32.mrf.mxu0
    %v121 = vadd.f32 0.0, %v120
    %v122 = vpop.f32.mrf.mxu0
    %v123 = vadd.f32 0.0, %v122
    %124 = vmatmul.bf16.gmra.mxu0 %v101
    %v125 = vpop.f32.mrf.mxu0
    %v126 = vadd.f32 0.0, %v125
    %v127 = vpop.f32.mrf.mxu0
    %v128 = vadd.f32 0.0, %v127
    %129 = vmatmul.bf16.gmra.mxu0 %v104
    %v130 = vpop.f32.mrf.mxu0
    %v131 = vadd.f32 0.0, %v130
    %v132 = vpop.f32.mrf.mxu0
    %v133 = vadd.f32 0.0, %v132
    %134 = vdwg.mxu0
    %v143 = vunpack.c.l.b16 %v40
    %v144 = vunpack.c.l.b16 %v41
    %v145 = vunpack.c.l.b16 %v42
    %v146 = vunpack.c.l.b16 %v43
    %v147 = vunpack.c.l.b16 %v44
    %v148 = vunpack.c.l.b16 %v45
    %v149 = vunpack.c.l.b16 %v46
    %v150 = vunpack.c.l.b16 %v47
    %v151 = vpack.c.b16 %v144, %v143
    %v152 = vpack.c.b16 %v146, %v145
    %v153 = vpack.c.b16 %v148, %v147
    %v154 = vpack.c.b16 %v150, %v149
    %v158 = vsel %vm93, %v151, 0
    %v161 = vsel %vm93, %v152, 0
    %v164 = vsel %vm93, %v153, 0
    %v167 = vsel %vm93, %v154, 0
    %169 = vmatpush.bf16.msra.mxu0 0
    %170 = vmatpush.bf16.msra.mxu0 0
    %171 = vmatpush.bf16.msra.mxu0 0
    %172 = vmatpush.bf16.msra.mxu0 0
    %173 = vmatpush.bf16.msra.mxu0 0
    %174 = vmatpush.bf16.msra.mxu0 0
    %175 = vmatpush.bf16.msra.mxu0 %v86
    %176 = vmatpush.bf16.msra.mxu0 %v85
    %177 = vmatmul.bf16.gmra.mxu0 %v158
    %v178 = vpop.f32.mrf.mxu0
    %v179 = vadd.f32 %v116, %v178
    %v180 = vpop.f32.mrf.mxu0
    %v181 = vadd.f32 %v118, %v180
    %182 = vmatmul.bf16.gmra.mxu0 %v161
    %v183 = vpop.f32.mrf.mxu0
    %v184 = vadd.f32 %v121, %v183
    %v185 = vpop.f32.mrf.mxu0
    %v186 = vadd.f32 %v123, %v185
    %187 = vmatmul.bf16.gmra.mxu0 %v164
    %v188 = vpop.f32.mrf.mxu0
    %v189 = vadd.f32 %v126, %v188
    %v190 = vpop.f32.mrf.mxu0
    %v191 = vadd.f32 %v128, %v190
    %192 = vmatmul.bf16.gmra.mxu0 %v167
    %v193 = vpop.f32.mrf.mxu0
    %v194 = vadd.f32 %v131, %v193
    %v195 = vpop.f32.mrf.mxu0
    %v196 = vadd.f32 %v133, %v195
    %197 = vdwg.mxu0
    %s198 = scalar_lea.vmem %s1, 64
    %v199 = vld [vmem:[%s198] sm:$0xf]
    %v200 = vld [vmem:[%s198 + $0x4] sm:$0xf]
    %v201 = vld [vmem:[%s198 + $0x8] sm:$0xf]
    %v202 = vld [vmem:[%s198 + $0xc] sm:$0xf]
    %v203 = vld [vmem:[%s198 + $0x10] sm:$0xf]
    %v204 = vld [vmem:[%s198 + $0x14] sm:$0xf]
    %v205 = vld [vmem:[%s198 + $0x18] sm:$0xf]
    %v206 = vld [vmem:[%s198 + $0x1c] sm:$0xf]
    %v215 = vunpack.c.l.b16 %v199
    %v216 = vunpack.c.l.b16 %v200
    %v217 = vunpack.c.l.b16 %v201
    %v218 = vunpack.c.l.b16 %v202
    %v219 = vunpack.c.l.b16 %v203
    %v220 = vunpack.c.l.b16 %v204
    %v221 = vunpack.c.l.b16 %v205
    %v222 = vunpack.c.l.b16 %v206
    %v223 = vpack.c.b16 %v216, %v215
    %v224 = vpack.c.b16 %v218, %v217
    %v225 = vpack.c.b16 %v220, %v219
    %v226 = vpack.c.b16 %v222, %v221
    %227 = vrot.lane.b32.xlu0 %v85, 126
    %v228 = vpop.permute.xlu0 %227
    %229 = vrot.lane.b32.xlu0 %v86, 126
    %v230 = vpop.permute.xlu0 %229
    %v234 = vsel %vm93, %v223, 0
    %v237 = vsel %vm93, %v224, 0
    %v240 = vsel %vm93, %v225, 0
    %v243 = vsel %vm93, %v226, 0
    %245 = vmatpush.bf16.msra.mxu0 0
    %246 = vmatpush.bf16.msra.mxu0 0
    %247 = vmatpush.bf16.msra.mxu0 0
    %248 = vmatpush.bf16.msra.mxu0 0
    %249 = vmatpush.bf16.msra.mxu0 0
    %250 = vmatpush.bf16.msra.mxu0 0
    %251 = vmatpush.bf16.msra.mxu0 %v230
    %252 = vmatpush.bf16.msra.mxu0 %v228
    %253 = vmatmul.bf16.gmra.mxu0 %v234
    %v254 = vpop.f32.mrf.mxu0
    %v255 = vadd.f32 0.0, %v254
    %v256 = vpop.f32.mrf.mxu0
    %v257 = vadd.f32 0.0, %v256
    %258 = vmatmul.bf16.gmra.mxu0 %v237
    %v259 = vpop.f32.mrf.mxu0
    %v260 = vadd.f32 0.0, %v259
    %v261 = vpop.f32.mrf.mxu0
    %v262 = vadd.f32 0.0, %v261
    %263 = vmatmul.bf16.gmra.mxu0 %v240
    %v264 = vpop.f32.mrf.mxu0
    %v265 = vadd.f32 0.0, %v264
    %v266 = vpop.f32.mrf.mxu0
    %v267 = vadd.f32 0.0, %v266
    %268 = vmatmul.bf16.gmra.mxu0 %v243
    %v269 = vpop.f32.mrf.mxu0
    %v270 = vadd.f32 0.0, %v269
    %v271 = vpop.f32.mrf.mxu0
    %v272 = vadd.f32 0.0, %v271
    %273 = vdwg.mxu0
    %v274 = vadd.f32 %v179, %v255
    %v275 = vadd.f32 %v181, %v257
    %v276 = vadd.f32 %v184, %v260
    %v277 = vadd.f32 %v186, %v262
    %v278 = vadd.f32 %v189, %v265
    %v279 = vadd.f32 %v191, %v267
    %v280 = vadd.f32 %v194, %v270
    %v281 = vadd.f32 %v196, %v272
    %s282 = scalar_lea.vmem %s1, 96
    %v283 = vld [vmem:[%s282] sm:$0xf]
    %v284 = vld [vmem:[%s282 + $0x4] sm:$0xf]
    %v285 = vld [vmem:[%s282 + $0x8] sm:$0xf]
    %v286 = vld [vmem:[%s282 + $0xc] sm:$0xf]
    %v287 = vld [vmem:[%s282 + $0x10] sm:$0xf]
    %v288 = vld [vmem:[%s282 + $0x14] sm:$0xf]
    %v289 = vld [vmem:[%s282 + $0x18] sm:$0xf]
    %v290 = vld [vmem:[%s282 + $0x1c] sm:$0xf]
    %v299 = vunpack.c.l.b16 %v283
    %v300 = vunpack.c.l.b16 %v284
    %v301 = vunpack.c.l.b16 %v285
    %v302 = vunpack.c.l.b16 %v286
    %v303 = vunpack.c.l.b16 %v287
    %v304 = vunpack.c.l.b16 %v288
    %v305 = vunpack.c.l.b16 %v289
    %v306 = vunpack.c.l.b16 %v290
    %v307 = vpack.c.b16 %v300, %v299
    %v308 = vpack.c.b16 %v302, %v301
    %v309 = vpack.c.b16 %v304, %v303
    %v310 = vpack.c.b16 %v306, %v305
    %311 = vrot.lane.b32.xlu0 %v85, 118
    %v312 = vpop.permute.xlu0 %311
    %313 = vrot.lane.b32.xlu0 %v86, 118
    %v314 = vpop.permute.xlu0 %313
    %v318 = vsel %vm93, %v307, 0
    %v321 = vsel %vm93, %v308, 0
    %v324 = vsel %vm93, %v309, 0
    %v327 = vsel %vm93, %v310, 0
    %329 = vmatpush.bf16.msra.mxu0 0
    %330 = vmatpush.bf16.msra.mxu0 0
    %331 = vmatpush.bf16.msra.mxu0 0
    %332 = vmatpush.bf16.msra.mxu0 0
    %333 = vmatpush.bf16.msra.mxu0 0
    %334 = vmatpush.bf16.msra.mxu0 0
    %335 = vmatpush.bf16.msra.mxu0 %v314
    %336 = vmatpush.bf16.msra.mxu0 %v312
    %337 = vmatmul.bf16.gmra.mxu0 %v318
    %v338 = vpop.f32.mrf.mxu0
    %v339 = vadd.f32 0.0, %v338
    %v340 = vpop.f32.mrf.mxu0
    %v341 = vadd.f32 0.0, %v340
    %342 = vmatmul.bf16.gmra.mxu0 %v321
    %v343 = vpop.f32.mrf.mxu0
    %v344 = vadd.f32 0.0, %v343
    %v345 = vpop.f32.mrf.mxu0
    %v346 = vadd.f32 0.0, %v345
    %347 = vmatmul.bf16.gmra.mxu0 %v324
    %v348 = vpop.f32.mrf.mxu0
    %v349 = vadd.f32 0.0, %v348
    %v350 = vpop.f32.mrf.mxu0
    %v351 = vadd.f32 0.0, %v350
    %352 = vmatmul.bf16.gmra.mxu0 %v327
    %v353 = vpop.f32.mrf.mxu0
    %v354 = vadd.f32 0.0, %v353
    %v355 = vpop.f32.mrf.mxu0
    %v356 = vadd.f32 0.0, %v355
    %357 = vdwg.mxu0
    %v358 = vadd.f32 %v274, %v339
    %v359 = vadd.f32 %v275, %v341
    %v360 = vadd.f32 %v276, %v344
    %v361 = vadd.f32 %v277, %v346
    %v362 = vadd.f32 %v278, %v349
    %v363 = vadd.f32 %v279, %v351
    %v364 = vadd.f32 %v280, %v354
    %v365 = vadd.f32 %v281, %v356
    %s366 = scalar_lea.vmem %s1, 128
    %v367 = vld [vmem:[%s366] sm:$0xf]
    %v368 = vld [vmem:[%s366 + $0x4] sm:$0xf]
    %v369 = vld [vmem:[%s366 + $0x8] sm:$0xf]
    %v370 = vld [vmem:[%s366 + $0xc] sm:$0xf]
    %v371 = vld [vmem:[%s366 + $0x10] sm:$0xf]
    %v372 = vld [vmem:[%s366 + $0x14] sm:$0xf]
    %v373 = vld [vmem:[%s366 + $0x18] sm:$0xf]
    %v374 = vld [vmem:[%s366 + $0x1c] sm:$0xf]
    %v383 = vunpack.c.l.b16 %v367
    %v384 = vunpack.c.l.b16 %v368
    %v385 = vunpack.c.l.b16 %v369
    %v386 = vunpack.c.l.b16 %v370
    %v387 = vunpack.c.l.b16 %v371
    %v388 = vunpack.c.l.b16 %v372
    %v389 = vunpack.c.l.b16 %v373
    %v390 = vunpack.c.l.b16 %v374
    %v391 = vpack.c.b16 %v384, %v383
    %v392 = vpack.c.b16 %v386, %v385
    %v393 = vpack.c.b16 %v388, %v387
    %v394 = vpack.c.b16 %v390, %v389
    %395 = vrot.lane.b32.xlu0 %v85, 117
    %v396 = vpop.permute.xlu0 %395
    %397 = vrot.lane.b32.xlu0 %v86, 117
    %v398 = vpop.permute.xlu0 %397
    %v402 = vsel %vm93, %v391, 0
    %v405 = vsel %vm93, %v392, 0
    %v408 = vsel %vm93, %v393, 0
    %v411 = vsel %vm93, %v394, 0
    %413 = vmatpush.bf16.msra.mxu0 0
    %414 = vmatpush.bf16.msra.mxu0 0
    %415 = vmatpush.bf16.msra.mxu0 0
    %416 = vmatpush.bf16.msra.mxu0 0
    %417 = vmatpush.bf16.msra.mxu0 0
    %418 = vmatpush.bf16.msra.mxu0 0
    %419 = vmatpush.bf16.msra.mxu0 %v398
    %420 = vmatpush.bf16.msra.mxu0 %v396
    %421 = vmatmul.bf16.gmra.mxu0 %v402
    %v422 = vpop.f32.mrf.mxu0
    %v423 = vadd.f32 0.0, %v422
    %v424 = vpop.f32.mrf.mxu0
    %v425 = vadd.f32 0.0, %v424
    %426 = vmatmul.bf16.gmra.mxu0 %v405
    %v427 = vpop.f32.mrf.mxu0
    %v428 = vadd.f32 0.0, %v427
    %v429 = vpop.f32.mrf.mxu0
    %v430 = vadd.f32 0.0, %v429
    %431 = vmatmul.bf16.gmra.mxu0 %v408
    %v432 = vpop.f32.mrf.mxu0
    %v433 = vadd.f32 0.0, %v432
    %v434 = vpop.f32.mrf.mxu0
    %v435 = vadd.f32 0.0, %v434
    %436 = vmatmul.bf16.gmra.mxu0 %v411
    %v437 = vpop.f32.mrf.mxu0
    %v438 = vadd.f32 0.0, %v437
    %v439 = vpop.f32.mrf.mxu0
    %v440 = vadd.f32 0.0, %v439
    %441 = vdwg.mxu0
    %v442 = vadd.f32 %v358, %v423
    %v443 = vadd.f32 %v359, %v425
    %v444 = vadd.f32 %v360, %v428
    %v445 = vadd.f32 %v361, %v430
    %v446 = vadd.f32 %v362, %v433
    %v447 = vadd.f32 %v363, %v435
    %v448 = vadd.f32 %v364, %v438
    %v449 = vadd.f32 %v365, %v440
    %s450 = scalar_lea.vmem %s1, 160
    %v451 = vld [vmem:[%s450] sm:$0xf]
    %v452 = vld [vmem:[%s450 + $0x4] sm:$0xf]
    %v453 = vld [vmem:[%s450 + $0x8] sm:$0xf]
    %v454 = vld [vmem:[%s450 + $0xc] sm:$0xf]
    %v455 = vld [vmem:[%s450 + $0x10] sm:$0xf]
    %v456 = vld [vmem:[%s450 + $0x14] sm:$0xf]
    %v457 = vld [vmem:[%s450 + $0x18] sm:$0xf]
    %v458 = vld [vmem:[%s450 + $0x1c] sm:$0xf]
    %v467 = vunpack.c.l.b16 %v451
    %v468 = vunpack.c.l.b16 %v452
    %v469 = vunpack.c.l.b16 %v453
    %v470 = vunpack.c.l.b16 %v454
    %v471 = vunpack.c.l.b16 %v455
    %v472 = vunpack.c.l.b16 %v456
    %v473 = vunpack.c.l.b16 %v457
    %v474 = vunpack.c.l.b16 %v458
    %v475 = vpack.c.b16 %v468, %v467
    %v476 = vpack.c.b16 %v470, %v469
    %v477 = vpack.c.b16 %v472, %v471
    %v478 = vpack.c.b16 %v474, %v473
    %479 = vrot.lane.b32.xlu0 %v85, 116
    %v480 = vpop.permute.xlu0 %479
    %481 = vrot.lane.b32.xlu0 %v86, 116
    %v482 = vpop.permute.xlu0 %481
    %v486 = vsel %vm93, %v475, 0
    %v489 = vsel %vm93, %v476, 0
    %v492 = vsel %vm93, %v477, 0
    %v495 = vsel %vm93, %v478, 0
    %497 = vmatpush.bf16.msra.mxu0 0
    %498 = vmatpush.bf16.msra.mxu0 0
    %499 = vmatpush.bf16.msra.mxu0 0
    %500 = vmatpush.bf16.msra.mxu0 0
    %501 = vmatpush.bf16.msra.mxu0 0
    %502 = vmatpush.bf16.msra.mxu0 0
    %503 = vmatpush.bf16.msra.mxu0 %v482
    %504 = vmatpush.bf16.msra.mxu0 %v480
    %505 = vmatmul.bf16.gmra.mxu0 %v486
    %v506 = vpop.f32.mrf.mxu0
    %v507 = vadd.f32 0.0, %v506
    %v508 = vpop.f32.mrf.mxu0
    %v509 = vadd.f32 0.0, %v508
    %510 = vmatmul.bf16.gmra.mxu0 %v489
    %v511 = vpop.f32.mrf.mxu0
    %v512 = vadd.f32 0.0, %v511
    %v513 = vpop.f32.mrf.mxu0
    %v514 = vadd.f32 0.0, %v513
    %515 = vmatmul.bf16.gmra.mxu0 %v492
    %v516 = vpop.f32.mrf.mxu0
    %v517 = vadd.f32 0.0, %v516
    %v518 = vpop.f32.mrf.mxu0
    %v519 = vadd.f32 0.0, %v518
    %520 = vmatmul.bf16.gmra.mxu0 %v495
    %v521 = vpop.f32.mrf.mxu0
    %v522 = vadd.f32 0.0, %v521
    %v523 = vpop.f32.mrf.mxu0
    %v524 = vadd.f32 0.0, %v523
    %525 = vdwg.mxu0
    %v526 = vadd.f32 %v442, %v507
    %v527 = vadd.f32 %v443, %v509
    %v528 = vadd.f32 %v444, %v512
    %v529 = vadd.f32 %v445, %v514
    %v530 = vadd.f32 %v446, %v517
    %v531 = vadd.f32 %v447, %v519
    %v532 = vadd.f32 %v448, %v522
    %v533 = vadd.f32 %v449, %v524
    %s534 = scalar_lea.vmem %s1, 192
    %v535 = vld [vmem:[%s534] sm:$0xf]
    %v536 = vld [vmem:[%s534 + $0x4] sm:$0xf]
    %v537 = vld [vmem:[%s534 + $0x8] sm:$0xf]
    %v538 = vld [vmem:[%s534 + $0xc] sm:$0xf]
    %v539 = vld [vmem:[%s534 + $0x10] sm:$0xf]
    %v540 = vld [vmem:[%s534 + $0x14] sm:$0xf]
    %v541 = vld [vmem:[%s534 + $0x18] sm:$0xf]
    %v542 = vld [vmem:[%s534 + $0x1c] sm:$0xf]
    %v551 = vunpack.c.l.b16 %v535
    %v552 = vunpack.c.l.b16 %v536
    %v553 = vunpack.c.l.b16 %v537
    %v554 = vunpack.c.l.b16 %v538
    %v555 = vunpack.c.l.b16 %v539
    %v556 = vunpack.c.l.b16 %v540
    %v557 = vunpack.c.l.b16 %v541
    %v558 = vunpack.c.l.b16 %v542
    %v559 = vpack.c.b16 %v552, %v551
    %v560 = vpack.c.b16 %v554, %v553
    %v561 = vpack.c.b16 %v556, %v555
    %v562 = vpack.c.b16 %v558, %v557
    %563 = vrot.lane.b32.xlu0 %v85, 108
    %v564 = vpop.permute.xlu0 %563
    %565 = vrot.lane.b32.xlu0 %v86, 108
    %v566 = vpop.permute.xlu0 %565
    %v570 = vsel %vm93, %v559, 0
    %v573 = vsel %vm93, %v560, 0
    %v576 = vsel %vm93, %v561, 0
    %v579 = vsel %vm93, %v562, 0
    %581 = vmatpush.bf16.msra.mxu0 0
    %582 = vmatpush.bf16.msra.mxu0 0
    %583 = vmatpush.bf16.msra.mxu0 0
    %584 = vmatpush.bf16.msra.mxu0 0
    %585 = vmatpush.bf16.msra.mxu0 0
    %586 = vmatpush.bf16.msra.mxu0 0
    %587 = vmatpush.bf16.msra.mxu0 %v566
    %588 = vmatpush.bf16.msra.mxu0 %v564
    %589 = vmatmul.bf16.gmra.mxu0 %v570
    %v590 = vpop.f32.mrf.mxu0
    %v591 = vadd.f32 0.0, %v590
    %v592 = vpop.f32.mrf.mxu0
    %v593 = vadd.f32 0.0, %v592
    %594 = vmatmul.bf16.gmra.mxu0 %v573
    %v595 = vpop.f32.mrf.mxu0
    %v596 = vadd.f32 0.0, %v595
    %v597 = vpop.f32.mrf.mxu0
    %v598 = vadd.f32 0.0, %v597
    %599 = vmatmul.bf16.gmra.mxu0 %v576
    %v600 = vpop.f32.mrf.mxu0
    %v601 = vadd.f32 0.0, %v600
    %v602 = vpop.f32.mrf.mxu0
    %v603 = vadd.f32 0.0, %v602
    %604 = vmatmul.bf16.gmra.mxu0 %v579
    %v605 = vpop.f32.mrf.mxu0
    %v606 = vadd.f32 0.0, %v605
    %v607 = vpop.f32.mrf.mxu0
    %v608 = vadd.f32 0.0, %v607
    %609 = vdwg.mxu0
    %v610 = vadd.f32 %v526, %v591
    %v611 = vadd.f32 %v527, %v593
    %v612 = vadd.f32 %v528, %v596
    %v613 = vadd.f32 %v529, %v598
    %v614 = vadd.f32 %v530, %v601
    %v615 = vadd.f32 %v531, %v603
    %v616 = vadd.f32 %v532, %v606
    %v617 = vadd.f32 %v533, %v608
    %s618 = scalar_lea.vmem %s1, 224
    %v619 = vld [vmem:[%s618] sm:$0xf]
    %v620 = vld [vmem:[%s618 + $0x4] sm:$0xf]
    %v621 = vld [vmem:[%s618 + $0x8] sm:$0xf]
    %v622 = vld [vmem:[%s618 + $0xc] sm:$0xf]
    %v623 = vld [vmem:[%s618 + $0x10] sm:$0xf]
    %v624 = vld [vmem:[%s618 + $0x14] sm:$0xf]
    %v625 = vld [vmem:[%s618 + $0x18] sm:$0xf]
    %v626 = vld [vmem:[%s618 + $0x1c] sm:$0xf]
    %v635 = vunpack.c.l.b16 %v619
    %v636 = vunpack.c.l.b16 %v620
    %v637 = vunpack.c.l.b16 %v621
    %v638 = vunpack.c.l.b16 %v622
    %v639 = vunpack.c.l.b16 %v623
    %v640 = vunpack.c.l.b16 %v624
    %v641 = vunpack.c.l.b16 %v625
    %v642 = vunpack.c.l.b16 %v626
    %v643 = vpack.c.b16 %v636, %v635
    %v644 = vpack.c.b16 %v638, %v637
    %v645 = vpack.c.b16 %v640, %v639
    %v646 = vpack.c.b16 %v642, %v641
    %647 = vrot.lane.b32.xlu0 %v85, 107
    %v648 = vpop.permute.xlu0 %647
    %649 = vrot.lane.b32.xlu0 %v86, 107
    %v650 = vpop.permute.xlu0 %649
    %v654 = vsel %vm93, %v643, 0
    %v657 = vsel %vm93, %v644, 0
    %v660 = vsel %vm93, %v645, 0
    %v663 = vsel %vm93, %v646, 0
    %665 = vmatpush.bf16.msra.mxu0 0
    %666 = vmatpush.bf16.msra.mxu0 0
    %667 = vmatpush.bf16.msra.mxu0 0
    %668 = vmatpush.bf16.msra.mxu0 0
    %669 = vmatpush.bf16.msra.mxu0 0
    %670 = vmatpush.bf16.msra.mxu0 0
    %671 = vmatpush.bf16.msra.mxu0 %v650
    %672 = vmatpush.bf16.msra.mxu0 %v648
    %673 = vmatmul.bf16.gmra.mxu0 %v654
    %v674 = vpop.f32.mrf.mxu0
    %v675 = vadd.f32 0.0, %v674
    %v676 = vpop.f32.mrf.mxu0
    %v677 = vadd.f32 0.0, %v676
    %678 = vmatmul.bf16.gmra.mxu0 %v657
    %v679 = vpop.f32.mrf.mxu0
    %v680 = vadd.f32 0.0, %v679
    %v681 = vpop.f32.mrf.mxu0
    %v682 = vadd.f32 0.0, %v681
    %683 = vmatmul.bf16.gmra.mxu0 %v660
    %v684 = vpop.f32.mrf.mxu0
    %v685 = vadd.f32 0.0, %v684
    %v686 = vpop.f32.mrf.mxu0
    %v687 = vadd.f32 0.0, %v686
    %688 = vmatmul.bf16.gmra.mxu0 %v663
    %v689 = vpop.f32.mrf.mxu0
    %v690 = vadd.f32 0.0, %v689
    %v691 = vpop.f32.mrf.mxu0
    %v692 = vadd.f32 0.0, %v691
    %693 = vdwg.mxu0
    %v694 = vadd.f32 %v610, %v675
    %v695 = vadd.f32 %v611, %v677
    %v696 = vadd.f32 %v612, %v680
    %v697 = vadd.f32 %v613, %v682
    %v698 = vadd.f32 %v614, %v685
    %v699 = vadd.f32 %v615, %v687
    %v700 = vadd.f32 %v616, %v690
    %v701 = vadd.f32 %v617, %v692
    %s702 = scalar_lea.vmem %s1, 256
    %v703 = vld [vmem:[%s702] sm:$0xf]
    %v704 = vld [vmem:[%s702 + $0x4] sm:$0xf]
    %v705 = vld [vmem:[%s702 + $0x8] sm:$0xf]
    %v706 = vld [vmem:[%s702 + $0xc] sm:$0xf]
    %v707 = vld [vmem:[%s702 + $0x10] sm:$0xf]
    %v708 = vld [vmem:[%s702 + $0x14] sm:$0xf]
    %v709 = vld [vmem:[%s702 + $0x18] sm:$0xf]
    %v710 = vld [vmem:[%s702 + $0x1c] sm:$0xf]
    %v719 = vunpack.c.l.b16 %v703
    %v720 = vunpack.c.l.b16 %v704
    %v721 = vunpack.c.l.b16 %v705
    %v722 = vunpack.c.l.b16 %v706
    %v723 = vunpack.c.l.b16 %v707
    %v724 = vunpack.c.l.b16 %v708
    %v725 = vunpack.c.l.b16 %v709
    %v726 = vunpack.c.l.b16 %v710
    %v727 = vpack.c.b16 %v720, %v719
    %v728 = vpack.c.b16 %v722, %v721
    %v729 = vpack.c.b16 %v724, %v723
    %v730 = vpack.c.b16 %v726, %v725
    %731 = vrot.lane.b32.xlu0 %v85, 106
    %v732 = vpop.permute.xlu0 %731
    %733 = vrot.lane.b32.xlu0 %v86, 106
    %v734 = vpop.permute.xlu0 %733
    %v738 = vsel %vm93, %v727, 0
    %v741 = vsel %vm93, %v728, 0
    %v744 = vsel %vm93, %v729, 0
    %v747 = vsel %vm93, %v730, 0
    %749 = vmatpush.bf16.msra.mxu0 0
    %750 = vmatpush.bf16.msra.mxu0 0
    %751 = vmatpush.bf16.msra.mxu0 0
    %752 = vmatpush.bf16.msra.mxu0 0
    %753 = vmatpush.bf16.msra.mxu0 0
    %754 = vmatpush.bf16.msra.mxu0 0
    %755 = vmatpush.bf16.msra.mxu0 %v734
    %756 = vmatpush.bf16.msra.mxu0 %v732
    %757 = vmatmul.bf16.gmra.mxu0 %v738
    %v758 = vpop.f32.mrf.mxu0
    %v759 = vadd.f32 0.0, %v758
    %v760 = vpop.f32.mrf.mxu0
    %v761 = vadd.f32 0.0, %v760
    %762 = vmatmul.bf16.gmra.mxu0 %v741
    %v763 = vpop.f32.mrf.mxu0
    %v764 = vadd.f32 0.0, %v763
    %v765 = vpop.f32.mrf.mxu0
    %v766 = vadd.f32 0.0, %v765
    %767 = vmatmul.bf16.gmra.mxu0 %v744
    %v768 = vpop.f32.mrf.mxu0
    %v769 = vadd.f32 0.0, %v768
    %v770 = vpop.f32.mrf.mxu0
    %v771 = vadd.f32 0.0, %v770
    %772 = vmatmul.bf16.gmra.mxu0 %v747
    %v773 = vpop.f32.mrf.mxu0
    %v774 = vadd.f32 0.0, %v773
    %v775 = vpop.f32.mrf.mxu0
    %v776 = vadd.f32 0.0, %v775
    %777 = vdwg.mxu0
    %v778 = vadd.f32 %v694, %v759
    %v779 = vadd.f32 %v695, %v761
    %v780 = vadd.f32 %v696, %v764
    %v781 = vadd.f32 %v697, %v766
    %v782 = vadd.f32 %v698, %v769
    %v783 = vadd.f32 %v699, %v771
    %v784 = vadd.f32 %v700, %v774
    %v785 = vadd.f32 %v701, %v776
    %v787 = vperm.slane %v35, 0
    %v789 = vmul.f32 %v778, %v787
    %v790 = vmul.f32 %v779, %v787
    %v791 = vmul.f32 %v780, %v787
    %v792 = vmul.f32 %v781, %v787
    %v793 = vmul.f32 %v782, %v787
    %v794 = vmul.f32 %v783, %v787
    %v795 = vmul.f32 %v784, %v787
    %v796 = vmul.f32 %v785, %v787
    %s797 = scalar_lea.vmem %s0, 16
    %v798 = vld [vmem:[%s797] sm:$0xf]
    %v799 = vld [vmem:[%s797 + $0x4] sm:$0xf]
    %v800 = vld [vmem:[%s797 + $0x8] sm:$0xf]
    %v801 = vld [vmem:[%s797 + $0xc] sm:$0xf]
    %v806 = vunpack.c.l.b16 %v798
    %v807 = vunpack.c.l.b16 %v799
    %v808 = vunpack.c.l.b16 %v800
    %v809 = vunpack.c.l.b16 %v801
    %v810 = vpack.c.b16 %v807, %v806
    %v811 = vpack.c.b16 %v809, %v808
    %812 = vrot.lane.b32.xlu0 %v810, 127
    %v813 = vpop.permute.xlu0 %812
    %814 = vrot.lane.b32.xlu0 %v811, 127
    %v815 = vpop.permute.xlu0 %814
    %818 = vmatpush.bf16.msra.mxu0 0
    %819 = vmatpush.bf16.msra.mxu0 0
    %820 = vmatpush.bf16.msra.mxu0 0
    %821 = vmatpush.bf16.msra.mxu0 0
    %822 = vmatpush.bf16.msra.mxu0 0
    %823 = vmatpush.bf16.msra.mxu0 0
    %824 = vmatpush.bf16.msra.mxu0 %v815
    %825 = vmatpush.bf16.msra.mxu0 %v813
    %826 = vmatmul.bf16.gmra.mxu0 %v95
    %v827 = vpop.f32.mrf.mxu0
    %v828 = vadd.f32 0.0, %v827
    %v829 = vpop.f32.mrf.mxu0
    %v830 = vadd.f32 0.0, %v829
    %831 = vmatmul.bf16.gmra.mxu0 %v98
    %v832 = vpop.f32.mrf.mxu0
    %v833 = vadd.f32 0.0, %v832
    %v834 = vpop.f32.mrf.mxu0
    %v835 = vadd.f32 0.0, %v834
    %836 = vmatmul.bf16.gmra.mxu0 %v101
    %v837 = vpop.f32.mrf.mxu0
    %v838 = vadd.f32 0.0, %v837
    %v839 = vpop.f32.mrf.mxu0
    %v840 = vadd.f32 0.0, %v839
    %841 = vmatmul.bf16.gmra.mxu0 %v104
    %v842 = vpop.f32.mrf.mxu0
    %v843 = vadd.f32 0.0, %v842
    %v844 = vpop.f32.mrf.mxu0
    %v845 = vadd.f32 0.0, %v844
    %846 = vdwg.mxu0
    %849 = vmatpush.bf16.msra.mxu0 0
    %850 = vmatpush.bf16.msra.mxu0 0
    %851 = vmatpush.bf16.msra.mxu0 0
    %852 = vmatpush.bf16.msra.mxu0 0
    %853 = vmatpush.bf16.msra.mxu0 0
    %854 = vmatpush.bf16.msra.mxu0 0
    %855 = vmatpush.bf16.msra.mxu0 %v811
    %856 = vmatpush.bf16.msra.mxu0 %v810
    %857 = vmatmul.bf16.gmra.mxu0 %v158
    %v858 = vpop.f32.mrf.mxu0
    %v859 = vadd.f32 %v828, %v858
    %v860 = vpop.f32.mrf.mxu0
    %v861 = vadd.f32 %v830, %v860
    %862 = vmatmul.bf16.gmra.mxu0 %v161
    %v863 = vpop.f32.mrf.mxu0
    %v864 = vadd.f32 %v833, %v863
    %v865 = vpop.f32.mrf.mxu0
    %v866 = vadd.f32 %v835, %v865
    %867 = vmatmul.bf16.gmra.mxu0 %v164
    %v868 = vpop.f32.mrf.mxu0
    %v869 = vadd.f32 %v838, %v868
    %v870 = vpop.f32.mrf.mxu0
    %v871 = vadd.f32 %v840, %v870
    %872 = vmatmul.bf16.gmra.mxu0 %v167
    %v873 = vpop.f32.mrf.mxu0
    %v874 = vadd.f32 %v843, %v873
    %v875 = vpop.f32.mrf.mxu0
    %v876 = vadd.f32 %v845, %v875
    %877 = vdwg.mxu0
    %878 = vrot.lane.b32.xlu0 %v810, 126
    %v879 = vpop.permute.xlu0 %878
    %880 = vrot.lane.b32.xlu0 %v811, 126
    %v881 = vpop.permute.xlu0 %880
    %884 = vmatpush.bf16.msra.mxu0 0
    %885 = vmatpush.bf16.msra.mxu0 0
    %886 = vmatpush.bf16.msra.mxu0 0
    %887 = vmatpush.bf16.msra.mxu0 0
    %888 = vmatpush.bf16.msra.mxu0 0
    %889 = vmatpush.bf16.msra.mxu0 0
    %890 = vmatpush.bf16.msra.mxu0 %v881
    %891 = vmatpush.bf16.msra.mxu0 %v879
    %892 = vmatmul.bf16.gmra.mxu0 %v234
    %v893 = vpop.f32.mrf.mxu0
    %v894 = vadd.f32 0.0, %v893
    %v895 = vpop.f32.mrf.mxu0
    %v896 = vadd.f32 0.0, %v895
    %897 = vmatmul.bf16.gmra.mxu0 %v237
    %v898 = vpop.f32.mrf.mxu0
    %v899 = vadd.f32 0.0, %v898
    %v900 = vpop.f32.mrf.mxu0
    %v901 = vadd.f32 0.0, %v900
    %902 = vmatmul.bf16.gmra.mxu0 %v240
    %v903 = vpop.f32.mrf.mxu0
    %v904 = vadd.f32 0.0, %v903
    %v905 = vpop.f32.mrf.mxu0
    %v906 = vadd.f32 0.0, %v905
    %907 = vmatmul.bf16.gmra.mxu0 %v243
    %v908 = vpop.f32.mrf.mxu0
    %v909 = vadd.f32 0.0, %v908
    %v910 = vpop.f32.mrf.mxu0
    %v911 = vadd.f32 0.0, %v910
    %912 = vdwg.mxu0
    %v913 = vadd.f32 %v859, %v894
    %v914 = vadd.f32 %v861, %v896
    %v915 = vadd.f32 %v864, %v899
    %v916 = vadd.f32 %v866, %v901
    %v917 = vadd.f32 %v869, %v904
    %v918 = vadd.f32 %v871, %v906
    %v919 = vadd.f32 %v874, %v909
    %v920 = vadd.f32 %v876, %v911
    %921 = vrot.lane.b32.xlu0 %v810, 118
    %v922 = vpop.permute.xlu0 %921
    %923 = vrot.lane.b32.xlu0 %v811, 118
    %v924 = vpop.permute.xlu0 %923
    %927 = vmatpush.bf16.msra.mxu0 0
    %928 = vmatpush.bf16.msra.mxu0 0
    %929 = vmatpush.bf16.msra.mxu0 0
    %930 = vmatpush.bf16.msra.mxu0 0
    %931 = vmatpush.bf16.msra.mxu0 0
    %932 = vmatpush.bf16.msra.mxu0 0
    %933 = vmatpush.bf16.msra.mxu0 %v924
    %934 = vmatpush.bf16.msra.mxu0 %v922
    %935 = vmatmul.bf16.gmra.mxu0 %v318
    %v936 = vpop.f32.mrf.mxu0
    %v937 = vadd.f32 0.0, %v936
    %v938 = vpop.f32.mrf.mxu0
    %v939 = vadd.f32 0.0, %v938
    %940 = vmatmul.bf16.gmra.mxu0 %v321
    %v941 = vpop.f32.mrf.mxu0
    %v942 = vadd.f32 0.0, %v941
    %v943 = vpop.f32.mrf.mxu0
    %v944 = vadd.f32 0.0, %v943
    %945 = vmatmul.bf16.gmra.mxu0 %v324
    %v946 = vpop.f32.mrf.mxu0
    %v947 = vadd.f32 0.0, %v946
    %v948 = vpop.f32.mrf.mxu0
    %v949 = vadd.f32 0.0, %v948
    %950 = vmatmul.bf16.gmra.mxu0 %v327
    %v951 = vpop.f32.mrf.mxu0
    %v952 = vadd.f32 0.0, %v951
    %v953 = vpop.f32.mrf.mxu0
    %v954 = vadd.f32 0.0, %v953
    %955 = vdwg.mxu0
    %v956 = vadd.f32 %v913, %v937
    %v957 = vadd.f32 %v914, %v939
    %v958 = vadd.f32 %v915, %v942
    %v959 = vadd.f32 %v916, %v944
    %v960 = vadd.f32 %v917, %v947
    %v961 = vadd.f32 %v918, %v949
    %v962 = vadd.f32 %v919, %v952
    %v963 = vadd.f32 %v920, %v954
    %964 = vrot.lane.b32.xlu0 %v810, 117
    %v965 = vpop.permute.xlu0 %964
    %966 = vrot.lane.b32.xlu0 %v811, 117
    %v967 = vpop.permute.xlu0 %966
    %970 = vmatpush.bf16.msra.mxu0 0
    %971 = vmatpush.bf16.msra.mxu0 0
    %972 = vmatpush.bf16.msra.mxu0 0
    %973 = vmatpush.bf16.msra.mxu0 0
    %974 = vmatpush.bf16.msra.mxu0 0
    %975 = vmatpush.bf16.msra.mxu0 0
    %976 = vmatpush.bf16.msra.mxu0 %v967
    %977 = vmatpush.bf16.msra.mxu0 %v965
    %978 = vmatmul.bf16.gmra.mxu0 %v402
    %v979 = vpop.f32.mrf.mxu0
    %v980 = vadd.f32 0.0, %v979
    %v981 = vpop.f32.mrf.mxu0
    %v982 = vadd.f32 0.0, %v981
    %983 = vmatmul.bf16.gmra.mxu0 %v405
    %v984 = vpop.f32.mrf.mxu0
    %v985 = vadd.f32 0.0, %v984
    %v986 = vpop.f32.mrf.mxu0
    %v987 = vadd.f32 0.0, %v986
    %988 = vmatmul.bf16.gmra.mxu0 %v408
    %v989 = vpop.f32.mrf.mxu0
    %v990 = vadd.f32 0.0, %v989
    %v991 = vpop.f32.mrf.mxu0
    %v992 = vadd.f32 0.0, %v991
    %993 = vmatmul.bf16.gmra.mxu0 %v411
    %v994 = vpop.f32.mrf.mxu0
    %v995 = vadd.f32 0.0, %v994
    %v996 = vpop.f32.mrf.mxu0
    %v997 = vadd.f32 0.0, %v996
    %998 = vdwg.mxu0
    %v999 = vadd.f32 %v956, %v980
    %v1000 = vadd.f32 %v957, %v982
    %v1001 = vadd.f32 %v958, %v985
    %v1002 = vadd.f32 %v959, %v987
    %v1003 = vadd.f32 %v960, %v990
    %v1004 = vadd.f32 %v961, %v992
    %v1005 = vadd.f32 %v962, %v995
    %v1006 = vadd.f32 %v963, %v997
    %1007 = vrot.lane.b32.xlu0 %v810, 116
    %v1008 = vpop.permute.xlu0 %1007
    %1009 = vrot.lane.b32.xlu0 %v811, 116
    %v1010 = vpop.permute.xlu0 %1009
    %1013 = vmatpush.bf16.msra.mxu0 0
    %1014 = vmatpush.bf16.msra.mxu0 0
    %1015 = vmatpush.bf16.msra.mxu0 0
    %1016 = vmatpush.bf16.msra.mxu0 0
    %1017 = vmatpush.bf16.msra.mxu0 0
    %1018 = vmatpush.bf16.msra.mxu0 0
    %1019 = vmatpush.bf16.msra.mxu0 %v1010
    %1020 = vmatpush.bf16.msra.mxu0 %v1008
    %1021 = vmatmul.bf16.gmra.mxu0 %v486
    %v1022 = vpop.f32.mrf.mxu0
    %v1023 = vadd.f32 0.0, %v1022
    %v1024 = vpop.f32.mrf.mxu0
    %v1025 = vadd.f32 0.0, %v1024
    %1026 = vmatmul.bf16.gmra.mxu0 %v489
    %v1027 = vpop.f32.mrf.mxu0
    %v1028 = vadd.f32 0.0, %v1027
    %v1029 = vpop.f32.mrf.mxu0
    %v1030 = vadd.f32 0.0, %v1029
    %1031 = vmatmul.bf16.gmra.mxu0 %v492
    %v1032 = vpop.f32.mrf.mxu0
    %v1033 = vadd.f32 0.0, %v1032
    %v1034 = vpop.f32.mrf.mxu0
    %v1035 = vadd.f32 0.0, %v1034
    %1036 = vmatmul.bf16.gmra.mxu0 %v495
    %v1037 = vpop.f32.mrf.mxu0
    %v1038 = vadd.f32 0.0, %v1037
    %v1039 = vpop.f32.mrf.mxu0
    %v1040 = vadd.f32 0.0, %v1039
    %1041 = vdwg.mxu0
    %v1042 = vadd.f32 %v999, %v1023
    %v1043 = vadd.f32 %v1000, %v1025
    %v1044 = vadd.f32 %v1001, %v1028
    %v1045 = vadd.f32 %v1002, %v1030
    %v1046 = vadd.f32 %v1003, %v1033
    %v1047 = vadd.f32 %v1004, %v1035
    %v1048 = vadd.f32 %v1005, %v1038
    %v1049 = vadd.f32 %v1006, %v1040
    %1050 = vrot.lane.b32.xlu0 %v810, 108
    %v1051 = vpop.permute.xlu0 %1050
    %1052 = vrot.lane.b32.xlu0 %v811, 108
    %v1053 = vpop.permute.xlu0 %1052
    %1056 = vmatpush.bf16.msra.mxu0 0
    %1057 = vmatpush.bf16.msra.mxu0 0
    %1058 = vmatpush.bf16.msra.mxu0 0
    %1059 = vmatpush.bf16.msra.mxu0 0
    %1060 = vmatpush.bf16.msra.mxu0 0
    %1061 = vmatpush.bf16.msra.mxu0 0
    %1062 = vmatpush.bf16.msra.mxu0 %v1053
    %1063 = vmatpush.bf16.msra.mxu0 %v1051
    %1064 = vmatmul.bf16.gmra.mxu0 %v570
    %v1065 = vpop.f32.mrf.mxu0
    %v1066 = vadd.f32 0.0, %v1065
    %v1067 = vpop.f32.mrf.mxu0
    %v1068 = vadd.f32 0.0, %v1067
    %1069 = vmatmul.bf16.gmra.mxu0 %v573
    %v1070 = vpop.f32.mrf.mxu0
    %v1071 = vadd.f32 0.0, %v1070
    %v1072 = vpop.f32.mrf.mxu0
    %v1073 = vadd.f32 0.0, %v1072
    %1074 = vmatmul.bf16.gmra.mxu0 %v576
    %v1075 = vpop.f32.mrf.mxu0
    %v1076 = vadd.f32 0.0, %v1075
    %v1077 = vpop.f32.mrf.mxu0
    %v1078 = vadd.f32 0.0, %v1077
    %1079 = vmatmul.bf16.gmra.mxu0 %v579
    %v1080 = vpop.f32.mrf.mxu0
    %v1081 = vadd.f32 0.0, %v1080
    %v1082 = vpop.f32.mrf.mxu0
    %v1083 = vadd.f32 0.0, %v1082
    %1084 = vdwg.mxu0
    %v1085 = vadd.f32 %v1042, %v1066
    %v1086 = vadd.f32 %v1043, %v1068
    %v1087 = vadd.f32 %v1044, %v1071
    %v1088 = vadd.f32 %v1045, %v1073
    %v1089 = vadd.f32 %v1046, %v1076
    %v1090 = vadd.f32 %v1047, %v1078
    %v1091 = vadd.f32 %v1048, %v1081
    %v1092 = vadd.f32 %v1049, %v1083
    %1093 = vrot.lane.b32.xlu0 %v810, 107
    %v1094 = vpop.permute.xlu0 %1093
    %1095 = vrot.lane.b32.xlu0 %v811, 107
    %v1096 = vpop.permute.xlu0 %1095
    %1099 = vmatpush.bf16.msra.mxu0 0
    %1100 = vmatpush.bf16.msra.mxu0 0
    %1101 = vmatpush.bf16.msra.mxu0 0
    %1102 = vmatpush.bf16.msra.mxu0 0
    %1103 = vmatpush.bf16.msra.mxu0 0
    %1104 = vmatpush.bf16.msra.mxu0 0
    %1105 = vmatpush.bf16.msra.mxu0 %v1096
    %1106 = vmatpush.bf16.msra.mxu0 %v1094
    %1107 = vmatmul.bf16.gmra.mxu0 %v654
    %v1108 = vpop.f32.mrf.mxu0
    %v1109 = vadd.f32 0.0, %v1108
    %v1110 = vpop.f32.mrf.mxu0
    %v1111 = vadd.f32 0.0, %v1110
    %1112 = vmatmul.bf16.gmra.mxu0 %v657
    %v1113 = vpop.f32.mrf.mxu0
    %v1114 = vadd.f32 0.0, %v1113
    %v1115 = vpop.f32.mrf.mxu0
    %v1116 = vadd.f32 0.0, %v1115
    %1117 = vmatmul.bf16.gmra.mxu0 %v660
    %v1118 = vpop.f32.mrf.mxu0
    %v1119 = vadd.f32 0.0, %v1118
    %v1120 = vpop.f32.mrf.mxu0
    %v1121 = vadd.f32 0.0, %v1120
    %1122 = vmatmul.bf16.gmra.mxu0 %v663
    %v1123 = vpop.f32.mrf.mxu0
    %v1124 = vadd.f32 0.0, %v1123
    %v1125 = vpop.f32.mrf.mxu0
    %v1126 = vadd.f32 0.0, %v1125
    %1127 = vdwg.mxu0
    %v1128 = vadd.f32 %v1085, %v1109
    %v1129 = vadd.f32 %v1086, %v1111
    %v1130 = vadd.f32 %v1087, %v1114
    %v1131 = vadd.f32 %v1088, %v1116
    %v1132 = vadd.f32 %v1089, %v1119
    %v1133 = vadd.f32 %v1090, %v1121
    %v1134 = vadd.f32 %v1091, %v1124
    %v1135 = vadd.f32 %v1092, %v1126
    %1136 = vrot.lane.b32.xlu0 %v810, 106
    %v1137 = vpop.permute.xlu0 %1136
    %1138 = vrot.lane.b32.xlu0 %v811, 106
    %v1139 = vpop.permute.xlu0 %1138
    %1142 = vmatpush.bf16.msra.mxu0 0
    %1143 = vmatpush.bf16.msra.mxu0 0
    %1144 = vmatpush.bf16.msra.mxu0 0
    %1145 = vmatpush.bf16.msra.mxu0 0
    %1146 = vmatpush.bf16.msra.mxu0 0
    %1147 = vmatpush.bf16.msra.mxu0 0
    %1148 = vmatpush.bf16.msra.mxu0 %v1139
    %1149 = vmatpush.bf16.msra.mxu0 %v1137
    %1150 = vmatmul.bf16.gmra.mxu0 %v738
    %v1151 = vpop.f32.mrf.mxu0
    %v1152 = vadd.f32 0.0, %v1151
    %v1153 = vpop.f32.mrf.mxu0
    %v1154 = vadd.f32 0.0, %v1153
    %1155 = vmatmul.bf16.gmra.mxu0 %v741
    %v1156 = vpop.f32.mrf.mxu0
    %v1157 = vadd.f32 0.0, %v1156
    %v1158 = vpop.f32.mrf.mxu0
    %v1159 = vadd.f32 0.0, %v1158
    %1160 = vmatmul.bf16.gmra.mxu0 %v744
    %v1161 = vpop.f32.mrf.mxu0
    %v1162 = vadd.f32 0.0, %v1161
    %v1163 = vpop.f32.mrf.mxu0
    %v1164 = vadd.f32 0.0, %v1163
    %1165 = vmatmul.bf16.gmra.mxu0 %v747
    %v1166 = vpop.f32.mrf.mxu0
    %v1167 = vadd.f32 0.0, %v1166
    %v1168 = vpop.f32.mrf.mxu0
    %v1169 = vadd.f32 0.0, %v1168
    %1170 = vdwg.mxu0
    %v1171 = vadd.f32 %v1128, %v1152
    %v1172 = vadd.f32 %v1129, %v1154
    %v1173 = vadd.f32 %v1130, %v1157
    %v1174 = vadd.f32 %v1131, %v1159
    %v1175 = vadd.f32 %v1132, %v1162
    %v1176 = vadd.f32 %v1133, %v1164
    %v1177 = vadd.f32 %v1134, %v1167
    %v1178 = vadd.f32 %v1135, %v1169
    %v1179 = vmul.f32 %v1171, %v787
    %v1180 = vmul.f32 %v1172, %v787
    %v1181 = vmul.f32 %v1173, %v787
    %v1182 = vmul.f32 %v1174, %v787
    %v1183 = vmul.f32 %v1175, %v787
    %v1184 = vmul.f32 %v1176, %v787
    %v1185 = vmul.f32 %v1177, %v787
    %v1186 = vmul.f32 %v1178, %v787
    %vm1187 = vcmask 818176
    %v1188 = vsel %vm1187, %v789, 0.0
    %1189 = vadd.xlane.f32.xlu0 %v1188
    %v1190 = vpop.xlane.xlu0 %1189
    %v1191 = vsel %vm1187, %v790, 0.0
    %1192 = vadd.xlane.f32.xlu0 %v1191
    %v1193 = vpop.xlane.xlu0 %1192
    %v1194 = vsel %vm1187, %v791, 0.0
    %1195 = vadd.xlane.f32.xlu0 %v1194
    %v1196 = vpop.xlane.xlu0 %1195
    %v1197 = vsel %vm1187, %v792, 0.0
    %1198 = vadd.xlane.f32.xlu0 %v1197
    %v1199 = vpop.xlane.xlu0 %1198
    %v1200 = vsel %vm1187, %v793, 0.0
    %1201 = vadd.xlane.f32.xlu0 %v1200
    %v1202 = vpop.xlane.xlu0 %1201
    %v1203 = vsel %vm1187, %v794, 0.0
    %1204 = vadd.xlane.f32.xlu0 %v1203
    %v1205 = vpop.xlane.xlu0 %1204
    %v1206 = vsel %vm1187, %v795, 0.0
    %1207 = vadd.xlane.f32.xlu0 %v1206
    %v1208 = vpop.xlane.xlu0 %1207
    %v1209 = vsel %vm1187, %v796, 0.0
    %1210 = vadd.xlane.f32.xlu0 %v1209
    %v1211 = vpop.xlane.xlu0 %1210
    %v1212 = vsel %vm1187, %v1179, 0.0
    %1213 = vadd.xlane.f32.xlu0 %v1212
    %v1214 = vpop.xlane.xlu0 %1213
    %v1215 = vsel %vm1187, %v1180, 0.0
    %1216 = vadd.xlane.f32.xlu0 %v1215
    %v1217 = vpop.xlane.xlu0 %1216
    %v1218 = vsel %vm1187, %v1181, 0.0
    %1219 = vadd.xlane.f32.xlu0 %v1218
    %v1220 = vpop.xlane.xlu0 %1219
    %v1221 = vsel %vm1187, %v1182, 0.0
    %1222 = vadd.xlane.f32.xlu0 %v1221
    %v1223 = vpop.xlane.xlu0 %1222
    %v1224 = vsel %vm1187, %v1183, 0.0
    %1225 = vadd.xlane.f32.xlu0 %v1224
    %v1226 = vpop.xlane.xlu0 %1225
    %v1227 = vsel %vm1187, %v1184, 0.0
    %1228 = vadd.xlane.f32.xlu0 %v1227
    %v1229 = vpop.xlane.xlu0 %1228
    %v1230 = vsel %vm1187, %v1185, 0.0
    %1231 = vadd.xlane.f32.xlu0 %v1230
    %v1232 = vpop.xlane.xlu0 %1231
    %v1233 = vsel %vm1187, %v1186, 0.0
    %1234 = vadd.xlane.f32.xlu0 %v1233
    %v1235 = vpop.xlane.xlu0 %1234
    %v1236 = vadd.f32 %v1190, %v1214
    %v1237 = vadd.f32 %v1193, %v1217
    %v1238 = vadd.f32 %v1196, %v1220
    %v1239 = vadd.f32 %v1199, %v1223
    %v1240 = vadd.f32 %v1202, %v1226
    %v1241 = vadd.f32 %v1205, %v1229
    %v1242 = vadd.f32 %v1208, %v1232
    %v1243 = vadd.f32 %v1211, %v1235
    %v1244 = vadd.f32 %v1236, %v1238
    %v1245 = vadd.f32 %v1237, %v1239
    %v1246 = vadd.f32 %v1244, %v1240
    %v1247 = vadd.f32 %v1245, %v1241
    %v1248 = vadd.f32 %v1246, %v1242
    %v1249 = vadd.f32 %v1247, %v1243
    %v1250 = vmul.f32 %v1248, 0.001953125
    %v1251 = vmul.f32 %v1249, 0.001953125
    %1253 = vset.pattern.permute.xlu0 0
    %1254 = vperm.xlu0 %1253, %v1250
    %v1255 = vpop.permute.xlu0 %1254
    %1258 = vset.pattern.permute.xlu0 0
    %1259 = vperm.xlu0 %1258, %v1251
    %v1260 = vpop.permute.xlu0 %1259
    %v1262 = vsub.f32 %v789, %v1255
    %v1263 = vsub.f32 %v790, %v1260
    %v1264 = vsub.f32 %v791, %v1255
    %v1265 = vsub.f32 %v792, %v1260
    %v1266 = vsub.f32 %v793, %v1255
    %v1267 = vsub.f32 %v794, %v1260
    %v1268 = vsub.f32 %v795, %v1255
    %v1269 = vsub.f32 %v796, %v1260
    %v1270 = vmul.f32 %v1262, %v787
    %v1271 = vmul.f32 %v1263, %v787
    %v1272 = vmul.f32 %v1264, %v787
    %v1273 = vmul.f32 %v1265, %v787
    %v1274 = vmul.f32 %v1266, %v787
    %v1275 = vmul.f32 %v1267, %v787
    %v1276 = vmul.f32 %v1268, %v787
    %v1277 = vmul.f32 %v1269, %v787
    %v1278 = vmul.f32 %v1270, %v1270
    %v1279 = vmul.f32 %v1271, %v1271
    %v1280 = vmul.f32 %v1272, %v1272
    %v1281 = vmul.f32 %v1273, %v1273
    %v1282 = vmul.f32 %v1274, %v1274
    %v1283 = vmul.f32 %v1275, %v1275
    %v1284 = vmul.f32 %v1276, %v1276
    %v1285 = vmul.f32 %v1277, %v1277
    %v1286 = vsel %vm1187, %v1278, 0.0
    %1287 = vadd.xlane.f32.xlu0 %v1286
    %v1288 = vpop.xlane.xlu0 %1287
    %v1289 = vsel %vm1187, %v1279, 0.0
    %1290 = vadd.xlane.f32.xlu0 %v1289
    %v1291 = vpop.xlane.xlu0 %1290
    %v1292 = vsel %vm1187, %v1280, 0.0
    %1293 = vadd.xlane.f32.xlu0 %v1292
    %v1294 = vpop.xlane.xlu0 %1293
    %v1295 = vsel %vm1187, %v1281, 0.0
    %1296 = vadd.xlane.f32.xlu0 %v1295
    %v1297 = vpop.xlane.xlu0 %1296
    %v1298 = vsel %vm1187, %v1282, 0.0
    %1299 = vadd.xlane.f32.xlu0 %v1298
    %v1300 = vpop.xlane.xlu0 %1299
    %v1301 = vsel %vm1187, %v1283, 0.0
    %1302 = vadd.xlane.f32.xlu0 %v1301
    %v1303 = vpop.xlane.xlu0 %1302
    %v1304 = vsel %vm1187, %v1284, 0.0
    %1305 = vadd.xlane.f32.xlu0 %v1304
    %v1306 = vpop.xlane.xlu0 %1305
    %v1307 = vsel %vm1187, %v1285, 0.0
    %1308 = vadd.xlane.f32.xlu0 %v1307
    %v1309 = vpop.xlane.xlu0 %1308
    %v1310 = vsub.f32 %v1179, %v1255
    %v1311 = vsub.f32 %v1180, %v1260
    %v1312 = vsub.f32 %v1181, %v1255
    %v1313 = vsub.f32 %v1182, %v1260
    %v1314 = vsub.f32 %v1183, %v1255
    %v1315 = vsub.f32 %v1184, %v1260
    %v1316 = vsub.f32 %v1185, %v1255
    %v1317 = vsub.f32 %v1186, %v1260
    %v1318 = vmul.f32 %v1310, %v787
    %v1319 = vmul.f32 %v1311, %v787
    %v1320 = vmul.f32 %v1312, %v787
    %v1321 = vmul.f32 %v1313, %v787
    %v1322 = vmul.f32 %v1314, %v787
    %v1323 = vmul.f32 %v1315, %v787
    %v1324 = vmul.f32 %v1316, %v787
    %v1325 = vmul.f32 %v1317, %v787
    %v1326 = vmul.f32 %v1318, %v1318
    %v1327 = vmul.f32 %v1319, %v1319
    %v1328 = vmul.f32 %v1320, %v1320
    %v1329 = vmul.f32 %v1321, %v1321
    %v1330 = vmul.f32 %v1322, %v1322
    %v1331 = vmul.f32 %v1323, %v1323
    %v1332 = vmul.f32 %v1324, %v1324
    %v1333 = vmul.f32 %v1325, %v1325
    %v1334 = vsel %vm1187, %v1326, 0.0
    %1335 = vadd.xlane.f32.xlu0 %v1334
    %v1336 = vpop.xlane.xlu0 %1335
    %v1337 = vsel %vm1187, %v1327, 0.0
    %1338 = vadd.xlane.f32.xlu0 %v1337
    %v1339 = vpop.xlane.xlu0 %1338
    %v1340 = vsel %vm1187, %v1328, 0.0
    %1341 = vadd.xlane.f32.xlu0 %v1340
    %v1342 = vpop.xlane.xlu0 %1341
    %v1343 = vsel %vm1187, %v1329, 0.0
    %1344 = vadd.xlane.f32.xlu0 %v1343
    %v1345 = vpop.xlane.xlu0 %1344
    %v1346 = vsel %vm1187, %v1330, 0.0
    %1347 = vadd.xlane.f32.xlu0 %v1346
    %v1348 = vpop.xlane.xlu0 %1347
    %v1349 = vsel %vm1187, %v1331, 0.0
    %1350 = vadd.xlane.f32.xlu0 %v1349
    %v1351 = vpop.xlane.xlu0 %1350
    %v1352 = vsel %vm1187, %v1332, 0.0
    %1353 = vadd.xlane.f32.xlu0 %v1352
    %v1354 = vpop.xlane.xlu0 %1353
    %v1355 = vsel %vm1187, %v1333, 0.0
    %1356 = vadd.xlane.f32.xlu0 %v1355
    %v1357 = vpop.xlane.xlu0 %1356
    %v1358 = vadd.f32 %v1288, %v1336
    %v1359 = vadd.f32 %v1291, %v1339
    %v1360 = vadd.f32 %v1294, %v1342
    %v1361 = vadd.f32 %v1297, %v1345
    %v1362 = vadd.f32 %v1300, %v1348
    %v1363 = vadd.f32 %v1303, %v1351
    %v1364 = vadd.f32 %v1306, %v1354
    %v1365 = vadd.f32 %v1309, %v1357
    %v1366 = vadd.f32 %v1358, %v1360
    %v1367 = vadd.f32 %v1359, %v1361
    %v1368 = vadd.f32 %v1366, %v1362
    %v1369 = vadd.f32 %v1367, %v1363
    %v1370 = vadd.f32 %v1368, %v1364
    %v1371 = vadd.f32 %v1369, %v1365
    %v1372 = vmul.f32 %v1370, 0.001953125
    %v1373 = vmul.f32 %v1371, 0.001953125
    %v1374 = vld [vmem:[%s2] sm:$0xff]
    %v1375 = vld [vmem:[%s2 + $0x8] sm:$0xff]
    %v1376 = vadd.f32 %v1372, 1e-05
    %v1377 = vadd.f32 %v1373, 1e-05
    %v1378 = vrsqrt.pop %v1376
    %v1379 = vmul.f32 %v1378, %v1376
    %v1380 = vmul.f32 %v1379, %v1378
    %v1381 = vmul.f32 0.5, %v1380
    %v1382 = vsub.f32 1.5, %v1381
    %v1383 = vmul.f32 %v1378, %v1382
    %vm1384 = vweird.f32 %v1376
    %vm1385 = vweird.f32 %v1378
    %vm1386 = vmor %vm1384, %vm1385
    %v1387 = vsel %vm1386, %v1378, %v1383
    %v1388 = vrsqrt.pop %v1377
    %v1389 = vmul.f32 %v1388, %v1377
    %v1390 = vmul.f32 %v1389, %v1388
    %v1391 = vmul.f32 0.5, %v1390
    %v1392 = vsub.f32 1.5, %v1391
    %v1393 = vmul.f32 %v1388, %v1392
    %vm1394 = vweird.f32 %v1377
    %vm1395 = vweird.f32 %v1388
    %vm1396 = vmor %vm1394, %vm1395
    %v1397 = vsel %vm1396, %v1388, %v1393
    %v1398 = vmul.f32 %v1374, %v1387
    %v1399 = vmul.f32 %v1375, %v1397
    %v1400 = vld [vmem:[%s3] sm:$0xff]
    %v1401 = vld [vmem:[%s3 + $0x8] sm:$0xff]
    %1403 = vset.pattern.permute.xlu0 0
    %1404 = vperm.xlu0 %1403, %v1398
    %v1405 = vpop.permute.xlu0 %1404
    %1408 = vset.pattern.permute.xlu0 0
    %1409 = vperm.xlu0 %1408, %v1399
    %v1410 = vpop.permute.xlu0 %1409
    %v1412 = vmul.f32 %v1262, %v1405
    %v1413 = vmul.f32 %v1263, %v1410
    %v1414 = vmul.f32 %v1264, %v1405
    %v1415 = vmul.f32 %v1265, %v1410
    %v1416 = vmul.f32 %v1266, %v1405
    %v1417 = vmul.f32 %v1267, %v1410
    %v1418 = vmul.f32 %v1268, %v1405
    %v1419 = vmul.f32 %v1269, %v1410
    %1421 = vset.pattern.permute.xlu0 0
    %1422 = vperm.xlu0 %1421, %v1400
    %v1423 = vpop.permute.xlu0 %1422
    %1426 = vset.pattern.permute.xlu0 0
    %1427 = vperm.xlu0 %1426, %v1401
    %v1428 = vpop.permute.xlu0 %1427
    %v1430 = vadd.f32 %v1412, %v1423
    %v1431 = vadd.f32 %v1413, %v1428
    %v1432 = vadd.f32 %v1414, %v1423
    %v1433 = vadd.f32 %v1415, %v1428
    %v1434 = vadd.f32 %v1416, %v1423
    %v1435 = vadd.f32 %v1417, %v1428
    %v1436 = vadd.f32 %v1418, %v1423
    %v1437 = vadd.f32 %v1419, %v1428
    %v1438 = vmax.f32 %v1430, 0.0
    %v1439 = vmax.f32 %v1431, 0.0
    %v1440 = vmax.f32 %v1432, 0.0
    %v1441 = vmax.f32 %v1433, 0.0
    %v1442 = vmax.f32 %v1434, 0.0
    %v1443 = vmax.f32 %v1435, 0.0
    %v1444 = vmax.f32 %v1436, 0.0
    %v1445 = vmax.f32 %v1437, 0.0
    %v1446 = vpack.c.bf16 %v1438, %v1438
    %v1447 = vpack.c.bf16 %v1439, %v1439
    %v1448 = vpack.c.bf16 %v1440, %v1440
    %v1449 = vpack.c.bf16 %v1441, %v1441
    %v1450 = vpack.c.bf16 %v1442, %v1442
    %v1451 = vpack.c.bf16 %v1443, %v1443
    %v1452 = vpack.c.bf16 %v1444, %v1444
    %v1453 = vpack.c.bf16 %v1445, %v1445
    %vm1454 = vcmask 814080
    %1455 = vst.msk [vmem:[%s5] sm:$0xf] %vm1454, %v1446
    %1456 = vst.msk [vmem:[%s5 + $0x4] sm:$0xf] %vm1454, %v1447
    %1457 = vst.msk [vmem:[%s5 + $0x8] sm:$0xf] %vm1454, %v1448
    %1458 = vst.msk [vmem:[%s5 + $0xc] sm:$0xf] %vm1454, %v1449
    %1459 = vst.msk [vmem:[%s5 + $0x10] sm:$0xf] %vm1454, %v1450
    %1460 = vst.msk [vmem:[%s5 + $0x14] sm:$0xf] %vm1454, %v1451
    %1461 = vst.msk [vmem:[%s5 + $0x18] sm:$0xf] %vm1454, %v1452
    %1462 = vst.msk [vmem:[%s5 + $0x1c] sm:$0xf] %vm1454, %v1453
    %v1463 = vmul.f32 %v1310, %v1405
    %v1464 = vmul.f32 %v1311, %v1410
    %v1465 = vmul.f32 %v1312, %v1405
    %v1466 = vmul.f32 %v1313, %v1410
    %v1467 = vmul.f32 %v1314, %v1405
    %v1468 = vmul.f32 %v1315, %v1410
    %v1469 = vmul.f32 %v1316, %v1405
    %v1470 = vmul.f32 %v1317, %v1410
    %v1471 = vadd.f32 %v1463, %v1423
    %v1472 = vadd.f32 %v1464, %v1428
    %v1473 = vadd.f32 %v1465, %v1423
    %v1474 = vadd.f32 %v1466, %v1428
    %v1475 = vadd.f32 %v1467, %v1423
    %v1476 = vadd.f32 %v1468, %v1428
    %v1477 = vadd.f32 %v1469, %v1423
    %v1478 = vadd.f32 %v1470, %v1428
    %v1479 = vmax.f32 %v1471, 0.0
    %v1480 = vmax.f32 %v1472, 0.0
    %v1481 = vmax.f32 %v1473, 0.0
    %v1482 = vmax.f32 %v1474, 0.0
    %v1483 = vmax.f32 %v1475, 0.0
    %v1484 = vmax.f32 %v1476, 0.0
    %v1485 = vmax.f32 %v1477, 0.0
    %v1486 = vmax.f32 %v1478, 0.0
    %v1487 = vpack.c.bf16 %v1479, %v1479
    %v1488 = vpack.c.bf16 %v1480, %v1480
    %v1489 = vpack.c.bf16 %v1481, %v1481
    %v1490 = vpack.c.bf16 %v1482, %v1482
    %v1491 = vpack.c.bf16 %v1483, %v1483
    %v1492 = vpack.c.bf16 %v1484, %v1484
    %v1493 = vpack.c.bf16 %v1485, %v1485
    %v1494 = vpack.c.bf16 %v1486, %v1486
    %s1495 = scalar_lea.vmem %s5, 32
    %1496 = vst.msk [vmem:[%s1495] sm:$0xf] %vm1454, %v1487
    %1497 = vst.msk [vmem:[%s1495 + $0x4] sm:$0xf] %vm1454, %v1488
    %1498 = vst.msk [vmem:[%s1495 + $0x8] sm:$0xf] %vm1454, %v1489
    %1499 = vst.msk [vmem:[%s1495 + $0xc] sm:$0xf] %vm1454, %v1490
    %1500 = vst.msk [vmem:[%s1495 + $0x10] sm:$0xf] %vm1454, %v1491
    %1501 = vst.msk [vmem:[%s1495 + $0x14] sm:$0xf] %vm1454, %v1492
    %1502 = vst.msk [vmem:[%s1495 + $0x18] sm:$0xf] %vm1454, %v1493
    %1503 = vst.msk [vmem:[%s1495 + $0x1c] sm:$0xf] %vm1454, %v1494
    // Predicated region
    $region26: #{generator_forward.5} parent=1 // pred_check
      _
    $region27: #{generator_forward.5} parent=1 // pred_check_branch
      %1505 = sbr.rel (0) target = $region29
    $region28: #{generator_forward.5} parent=1 // pred_region
      _
    $region29: #{generator_forward.5} parent=1 // pred_fallthru
      _
    // Predicated region
    $region30: #{generator_forward.5} parent=1 // pred_check
      _
    $region31: #{generator_forward.5} parent=1 // pred_check_branch
      %1507 = sbr.rel (0) target = $region33
    $region32: #{generator_forward.5} parent=1 // pred_region
      _
    $region33: #{generator_forward.5} parent=1 // pred_fallthru
      _
    %1508 = vsyncpa [#allocation3], 1

// kernel: generator_forward.6
$region0: #{generator_forward.6}
  #allocation0 [shape = 'u32[]', space=smem, size = 0x4, offset = 0x4, fixed_abs, tag = 'smem constant byte address 0x4 - core index']
  #allocation1 [shape = 'u32[72,128]{1,0:T(1,128)}', space=vmem, size = 0x9000, scoped, tag = 'internal scratch']
  %s0 = inlined_call_operand.vmem [shape: bf16[2,16,362], index: 0, kind: input, shape index: {}]
  %s1 = inlined_call_operand.vmem [shape: bf16[9,32,16], index: 1, kind: input, shape index: {}]
  %s2 = inlined_call_operand.vmem [shape: f32[8,1], index: 2, kind: input, shape index: {}]
  %s3 = inlined_call_operand.vmem [shape: f32[8,1], index: 3, kind: input, shape index: {}]
  %s4 = inlined_call_operand.hbm [shape: f32[1,324], index: 4, kind: input, shape index: {}]
  %s5 = inlined_call_operand.vmem [shape: bf16[2,32,324], index: 5, kind: output, shape index: {}]
  %s6 = sld [smem:[#allocation0]]
  $region34: #{generator_forward.6} parent=0
    _
  %s8 = ssub.s32 1, %s6
  %s9 = scalar_select 0, %s8, %s6
  $region1: #{generator_forward.6} parent=0
    #allocation2 [shape = 'u8[1536]{0}', space=vmem, size = 0x800, scoped, tag = 'input window, operand 4, single buffered']
    #allocation3 [shape = 's32[1]{0}', space=sflag, size = 0x4, scoped, tag = 'scoped memory for generator_forward.6']
    %10 = vsyncpa [#allocation3], 0
    // Predicated region
    $region2: #{generator_forward.6} parent=1 // pred_check
      _
    $region3: #{generator_forward.6} parent=1 // pred_check_branch
      %12 = sbr.rel (0) target = $region5
    $region4: #{generator_forward.6} parent=1 // pred_region
      _
    $region5: #{generator_forward.6} parent=1 // pred_fallthru
      _
    // Predicated region
    $region6: #{generator_forward.6} parent=1 // pred_check
      _
    $region7: #{generator_forward.6} parent=1 // pred_check_branch
      %14 = sbr.rel (0) target = $region9
    $region8: #{generator_forward.6} parent=1 // pred_region
      _
    $region9: #{generator_forward.6} parent=1 // pred_fallthru
      _
    // Predicated region
    $region10: #{generator_forward.6} parent=1 // pred_check
      _
    $region11: #{generator_forward.6} parent=1 // pred_check_branch
      %16 = sbr.rel (0) target = $region13
    $region12: #{generator_forward.6} parent=1 // pred_region
      _
    $region13: #{generator_forward.6} parent=1 // pred_fallthru
      _
    // Predicated region
    $region14: #{generator_forward.6} parent=1 // pred_check
      _
    $region15: #{generator_forward.6} parent=1 // pred_check_branch
      %18 = sbr.rel (0) target = $region17
    $region16: #{generator_forward.6} parent=1 // pred_region
      _
    $region17: #{generator_forward.6} parent=1 // pred_fallthru
      _
    // Predicated region
    $region18: #{generator_forward.6} parent=1 // pred_check
      _
    $region19: #{generator_forward.6} parent=1 // pred_check_branch
      %20 = sbr.rel (0) target = $region21
    $region20: #{generator_forward.6} parent=1 // pred_region
      %22 = vsyncadd [#allocation3], 0
      %s24 = sshll.u32 %s4, 4
      %s25 = int_to_ptr.hbm [resolvable:$true] %s24
      %s26 = sshll.u32 [#allocation2], 4
      %s27 = int_to_ptr.vmem [resolvable:$true] %s26
      %29 = dma.hbm_to_vmem [thread:$0]  %s25, 48, %s27, [#allocation3]
    $region21: #{generator_forward.6} parent=1 // pred_fallthru
      _
    // Predicated region
    $region22: #{generator_forward.6} parent=1 // pred_check
      _
    $region23: #{generator_forward.6} parent=1 // pred_check_branch
      %31 = sbr.rel (0) target = $region25
    $region24: #{generator_forward.6} parent=1 // pred_region
      %33 = dma.done [#allocation3], 48
    $region25: #{generator_forward.6} parent=1 // pred_fallthru
      _
    %v35 = vld [vmem:[#allocation2] sm:$0x7]
    %v36 = vld [vmem:[%s0] sm:$0xff]
    %v37 = vld [vmem:[%s0 + $0x8] sm:$0xf]
    %v38 = vld [vmem:[%s0 + $0xc] sm:$0xff]
    %v39 = vld [vmem:[%s0 + $0x14] sm:$0xf]
    %v40 = vld [vmem:[%s1] sm:$0xf]
    %v41 = vld [vmem:[%s1 + $0x4] sm:$0xf]
    %v42 = vld [vmem:[%s1 + $0x8] sm:$0xf]
    %v43 = vld [vmem:[%s1 + $0xc] sm:$0xf]
    %s44 = scalar_lea.vmem %s1, 16
    %v45 = vld [vmem:[%s44] sm:$0xf]
    %v46 = vld [vmem:[%s44 + $0x4] sm:$0xf]
    %v47 = vld [vmem:[%s44 + $0x8] sm:$0xf]
    %v48 = vld [vmem:[%s44 + $0xc] sm:$0xf]
    %v53 = vunpack.c.l.b16 %v45
    %v54 = vunpack.c.l.b16 %v46
    %v55 = vunpack.c.l.b16 %v47
    %v56 = vunpack.c.l.b16 %v48
    %v57 = vpack.c.b16 %v54, %v53
    %v58 = vpack.c.b16 %v56, %v55
    %v63 = vunpack.c.l.b16 %v36
    %v64 = vunpack.c.h.b16 %v36
    %v65 = vunpack.c.l.b16 %v37
    %v66 = vunpack.c.l.b16 %v38
    %v67 = vunpack.c.h.b16 %v38
    %v68 = vunpack.c.l.b16 %v39
    %v69 = vpack.c.b16 %v66, %v63
    %v70 = vpack.c.b16 %v67, %v64
    %v71 = vpack.c.b16 %v68, %v65
    %72 = vrot.lane.b32.xlu0 %v69, 127
    %v73 = vpop.permute.xlu0 %72
    %74 = vrot.lane.b32.xlu0 %v70, 127
    %v75 = vpop.permute.xlu0 %74
    %76 = vrot.lane.b32.xlu0 %v71, 127
    %v77 = vpop.permute.xlu0 %76
    %vm78 = vcmask 1039360
    %v79 = vsel %vm78, %v73, %v75
    %v80 = vsel %vm78, %v75, %v77
    %vm84 = vcmask 130048
    %v86 = vsel %vm84, %v57, 0
    %v89 = vsel %vm84, %v58, 0
    %91 = vmatpush.bf16.msra.mxu0 0
    %92 = vmatpush.bf16.msra.mxu0 0
    %93 = vmatpush.bf16.msra.mxu0 0
    %94 = vmatpush.bf16.msra.mxu0 0
    %95 = vmatpush.bf16.msra.mxu0 0
    %96 = vmatpush.bf16.msra.mxu0 0
    %97 = vmatpush.bf16.msra.mxu0 0
    %98 = vmatpush.bf16.msra.mxu0 %v79
    %99 = vmatmul.bf16.gmra.mxu0 %v86
    %v100 = vpop.f32.mrf.mxu0
    %v101 = vadd.f32 0.0, %v100
    %v102 = vpop.f32.mrf.mxu0
    %v103 = vadd.f32 0.0, %v102
    %104 = vmatmul.bf16.gmra.mxu0 %v89
    %v105 = vpop.f32.mrf.mxu0
    %v106 = vadd.f32 0.0, %v105
    %v107 = vpop.f32.mrf.mxu0
    %v108 = vadd.f32 0.0, %v107
    %109 = vdwg.mxu0
    %110 = vmatpush.bf16.msra.mxu0 0
    %111 = vmatpush.bf16.msra.mxu0 0
    %112 = vmatpush.bf16.msra.mxu0 0
    %113 = vmatpush.bf16.msra.mxu0 0
    %114 = vmatpush.bf16.msra.mxu0 0
    %115 = vmatpush.bf16.msra.mxu0 0
    %116 = vmatpush.bf16.msra.mxu0 0
    %117 = vmatpush.bf16.msra.mxu0 %v80
    %118 = vmatmul.bf16.gmra.mxu0 %v86
    %v119 = vpop.f32.mrf.mxu0
    %v120 = vadd.f32 0.0, %v119
    %v121 = vpop.f32.mrf.mxu0
    %v122 = vadd.f32 0.0, %v121
    %123 = vmatmul.bf16.gmra.mxu0 %v89
    %v124 = vpop.f32.mrf.mxu0
    %v125 = vadd.f32 0.0, %v124
    %v126 = vpop.f32.mrf.mxu0
    %v127 = vadd.f32 0.0, %v126
    %128 = vdwg.mxu0
    %129 = vmatpush.bf16.msra.mxu0 0
    %130 = vmatpush.bf16.msra.mxu0 0
    %131 = vmatpush.bf16.msra.mxu0 0
    %132 = vmatpush.bf16.msra.mxu0 0
    %133 = vmatpush.bf16.msra.mxu0 0
    %134 = vmatpush.bf16.msra.mxu0 0
    %135 = vmatpush.bf16.msra.mxu0 0
    %136 = vmatpush.bf16.msra.mxu0 %v77
    %137 = vmatmul.bf16.gmra.mxu0 %v86
    %v138 = vpop.f32.mrf.mxu0
    %v139 = vadd.f32 0.0, %v138
    %v140 = vpop.f32.mrf.mxu0
    %v141 = vadd.f32 0.0, %v140
    %142 = vmatmul.bf16.gmra.mxu0 %v89
    %v143 = vpop.f32.mrf.mxu0
    %v144 = vadd.f32 0.0, %v143
    %v145 = vpop.f32.mrf.mxu0
    %v146 = vadd.f32 0.0, %v145
    %147 = vdwg.mxu0
    %v152 = vunpack.c.l.b16 %v40
    %v153 = vunpack.c.l.b16 %v41
    %v154 = vunpack.c.l.b16 %v42
    %v155 = vunpack.c.l.b16 %v43
    %v156 = vpack.c.b16 %v153, %v152
    %v157 = vpack.c.b16 %v155, %v154
    %v162 = vsel %vm84, %v156, 0
    %v165 = vsel %vm84, %v157, 0
    %167 = vmatpush.bf16.msra.mxu0 0
    %168 = vmatpush.bf16.msra.mxu0 0
    %169 = vmatpush.bf16.msra.mxu0 0
    %170 = vmatpush.bf16.msra.mxu0 0
    %171 = vmatpush.bf16.msra.mxu0 0
    %172 = vmatpush.bf16.msra.mxu0 0
    %173 = vmatpush.bf16.msra.mxu0 0
    %174 = vmatpush.bf16.msra.mxu0 %v69
    %175 = vmatmul.bf16.gmra.mxu0 %v162
    %v176 = vpop.f32.mrf.mxu0
    %v177 = vadd.f32 %v101, %v176
    %v178 = vpop.f32.mrf.mxu0
    %v179 = vadd.f32 %v103, %v178
    %180 = vmatmul.bf16.gmra.mxu0 %v165
    %v181 = vpop.f32.mrf.mxu0
    %v182 = vadd.f32 %v106, %v181
    %v183 = vpop.f32.mrf.mxu0
    %v184 = vadd.f32 %v108, %v183
    %185 = vdwg.mxu0
    %186 = vmatpush.bf16.msra.mxu0 0
    %187 = vmatpush.bf16.msra.mxu0 0
    %188 = vmatpush.bf16.msra.mxu0 0
    %189 = vmatpush.bf16.msra.mxu0 0
    %190 = vmatpush.bf16.msra.mxu0 0
    %191 = vmatpush.bf16.msra.mxu0 0
    %192 = vmatpush.bf16.msra.mxu0 0
    %193 = vmatpush.bf16.msra.mxu0 %v70
    %194 = vmatmul.bf16.gmra.mxu0 %v162
    %v195 = vpop.f32.mrf.mxu0
    %v196 = vadd.f32 %v120, %v195
    %v197 = vpop.f32.mrf.mxu0
    %v198 = vadd.f32 %v122, %v197
    %199 = vmatmul.bf16.gmra.mxu0 %v165
    %v200 = vpop.f32.mrf.mxu0
    %v201 = vadd.f32 %v125, %v200
    %v202 = vpop.f32.mrf.mxu0
    %v203 = vadd.f32 %v127, %v202
    %204 = vdwg.mxu0
    %205 = vmatpush.bf16.msra.mxu0 0
    %206 = vmatpush.bf16.msra.mxu0 0
    %207 = vmatpush.bf16.msra.mxu0 0
    %208 = vmatpush.bf16.msra.mxu0 0
    %209 = vmatpush.bf16.msra.mxu0 0
    %210 = vmatpush.bf16.msra.mxu0 0
    %211 = vmatpush.bf16.msra.mxu0 0
    %212 = vmatpush.bf16.msra.mxu0 %v71
    %213 = vmatmul.bf16.gmra.mxu0 %v162
    %v214 = vpop.f32.mrf.mxu0
    %v215 = vadd.f32 %v139, %v214
    %v216 = vpop.f32.mrf.mxu0
    %v217 = vadd.f32 %v141, %v216
    %218 = vmatmul.bf16.gmra.mxu0 %v165
    %v219 = vpop.f32.mrf.mxu0
    %v220 = vadd.f32 %v144, %v219
    %v221 = vpop.f32.mrf.mxu0
    %v222 = vadd.f32 %v146, %v221
    %223 = vdwg.mxu0
    %s224 = scalar_lea.vmem %s1, 32
    %v225 = vld [vmem:[%s224] sm:$0xf]
    %v226 = vld [vmem:[%s224 + $0x4] sm:$0xf]
    %v227 = vld [vmem:[%s224 + $0x8] sm:$0xf]
    %v228 = vld [vmem:[%s224 + $0xc] sm:$0xf]
    %v233 = vunpack.c.l.b16 %v225
    %v234 = vunpack.c.l.b16 %v226
    %v235 = vunpack.c.l.b16 %v227
    %v236 = vunpack.c.l.b16 %v228
    %v237 = vpack.c.b16 %v234, %v233
    %v238 = vpack.c.b16 %v236, %v235
    %239 = vrot.lane.b32.xlu0 %v69, 126
    %v240 = vpop.permute.xlu0 %239
    %241 = vrot.lane.b32.xlu0 %v70, 126
    %v242 = vpop.permute.xlu0 %241
    %243 = vrot.lane.b32.xlu0 %v71, 126
    %v244 = vpop.permute.xlu0 %243
    %vm245 = vcmask 1031168
    %v246 = vsel %vm245, %v240, %v242
    %v247 = vsel %vm245, %v242, %v244
    %v252 = vsel %vm84, %v237, 0
    %v255 = vsel %vm84, %v238, 0
    %257 = vmatpush.bf16.msra.mxu0 0
    %258 = vmatpush.bf16.msra.mxu0 0
    %259 = vmatpush.bf16.msra.mxu0 0
    %260 = vmatpush.bf16.msra.mxu0 0
    %261 = vmatpush.bf16.msra.mxu0 0
    %262 = vmatpush.bf16.msra.mxu0 0
    %263 = vmatpush.bf16.msra.mxu0 0
    %264 = vmatpush.bf16.msra.mxu0 %v246
    %265 = vmatmul.bf16.gmra.mxu0 %v252
    %v266 = vpop.f32.mrf.mxu0
    %v267 = vadd.f32 0.0, %v266
    %v268 = vpop.f32.mrf.mxu0
    %v269 = vadd.f32 0.0, %v268
    %270 = vmatmul.bf16.gmra.mxu0 %v255
    %v271 = vpop.f32.mrf.mxu0
    %v272 = vadd.f32 0.0, %v271
    %v273 = vpop.f32.mrf.mxu0
    %v274 = vadd.f32 0.0, %v273
    %275 = vdwg.mxu0
    %276 = vmatpush.bf16.msra.mxu0 0
    %277 = vmatpush.bf16.msra.mxu0 0
    %278 = vmatpush.bf16.msra.mxu0 0
    %279 = vmatpush.bf16.msra.mxu0 0
    %280 = vmatpush.bf16.msra.mxu0 0
    %281 = vmatpush.bf16.msra.mxu0 0
    %282 = vmatpush.bf16.msra.mxu0 0
    %283 = vmatpush.bf16.msra.mxu0 %v247
    %284 = vmatmul.bf16.gmra.mxu0 %v252
    %v285 = vpop.f32.mrf.mxu0
    %v286 = vadd.f32 0.0, %v285
    %v287 = vpop.f32.mrf.mxu0
    %v288 = vadd.f32 0.0, %v287
    %289 = vmatmul.bf16.gmra.mxu0 %v255
    %v290 = vpop.f32.mrf.mxu0
    %v291 = vadd.f32 0.0, %v290
    %v292 = vpop.f32.mrf.mxu0
    %v293 = vadd.f32 0.0, %v292
    %294 = vdwg.mxu0
    %295 = vmatpush.bf16.msra.mxu0 0
    %296 = vmatpush.bf16.msra.mxu0 0
    %297 = vmatpush.bf16.msra.mxu0 0
    %298 = vmatpush.bf16.msra.mxu0 0
    %299 = vmatpush.bf16.msra.mxu0 0
    %300 = vmatpush.bf16.msra.mxu0 0
    %301 = vmatpush.bf16.msra.mxu0 0
    %302 = vmatpush.bf16.msra.mxu0 %v244
    %303 = vmatmul.bf16.gmra.mxu0 %v252
    %v304 = vpop.f32.mrf.mxu0
    %v305 = vadd.f32 0.0, %v304
    %v306 = vpop.f32.mrf.mxu0
    %v307 = vadd.f32 0.0, %v306
    %308 = vmatmul.bf16.gmra.mxu0 %v255
    %v309 = vpop.f32.mrf.mxu0
    %v310 = vadd.f32 0.0, %v309
    %v311 = vpop.f32.mrf.mxu0
    %v312 = vadd.f32 0.0, %v311
    %313 = vdwg.mxu0
    %v314 = vadd.f32 %v177, %v267
    %v315 = vadd.f32 %v196, %v286
    %v316 = vadd.f32 %v215, %v305
    %v317 = vadd.f32 %v179, %v269
    %v318 = vadd.f32 %v198, %v288
    %v319 = vadd.f32 %v217, %v307
    %v320 = vadd.f32 %v182, %v272
    %v321 = vadd.f32 %v201, %v291
    %v322 = vadd.f32 %v220, %v310
    %v323 = vadd.f32 %v184, %v274
    %v324 = vadd.f32 %v203, %v293
    %v325 = vadd.f32 %v222, %v312
    %s326 = scalar_lea.vmem %s1, 48
    %v327 = vld [vmem:[%s326] sm:$0xf]
    %v328 = vld [vmem:[%s326 + $0x4] sm:$0xf]
    %v329 = vld [vmem:[%s326 + $0x8] sm:$0xf]
    %v330 = vld [vmem:[%s326 + $0xc] sm:$0xf]
    %v335 = vunpack.c.l.b16 %v327
    %v336 = vunpack.c.l.b16 %v328
    %v337 = vunpack.c.l.b16 %v329
    %v338 = vunpack.c.l.b16 %v330
    %v339 = vpack.c.b16 %v336, %v335
    %v340 = vpack.c.b16 %v338, %v337
    %341 = vrot.lane.b32.xlu0 %v69, 110
    %v342 = vpop.permute.xlu0 %341
    %343 = vrot.lane.b32.xlu0 %v70, 110
    %v344 = vpop.permute.xlu0 %343
    %345 = vrot.lane.b32.xlu0 %v71, 110
    %v346 = vpop.permute.xlu0 %345
    %vm347 = vcmask 900096
    %v348 = vsel %vm347, %v342, %v344
    %v349 = vsel %vm347, %v344, %v346
    %v354 = vsel %vm84, %v339, 0
    %v357 = vsel %vm84, %v340, 0
    %359 = vmatpush.bf16.msra.mxu0 0
    %360 = vmatpush.bf16.msra.mxu0 0
    %361 = vmatpush.bf16.msra.mxu0 0
    %362 = vmatpush.bf16.msra.mxu0 0
    %363 = vmatpush.bf16.msra.mxu0 0
    %364 = vmatpush.bf16.msra.mxu0 0
    %365 = vmatpush.bf16.msra.mxu0 0
    %366 = vmatpush.bf16.msra.mxu0 %v348
    %367 = vmatmul.bf16.gmra.mxu0 %v354
    %v368 = vpop.f32.mrf.mxu0
    %v369 = vadd.f32 0.0, %v368
    %v370 = vpop.f32.mrf.mxu0
    %v371 = vadd.f32 0.0, %v370
    %372 = vmatmul.bf16.gmra.mxu0 %v357
    %v373 = vpop.f32.mrf.mxu0
    %v374 = vadd.f32 0.0, %v373
    %v375 = vpop.f32.mrf.mxu0
    %v376 = vadd.f32 0.0, %v375
    %377 = vdwg.mxu0
    %378 = vmatpush.bf16.msra.mxu0 0
    %379 = vmatpush.bf16.msra.mxu0 0
    %380 = vmatpush.bf16.msra.mxu0 0
    %381 = vmatpush.bf16.msra.mxu0 0
    %382 = vmatpush.bf16.msra.mxu0 0
    %383 = vmatpush.bf16.msra.mxu0 0
    %384 = vmatpush.bf16.msra.mxu0 0
    %385 = vmatpush.bf16.msra.mxu0 %v349
    %386 = vmatmul.bf16.gmra.mxu0 %v354
    %v387 = vpop.f32.mrf.mxu0
    %v388 = vadd.f32 0.0, %v387
    %v389 = vpop.f32.mrf.mxu0
    %v390 = vadd.f32 0.0, %v389
    %391 = vmatmul.bf16.gmra.mxu0 %v357
    %v392 = vpop.f32.mrf.mxu0
    %v393 = vadd.f32 0.0, %v392
    %v394 = vpop.f32.mrf.mxu0
    %v395 = vadd.f32 0.0, %v394
    %396 = vdwg.mxu0
    %397 = vmatpush.bf16.msra.mxu0 0
    %398 = vmatpush.bf16.msra.mxu0 0
    %399 = vmatpush.bf16.msra.mxu0 0
    %400 = vmatpush.bf16.msra.mxu0 0
    %401 = vmatpush.bf16.msra.mxu0 0
    %402 = vmatpush.bf16.msra.mxu0 0
    %403 = vmatpush.bf16.msra.mxu0 0
    %404 = vmatpush.bf16.msra.mxu0 %v346
    %405 = vmatmul.bf16.gmra.mxu0 %v354
    %v406 = vpop.f32.mrf.mxu0
    %v407 = vadd.f32 0.0, %v406
    %v408 = vpop.f32.mrf.mxu0
    %v409 = vadd.f32 0.0, %v408
    %410 = vmatmul.bf16.gmra.mxu0 %v357
    %v411 = vpop.f32.mrf.mxu0
    %v412 = vadd.f32 0.0, %v411
    %v413 = vpop.f32.mrf.mxu0
    %v414 = vadd.f32 0.0, %v413
    %415 = vdwg.mxu0
    %v416 = vadd.f32 %v314, %v369
    %v417 = vadd.f32 %v315, %v388
    %v418 = vadd.f32 %v316, %v407
    %v419 = vadd.f32 %v317, %v371
    %v420 = vadd.f32 %v318, %v390
    %v421 = vadd.f32 %v319, %v409
    %v422 = vadd.f32 %v320, %v374
    %v423 = vadd.f32 %v321, %v393
    %v424 = vadd.f32 %v322, %v412
    %v425 = vadd.f32 %v323, %v376
    %v426 = vadd.f32 %v324, %v395
    %v427 = vadd.f32 %v325, %v414
    %s428 = scalar_lea.vmem %s1, 64
    %v429 = vld [vmem:[%s428] sm:$0xf]
    %v430 = vld [vmem:[%s428 + $0x4] sm:$0xf]
    %v431 = vld [vmem:[%s428 + $0x8] sm:$0xf]
    %v432 = vld [vmem:[%s428 + $0xc] sm:$0xf]
    %v437 = vunpack.c.l.b16 %v429
    %v438 = vunpack.c.l.b16 %v430
    %v439 = vunpack.c.l.b16 %v431
    %v440 = vunpack.c.l.b16 %v432
    %v441 = vpack.c.b16 %v438, %v437
    %v442 = vpack.c.b16 %v440, %v439
    %443 = vrot.lane.b32.xlu0 %v69, 109
    %v444 = vpop.permute.xlu0 %443
    %445 = vrot.lane.b32.xlu0 %v70, 109
    %v446 = vpop.permute.xlu0 %445
    %447 = vrot.lane.b32.xlu0 %v71, 109
    %v448 = vpop.permute.xlu0 %447
    %vm449 = vcmask 891904
    %v450 = vsel %vm449, %v444, %v446
    %v451 = vsel %vm449, %v446, %v448
    %v456 = vsel %vm84, %v441, 0
    %v459 = vsel %vm84, %v442, 0
    %461 = vmatpush.bf16.msra.mxu0 0
    %462 = vmatpush.bf16.msra.mxu0 0
    %463 = vmatpush.bf16.msra.mxu0 0
    %464 = vmatpush.bf16.msra.mxu0 0
    %465 = vmatpush.bf16.msra.mxu0 0
    %466 = vmatpush.bf16.msra.mxu0 0
    %467 = vmatpush.bf16.msra.mxu0 0
    %468 = vmatpush.bf16.msra.mxu0 %v450
    %469 = vmatmul.bf16.gmra.mxu0 %v456
    %v470 = vpop.f32.mrf.mxu0
    %v471 = vadd.f32 0.0, %v470
    %v472 = vpop.f32.mrf.mxu0
    %v473 = vadd.f32 0.0, %v472
    %474 = vmatmul.bf16.gmra.mxu0 %v459
    %v475 = vpop.f32.mrf.mxu0
    %v476 = vadd.f32 0.0, %v475
    %v477 = vpop.f32.mrf.mxu0
    %v478 = vadd.f32 0.0, %v477
    %479 = vdwg.mxu0
    %480 = vmatpush.bf16.msra.mxu0 0
    %481 = vmatpush.bf16.msra.mxu0 0
    %482 = vmatpush.bf16.msra.mxu0 0
    %483 = vmatpush.bf16.msra.mxu0 0
    %484 = vmatpush.bf16.msra.mxu0 0
    %485 = vmatpush.bf16.msra.mxu0 0
    %486 = vmatpush.bf16.msra.mxu0 0
    %487 = vmatpush.bf16.msra.mxu0 %v451
    %488 = vmatmul.bf16.gmra.mxu0 %v456
    %v489 = vpop.f32.mrf.mxu0
    %v490 = vadd.f32 0.0, %v489
    %v491 = vpop.f32.mrf.mxu0
    %v492 = vadd.f32 0.0, %v491
    %493 = vmatmul.bf16.gmra.mxu0 %v459
    %v494 = vpop.f32.mrf.mxu0
    %v495 = vadd.f32 0.0, %v494
    %v496 = vpop.f32.mrf.mxu0
    %v497 = vadd.f32 0.0, %v496
    %498 = vdwg.mxu0
    %499 = vmatpush.bf16.msra.mxu0 0
    %500 = vmatpush.bf16.msra.mxu0 0
    %501 = vmatpush.bf16.msra.mxu0 0
    %502 = vmatpush.bf16.msra.mxu0 0
    %503 = vmatpush.bf16.msra.mxu0 0
    %504 = vmatpush.bf16.msra.mxu0 0
    %505 = vmatpush.bf16.msra.mxu0 0
    %506 = vmatpush.bf16.msra.mxu0 %v448
    %507 = vmatmul.bf16.gmra.mxu0 %v456
    %v508 = vpop.f32.mrf.mxu0
    %v509 = vadd.f32 0.0, %v508
    %v510 = vpop.f32.mrf.mxu0
    %v511 = vadd.f32 0.0, %v510
    %512 = vmatmul.bf16.gmra.mxu0 %v459
    %v513 = vpop.f32.mrf.mxu0
    %v514 = vadd.f32 0.0, %v513
    %v515 = vpop.f32.mrf.mxu0
    %v516 = vadd.f32 0.0, %v515
    %517 = vdwg.mxu0
    %v518 = vadd.f32 %v416, %v471
    %v519 = vadd.f32 %v417, %v490
    %v520 = vadd.f32 %v418, %v509
    %v521 = vadd.f32 %v419, %v473
    %v522 = vadd.f32 %v420, %v492
    %v523 = vadd.f32 %v421, %v511
    %v524 = vadd.f32 %v422, %v476
    %v525 = vadd.f32 %v423, %v495
    %v526 = vadd.f32 %v424, %v514
    %v527 = vadd.f32 %v425, %v478
    %v528 = vadd.f32 %v426, %v497
    %v529 = vadd.f32 %v427, %v516
    %s530 = scalar_lea.vmem %s1, 80
    %v531 = vld [vmem:[%s530] sm:$0xf]
    %v532 = vld [vmem:[%s530 + $0x4] sm:$0xf]
    %v533 = vld [vmem:[%s530 + $0x8] sm:$0xf]
    %v534 = vld [vmem:[%s530 + $0xc] sm:$0xf]
    %v539 = vunpack.c.l.b16 %v531
    %v540 = vunpack.c.l.b16 %v532
    %v541 = vunpack.c.l.b16 %v533
    %v542 = vunpack.c.l.b16 %v534
    %v543 = vpack.c.b16 %v540, %v539
    %v544 = vpack.c.b16 %v542, %v541
    %545 = vrot.lane.b32.xlu0 %v69, 108
    %v546 = vpop.permute.xlu0 %545
    %547 = vrot.lane.b32.xlu0 %v70, 108
    %v548 = vpop.permute.xlu0 %547
    %549 = vrot.lane.b32.xlu0 %v71, 108
    %v550 = vpop.permute.xlu0 %549
    %vm551 = vcmask 883712
    %v552 = vsel %vm551, %v546, %v548
    %v553 = vsel %vm551, %v548, %v550
    %v558 = vsel %vm84, %v543, 0
    %v561 = vsel %vm84, %v544, 0
    %563 = vmatpush.bf16.msra.mxu0 0
    %564 = vmatpush.bf16.msra.mxu0 0
    %565 = vmatpush.bf16.msra.mxu0 0
    %566 = vmatpush.bf16.msra.mxu0 0
    %567 = vmatpush.bf16.msra.mxu0 0
    %568 = vmatpush.bf16.msra.mxu0 0
    %569 = vmatpush.bf16.msra.mxu0 0
    %570 = vmatpush.bf16.msra.mxu0 %v552
    %571 = vmatmul.bf16.gmra.mxu0 %v558
    %v572 = vpop.f32.mrf.mxu0
    %v573 = vadd.f32 0.0, %v572
    %v574 = vpop.f32.mrf.mxu0
    %v575 = vadd.f32 0.0, %v574
    %576 = vmatmul.bf16.gmra.mxu0 %v561
    %v577 = vpop.f32.mrf.mxu0
    %v578 = vadd.f32 0.0, %v577
    %v579 = vpop.f32.mrf.mxu0
    %v580 = vadd.f32 0.0, %v579
    %581 = vdwg.mxu0
    %582 = vmatpush.bf16.msra.mxu0 0
    %583 = vmatpush.bf16.msra.mxu0 0
    %584 = vmatpush.bf16.msra.mxu0 0
    %585 = vmatpush.bf16.msra.mxu0 0
    %586 = vmatpush.bf16.msra.mxu0 0
    %587 = vmatpush.bf16.msra.mxu0 0
    %588 = vmatpush.bf16.msra.mxu0 0
    %589 = vmatpush.bf16.msra.mxu0 %v553
    %590 = vmatmul.bf16.gmra.mxu0 %v558
    %v591 = vpop.f32.mrf.mxu0
    %v592 = vadd.f32 0.0, %v591
    %v593 = vpop.f32.mrf.mxu0
    %v594 = vadd.f32 0.0, %v593
    %595 = vmatmul.bf16.gmra.mxu0 %v561
    %v596 = vpop.f32.mrf.mxu0
    %v597 = vadd.f32 0.0, %v596
    %v598 = vpop.f32.mrf.mxu0
    %v599 = vadd.f32 0.0, %v598
    %600 = vdwg.mxu0
    %601 = vmatpush.bf16.msra.mxu0 0
    %602 = vmatpush.bf16.msra.mxu0 0
    %603 = vmatpush.bf16.msra.mxu0 0
    %604 = vmatpush.bf16.msra.mxu0 0
    %605 = vmatpush.bf16.msra.mxu0 0
    %606 = vmatpush.bf16.msra.mxu0 0
    %607 = vmatpush.bf16.msra.mxu0 0
    %608 = vmatpush.bf16.msra.mxu0 %v550
    %609 = vmatmul.bf16.gmra.mxu0 %v558
    %v610 = vpop.f32.mrf.mxu0
    %v611 = vadd.f32 0.0, %v610
    %v612 = vpop.f32.mrf.mxu0
    %v613 = vadd.f32 0.0, %v612
    %614 = vmatmul.bf16.gmra.mxu0 %v561
    %v615 = vpop.f32.mrf.mxu0
    %v616 = vadd.f32 0.0, %v615
    %v617 = vpop.f32.mrf.mxu0
    %v618 = vadd.f32 0.0, %v617
    %619 = vdwg.mxu0
    %v620 = vadd.f32 %v518, %v573
    %v621 = vadd.f32 %v519, %v592
    %v622 = vadd.f32 %v520, %v611
    %v623 = vadd.f32 %v521, %v575
    %v624 = vadd.f32 %v522, %v594
    %v625 = vadd.f32 %v523, %v613
    %v626 = vadd.f32 %v524, %v578
    %v627 = vadd.f32 %v525, %v597
    %v628 = vadd.f32 %v526, %v616
    %v629 = vadd.f32 %v527, %v580
    %v630 = vadd.f32 %v528, %v599
    %v631 = vadd.f32 %v529, %v618
    %s632 = scalar_lea.vmem %s1, 96
    %v633 = vld [vmem:[%s632] sm:$0xf]
    %v634 = vld [vmem:[%s632 + $0x4] sm:$0xf]
    %v635 = vld [vmem:[%s632 + $0x8] sm:$0xf]
    %v636 = vld [vmem:[%s632 + $0xc] sm:$0xf]
    %v641 = vunpack.c.l.b16 %v633
    %v642 = vunpack.c.l.b16 %v634
    %v643 = vunpack.c.l.b16 %v635
    %v644 = vunpack.c.l.b16 %v636
    %v645 = vpack.c.b16 %v642, %v641
    %v646 = vpack.c.b16 %v644, %v643
    %647 = vrot.lane.b32.xlu0 %v69, 92
    %v648 = vpop.permute.xlu0 %647
    %649 = vrot.lane.b32.xlu0 %v70, 92
    %v650 = vpop.permute.xlu0 %649
    %651 = vrot.lane.b32.xlu0 %v71, 92
    %v652 = vpop.permute.xlu0 %651
    %vm653 = vcmask 752640
    %v654 = vsel %vm653, %v648, %v650
    %v655 = vsel %vm653, %v650, %v652
    %v660 = vsel %vm84, %v645, 0
    %v663 = vsel %vm84, %v646, 0
    %665 = vmatpush.bf16.msra.mxu0 0
    %666 = vmatpush.bf16.msra.mxu0 0
    %667 = vmatpush.bf16.msra.mxu0 0
    %668 = vmatpush.bf16.msra.mxu0 0
    %669 = vmatpush.bf16.msra.mxu0 0
    %670 = vmatpush.bf16.msra.mxu0 0
    %671 = vmatpush.bf16.msra.mxu0 0
    %672 = vmatpush.bf16.msra.mxu0 %v654
    %673 = vmatmul.bf16.gmra.mxu0 %v660
    %v674 = vpop.f32.mrf.mxu0
    %v675 = vadd.f32 0.0, %v674
    %v676 = vpop.f32.mrf.mxu0
    %v677 = vadd.f32 0.0, %v676
    %678 = vmatmul.bf16.gmra.mxu0 %v663
    %v679 = vpop.f32.mrf.mxu0
    %v680 = vadd.f32 0.0, %v679
    %v681 = vpop.f32.mrf.mxu0
    %v682 = vadd.f32 0.0, %v681
    %683 = vdwg.mxu0
    %684 = vmatpush.bf16.msra.mxu0 0
    %685 = vmatpush.bf16.msra.mxu0 0
    %686 = vmatpush.bf16.msra.mxu0 0
    %687 = vmatpush.bf16.msra.mxu0 0
    %688 = vmatpush.bf16.msra.mxu0 0
    %689 = vmatpush.bf16.msra.mxu0 0
    %690 = vmatpush.bf16.msra.mxu0 0
    %691 = vmatpush.bf16.msra.mxu0 %v655
    %692 = vmatmul.bf16.gmra.mxu0 %v660
    %v693 = vpop.f32.mrf.mxu0
    %v694 = vadd.f32 0.0, %v693
    %v695 = vpop.f32.mrf.mxu0
    %v696 = vadd.f32 0.0, %v695
    %697 = vmatmul.bf16.gmra.mxu0 %v663
    %v698 = vpop.f32.mrf.mxu0
    %v699 = vadd.f32 0.0, %v698
    %v700 = vpop.f32.mrf.mxu0
    %v701 = vadd.f32 0.0, %v700
    %702 = vdwg.mxu0
    %703 = vmatpush.bf16.msra.mxu0 0
    %704 = vmatpush.bf16.msra.mxu0 0
    %705 = vmatpush.bf16.msra.mxu0 0
    %706 = vmatpush.bf16.msra.mxu0 0
    %707 = vmatpush.bf16.msra.mxu0 0
    %708 = vmatpush.bf16.msra.mxu0 0
    %709 = vmatpush.bf16.msra.mxu0 0
    %710 = vmatpush.bf16.msra.mxu0 %v652
    %711 = vmatmul.bf16.gmra.mxu0 %v660
    %v712 = vpop.f32.mrf.mxu0
    %v713 = vadd.f32 0.0, %v712
    %v714 = vpop.f32.mrf.mxu0
    %v715 = vadd.f32 0.0, %v714
    %716 = vmatmul.bf16.gmra.mxu0 %v663
    %v717 = vpop.f32.mrf.mxu0
    %v718 = vadd.f32 0.0, %v717
    %v719 = vpop.f32.mrf.mxu0
    %v720 = vadd.f32 0.0, %v719
    %721 = vdwg.mxu0
    %v722 = vadd.f32 %v620, %v675
    %v723 = vadd.f32 %v621, %v694
    %v724 = vadd.f32 %v622, %v713
    %v725 = vadd.f32 %v623, %v677
    %v726 = vadd.f32 %v624, %v696
    %v727 = vadd.f32 %v625, %v715
    %v728 = vadd.f32 %v626, %v680
    %v729 = vadd.f32 %v627, %v699
    %v730 = vadd.f32 %v628, %v718
    %v731 = vadd.f32 %v629, %v682
    %v732 = vadd.f32 %v630, %v701
    %v733 = vadd.f32 %v631, %v720
    %s734 = scalar_lea.vmem %s1, 112
    %v735 = vld [vmem:[%s734] sm:$0xf]
    %v736 = vld [vmem:[%s734 + $0x4] sm:$0xf]
    %v737 = vld [vmem:[%s734 + $0x8] sm:$0xf]
    %v738 = vld [vmem:[%s734 + $0xc] sm:$0xf]
    %v743 = vunpack.c.l.b16 %v735
    %v744 = vunpack.c.l.b16 %v736
    %v745 = vunpack.c.l.b16 %v737
    %v746 = vunpack.c.l.b16 %v738
    %v747 = vpack.c.b16 %v744, %v743
    %v748 = vpack.c.b16 %v746, %v745
    %749 = vrot.lane.b32.xlu0 %v69, 91
    %v750 = vpop.permute.xlu0 %749
    %751 = vrot.lane.b32.xlu0 %v70, 91
    %v752 = vpop.permute.xlu0 %751
    %753 = vrot.lane.b32.xlu0 %v71, 91
    %v754 = vpop.permute.xlu0 %753
    %vm755 = vcmask 744448
    %v756 = vsel %vm755, %v750, %v752
    %v757 = vsel %vm755, %v752, %v754
    %v762 = vsel %vm84, %v747, 0
    %v765 = vsel %vm84, %v748, 0
    %767 = vmatpush.bf16.msra.mxu0 0
    %768 = vmatpush.bf16.msra.mxu0 0
    %769 = vmatpush.bf16.msra.mxu0 0
    %770 = vmatpush.bf16.msra.mxu0 0
    %771 = vmatpush.bf16.msra.mxu0 0
    %772 = vmatpush.bf16.msra.mxu0 0
    %773 = vmatpush.bf16.msra.mxu0 0
    %774 = vmatpush.bf16.msra.mxu0 %v756
    %775 = vmatmul.bf16.gmra.mxu0 %v762
    %v776 = vpop.f32.mrf.mxu0
    %v777 = vadd.f32 0.0, %v776
    %v778 = vpop.f32.mrf.mxu0
    %v779 = vadd.f32 0.0, %v778
    %780 = vmatmul.bf16.gmra.mxu0 %v765
    %v781 = vpop.f32.mrf.mxu0
    %v782 = vadd.f32 0.0, %v781
    %v783 = vpop.f32.mrf.mxu0
    %v784 = vadd.f32 0.0, %v783
    %785 = vdwg.mxu0
    %786 = vmatpush.bf16.msra.mxu0 0
    %787 = vmatpush.bf16.msra.mxu0 0
    %788 = vmatpush.bf16.msra.mxu0 0
    %789 = vmatpush.bf16.msra.mxu0 0
    %790 = vmatpush.bf16.msra.mxu0 0
    %791 = vmatpush.bf16.msra.mxu0 0
    %792 = vmatpush.bf16.msra.mxu0 0
    %793 = vmatpush.bf16.msra.mxu0 %v757
    %794 = vmatmul.bf16.gmra.mxu0 %v762
    %v795 = vpop.f32.mrf.mxu0
    %v796 = vadd.f32 0.0, %v795
    %v797 = vpop.f32.mrf.mxu0
    %v798 = vadd.f32 0.0, %v797
    %799 = vmatmul.bf16.gmra.mxu0 %v765
    %v800 = vpop.f32.mrf.mxu0
    %v801 = vadd.f32 0.0, %v800
    %v802 = vpop.f32.mrf.mxu0
    %v803 = vadd.f32 0.0, %v802
    %804 = vdwg.mxu0
    %805 = vmatpush.bf16.msra.mxu0 0
    %806 = vmatpush.bf16.msra.mxu0 0
    %807 = vmatpush.bf16.msra.mxu0 0
    %808 = vmatpush.bf16.msra.mxu0 0
    %809 = vmatpush.bf16.msra.mxu0 0
    %810 = vmatpush.bf16.msra.mxu0 0
    %811 = vmatpush.bf16.msra.mxu0 0
    %812 = vmatpush.bf16.msra.mxu0 %v754
    %813 = vmatmul.bf16.gmra.mxu0 %v762
    %v814 = vpop.f32.mrf.mxu0
    %v815 = vadd.f32 0.0, %v814
    %v816 = vpop.f32.mrf.mxu0
    %v817 = vadd.f32 0.0, %v816
    %818 = vmatmul.bf16.gmra.mxu0 %v765
    %v819 = vpop.f32.mrf.mxu0
    %v820 = vadd.f32 0.0, %v819
    %v821 = vpop.f32.mrf.mxu0
    %v822 = vadd.f32 0.0, %v821
    %823 = vdwg.mxu0
    %v824 = vadd.f32 %v722, %v777
    %v825 = vadd.f32 %v723, %v796
    %v826 = vadd.f32 %v724, %v815
    %v827 = vadd.f32 %v725, %v779
    %v828 = vadd.f32 %v726, %v798
    %v829 = vadd.f32 %v727, %v817
    %v830 = vadd.f32 %v728, %v782
    %v831 = vadd.f32 %v729, %v801
    %v832 = vadd.f32 %v730, %v820
    %v833 = vadd.f32 %v731, %v784
    %v834 = vadd.f32 %v732, %v803
    %v835 = vadd.f32 %v733, %v822
    %s836 = scalar_lea.vmem %s1, 128
    %v837 = vld [vmem:[%s836] sm:$0xf]
    %v838 = vld [vmem:[%s836 + $0x4] sm:$0xf]
    %v839 = vld [vmem:[%s836 + $0x8] sm:$0xf]
    %v840 = vld [vmem:[%s836 + $0xc] sm:$0xf]
    %v845 = vunpack.c.l.b16 %v837
    %v846 = vunpack.c.l.b16 %v838
    %v847 = vunpack.c.l.b16 %v839
    %v848 = vunpack.c.l.b16 %v840
    %v849 = vpack.c.b16 %v846, %v845
    %v850 = vpack.c.b16 %v848, %v847
    %851 = vrot.lane.b32.xlu0 %v69, 90
    %v852 = vpop.permute.xlu0 %851
    %853 = vrot.lane.b32.xlu0 %v70, 90
    %v854 = vpop.permute.xlu0 %853
    %855 = vrot.lane.b32.xlu0 %v71, 90
    %v856 = vpop.permute.xlu0 %855
    %vm857 = vcmask 736256
    %v858 = vsel %vm857, %v852, %v854
    %v859 = vsel %vm857, %v854, %v856
    %v864 = vsel %vm84, %v849, 0
    %v867 = vsel %vm84, %v850, 0
    %869 = vmatpush.bf16.msra.mxu0 0
    %870 = vmatpush.bf16.msra.mxu0 0
    %871 = vmatpush.bf16.msra.mxu0 0
    %872 = vmatpush.bf16.msra.mxu0 0
    %873 = vmatpush.bf16.msra.mxu0 0
    %874 = vmatpush.bf16.msra.mxu0 0
    %875 = vmatpush.bf16.msra.mxu0 0
    %876 = vmatpush.bf16.msra.mxu0 %v858
    %877 = vmatmul.bf16.gmra.mxu0 %v864
    %v878 = vpop.f32.mrf.mxu0
    %v879 = vadd.f32 0.0, %v878
    %v880 = vpop.f32.mrf.mxu0
    %v881 = vadd.f32 0.0, %v880
    %882 = vmatmul.bf16.gmra.mxu0 %v867
    %v883 = vpop.f32.mrf.mxu0
    %v884 = vadd.f32 0.0, %v883
    %v885 = vpop.f32.mrf.mxu0
    %v886 = vadd.f32 0.0, %v885
    %887 = vdwg.mxu0
    %888 = vmatpush.bf16.msra.mxu0 0
    %889 = vmatpush.bf16.msra.mxu0 0
    %890 = vmatpush.bf16.msra.mxu0 0
    %891 = vmatpush.bf16.msra.mxu0 0
    %892 = vmatpush.bf16.msra.mxu0 0
    %893 = vmatpush.bf16.msra.mxu0 0
    %894 = vmatpush.bf16.msra.mxu0 0
    %895 = vmatpush.bf16.msra.mxu0 %v859
    %896 = vmatmul.bf16.gmra.mxu0 %v864
    %v897 = vpop.f32.mrf.mxu0
    %v898 = vadd.f32 0.0, %v897
    %v899 = vpop.f32.mrf.mxu0
    %v900 = vadd.f32 0.0, %v899
    %901 = vmatmul.bf16.gmra.mxu0 %v867
    %v902 = vpop.f32.mrf.mxu0
    %v903 = vadd.f32 0.0, %v902
    %v904 = vpop.f32.mrf.mxu0
    %v905 = vadd.f32 0.0, %v904
    %906 = vdwg.mxu0
    %907 = vmatpush.bf16.msra.mxu0 0
    %908 = vmatpush.bf16.msra.mxu0 0
    %909 = vmatpush.bf16.msra.mxu0 0
    %910 = vmatpush.bf16.msra.mxu0 0
    %911 = vmatpush.bf16.msra.mxu0 0
    %912 = vmatpush.bf16.msra.mxu0 0
    %913 = vmatpush.bf16.msra.mxu0 0
    %914 = vmatpush.bf16.msra.mxu0 %v856
    %915 = vmatmul.bf16.gmra.mxu0 %v864
    %v916 = vpop.f32.mrf.mxu0
    %v917 = vadd.f32 0.0, %v916
    %v918 = vpop.f32.mrf.mxu0
    %v919 = vadd.f32 0.0, %v918
    %920 = vmatmul.bf16.gmra.mxu0 %v867
    %v921 = vpop.f32.mrf.mxu0
    %v922 = vadd.f32 0.0, %v921
    %v923 = vpop.f32.mrf.mxu0
    %v924 = vadd.f32 0.0, %v923
    %925 = vdwg.mxu0
    %v926 = vadd.f32 %v824, %v879
    %v927 = vadd.f32 %v825, %v898
    %v928 = vadd.f32 %v826, %v917
    %v929 = vadd.f32 %v827, %v881
    %v930 = vadd.f32 %v828, %v900
    %v931 = vadd.f32 %v829, %v919
    %v932 = vadd.f32 %v830, %v884
    %v933 = vadd.f32 %v831, %v903
    %v934 = vadd.f32 %v832, %v922
    %v935 = vadd.f32 %v833, %v886
    %v936 = vadd.f32 %v834, %v905
    %v937 = vadd.f32 %v835, %v924
    %v939 = vperm.slane %v35, 0
    %v940 = vperm.slane %v35, 1
    %v941 = vperm.slane %v35, 2
    %v945 = vmul.f32 %v926, %v939
    %v946 = vmul.f32 %v927, %v940
    %v947 = vmul.f32 %v928, %v941
    %v948 = vmul.f32 %v929, %v939
    %v949 = vmul.f32 %v930, %v940
    %v950 = vmul.f32 %v931, %v941
    %v951 = vmul.f32 %v932, %v939
    %v952 = vmul.f32 %v933, %v940
    %v953 = vmul.f32 %v934, %v941
    %v954 = vmul.f32 %v935, %v939
    %v955 = vmul.f32 %v936, %v940
    %v956 = vmul.f32 %v937, %v941
    %s957 = scalar_lea.vmem %s0, 24
    %v958 = vld [vmem:[%s957] sm:$0xff]
    %v959 = vld [vmem:[%s957 + $0x8] sm:$0xf]
    %v960 = vld [vmem:[%s957 + $0xc] sm:$0xff]
    %v961 = vld [vmem:[%s957 + $0x14] sm:$0xf]
    %v966 = vunpack.c.l.b16 %v958
    %v967 = vunpack.c.h.b16 %v958
    %v968 = vunpack.c.l.b16 %v959
    %v969 = vunpack.c.l.b16 %v960
    %v970 = vunpack.c.h.b16 %v960
    %v971 = vunpack.c.l.b16 %v961
    %v972 = vpack.c.b16 %v969, %v966
    %v973 = vpack.c.b16 %v970, %v967
    %v974 = vpack.c.b16 %v971, %v968
    %975 = vrot.lane.b32.xlu0 %v972, 127
    %v976 = vpop.permute.xlu0 %975
    %977 = vrot.lane.b32.xlu0 %v973, 127
    %v978 = vpop.permute.xlu0 %977
    %979 = vrot.lane.b32.xlu0 %v974, 127
    %v980 = vpop.permute.xlu0 %979
    %v981 = vsel %vm78, %v976, %v978
    %v982 = vsel %vm78, %v978, %v980
    %986 = vmatpush.bf16.msra.mxu0 0
    %987 = vmatpush.bf16.msra.mxu0 0
    %988 = vmatpush.bf16.msra.mxu0 0
    %989 = vmatpush.bf16.msra.mxu0 0
    %990 = vmatpush.bf16.msra.mxu0 0
    %991 = vmatpush.bf16.msra.mxu0 0
    %992 = vmatpush.bf16.msra.mxu0 0
    %993 = vmatpush.bf16.msra.mxu0 %v981
    %994 = vmatmul.bf16.gmra.mxu0 %v86
    %v995 = vpop.f32.mrf.mxu0
    %v996 = vadd.f32 0.0, %v995
    %v997 = vpop.f32.mrf.mxu0
    %v998 = vadd.f32 0.0, %v997
    %999 = vmatmul.bf16.gmra.mxu0 %v89
    %v1000 = vpop.f32.mrf.mxu0
    %v1001 = vadd.f32 0.0, %v1000
    %v1002 = vpop.f32.mrf.mxu0
    %v1003 = vadd.f32 0.0, %v1002
    %1004 = vdwg.mxu0
    %1005 = vmatpush.bf16.msra.mxu0 0
    %1006 = vmatpush.bf16.msra.mxu0 0
    %1007 = vmatpush.bf16.msra.mxu0 0
    %1008 = vmatpush.bf16.msra.mxu0 0
    %1009 = vmatpush.bf16.msra.mxu0 0
    %1010 = vmatpush.bf16.msra.mxu0 0
    %1011 = vmatpush.bf16.msra.mxu0 0
    %1012 = vmatpush.bf16.msra.mxu0 %v982
    %1013 = vmatmul.bf16.gmra.mxu0 %v86
    %v1014 = vpop.f32.mrf.mxu0
    %v1015 = vadd.f32 0.0, %v1014
    %v1016 = vpop.f32.mrf.mxu0
    %v1017 = vadd.f32 0.0, %v1016
    %1018 = vmatmul.bf16.gmra.mxu0 %v89
    %v1019 = vpop.f32.mrf.mxu0
    %v1020 = vadd.f32 0.0, %v1019
    %v1021 = vpop.f32.mrf.mxu0
    %v1022 = vadd.f32 0.0, %v1021
    %1023 = vdwg.mxu0
    %1024 = vmatpush.bf16.msra.mxu0 0
    %1025 = vmatpush.bf16.msra.mxu0 0
    %1026 = vmatpush.bf16.msra.mxu0 0
    %1027 = vmatpush.bf16.msra.mxu0 0
    %1028 = vmatpush.bf16.msra.mxu0 0
    %1029 = vmatpush.bf16.msra.mxu0 0
    %1030 = vmatpush.bf16.msra.mxu0 0
    %1031 = vmatpush.bf16.msra.mxu0 %v980
    %1032 = vmatmul.bf16.gmra.mxu0 %v86
    %v1033 = vpop.f32.mrf.mxu0
    %v1034 = vadd.f32 0.0, %v1033
    %v1035 = vpop.f32.mrf.mxu0
    %v1036 = vadd.f32 0.0, %v1035
    %1037 = vmatmul.bf16.gmra.mxu0 %v89
    %v1038 = vpop.f32.mrf.mxu0
    %v1039 = vadd.f32 0.0, %v1038
    %v1040 = vpop.f32.mrf.mxu0
    %v1041 = vadd.f32 0.0, %v1040
    %1042 = vdwg.mxu0
    %1046 = vmatpush.bf16.msra.mxu0 0
    %1047 = vmatpush.bf16.msra.mxu0 0
    %1048 = vmatpush.bf16.msra.mxu0 0
    %1049 = vmatpush.bf16.msra.mxu0 0
    %1050 = vmatpush.bf16.msra.mxu0 0
    %1051 = vmatpush.bf16.msra.mxu0 0
    %1052 = vmatpush.bf16.msra.mxu0 0
    %1053 = vmatpush.bf16.msra.mxu0 %v972
    %1054 = vmatmul.bf16.gmra.mxu0 %v162
    %v1055 = vpop.f32.mrf.mxu0
    %v1056 = vadd.f32 %v996, %v1055
    %v1057 = vpop.f32.mrf.mxu0
    %v1058 = vadd.f32 %v998, %v1057
    %1059 = vmatmul.bf16.gmra.mxu0 %v165
    %v1060 = vpop.f32.mrf.mxu0
    %v1061 = vadd.f32 %v1001, %v1060
    %v1062 = vpop.f32.mrf.mxu0
    %v1063 = vadd.f32 %v1003, %v1062
    %1064 = vdwg.mxu0
    %1065 = vmatpush.bf16.msra.mxu0 0
    %1066 = vmatpush.bf16.msra.mxu0 0
    %1067 = vmatpush.bf16.msra.mxu0 0
    %1068 = vmatpush.bf16.msra.mxu0 0
    %1069 = vmatpush.bf16.msra.mxu0 0
    %1070 = vmatpush.bf16.msra.mxu0 0
    %1071 = vmatpush.bf16.msra.mxu0 0
    %1072 = vmatpush.bf16.msra.mxu0 %v973
    %1073 = vmatmul.bf16.gmra.mxu0 %v162
    %v1074 = vpop.f32.mrf.mxu0
    %v1075 = vadd.f32 %v1015, %v1074
    %v1076 = vpop.f32.mrf.mxu0
    %v1077 = vadd.f32 %v1017, %v1076
    %1078 = vmatmul.bf16.gmra.mxu0 %v165
    %v1079 = vpop.f32.mrf.mxu0
    %v1080 = vadd.f32 %v1020, %v1079
    %v1081 = vpop.f32.mrf.mxu0
    %v1082 = vadd.f32 %v1022, %v1081
    %1083 = vdwg.mxu0
    %1084 = vmatpush.bf16.msra.mxu0 0
    %1085 = vmatpush.bf16.msra.mxu0 0
    %1086 = vmatpush.bf16.msra.mxu0 0
    %1087 = vmatpush.bf16.msra.mxu0 0
    %1088 = vmatpush.bf16.msra.mxu0 0
    %1089 = vmatpush.bf16.msra.mxu0 0
    %1090 = vmatpush.bf16.msra.mxu0 0
    %1091 = vmatpush.bf16.msra.mxu0 %v974
    %1092 = vmatmul.bf16.gmra.mxu0 %v162
    %v1093 = vpop.f32.mrf.mxu0
    %v1094 = vadd.f32 %v1034, %v1093
    %v1095 = vpop.f32.mrf.mxu0
    %v1096 = vadd.f32 %v1036, %v1095
    %1097 = vmatmul.bf16.gmra.mxu0 %v165
    %v1098 = vpop.f32.mrf.mxu0
    %v1099 = vadd.f32 %v1039, %v1098
    %v1100 = vpop.f32.mrf.mxu0
    %v1101 = vadd.f32 %v1041, %v1100
    %1102 = vdwg.mxu0
    %1103 = vrot.lane.b32.xlu0 %v972, 126
    %v1104 = vpop.permute.xlu0 %1103
    %1105 = vrot.lane.b32.xlu0 %v973, 126
    %v1106 = vpop.permute.xlu0 %1105
    %1107 = vrot.lane.b32.xlu0 %v974, 126
    %v1108 = vpop.permute.xlu0 %1107
    %v1109 = vsel %vm245, %v1104, %v1106
    %v1110 = vsel %vm245, %v1106, %v1108
    %1114 = vmatpush.bf16.msra.mxu0 0
    %1115 = vmatpush.bf16.msra.mxu0 0
    %1116 = vmatpush.bf16.msra.mxu0 0
    %1117 = vmatpush.bf16.msra.mxu0 0
    %1118 = vmatpush.bf16.msra.mxu0 0
    %1119 = vmatpush.bf16.msra.mxu0 0
    %1120 = vmatpush.bf16.msra.mxu0 0
    %1121 = vmatpush.bf16.msra.mxu0 %v1109
    %1122 = vmatmul.bf16.gmra.mxu0 %v252
    %v1123 = vpop.f32.mrf.mxu0
    %v1124 = vadd.f32 0.0, %v1123
    %v1125 = vpop.f32.mrf.mxu0
    %v1126 = vadd.f32 0.0, %v1125
    %1127 = vmatmul.bf16.gmra.mxu0 %v255
    %v1128 = vpop.f32.mrf.mxu0
    %v1129 = vadd.f32 0.0, %v1128
    %v1130 = vpop.f32.mrf.mxu0
    %v1131 = vadd.f32 0.0, %v1130
    %1132 = vdwg.mxu0
    %1133 = vmatpush.bf16.msra.mxu0 0
    %1134 = vmatpush.bf16.msra.mxu0 0
    %1135 = vmatpush.bf16.msra.mxu0 0
    %1136 = vmatpush.bf16.msra.mxu0 0
    %1137 = vmatpush.bf16.msra.mxu0 0
    %1138 = vmatpush.bf16.msra.mxu0 0
    %1139 = vmatpush.bf16.msra.mxu0 0
    %1140 = vmatpush.bf16.msra.mxu0 %v1110
    %1141 = vmatmul.bf16.gmra.mxu0 %v252
    %v1142 = vpop.f32.mrf.mxu0
    %v1143 = vadd.f32 0.0, %v1142
    %v1144 = vpop.f32.mrf.mxu0
    %v1145 = vadd.f32 0.0, %v1144
    %1146 = vmatmul.bf16.gmra.mxu0 %v255
    %v1147 = vpop.f32.mrf.mxu0
    %v1148 = vadd.f32 0.0, %v1147
    %v1149 = vpop.f32.mrf.mxu0
    %v1150 = vadd.f32 0.0, %v1149
    %1151 = vdwg.mxu0
    %1152 = vmatpush.bf16.msra.mxu0 0
    %1153 = vmatpush.bf16.msra.mxu0 0
    %1154 = vmatpush.bf16.msra.mxu0 0
    %1155 = vmatpush.bf16.msra.mxu0 0
    %1156 = vmatpush.bf16.msra.mxu0 0
    %1157 = vmatpush.bf16.msra.mxu0 0
    %1158 = vmatpush.bf16.msra.mxu0 0
    %1159 = vmatpush.bf16.msra.mxu0 %v1108
    %1160 = vmatmul.bf16.gmra.mxu0 %v252
    %v1161 = vpop.f32.mrf.mxu0
    %v1162 = vadd.f32 0.0, %v1161
    %v1163 = vpop.f32.mrf.mxu0
    %v1164 = vadd.f32 0.0, %v1163
    %1165 = vmatmul.bf16.gmra.mxu0 %v255
    %v1166 = vpop.f32.mrf.mxu0
    %v1167 = vadd.f32 0.0, %v1166
    %v1168 = vpop.f32.mrf.mxu0
    %v1169 = vadd.f32 0.0, %v1168
    %1170 = vdwg.mxu0
    %v1171 = vadd.f32 %v1056, %v1124
    %v1172 = vadd.f32 %v1075, %v1143
    %v1173 = vadd.f32 %v1094, %v1162
    %v1174 = vadd.f32 %v1058, %v1126
    %v1175 = vadd.f32 %v1077, %v1145
    %v1176 = vadd.f32 %v1096, %v1164
    %v1177 = vadd.f32 %v1061, %v1129
    %v1178 = vadd.f32 %v1080, %v1148
    %v1179 = vadd.f32 %v1099, %v1167
    %v1180 = vadd.f32 %v1063, %v1131
    %v1181 = vadd.f32 %v1082, %v1150
    %v1182 = vadd.f32 %v1101, %v1169
    %1183 = vrot.lane.b32.xlu0 %v972, 110
    %v1184 = vpop.permute.xlu0 %1183
    %1185 = vrot.lane.b32.xlu0 %v973, 110
    %v1186 = vpop.permute.xlu0 %1185
    %1187 = vrot.lane.b32.xlu0 %v974, 110
    %v1188 = vpop.permute.xlu0 %1187
    %v1189 = vsel %vm347, %v1184, %v1186
    %v1190 = vsel %vm347, %v1186, %v1188
    %1194 = vmatpush.bf16.msra.mxu0 0
    %1195 = vmatpush.bf16.msra.mxu0 0
    %1196 = vmatpush.bf16.msra.mxu0 0
    %1197 = vmatpush.bf16.msra.mxu0 0
    %1198 = vmatpush.bf16.msra.mxu0 0
    %1199 = vmatpush.bf16.msra.mxu0 0
    %1200 = vmatpush.bf16.msra.mxu0 0
    %1201 = vmatpush.bf16.msra.mxu0 %v1189
    %1202 = vmatmul.bf16.gmra.mxu0 %v354
    %v1203 = vpop.f32.mrf.mxu0
    %v1204 = vadd.f32 0.0, %v1203
    %v1205 = vpop.f32.mrf.mxu0
    %v1206 = vadd.f32 0.0, %v1205
    %1207 = vmatmul.bf16.gmra.mxu0 %v357
    %v1208 = vpop.f32.mrf.mxu0
    %v1209 = vadd.f32 0.0, %v1208
    %v1210 = vpop.f32.mrf.mxu0
    %v1211 = vadd.f32 0.0, %v1210
    %1212 = vdwg.mxu0
    %1213 = vmatpush.bf16.msra.mxu0 0
    %1214 = vmatpush.bf16.msra.mxu0 0
    %1215 = vmatpush.bf16.msra.mxu0 0
    %1216 = vmatpush.bf16.msra.mxu0 0
    %1217 = vmatpush.bf16.msra.mxu0 0
    %1218 = vmatpush.bf16.msra.mxu0 0
    %1219 = vmatpush.bf16.msra.mxu0 0
    %1220 = vmatpush.bf16.msra.mxu0 %v1190
    %1221 = vmatmul.bf16.gmra.mxu0 %v354
    %v1222 = vpop.f32.mrf.mxu0
    %v1223 = vadd.f32 0.0, %v1222
    %v1224 = vpop.f32.mrf.mxu0
    %v1225 = vadd.f32 0.0, %v1224
    %1226 = vmatmul.bf16.gmra.mxu0 %v357
    %v1227 = vpop.f32.mrf.mxu0
    %v1228 = vadd.f32 0.0, %v1227
    %v1229 = vpop.f32.mrf.mxu0
    %v1230 = vadd.f32 0.0, %v1229
    %1231 = vdwg.mxu0
    %1232 = vmatpush.bf16.msra.mxu0 0
    %1233 = vmatpush.bf16.msra.mxu0 0
    %1234 = vmatpush.bf16.msra.mxu0 0
    %1235 = vmatpush.bf16.msra.mxu0 0
    %1236 = vmatpush.bf16.msra.mxu0 0
    %1237 = vmatpush.bf16.msra.mxu0 0
    %1238 = vmatpush.bf16.msra.mxu0 0
    %1239 = vmatpush.bf16.msra.mxu0 %v1188
    %1240 = vmatmul.bf16.gmra.mxu0 %v354
    %v1241 = vpop.f32.mrf.mxu0
    %v1242 = vadd.f32 0.0, %v1241
    %v1243 = vpop.f32.mrf.mxu0
    %v1244 = vadd.f32 0.0, %v1243
    %1245 = vmatmul.bf16.gmra.mxu0 %v357
    %v1246 = vpop.f32.mrf.mxu0
    %v1247 = vadd.f32 0.0, %v1246
    %v1248 = vpop.f32.mrf.mxu0
    %v1249 = vadd.f32 0.0, %v1248
    %1250 = vdwg.mxu0
    %v1251 = vadd.f32 %v1171, %v1204
    %v1252 = vadd.f32 %v1172, %v1223
    %v1253 = vadd.f32 %v1173, %v1242
    %v1254 = vadd.f32 %v1174, %v1206
    %v1255 = vadd.f32 %v1175, %v1225
    %v1256 = vadd.f32 %v1176, %v1244
    %v1257 = vadd.f32 %v1177, %v1209
    %v1258 = vadd.f32 %v1178, %v1228
    %v1259 = vadd.f32 %v1179, %v1247
    %v1260 = vadd.f32 %v1180, %v1211
    %v1261 = vadd.f32 %v1181, %v1230
    %v1262 = vadd.f32 %v1182, %v1249
    %1263 = vrot.lane.b32.xlu0 %v972, 109
    %v1264 = vpop.permute.xlu0 %1263
    %1265 = vrot.lane.b32.xlu0 %v973, 109
    %v1266 = vpop.permute.xlu0 %1265
    %1267 = vrot.lane.b32.xlu0 %v974, 109
    %v1268 = vpop.permute.xlu0 %1267
    %v1269 = vsel %vm449, %v1264, %v1266
    %v1270 = vsel %vm449, %v1266, %v1268
    %1274 = vmatpush.bf16.msra.mxu0 0
    %1275 = vmatpush.bf16.msra.mxu0 0
    %1276 = vmatpush.bf16.msra.mxu0 0
    %1277 = vmatpush.bf16.msra.mxu0 0
    %1278 = vmatpush.bf16.msra.mxu0 0
    %1279 = vmatpush.bf16.msra.mxu0 0
    %1280 = vmatpush.bf16.msra.mxu0 0
    %1281 = vmatpush.bf16.msra.mxu0 %v1269
    %1282 = vmatmul.bf16.gmra.mxu0 %v456
    %v1283 = vpop.f32.mrf.mxu0
    %v1284 = vadd.f32 0.0, %v1283
    %v1285 = vpop.f32.mrf.mxu0
    %v1286 = vadd.f32 0.0, %v1285
    %1287 = vmatmul.bf16.gmra.mxu0 %v459
    %v1288 = vpop.f32.mrf.mxu0
    %v1289 = vadd.f32 0.0, %v1288
    %v1290 = vpop.f32.mrf.mxu0
    %v1291 = vadd.f32 0.0, %v1290
    %1292 = vdwg.mxu0
    %1293 = vmatpush.bf16.msra.mxu0 0
    %1294 = vmatpush.bf16.msra.mxu0 0
    %1295 = vmatpush.bf16.msra.mxu0 0
    %1296 = vmatpush.bf16.msra.mxu0 0
    %1297 = vmatpush.bf16.msra.mxu0 0
    %1298 = vmatpush.bf16.msra.mxu0 0
    %1299 = vmatpush.bf16.msra.mxu0 0
    %1300 = vmatpush.bf16.msra.mxu0 %v1270
    %1301 = vmatmul.bf16.gmra.mxu0 %v456
    %v1302 = vpop.f32.mrf.mxu0
    %v1303 = vadd.f32 0.0, %v1302
    %v1304 = vpop.f32.mrf.mxu0
    %v1305 = vadd.f32 0.0, %v1304
    %1306 = vmatmul.bf16.gmra.mxu0 %v459
    %v1307 = vpop.f32.mrf.mxu0
    %v1308 = vadd.f32 0.0, %v1307
    %v1309 = vpop.f32.mrf.mxu0
    %v1310 = vadd.f32 0.0, %v1309
    %1311 = vdwg.mxu0
    %1312 = vmatpush.bf16.msra.mxu0 0
    %1313 = vmatpush.bf16.msra.mxu0 0
    %1314 = vmatpush.bf16.msra.mxu0 0
    %1315 = vmatpush.bf16.msra.mxu0 0
    %1316 = vmatpush.bf16.msra.mxu0 0
    %1317 = vmatpush.bf16.msra.mxu0 0
    %1318 = vmatpush.bf16.msra.mxu0 0
    %1319 = vmatpush.bf16.msra.mxu0 %v1268
    %1320 = vmatmul.bf16.gmra.mxu0 %v456
    %v1321 = vpop.f32.mrf.mxu0
    %v1322 = vadd.f32 0.0, %v1321
    %v1323 = vpop.f32.mrf.mxu0
    %v1324 = vadd.f32 0.0, %v1323
    %1325 = vmatmul.bf16.gmra.mxu0 %v459
    %v1326 = vpop.f32.mrf.mxu0
    %v1327 = vadd.f32 0.0, %v1326
    %v1328 = vpop.f32.mrf.mxu0
    %v1329 = vadd.f32 0.0, %v1328
    %1330 = vdwg.mxu0
    %v1331 = vadd.f32 %v1251, %v1284
    %v1332 = vadd.f32 %v1252, %v1303
    %v1333 = vadd.f32 %v1253, %v1322
    %v1334 = vadd.f32 %v1254, %v1286
    %v1335 = vadd.f32 %v1255, %v1305
    %v1336 = vadd.f32 %v1256, %v1324
    %v1337 = vadd.f32 %v1257, %v1289
    %v1338 = vadd.f32 %v1258, %v1308
    %v1339 = vadd.f32 %v1259, %v1327
    %v1340 = vadd.f32 %v1260, %v1291
    %v1341 = vadd.f32 %v1261, %v1310
    %v1342 = vadd.f32 %v1262, %v1329
    %1343 = vrot.lane.b32.xlu0 %v972, 108
    %v1344 = vpop.permute.xlu0 %1343
    %1345 = vrot.lane.b32.xlu0 %v973, 108
    %v1346 = vpop.permute.xlu0 %1345
    %1347 = vrot.lane.b32.xlu0 %v974, 108
    %v1348 = vpop.permute.xlu0 %1347
    %v1349 = vsel %vm551, %v1344, %v1346
    %v1350 = vsel %vm551, %v1346, %v1348
    %1354 = vmatpush.bf16.msra.mxu0 0
    %1355 = vmatpush.bf16.msra.mxu0 0
    %1356 = vmatpush.bf16.msra.mxu0 0
    %1357 = vmatpush.bf16.msra.mxu0 0
    %1358 = vmatpush.bf16.msra.mxu0 0
    %1359 = vmatpush.bf16.msra.mxu0 0
    %1360 = vmatpush.bf16.msra.mxu0 0
    %1361 = vmatpush.bf16.msra.mxu0 %v1349
    %1362 = vmatmul.bf16.gmra.mxu0 %v558
    %v1363 = vpop.f32.mrf.mxu0
    %v1364 = vadd.f32 0.0, %v1363
    %v1365 = vpop.f32.mrf.mxu0
    %v1366 = vadd.f32 0.0, %v1365
    %1367 = vmatmul.bf16.gmra.mxu0 %v561
    %v1368 = vpop.f32.mrf.mxu0
    %v1369 = vadd.f32 0.0, %v1368
    %v1370 = vpop.f32.mrf.mxu0
    %v1371 = vadd.f32 0.0, %v1370
    %1372 = vdwg.mxu0
    %1373 = vmatpush.bf16.msra.mxu0 0
    %1374 = vmatpush.bf16.msra.mxu0 0
    %1375 = vmatpush.bf16.msra.mxu0 0
    %1376 = vmatpush.bf16.msra.mxu0 0
    %1377 = vmatpush.bf16.msra.mxu0 0
    %1378 = vmatpush.bf16.msra.mxu0 0
    %1379 = vmatpush.bf16.msra.mxu0 0
    %1380 = vmatpush.bf16.msra.mxu0 %v1350
    %1381 = vmatmul.bf16.gmra.mxu0 %v558
    %v1382 = vpop.f32.mrf.mxu0
    %v1383 = vadd.f32 0.0, %v1382
    %v1384 = vpop.f32.mrf.mxu0
    %v1385 = vadd.f32 0.0, %v1384
    %1386 = vmatmul.bf16.gmra.mxu0 %v561
    %v1387 = vpop.f32.mrf.mxu0
    %v1388 = vadd.f32 0.0, %v1387
    %v1389 = vpop.f32.mrf.mxu0
    %v1390 = vadd.f32 0.0, %v1389
    %1391 = vdwg.mxu0
    %1392 = vmatpush.bf16.msra.mxu0 0
    %1393 = vmatpush.bf16.msra.mxu0 0
    %1394 = vmatpush.bf16.msra.mxu0 0
    %1395 = vmatpush.bf16.msra.mxu0 0
    %1396 = vmatpush.bf16.msra.mxu0 0
    %1397 = vmatpush.bf16.msra.mxu0 0
    %1398 = vmatpush.bf16.msra.mxu0 0
    %1399 = vmatpush.bf16.msra.mxu0 %v1348
    %1400 = vmatmul.bf16.gmra.mxu0 %v558
    %v1401 = vpop.f32.mrf.mxu0
    %v1402 = vadd.f32 0.0, %v1401
    %v1403 = vpop.f32.mrf.mxu0
    %v1404 = vadd.f32 0.0, %v1403
    %1405 = vmatmul.bf16.gmra.mxu0 %v561
    %v1406 = vpop.f32.mrf.mxu0
    %v1407 = vadd.f32 0.0, %v1406
    %v1408 = vpop.f32.mrf.mxu0
    %v1409 = vadd.f32 0.0, %v1408
    %1410 = vdwg.mxu0
    %v1411 = vadd.f32 %v1331, %v1364
    %v1412 = vadd.f32 %v1332, %v1383
    %v1413 = vadd.f32 %v1333, %v1402
    %v1414 = vadd.f32 %v1334, %v1366
    %v1415 = vadd.f32 %v1335, %v1385
    %v1416 = vadd.f32 %v1336, %v1404
    %v1417 = vadd.f32 %v1337, %v1369
    %v1418 = vadd.f32 %v1338, %v1388
    %v1419 = vadd.f32 %v1339, %v1407
    %v1420 = vadd.f32 %v1340, %v1371
    %v1421 = vadd.f32 %v1341, %v1390
    %v1422 = vadd.f32 %v1342, %v1409
    %1423 = vrot.lane.b32.xlu0 %v972, 92
    %v1424 = vpop.permute.xlu0 %1423
    %1425 = vrot.lane.b32.xlu0 %v973, 92
    %v1426 = vpop.permute.xlu0 %1425
    %1427 = vrot.lane.b32.xlu0 %v974, 92
    %v1428 = vpop.permute.xlu0 %1427
    %v1429 = vsel %vm653, %v1424, %v1426
    %v1430 = vsel %vm653, %v1426, %v1428
    %1434 = vmatpush.bf16.msra.mxu0 0
    %1435 = vmatpush.bf16.msra.mxu0 0
    %1436 = vmatpush.bf16.msra.mxu0 0
    %1437 = vmatpush.bf16.msra.mxu0 0
    %1438 = vmatpush.bf16.msra.mxu0 0
    %1439 = vmatpush.bf16.msra.mxu0 0
    %1440 = vmatpush.bf16.msra.mxu0 0
    %1441 = vmatpush.bf16.msra.mxu0 %v1429
    %1442 = vmatmul.bf16.gmra.mxu0 %v660
    %v1443 = vpop.f32.mrf.mxu0
    %v1444 = vadd.f32 0.0, %v1443
    %v1445 = vpop.f32.mrf.mxu0
    %v1446 = vadd.f32 0.0, %v1445
    %1447 = vmatmul.bf16.gmra.mxu0 %v663
    %v1448 = vpop.f32.mrf.mxu0
    %v1449 = vadd.f32 0.0, %v1448
    %v1450 = vpop.f32.mrf.mxu0
    %v1451 = vadd.f32 0.0, %v1450
    %1452 = vdwg.mxu0
    %1453 = vmatpush.bf16.msra.mxu0 0
    %1454 = vmatpush.bf16.msra.mxu0 0
    %1455 = vmatpush.bf16.msra.mxu0 0
    %1456 = vmatpush.bf16.msra.mxu0 0
    %1457 = vmatpush.bf16.msra.mxu0 0
    %1458 = vmatpush.bf16.msra.mxu0 0
    %1459 = vmatpush.bf16.msra.mxu0 0
    %1460 = vmatpush.bf16.msra.mxu0 %v1430
    %1461 = vmatmul.bf16.gmra.mxu0 %v660
    %v1462 = vpop.f32.mrf.mxu0
    %v1463 = vadd.f32 0.0, %v1462
    %v1464 = vpop.f32.mrf.mxu0
    %v1465 = vadd.f32 0.0, %v1464
    %1466 = vmatmul.bf16.gmra.mxu0 %v663
    %v1467 = vpop.f32.mrf.mxu0
    %v1468 = vadd.f32 0.0, %v1467
    %v1469 = vpop.f32.mrf.mxu0
    %v1470 = vadd.f32 0.0, %v1469
    %1471 = vdwg.mxu0
    %1472 = vmatpush.bf16.msra.mxu0 0
    %1473 = vmatpush.bf16.msra.mxu0 0
    %1474 = vmatpush.bf16.msra.mxu0 0
    %1475 = vmatpush.bf16.msra.mxu0 0
    %1476 = vmatpush.bf16.msra.mxu0 0
    %1477 = vmatpush.bf16.msra.mxu0 0
    %1478 = vmatpush.bf16.msra.mxu0 0
    %1479 = vmatpush.bf16.msra.mxu0 %v1428
    %1480 = vmatmul.bf16.gmra.mxu0 %v660
    %v1481 = vpop.f32.mrf.mxu0
    %v1482 = vadd.f32 0.0, %v1481
    %v1483 = vpop.f32.mrf.mxu0
    %v1484 = vadd.f32 0.0, %v1483
    %1485 = vmatmul.bf16.gmra.mxu0 %v663
    %v1486 = vpop.f32.mrf.mxu0
    %v1487 = vadd.f32 0.0, %v1486
    %v1488 = vpop.f32.mrf.mxu0
    %v1489 = vadd.f32 0.0, %v1488
    %1490 = vdwg.mxu0
    %v1491 = vadd.f32 %v1411, %v1444
    %v1492 = vadd.f32 %v1412, %v1463
    %v1493 = vadd.f32 %v1413, %v1482
    %v1494 = vadd.f32 %v1414, %v1446
    %v1495 = vadd.f32 %v1415, %v1465
    %v1496 = vadd.f32 %v1416, %v1484
    %v1497 = vadd.f32 %v1417, %v1449
    %v1498 = vadd.f32 %v1418, %v1468
    %v1499 = vadd.f32 %v1419, %v1487
    %v1500 = vadd.f32 %v1420, %v1451
    %v1501 = vadd.f32 %v1421, %v1470
    %v1502 = vadd.f32 %v1422, %v1489
    %1503 = vrot.lane.b32.xlu0 %v972, 91
    %v1504 = vpop.permute.xlu0 %1503
    %1505 = vrot.lane.b32.xlu0 %v973, 91
    %v1506 = vpop.permute.xlu0 %1505
    %1507 = vrot.lane.b32.xlu0 %v974, 91
    %v1508 = vpop.permute.xlu0 %1507
    %v1509 = vsel %vm755, %v1504, %v1506
    %v1510 = vsel %vm755, %v1506, %v1508
    %1514 = vmatpush.bf16.msra.mxu0 0
    %1515 = vmatpush.bf16.msra.mxu0 0
    %1516 = vmatpush.bf16.msra.mxu0 0
    %1517 = vmatpush.bf16.msra.mxu0 0
    %1518 = vmatpush.bf16.msra.mxu0 0
    %1519 = vmatpush.bf16.msra.mxu0 0
    %1520 = vmatpush.bf16.msra.mxu0 0
    %1521 = vmatpush.bf16.msra.mxu0 %v1509
    %1522 = vmatmul.bf16.gmra.mxu0 %v762
    %v1523 = vpop.f32.mrf.mxu0
    %v1524 = vadd.f32 0.0, %v1523
    %v1525 = vpop.f32.mrf.mxu0
    %v1526 = vadd.f32 0.0, %v1525
    %1527 = vmatmul.bf16.gmra.mxu0 %v765
    %v1528 = vpop.f32.mrf.mxu0
    %v1529 = vadd.f32 0.0, %v1528
    %v1530 = vpop.f32.mrf.mxu0
    %v1531 = vadd.f32 0.0, %v1530
    %1532 = vdwg.mxu0
    %1533 = vmatpush.bf16.msra.mxu0 0
    %1534 = vmatpush.bf16.msra.mxu0 0
    %1535 = vmatpush.bf16.msra.mxu0 0
    %1536 = vmatpush.bf16.msra.mxu0 0
    %1537 = vmatpush.bf16.msra.mxu0 0
    %1538 = vmatpush.bf16.msra.mxu0 0
    %1539 = vmatpush.bf16.msra.mxu0 0
    %1540 = vmatpush.bf16.msra.mxu0 %v1510
    %1541 = vmatmul.bf16.gmra.mxu0 %v762
    %v1542 = vpop.f32.mrf.mxu0
    %v1543 = vadd.f32 0.0, %v1542
    %v1544 = vpop.f32.mrf.mxu0
    %v1545 = vadd.f32 0.0, %v1544
    %1546 = vmatmul.bf16.gmra.mxu0 %v765
    %v1547 = vpop.f32.mrf.mxu0
    %v1548 = vadd.f32 0.0, %v1547
    %v1549 = vpop.f32.mrf.mxu0
    %v1550 = vadd.f32 0.0, %v1549
    %1551 = vdwg.mxu0
    %1552 = vmatpush.bf16.msra.mxu0 0
    %1553 = vmatpush.bf16.msra.mxu0 0
    %1554 = vmatpush.bf16.msra.mxu0 0
    %1555 = vmatpush.bf16.msra.mxu0 0
    %1556 = vmatpush.bf16.msra.mxu0 0
    %1557 = vmatpush.bf16.msra.mxu0 0
    %1558 = vmatpush.bf16.msra.mxu0 0
    %1559 = vmatpush.bf16.msra.mxu0 %v1508
    %1560 = vmatmul.bf16.gmra.mxu0 %v762
    %v1561 = vpop.f32.mrf.mxu0
    %v1562 = vadd.f32 0.0, %v1561
    %v1563 = vpop.f32.mrf.mxu0
    %v1564 = vadd.f32 0.0, %v1563
    %1565 = vmatmul.bf16.gmra.mxu0 %v765
    %v1566 = vpop.f32.mrf.mxu0
    %v1567 = vadd.f32 0.0, %v1566
    %v1568 = vpop.f32.mrf.mxu0
    %v1569 = vadd.f32 0.0, %v1568
    %1570 = vdwg.mxu0
    %v1571 = vadd.f32 %v1491, %v1524
    %v1572 = vadd.f32 %v1492, %v1543
    %v1573 = vadd.f32 %v1493, %v1562
    %v1574 = vadd.f32 %v1494, %v1526
    %v1575 = vadd.f32 %v1495, %v1545
    %v1576 = vadd.f32 %v1496, %v1564
    %v1577 = vadd.f32 %v1497, %v1529
    %v1578 = vadd.f32 %v1498, %v1548
    %v1579 = vadd.f32 %v1499, %v1567
    %v1580 = vadd.f32 %v1500, %v1531
    %v1581 = vadd.f32 %v1501, %v1550
    %v1582 = vadd.f32 %v1502, %v1569
    %1583 = vrot.lane.b32.xlu0 %v972, 90
    %v1584 = vpop.permute.xlu0 %1583
    %1585 = vrot.lane.b32.xlu0 %v973, 90
    %v1586 = vpop.permute.xlu0 %1585
    %1587 = vrot.lane.b32.xlu0 %v974, 90
    %v1588 = vpop.permute.xlu0 %1587
    %v1589 = vsel %vm857, %v1584, %v1586
    %v1590 = vsel %vm857, %v1586, %v1588
    %1594 = vmatpush.bf16.msra.mxu0 0
    %1595 = vmatpush.bf16.msra.mxu0 0
    %1596 = vmatpush.bf16.msra.mxu0 0
    %1597 = vmatpush.bf16.msra.mxu0 0
    %1598 = vmatpush.bf16.msra.mxu0 0
    %1599 = vmatpush.bf16.msra.mxu0 0
    %1600 = vmatpush.bf16.msra.mxu0 0
    %1601 = vmatpush.bf16.msra.mxu0 %v1589
    %1602 = vmatmul.bf16.gmra.mxu0 %v864
    %v1603 = vpop.f32.mrf.mxu0
    %v1604 = vadd.f32 0.0, %v1603
    %v1605 = vpop.f32.mrf.mxu0
    %v1606 = vadd.f32 0.0, %v1605
    %1607 = vmatmul.bf16.gmra.mxu0 %v867
    %v1608 = vpop.f32.mrf.mxu0
    %v1609 = vadd.f32 0.0, %v1608
    %v1610 = vpop.f32.mrf.mxu0
    %v1611 = vadd.f32 0.0, %v1610
    %1612 = vdwg.mxu0
    %1613 = vmatpush.bf16.msra.mxu0 0
    %1614 = vmatpush.bf16.msra.mxu0 0
    %1615 = vmatpush.bf16.msra.mxu0 0
    %1616 = vmatpush.bf16.msra.mxu0 0
    %1617 = vmatpush.bf16.msra.mxu0 0
    %1618 = vmatpush.bf16.msra.mxu0 0
    %1619 = vmatpush.bf16.msra.mxu0 0
    %1620 = vmatpush.bf16.msra.mxu0 %v1590
    %1621 = vmatmul.bf16.gmra.mxu0 %v864
    %v1622 = vpop.f32.mrf.mxu0
    %v1623 = vadd.f32 0.0, %v1622
    %v1624 = vpop.f32.mrf.mxu0
    %v1625 = vadd.f32 0.0, %v1624
    %1626 = vmatmul.bf16.gmra.mxu0 %v867
    %v1627 = vpop.f32.mrf.mxu0
    %v1628 = vadd.f32 0.0, %v1627
    %v1629 = vpop.f32.mrf.mxu0
    %v1630 = vadd.f32 0.0, %v1629
    %1631 = vdwg.mxu0
    %1632 = vmatpush.bf16.msra.mxu0 0
    %1633 = vmatpush.bf16.msra.mxu0 0
    %1634 = vmatpush.bf16.msra.mxu0 0
    %1635 = vmatpush.bf16.msra.mxu0 0
    %1636 = vmatpush.bf16.msra.mxu0 0
    %1637 = vmatpush.bf16.msra.mxu0 0
    %1638 = vmatpush.bf16.msra.mxu0 0
    %1639 = vmatpush.bf16.msra.mxu0 %v1588
    %1640 = vmatmul.bf16.gmra.mxu0 %v864
    %v1641 = vpop.f32.mrf.mxu0
    %v1642 = vadd.f32 0.0, %v1641
    %v1643 = vpop.f32.mrf.mxu0
    %v1644 = vadd.f32 0.0, %v1643
    %1645 = vmatmul.bf16.gmra.mxu0 %v867
    %v1646 = vpop.f32.mrf.mxu0
    %v1647 = vadd.f32 0.0, %v1646
    %v1648 = vpop.f32.mrf.mxu0
    %v1649 = vadd.f32 0.0, %v1648
    %1650 = vdwg.mxu0
    %v1651 = vadd.f32 %v1571, %v1604
    %v1652 = vadd.f32 %v1572, %v1623
    %v1653 = vadd.f32 %v1573, %v1642
    %v1654 = vadd.f32 %v1574, %v1606
    %v1655 = vadd.f32 %v1575, %v1625
    %v1656 = vadd.f32 %v1576, %v1644
    %v1657 = vadd.f32 %v1577, %v1609
    %v1658 = vadd.f32 %v1578, %v1628
    %v1659 = vadd.f32 %v1579, %v1647
    %v1660 = vadd.f32 %v1580, %v1611
    %v1661 = vadd.f32 %v1581, %v1630
    %v1662 = vadd.f32 %v1582, %v1649
    %v1663 = vmul.f32 %v1651, %v939
    %v1664 = vmul.f32 %v1652, %v940
    %v1665 = vmul.f32 %v1653, %v941
    %v1666 = vmul.f32 %v1654, %v939
    %v1667 = vmul.f32 %v1655, %v940
    %v1668 = vmul.f32 %v1656, %v941
    %v1669 = vmul.f32 %v1657, %v939
    %v1670 = vmul.f32 %v1658, %v940
    %v1671 = vmul.f32 %v1659, %v941
    %v1672 = vmul.f32 %v1660, %v939
    %v1673 = vmul.f32 %v1661, %v940
    %v1674 = vmul.f32 %v1662, %v941
    %v1675 = vadd.f32 %v945, %v946
    %vm1676 = vcmask 556032
    %v1677 = vsel %vm1676, %v947, 0.0
    %v1678 = vadd.f32 %v1675, %v1677
    %1679 = vadd.xlane.f32.xlu0 %v1678
    %v1680 = vpop.xlane.xlu0 %1679
    %v1681 = vadd.f32 %v948, %v949
    %v1682 = vsel %vm1676, %v950, 0.0
    %v1683 = vadd.f32 %v1681, %v1682
    %1684 = vadd.xlane.f32.xlu0 %v1683
    %v1685 = vpop.xlane.xlu0 %1684
    %v1686 = vadd.f32 %v951, %v952
    %v1687 = vsel %vm1676, %v953, 0.0
    %v1688 = vadd.f32 %v1686, %v1687
    %1689 = vadd.xlane.f32.xlu0 %v1688
    %v1690 = vpop.xlane.xlu0 %1689
    %v1691 = vadd.f32 %v954, %v955
    %v1692 = vsel %vm1676, %v956, 0.0
    %v1693 = vadd.f32 %v1691, %v1692
    %1694 = vadd.xlane.f32.xlu0 %v1693
    %v1695 = vpop.xlane.xlu0 %1694
    %v1696 = vadd.f32 %v1663, %v1664
    %v1697 = vsel %vm1676, %v1665, 0.0
    %v1698 = vadd.f32 %v1696, %v1697
    %1699 = vadd.xlane.f32.xlu0 %v1698
    %v1700 = vpop.xlane.xlu0 %1699
    %v1701 = vadd.f32 %v1666, %v1667
    %v1702 = vsel %vm1676, %v1668, 0.0
    %v1703 = vadd.f32 %v1701, %v1702
    %1704 = vadd.xlane.f32.xlu0 %v1703
    %v1705 = vpop.xlane.xlu0 %1704
    %v1706 = vadd.f32 %v1669, %v1670
    %v1707 = vsel %vm1676, %v1671, 0.0
    %v1708 = vadd.f32 %v1706, %v1707
    %1709 = vadd.xlane.f32.xlu0 %v1708
    %v1710 = vpop.xlane.xlu0 %1709
    %v1711 = vadd.f32 %v1672, %v1673
    %v1712 = vsel %vm1676, %v1674, 0.0
    %v1713 = vadd.f32 %v1711, %v1712
    %1714 = vadd.xlane.f32.xlu0 %v1713
    %v1715 = vpop.xlane.xlu0 %1714
    %v1716 = vadd.f32 %v1680, %v1700
    %v1717 = vadd.f32 %v1685, %v1705
    %v1718 = vadd.f32 %v1690, %v1710
    %v1719 = vadd.f32 %v1695, %v1715
    %v1720 = vadd.f32 %v1716, %v1717
    %v1721 = vadd.f32 %v1720, %v1718
    %v1722 = vadd.f32 %v1721, %v1719
    %v1723 = vmul.f32 %v1722, 0.00048828125
    %1725 = vset.pattern.permute.xlu0 0
    %1726 = vperm.xlu0 %1725, %v1723
    %v1727 = vpop.permute.xlu0 %1726
    %v1729 = vsub.f32 %v945, %v1727
    %v1730 = vsub.f32 %v946, %v1727
    %v1731 = vsub.f32 %v947, %v1727
    %v1732 = vsub.f32 %v948, %v1727
    %v1733 = vsub.f32 %v949, %v1727
    %v1734 = vsub.f32 %v950, %v1727
    %v1735 = vsub.f32 %v951, %v1727
    %v1736 = vsub.f32 %v952, %v1727
    %v1737 = vsub.f32 %v953, %v1727
    %v1738 = vsub.f32 %v954, %v1727
    %v1739 = vsub.f32 %v955, %v1727
    %v1740 = vsub.f32 %v956, %v1727
    %v1741 = vmul.f32 %v1729, %v939
    %v1742 = vmul.f32 %v1730, %v940
    %v1743 = vmul.f32 %v1731, %v941
    %v1744 = vmul.f32 %v1732, %v939
    %v1745 = vmul.f32 %v1733, %v940
    %v1746 = vmul.f32 %v1734, %v941
    %v1747 = vmul.f32 %v1735, %v939
    %v1748 = vmul.f32 %v1736, %v940
    %v1749 = vmul.f32 %v1737, %v941
    %v1750 = vmul.f32 %v1738, %v939
    %v1751 = vmul.f32 %v1739, %v940
    %v1752 = vmul.f32 %v1740, %v941
    %v1753 = vmul.f32 %v1741, %v1741
    %v1754 = vmul.f32 %v1742, %v1742
    %v1755 = vmul.f32 %v1743, %v1743
    %v1756 = vmul.f32 %v1744, %v1744
    %v1757 = vmul.f32 %v1745, %v1745
    %v1758 = vmul.f32 %v1746, %v1746
    %v1759 = vmul.f32 %v1747, %v1747
    %v1760 = vmul.f32 %v1748, %v1748
    %v1761 = vmul.f32 %v1749, %v1749
    %v1762 = vmul.f32 %v1750, %v1750
    %v1763 = vmul.f32 %v1751, %v1751
    %v1764 = vmul.f32 %v1752, %v1752
    %v1765 = vadd.f32 %v1753, %v1754
    %v1766 = vsel %vm1676, %v1755, 0.0
    %v1767 = vadd.f32 %v1765, %v1766
    %1768 = vadd.xlane.f32.xlu0 %v1767
    %v1769 = vpop.xlane.xlu0 %1768
    %v1770 = vadd.f32 %v1756, %v1757
    %v1771 = vsel %vm1676, %v1758, 0.0
    %v1772 = vadd.f32 %v1770, %v1771
    %1773 = vadd.xlane.f32.xlu0 %v1772
    %v1774 = vpop.xlane.xlu0 %1773
    %v1775 = vadd.f32 %v1759, %v1760
    %v1776 = vsel %vm1676, %v1761, 0.0
    %v1777 = vadd.f32 %v1775, %v1776
    %1778 = vadd.xlane.f32.xlu0 %v1777
    %v1779 = vpop.xlane.xlu0 %1778
    %v1780 = vadd.f32 %v1762, %v1763
    %v1781 = vsel %vm1676, %v1764, 0.0
    %v1782 = vadd.f32 %v1780, %v1781
    %1783 = vadd.xlane.f32.xlu0 %v1782
    %v1784 = vpop.xlane.xlu0 %1783
    %v1785 = vsub.f32 %v1663, %v1727
    %v1786 = vsub.f32 %v1664, %v1727
    %v1787 = vsub.f32 %v1665, %v1727
    %v1788 = vsub.f32 %v1666, %v1727
    %v1789 = vsub.f32 %v1667, %v1727
    %v1790 = vsub.f32 %v1668, %v1727
    %v1791 = vsub.f32 %v1669, %v1727
    %v1792 = vsub.f32 %v1670, %v1727
    %v1793 = vsub.f32 %v1671, %v1727
    %v1794 = vsub.f32 %v1672, %v1727
    %v1795 = vsub.f32 %v1673, %v1727
    %v1796 = vsub.f32 %v1674, %v1727
    %v1797 = vmul.f32 %v1785, %v939
    %v1798 = vmul.f32 %v1786, %v940
    %v1799 = vmul.f32 %v1787, %v941
    %v1800 = vmul.f32 %v1788, %v939
    %v1801 = vmul.f32 %v1789, %v940
    %v1802 = vmul.f32 %v1790, %v941
    %v1803 = vmul.f32 %v1791, %v939
    %v1804 = vmul.f32 %v1792, %v940
    %v1805 = vmul.f32 %v1793, %v941
    %v1806 = vmul.f32 %v1794, %v939
    %v1807 = vmul.f32 %v1795, %v940
    %v1808 = vmul.f32 %v1796, %v941
    %v1809 = vmul.f32 %v1797, %v1797
    %v1810 = vmul.f32 %v1798, %v1798
    %v1811 = vmul.f32 %v1799, %v1799
    %v1812 = vmul.f32 %v1800, %v1800
    %v1813 = vmul.f32 %v1801, %v1801
    %v1814 = vmul.f32 %v1802, %v1802
    %v1815 = vmul.f32 %v1803, %v1803
    %v1816 = vmul.f32 %v1804, %v1804
    %v1817 = vmul.f32 %v1805, %v1805
    %v1818 = vmul.f32 %v1806, %v1806
    %v1819 = vmul.f32 %v1807, %v1807
    %v1820 = vmul.f32 %v1808, %v1808
    %v1821 = vadd.f32 %v1809, %v1810
    %v1822 = vsel %vm1676, %v1811, 0.0
    %v1823 = vadd.f32 %v1821, %v1822
    %1824 = vadd.xlane.f32.xlu0 %v1823
    %v1825 = vpop.xlane.xlu0 %1824
    %v1826 = vadd.f32 %v1812, %v1813
    %v1827 = vsel %vm1676, %v1814, 0.0
    %v1828 = vadd.f32 %v1826, %v1827
    %1829 = vadd.xlane.f32.xlu0 %v1828
    %v1830 = vpop.xlane.xlu0 %1829
    %v1831 = vadd.f32 %v1815, %v1816
    %v1832 = vsel %vm1676, %v1817, 0.0
    %v1833 = vadd.f32 %v1831, %v1832
    %1834 = vadd.xlane.f32.xlu0 %v1833
    %v1835 = vpop.xlane.xlu0 %1834
    %v1836 = vadd.f32 %v1818, %v1819
    %v1837 = vsel %vm1676, %v1820, 0.0
    %v1838 = vadd.f32 %v1836, %v1837
    %1839 = vadd.xlane.f32.xlu0 %v1838
    %v1840 = vpop.xlane.xlu0 %1839
    %v1841 = vadd.f32 %v1769, %v1825
    %v1842 = vadd.f32 %v1774, %v1830
    %v1843 = vadd.f32 %v1779, %v1835
    %v1844 = vadd.f32 %v1784, %v1840
    %v1845 = vadd.f32 %v1841, %v1842
    %v1846 = vadd.f32 %v1845, %v1843
    %v1847 = vadd.f32 %v1846, %v1844
    %v1848 = vmul.f32 %v1847, 0.00048828125
    %v1849 = vld [vmem:[%s2] sm:$0xff]
    %v1850 = vadd.f32 %v1848, 1e-05
    %v1851 = vrsqrt.pop %v1850
    %v1852 = vmul.f32 %v1851, %v1850
    %v1853 = vmul.f32 %v1852, %v1851
    %v1854 = vmul.f32 0.5, %v1853
    %v1855 = vsub.f32 1.5, %v1854
    %v1856 = vmul.f32 %v1851, %v1855
    %vm1857 = vweird.f32 %v1850
    %vm1858 = vweird.f32 %v1851
    %vm1859 = vmor %vm1857, %vm1858
    %v1860 = vsel %vm1859, %v1851, %v1856
    %v1861 = vmul.f32 %v1849, %v1860
    %v1862 = vld [vmem:[%s3] sm:$0xff]
    %1864 = vset.pattern.permute.xlu0 0
    %1865 = vperm.xlu0 %1864, %v1861
    %v1866 = vpop.permute.xlu0 %1865
    %v1868 = vmul.f32 %v1729, %v1866
    %v1869 = vmul.f32 %v1730, %v1866
    %v1870 = vmul.f32 %v1731, %v1866
    %v1871 = vmul.f32 %v1732, %v1866
    %v1872 = vmul.f32 %v1733, %v1866
    %v1873 = vmul.f32 %v1734, %v1866
    %v1874 = vmul.f32 %v1735, %v1866
    %v1875 = vmul.f32 %v1736, %v1866
    %v1876 = vmul.f32 %v1737, %v1866
    %v1877 = vmul.f32 %v1738, %v1866
    %v1878 = vmul.f32 %v1739, %v1866
    %v1879 = vmul.f32 %v1740, %v1866
    %1881 = vset.pattern.permute.xlu0 0
    %1882 = vperm.xlu0 %1881, %v1862
    %v1883 = vpop.permute.xlu0 %1882
    %v1885 = vadd.f32 %v1868, %v1883
    %v1886 = vadd.f32 %v1869, %v1883
    %v1887 = vadd.f32 %v1870, %v1883
    %v1888 = vadd.f32 %v1871, %v1883
    %v1889 = vadd.f32 %v1872, %v1883
    %v1890 = vadd.f32 %v1873, %v1883
    %v1891 = vadd.f32 %v1874, %v1883
    %v1892 = vadd.f32 %v1875, %v1883
    %v1893 = vadd.f32 %v1876, %v1883
    %v1894 = vadd.f32 %v1877, %v1883
    %v1895 = vadd.f32 %v1878, %v1883
    %v1896 = vadd.f32 %v1879, %v1883
    %v1897 = vmax.f32 %v1885, 0.0
    %v1898 = vmax.f32 %v1886, 0.0
    %v1899 = vmax.f32 %v1887, 0.0
    %v1900 = vmax.f32 %v1888, 0.0
    %v1901 = vmax.f32 %v1889, 0.0
    %v1902 = vmax.f32 %v1890, 0.0
    %v1903 = vmax.f32 %v1891, 0.0
    %v1904 = vmax.f32 %v1892, 0.0
    %v1905 = vmax.f32 %v1893, 0.0
    %v1906 = vmax.f32 %v1894, 0.0
    %v1907 = vmax.f32 %v1895, 0.0
    %v1908 = vmax.f32 %v1896, 0.0
    %v1909 = vpack.c.bf16 %v1898, %v1897
    %v1910 = vpack.c.bf16 %v1899, %v1899
    %v1911 = vpack.c.bf16 %v1901, %v1900
    %v1912 = vpack.c.bf16 %v1902, %v1902
    %v1913 = vpack.c.bf16 %v1904, %v1903
    %v1914 = vpack.c.bf16 %v1905, %v1905
    %v1915 = vpack.c.bf16 %v1907, %v1906
    %v1916 = vpack.c.bf16 %v1908, %v1908
    %1917 = vst [vmem:[%s5] sm:$0xff] %v1909
    %vm1918 = vcmask 551936
    %1919 = vst.msk [vmem:[%s5 + $0x8] sm:$0xf] %vm1918, %v1910
    %1920 = vst [vmem:[%s5 + $0xc] sm:$0xff] %v1911
    %1921 = vst.msk [vmem:[%s5 + $0x14] sm:$0xf] %vm1918, %v1912
    %1922 = vst [vmem:[%s5 + $0x18] sm:$0xff] %v1913
    %1923 = vst.msk [vmem:[%s5 + $0x20] sm:$0xf] %vm1918, %v1914
    %1924 = vst [vmem:[%s5 + $0x24] sm:$0xff] %v1915
    %1925 = vst.msk [vmem:[%s5 + $0x2c] sm:$0xf] %vm1918, %v1916
    %v1926 = vmul.f32 %v1785, %v1866
    %v1927 = vmul.f32 %v1786, %v1866
    %v1928 = vmul.f32 %v1787, %v1866
    %v1929 = vmul.f32 %v1788, %v1866
    %v1930 = vmul.f32 %v1789, %v1866
    %v1931 = vmul.f32 %v1790, %v1866
    %v1932 = vmul.f32 %v1791, %v1866
    %v1933 = vmul.f32 %v1792, %v1866
    %v1934 = vmul.f32 %v1793, %v1866
    %v1935 = vmul.f32 %v1794, %v1866
    %v1936 = vmul.f32 %v1795, %v1866
    %v1937 = vmul.f32 %v1796, %v1866
    %v1938 = vadd.f32 %v1926, %v1883
    %v1939 = vadd.f32 %v1927, %v1883
    %v1940 = vadd.f32 %v1928, %v1883
    %v1941 = vadd.f32 %v1929, %v1883
    %v1942 = vadd.f32 %v1930, %v1883
    %v1943 = vadd.f32 %v1931, %v1883
    %v1944 = vadd.f32 %v1932, %v1883
    %v1945 = vadd.f32 %v1933, %v1883
    %v1946 = vadd.f32 %v1934, %v1883
    %v1947 = vadd.f32 %v1935, %v1883
    %v1948 = vadd.f32 %v1936, %v1883
    %v1949 = vadd.f32 %v1937, %v1883
    %v1950 = vmax.f32 %v1938, 0.0
    %v1951 = vmax.f32 %v1939, 0.0
    %v1952 = vmax.f32 %v1940, 0.0
    %v1953 = vmax.f32 %v1941, 0.0
    %v1954 = vmax.f32 %v1942, 0.0
    %v1955 = vmax.f32 %v1943, 0.0
    %v1956 = vmax.f32 %v1944, 0.0
    %v1957 = vmax.f32 %v1945, 0.0
    %v1958 = vmax.f32 %v1946, 0.0
    %v1959 = vmax.f32 %v1947, 0.0
    %v1960 = vmax.f32 %v1948, 0.0
    %v1961 = vmax.f32 %v1949, 0.0
    %v1962 = vpack.c.bf16 %v1951, %v1950
    %v1963 = vpack.c.bf16 %v1952, %v1952
    %v1964 = vpack.c.bf16 %v1954, %v1953
    %v1965 = vpack.c.bf16 %v1955, %v1955
    %v1966 = vpack.c.bf16 %v1957, %v1956
    %v1967 = vpack.c.bf16 %v1958, %v1958
    %v1968 = vpack.c.bf16 %v1960, %v1959
    %v1969 = vpack.c.bf16 %v1961, %v1961
    %s1970 = scalar_lea.vmem %s5, 48
    %1971 = vst [vmem:[%s1970] sm:$0xff] %v1962
    %1972 = vst.msk [vmem:[%s1970 + $0x8] sm:$0xf] %vm1918, %v1963
    %1973 = vst [vmem:[%s1970 + $0xc] sm:$0xff] %v1964
    %1974 = vst.msk [vmem:[%s1970 + $0x14] sm:$0xf] %vm1918, %v1965
    %1975 = vst [vmem:[%s1970 + $0x18] sm:$0xff] %v1966
    %1976 = vst.msk [vmem:[%s1970 + $0x20] sm:$0xf] %vm1918, %v1967
    %1977 = vst [vmem:[%s1970 + $0x24] sm:$0xff] %v1968
    %1978 = vst.msk [vmem:[%s1970 + $0x2c] sm:$0xf] %vm1918, %v1969
    // Predicated region
    $region26: #{generator_forward.6} parent=1 // pred_check
      _
    $region27: #{generator_forward.6} parent=1 // pred_check_branch
      %1980 = sbr.rel (0) target = $region29
    $region28: #{generator_forward.6} parent=1 // pred_region
      _
    $region29: #{generator_forward.6} parent=1 // pred_fallthru
      _
    // Predicated region
    $region30: #{generator_forward.6} parent=1 // pred_check
      _
    $region31: #{generator_forward.6} parent=1 // pred_check_branch
      %1982 = sbr.rel (0) target = $region33
    $region32: #{generator_forward.6} parent=1 // pred_region
      _
    $region33: #{generator_forward.6} parent=1 // pred_fallthru
      _
    %1983 = vsyncpa [#allocation3], 1

// kernel: generator_forward.7
$region0: #{generator_forward.7}
  #allocation0 [shape = 'u32[]', space=smem, size = 0x4, offset = 0x4, fixed_abs, tag = 'smem constant byte address 0x4 - core index']
  #allocation1 [shape = 'u32[72,128]{1,0:T(1,128)}', space=vmem, size = 0x9000, scoped, tag = 'internal scratch']
  %s0 = inlined_call_operand.vmem [shape: bf16[2,8,1226], index: 0, kind: input, shape index: {}]
  %s1 = inlined_call_operand.vmem [shape: bf16[9,12,8], index: 1, kind: input, shape index: {}]
  %s2 = inlined_call_operand.vmem [shape: f32[12,1], index: 2, kind: input, shape index: {}]
  %s3 = inlined_call_operand.vmem [shape: f32[2,12,1156], index: 3, kind: output, shape index: {}]
  %s4 = sld [smem:[#allocation0]]
  $region45: #{generator_forward.7} parent=0
    _
  %s6 = ssub.s32 1, %s4
  %s7 = scalar_select 0, %s6, %s4
  loop: start=0, step=1, limit=4
  $region2: #{generator_forward.7} parent=0 // loop_pre_header
    _
  $region3: #{generator_forward.7} parent=0 // loop_header
    %s9 = sphi 0, %s13
    %p10 = scmp.ge.s32.totalorder %s9, 4
    %s19 = sphi 0, %s21
    %s22 = sphi 0, %s19
    %s23 = sphi 0, %s22
    %s39 = sphi 0, %s23
    %s43 = sphi 0, %s43
    %s45 = sphi 0, %s43
    %s46 = sphi 0, %s45
    %s60 = sphi 0, %s46
    %s64 = sphi 0, %s64
    %s66 = sphi 0, %s64
    %s67 = sphi 0, %s66
    %s81 = sphi 0, %s67
    %s87 = sphi 0, %s89
    %s90 = sphi 0, %s87
    %s91 = sphi 0, %s90
    %s107 = sphi 0, %s91
  $region4: #{generator_forward.7} parent=0 // loop_header_branch
    %12 = sbr.rel (%p10) target = $region8
  $region5: #{generator_forward.7} parent=0 // loop_body
    %s14 = ssub.s32 %s9, 1
    %s15 = ssub.s32 %s9, 2
    %s16 = sadd.s32 %s9, 1
    %s17 = ssub.s32 %s9, %s16
    %p18 = scmp.eq.s32.totalorder %s17, 0
    %s20 = sadd.s32 %s19, 1
    %s21 = scalar_select %p18, %s19, %s20
    %p24 = pneg %p18
    %p25 = scmp.eq.s32.totalorder %s9, 1
    %p26 = por %p24, %p25
    %p27 = scmp.ne.s32.totalorder %s19, %s22
    %p28 = scmp.eq.s32.totalorder %s9, 0
    %p29 = por %p27, %p28
    %p30 = scmp.ne.s32.totalorder %s19, %s22
    %p31 = scmp.eq.s32.totalorder %s14, 1
    %p32 = por %p30, %p31
    %p33 = scmp.ne.s32.totalorder %s22, %s23
    %p34 = scmp.eq.s32.totalorder %s14, 0
    %p35 = por %p33, %p34
    %p36 = scmp.ne.s32.totalorder %s22, %s23
    %p37 = scmp.eq.s32.totalorder %s15, 1
    %p38 = por %p36, %p37
    %p40 = scmp.ne.s32.totalorder %s23, %s39
    %p41 = scmp.eq.s32.totalorder %s15, 0
    %p42 = por %p40, %p41
    %s44 = sadd.s32 %s43, 1
    %p47 = scmp.eq.s32.totalorder %s9, 1
    %p48 = scmp.ne.s32.totalorder %s43, %s45
    %p49 = scmp.eq.s32.totalorder %s9, 0
    %p50 = por %p48, %p49
    %p51 = scmp.ne.s32.totalorder %s43, %s45
    %p52 = scmp.eq.s32.totalorder %s14, 1
    %p53 = por %p51, %p52
    %p54 = scmp.ne.s32.totalorder %s45, %s46
    %p55 = scmp.eq.s32.totalorder %s14, 0
    %p56 = por %p54, %p55
    %p57 = scmp.ne.s32.totalorder %s45, %s46
    %p58 = scmp.eq.s32.totalorder %s15, 1
    %p59 = por %p57, %p58
    %p61 = scmp.ne.s32.totalorder %s46, %s60
    %p62 = scmp.eq.s32.totalorder %s15, 0
    %p63 = por %p61, %p62
    %s65 = sadd.s32 %s64, 1
    %p68 = scmp.eq.s32.totalorder %s9, 1
    %p69 = scmp.ne.s32.totalorder %s64, %s66
    %p70 = scmp.eq.s32.totalorder %s9, 0
    %p71 = por %p69, %p70
    %p72 = scmp.ne.s32.totalorder %s64, %s66
    %p73 = scmp.eq.s32.totalorder %s14, 1
    %p74 = por %p72, %p73
    %p75 = scmp.ne.s32.totalorder %s66, %s67
    %p76 = scmp.eq.s32.totalorder %s14, 0
    %p77 = por %p75, %p76
    %p78 = scmp.ne.s32.totalorder %s66, %s67
    %p79 = scmp.eq.s32.totalorder %s15, 1
    %p80 = por %p78, %p79
    %p82 = scmp.ne.s32.totalorder %s67, %s81
    %p83 = scmp.eq.s32.totalorder %s15, 0
    %p84 = por %p82, %p83
    %s85 = ssub.s32 %s9, %s16
    %p86 = scmp.eq.s32.totalorder %s85, 0
    %s88 = sadd.s32 %s87, 1
    %s89 = scalar_select %p86, %s87, %s88
    %p92 = pneg %p86
    %p93 = scmp.eq.s32.totalorder %s9, 1
    %p94 = por %p92, %p93
    %p95 = scmp.ne.s32.totalorder %s87, %s90
    %p96 = scmp.eq.s32.totalorder %s9, 0
    %p97 = por %p95, %p96
    %p98 = scmp.ne.s32.totalorder %s87, %s90
    %p99 = scmp.eq.s32.totalorder %s14, 1
    %p100 = por %p98, %p99
    %p101 = scmp.ne.s32.totalorder %s90, %s91
    %p102 = scmp.eq.s32.totalorder %s14, 0
    %p103 = por %p101, %p102
    %p104 = scmp.ne.s32.totalorder %s90, %s91
    %p105 = scmp.eq.s32.totalorder %s15, 1
    %p106 = por %p104, %p105
    %p108 = scmp.ne.s32.totalorder %s91, %s107
    %p109 = scmp.eq.s32.totalorder %s15, 0
    %p110 = por %p108, %p109
    %p111 = scmp.le.s32.totalorder 1, %s9
    %p112 = scmp.lt.s32.totalorder %s9, 3
    %p113 = pnand %p111, %p112
    %p114 = pneg %p113
    // Predicated region
    $region9: #{generator_forward.7} parent=5 // pred_check
      _
    $region10: #{generator_forward.7} parent=5 // pred_check_branch
      %116 = sbr.rel (%p113) target = $region12
    $region11: #{generator_forward.7} parent=5 // pred_region
      %s117 = ssub.s32 %s9, 1
      // Predicated region
      $region13: #{generator_forward.7} parent=11 // pred_check
        %p118 = pneg %p56
      $region14: #{generator_forward.7} parent=11 // pred_check_branch
        %120 = sbr.rel (%p118) target = $region16
      $region15: #{generator_forward.7} parent=11 // pred_region
        _
      $region16: #{generator_forward.7} parent=11 // pred_fallthru
        _
      // Predicated region
      $region17: #{generator_forward.7} parent=11 // pred_check
        %p121 = pneg %p77
      $region18: #{generator_forward.7} parent=11 // pred_check_branch
        %123 = sbr.rel (%p121) target = $region20
      $region19: #{generator_forward.7} parent=11 // pred_region
        _
      $region20: #{generator_forward.7} parent=11 // pred_fallthru
        _
    $region12: #{generator_forward.7} parent=5 // pred_fallthru
      _
    %p124 = scmp.lt.s32.totalorder %s9, 2
    // Predicated region
    $region21: #{generator_forward.7} parent=5 // pred_check
      %p125 = pneg %p124
    $region22: #{generator_forward.7} parent=5 // pred_check_branch
      %127 = sbr.rel (%p125) target = $region24
    $region23: #{generator_forward.7} parent=5 // pred_region
      // Predicated region
      $region25: #{generator_forward.7} parent=23 // pred_check
        %p128 = pneg %p29
      $region26: #{generator_forward.7} parent=23 // pred_check_branch
        %130 = sbr.rel (%p128) target = $region28
      $region27: #{generator_forward.7} parent=23 // pred_region
        %p131 = scmp.lt.s32.totalorder %s9, 1
        %s132 = scalar_select %p131, %s9, 1
        %s133 = smul.addr %s132, 10
        %s134 = smul.addr %s133, 4
        %s135 = scalar_lea.vmem %s0, %s134
      $region28: #{generator_forward.7} parent=23 // pred_fallthru
        _
    $region24: #{generator_forward.7} parent=5 // pred_fallthru
      _
    %p136 = scmp.le.s32.totalorder 1, %s9
    %p137 = scmp.lt.s32.totalorder %s9, 3
    %p138 = pnand %p136, %p137
    %p139 = pneg %p138
    // Predicated region
    $region29: #{generator_forward.7} parent=5 // pred_check
      _
    $region30: #{generator_forward.7} parent=5 // pred_check_branch
      %141 = sbr.rel (%p138) target = $region32
    $region31: #{generator_forward.7} parent=5 // pred_region
      %s142 = ssub.s32 %s9, 1
      %p143 = scmp.lt.s32.totalorder %s14, 1
      %s144 = scalar_select %p143, %s14, 1
      %s145 = smul.addr %s144, 10
      %s146 = smul.addr %s145, 4
      %s147 = scalar_lea.vmem %s0, %s146
      %p148 = pneg %p35
      %p149 = pneg %p32
      %p150 = pneg %p56
      %p151 = pneg %p53
      %p152 = pneg %p77
      %p153 = pneg %p74
      %p154 = pneg %p103
      %p155 = pneg %p100
      %p156 = scmp.lt.s32.totalorder %s14, 1
      %s157 = scalar_select %p156, %s14, 1
      %s158 = smul.addr %s157, 20
      %s159 = smul.addr %s158, 8
      %s160 = scalar_lea.vmem %s3, %s159
      %p161 = scmp.lt.s32.totalorder %s14, 1
      %s162 = scalar_select %p161, %s14, 1
      %s163 = smul.addr %s162, 10
      %s164 = smul.addr %s163, 4
      %s165 = scalar_lea.vmem %s0, %s164
      %p166 = scmp.lt.s32.totalorder %s14, 1
      %s167 = scalar_select %p166, %s14, 1
      %s168 = smul.addr %s167, 20
      %s169 = smul.addr %s168, 8
      %s170 = scalar_lea.vmem %s3, %s169
      %v172 = vld [vmem:[%s165] sm:$0xff]
      %v173 = vld [vmem:[%s165 + $0x8] sm:$0xff]
      %v174 = vld [vmem:[%s165 + $0x10] sm:$0xff]
      %v175 = vld [vmem:[%s165 + $0x18] sm:$0xff]
      %v176 = vld [vmem:[%s165 + $0x20] sm:$0xff]
      %v177 = vld [vmem:[%s1] sm:$0xf]
      %v178 = vld [vmem:[%s1 + $0x4] sm:$0x3]
      %s179 = scalar_lea.vmem %s1, 8
      %v180 = vld [vmem:[%s179] sm:$0xf]
      %v181 = vld [vmem:[%s179 + $0x4] sm:$0x3]
      %v184 = vunpack.c.l.b16 %v180
      %v185 = vunpack.c.l.b16 %v181
      %v186 = vpack.c.b16 %v185, %v184
      %v192 = vunpack.c.l.b16 %v172
      %v193 = vunpack.c.h.b16 %v172
      %v194 = vunpack.c.l.b16 %v173
      %v195 = vunpack.c.h.b16 %v173
      %v196 = vunpack.c.l.b16 %v174
      %v197 = vunpack.c.h.b16 %v174
      %v198 = vunpack.c.l.b16 %v175
      %v199 = vunpack.c.h.b16 %v175
      %v200 = vunpack.c.l.b16 %v176
      %v201 = vunpack.c.h.b16 %v176
      %v202 = vpack.c.b16 %v192, %v192
      %v203 = vpack.c.b16 %v193, %v193
      %v204 = vpack.c.b16 %v194, %v194
      %v205 = vpack.c.b16 %v195, %v195
      %v206 = vpack.c.b16 %v196, %v196
      %v207 = vpack.c.b16 %v197, %v197
      %v208 = vpack.c.b16 %v198, %v198
      %v209 = vpack.c.b16 %v199, %v199
      %v210 = vpack.c.b16 %v200, %v200
      %v211 = vpack.c.b16 %v201, %v201
      %212 = vrot.lane.b32.xlu0 %v202, 127
      %v213 = vpop.permute.xlu0 %212
      %214 = vrot.lane.b32.xlu0 %v203, 127
      %v215 = vpop.permute.xlu0 %214
      %216 = vrot.lane.b32.xlu0 %v204, 127
      %v217 = vpop.permute.xlu0 %216
      %218 = vrot.lane.b32.xlu0 %v205, 127
      %v219 = vpop.permute.xlu0 %218
      %220 = vrot.lane.b32.xlu0 %v206, 127
      %v221 = vpop.permute.xlu0 %220
      %222 = vrot.lane.b32.xlu0 %v207, 127
      %v223 = vpop.permute.xlu0 %222
      %224 = vrot.lane.b32.xlu0 %v208, 127
      %v225 = vpop.permute.xlu0 %224
      %226 = vrot.lane.b32.xlu0 %v209, 127
      %v227 = vpop.permute.xlu0 %226
      %228 = vrot.lane.b32.xlu0 %v210, 127
      %v229 = vpop.permute.xlu0 %228
      %230 = vrot.lane.b32.xlu0 %v211, 127
      %v231 = vpop.permute.xlu0 %230
      %vm232 = vcmask 1039360
      %v233 = vsel %vm232, %v213, %v215
      %v234 = vsel %vm232, %v215, %v217
      %v235 = vsel %vm232, %v217, %v219
      %v236 = vsel %vm232, %v219, %v221
      %v237 = vsel %vm232, %v221, %v223
      %v238 = vsel %vm232, %v223, %v225
      %v239 = vsel %vm232, %v225, %v227
      %v240 = vsel %vm232, %v227, %v229
      %v241 = vsel %vm232, %v229, %v231
      %vm242 = vcmask 64512
      %v244 = vsel %vm242, %v186, 0
      %vm246 = vcmask 1043456
      %v248 = vsel %vm246, %v233, 0
      %v251 = vsel %vm246, %v234, 0
      %v254 = vsel %vm246, %v235, 0
      %v257 = vsel %vm246, %v236, 0
      %v260 = vsel %vm246, %v237, 0
      %v263 = vsel %vm246, %v238, 0
      %v266 = vsel %vm246, %v239, 0
      %v269 = vsel %vm246, %v240, 0
      %v272 = vsel %vm246, %v241, 0
      %v275 = vsel %vm246, %v231, 0
      %277 = vmatpush.bf16.msra.mxu0 0
      %278 = vmatpush.bf16.msra.mxu0 0
      %279 = vmatpush.bf16.msra.mxu0 0
      %280 = vmatpush.bf16.msra.mxu0 0
      %281 = vmatpush.bf16.msra.mxu0 0
      %282 = vmatpush.bf16.msra.mxu0 0
      %283 = vmatpush.bf16.msra.mxu0 0
      %284 = vmatpush.bf16.msra.mxu0 %v248
      %285 = vmatmul.bf16.gmra.mxu0 %v244
      %v286 = vpop.f32.mrf.mxu0
      %v287 = vadd.f32 0.0, %v286
      %v288 = vpop.f32.mrf.mxu0
      %v289 = vadd.f32 0.0, %v288
      %290 = vdwg.mxu0
      %291 = vmatpush.bf16.msra.mxu0 0
      %292 = vmatpush.bf16.msra.mxu0 0
      %293 = vmatpush.bf16.msra.mxu0 0
      %294 = vmatpush.bf16.msra.mxu0 0
      %295 = vmatpush.bf16.msra.mxu0 0
      %296 = vmatpush.bf16.msra.mxu0 0
      %297 = vmatpush.bf16.msra.mxu0 0
      %298 = vmatpush.bf16.msra.mxu0 %v251
      %299 = vmatmul.bf16.gmra.mxu0 %v244
      %v300 = vpop.f32.mrf.mxu0
      %v301 = vadd.f32 0.0, %v300
      %v302 = vpop.f32.mrf.mxu0
      %v303 = vadd.f32 0.0, %v302
      %304 = vdwg.mxu0
      %305 = vmatpush.bf16.msra.mxu0 0
      %306 = vmatpush.bf16.msra.mxu0 0
      %307 = vmatpush.bf16.msra.mxu0 0
      %308 = vmatpush.bf16.msra.mxu0 0
      %309 = vmatpush.bf16.msra.mxu0 0
      %310 = vmatpush.bf16.msra.mxu0 0
      %311 = vmatpush.bf16.msra.mxu0 0
      %312 = vmatpush.bf16.msra.mxu0 %v254
      %313 = vmatmul.bf16.gmra.mxu0 %v244
      %v314 = vpop.f32.mrf.mxu0
      %v315 = vadd.f32 0.0, %v314
      %v316 = vpop.f32.mrf.mxu0
      %v317 = vadd.f32 0.0, %v316
      %318 = vdwg.mxu0
      %319 = vmatpush.bf16.msra.mxu0 0
      %320 = vmatpush.bf16.msra.mxu0 0
      %321 = vmatpush.bf16.msra.mxu0 0
      %322 = vmatpush.bf16.msra.mxu0 0
      %323 = vmatpush.bf16.msra.mxu0 0
      %324 = vmatpush.bf16.msra.mxu0 0
      %325 = vmatpush.bf16.msra.mxu0 0
      %326 = vmatpush.bf16.msra.mxu0 %v257
      %327 = vmatmul.bf16.gmra.mxu0 %v244
      %v328 = vpop.f32.mrf.mxu0
      %v329 = vadd.f32 0.0, %v328
      %v330 = vpop.f32.mrf.mxu0
      %v331 = vadd.f32 0.0, %v330
      %332 = vdwg.mxu0
      %333 = vmatpush.bf16.msra.mxu0 0
      %334 = vmatpush.bf16.msra.mxu0 0
      %335 = vmatpush.bf16.msra.mxu0 0
      %336 = vmatpush.bf16.msra.mxu0 0
      %337 = vmatpush.bf16.msra.mxu0 0
      %338 = vmatpush.bf16.msra.mxu0 0
      %339 = vmatpush.bf16.msra.mxu0 0
      %340 = vmatpush.bf16.msra.mxu0 %v260
      %341 = vmatmul.bf16.gmra.mxu0 %v244
      %v342 = vpop.f32.mrf.mxu0
      %v343 = vadd.f32 0.0, %v342
      %v344 = vpop.f32.mrf.mxu0
      %v345 = vadd.f32 0.0, %v344
      %346 = vdwg.mxu0
      %347 = vmatpush.bf16.msra.mxu0 0
      %348 = vmatpush.bf16.msra.mxu0 0
      %349 = vmatpush.bf16.msra.mxu0 0
      %350 = vmatpush.bf16.msra.mxu0 0
      %351 = vmatpush.bf16.msra.mxu0 0
      %352 = vmatpush.bf16.msra.mxu0 0
      %353 = vmatpush.bf16.msra.mxu0 0
      %354 = vmatpush.bf16.msra.mxu0 %v263
      %355 = vmatmul.bf16.gmra.mxu0 %v244
      %v356 = vpop.f32.mrf.mxu0
      %v357 = vadd.f32 0.0, %v356
      %v358 = vpop.f32.mrf.mxu0
      %v359 = vadd.f32 0.0, %v358
      %360 = vdwg.mxu0
      %361 = vmatpush.bf16.msra.mxu0 0
      %362 = vmatpush.bf16.msra.mxu0 0
      %363 = vmatpush.bf16.msra.mxu0 0
      %364 = vmatpush.bf16.msra.mxu0 0
      %365 = vmatpush.bf16.msra.mxu0 0
      %366 = vmatpush.bf16.msra.mxu0 0
      %367 = vmatpush.bf16.msra.mxu0 0
      %368 = vmatpush.bf16.msra.mxu0 %v266
      %369 = vmatmul.bf16.gmra.mxu0 %v244
      %v370 = vpop.f32.mrf.mxu0
      %v371 = vadd.f32 0.0, %v370
      %v372 = vpop.f32.mrf.mxu0
      %v373 = vadd.f32 0.0, %v372
      %374 = vdwg.mxu0
      %375 = vmatpush.bf16.msra.mxu0 0
      %376 = vmatpush.bf16.msra.mxu0 0
      %377 = vmatpush.bf16.msra.mxu0 0
      %378 = vmatpush.bf16.msra.mxu0 0
      %379 = vmatpush.bf16.msra.mxu0 0
      %380 = vmatpush.bf16.msra.mxu0 0
      %381 = vmatpush.bf16.msra.mxu0 0
      %382 = vmatpush.bf16.msra.mxu0 %v269
      %383 = vmatmul.bf16.gmra.mxu0 %v244
      %v384 = vpop.f32.mrf.mxu0
      %v385 = vadd.f32 0.0, %v384
      %v386 = vpop.f32.mrf.mxu0
      %v387 = vadd.f32 0.0, %v386
      %388 = vdwg.mxu0
      %389 = vmatpush.bf16.msra.mxu0 0
      %390 = vmatpush.bf16.msra.mxu0 0
      %391 = vmatpush.bf16.msra.mxu0 0
      %392 = vmatpush.bf16.msra.mxu0 0
      %393 = vmatpush.bf16.msra.mxu0 0
      %394 = vmatpush.bf16.msra.mxu0 0
      %395 = vmatpush.bf16.msra.mxu0 0
      %396 = vmatpush.bf16.msra.mxu0 %v272
      %397 = vmatmul.bf16.gmra.mxu0 %v244
      %v398 = vpop.f32.mrf.mxu0
      %v399 = vadd.f32 0.0, %v398
      %v400 = vpop.f32.mrf.mxu0
      %v401 = vadd.f32 0.0, %v400
      %402 = vdwg.mxu0
      %403 = vmatpush.bf16.msra.mxu0 0
      %404 = vmatpush.bf16.msra.mxu0 0
      %405 = vmatpush.bf16.msra.mxu0 0
      %406 = vmatpush.bf16.msra.mxu0 0
      %407 = vmatpush.bf16.msra.mxu0 0
      %408 = vmatpush.bf16.msra.mxu0 0
      %409 = vmatpush.bf16.msra.mxu0 0
      %410 = vmatpush.bf16.msra.mxu0 %v275
      %411 = vmatmul.bf16.gmra.mxu0 %v244
      %v412 = vpop.f32.mrf.mxu0
      %v413 = vadd.f32 0.0, %v412
      %v414 = vpop.f32.mrf.mxu0
      %v415 = vadd.f32 0.0, %v414
      %416 = vdwg.mxu0
      %v419 = vunpack.c.l.b16 %v177
      %v420 = vunpack.c.l.b16 %v178
      %v421 = vpack.c.b16 %v420, %v419
      %v423 = vsel %vm242, %v421, 0
      %v426 = vsel %vm246, %v202, 0
      %v429 = vsel %vm246, %v203, 0
      %v432 = vsel %vm246, %v204, 0
      %v435 = vsel %vm246, %v205, 0
      %v438 = vsel %vm246, %v206, 0
      %v441 = vsel %vm246, %v207, 0
      %v444 = vsel %vm246, %v208, 0
      %v447 = vsel %vm246, %v209, 0
      %v450 = vsel %vm246, %v210, 0
      %v453 = vsel %vm246, %v211, 0
      %455 = vmatpush.bf16.msra.mxu0 0
      %456 = vmatpush.bf16.msra.mxu0 0
      %457 = vmatpush.bf16.msra.mxu0 0
      %458 = vmatpush.bf16.msra.mxu0 0
      %459 = vmatpush.bf16.msra.mxu0 0
      %460 = vmatpush.bf16.msra.mxu0 0
      %461 = vmatpush.bf16.msra.mxu0 0
      %462 = vmatpush.bf16.msra.mxu0 %v426
      %463 = vmatmul.bf16.gmra.mxu0 %v423
      %v464 = vpop.f32.mrf.mxu0
      %v465 = vadd.f32 %v287, %v464
      %v466 = vpop.f32.mrf.mxu0
      %v467 = vadd.f32 %v289, %v466
      %468 = vdwg.mxu0
      %469 = vmatpush.bf16.msra.mxu0 0
      %470 = vmatpush.bf16.msra.mxu0 0
      %471 = vmatpush.bf16.msra.mxu0 0
      %472 = vmatpush.bf16.msra.mxu0 0
      %473 = vmatpush.bf16.msra.mxu0 0
      %474 = vmatpush.bf16.msra.mxu0 0
      %475 = vmatpush.bf16.msra.mxu0 0
      %476 = vmatpush.bf16.msra.mxu0 %v429
      %477 = vmatmul.bf16.gmra.mxu0 %v423
      %v478 = vpop.f32.mrf.mxu0
      %v479 = vadd.f32 %v301, %v478
      %v480 = vpop.f32.mrf.mxu0
      %v481 = vadd.f32 %v303, %v480
      %482 = vdwg.mxu0
      %483 = vmatpush.bf16.msra.mxu0 0
      %484 = vmatpush.bf16.msra.mxu0 0
      %485 = vmatpush.bf16.msra.mxu0 0
      %486 = vmatpush.bf16.msra.mxu0 0
      %487 = vmatpush.bf16.msra.mxu0 0
      %488 = vmatpush.bf16.msra.mxu0 0
      %489 = vmatpush.bf16.msra.mxu0 0
      %490 = vmatpush.bf16.msra.mxu0 %v432
      %491 = vmatmul.bf16.gmra.mxu0 %v423
      %v492 = vpop.f32.mrf.mxu0
      %v493 = vadd.f32 %v315, %v492
      %v494 = vpop.f32.mrf.mxu0
      %v495 = vadd.f32 %v317, %v494
      %496 = vdwg.mxu0
      %497 = vmatpush.bf16.msra.mxu0 0
      %498 = vmatpush.bf16.msra.mxu0 0
      %499 = vmatpush.bf16.msra.mxu0 0
      %500 = vmatpush.bf16.msra.mxu0 0
      %501 = vmatpush.bf16.msra.mxu0 0
      %502 = vmatpush.bf16.msra.mxu0 0
      %503 = vmatpush.bf16.msra.mxu0 0
      %504 = vmatpush.bf16.msra.mxu0 %v435
      %505 = vmatmul.bf16.gmra.mxu0 %v423
      %v506 = vpop.f32.mrf.mxu0
      %v507 = vadd.f32 %v329, %v506
      %v508 = vpop.f32.mrf.mxu0
      %v509 = vadd.f32 %v331, %v508
      %510 = vdwg.mxu0
      %511 = vmatpush.bf16.msra.mxu0 0
      %512 = vmatpush.bf16.msra.mxu0 0
      %513 = vmatpush.bf16.msra.mxu0 0
      %514 = vmatpush.bf16.msra.mxu0 0
      %515 = vmatpush.bf16.msra.mxu0 0
      %516 = vmatpush.bf16.msra.mxu0 0
      %517 = vmatpush.bf16.msra.mxu0 0
      %518 = vmatpush.bf16.msra.mxu0 %v438
      %519 = vmatmul.bf16.gmra.mxu0 %v423
      %v520 = vpop.f32.mrf.mxu0
      %v521 = vadd.f32 %v343, %v520
      %v522 = vpop.f32.mrf.mxu0
      %v523 = vadd.f32 %v345, %v522
      %524 = vdwg.mxu0
      %525 = vmatpush.bf16.msra.mxu0 0
      %526 = vmatpush.bf16.msra.mxu0 0
      %527 = vmatpush.bf16.msra.mxu0 0
      %528 = vmatpush.bf16.msra.mxu0 0
      %529 = vmatpush.bf16.msra.mxu0 0
      %530 = vmatpush.bf16.msra.mxu0 0
      %531 = vmatpush.bf16.msra.mxu0 0
      %532 = vmatpush.bf16.msra.mxu0 %v441
      %533 = vmatmul.bf16.gmra.mxu0 %v423
      %v534 = vpop.f32.mrf.mxu0
      %v535 = vadd.f32 %v357, %v534
      %v536 = vpop.f32.mrf.mxu0
      %v537 = vadd.f32 %v359, %v536
      %538 = vdwg.mxu0
      %539 = vmatpush.bf16.msra.mxu0 0
      %540 = vmatpush.bf16.msra.mxu0 0
      %541 = vmatpush.bf16.msra.mxu0 0
      %542 = vmatpush.bf16.msra.mxu0 0
      %543 = vmatpush.bf16.msra.mxu0 0
      %544 = vmatpush.bf16.msra.mxu0 0
      %545 = vmatpush.bf16.msra.mxu0 0
      %546 = vmatpush.bf16.msra.mxu0 %v444
      %547 = vmatmul.bf16.gmra.mxu0 %v423
      %v548 = vpop.f32.mrf.mxu0
      %v549 = vadd.f32 %v371, %v548
      %v550 = vpop.f32.mrf.mxu0
      %v551 = vadd.f32 %v373, %v550
      %552 = vdwg.mxu0
      %553 = vmatpush.bf16.msra.mxu0 0
      %554 = vmatpush.bf16.msra.mxu0 0
      %555 = vmatpush.bf16.msra.mxu0 0
      %556 = vmatpush.bf16.msra.mxu0 0
      %557 = vmatpush.bf16.msra.mxu0 0
      %558 = vmatpush.bf16.msra.mxu0 0
      %559 = vmatpush.bf16.msra.mxu0 0
      %560 = vmatpush.bf16.msra.mxu0 %v447
      %561 = vmatmul.bf16.gmra.mxu0 %v423
      %v562 = vpop.f32.mrf.mxu0
      %v563 = vadd.f32 %v385, %v562
      %v564 = vpop.f32.mrf.mxu0
      %v565 = vadd.f32 %v387, %v564
      %566 = vdwg.mxu0
      %567 = vmatpush.bf16.msra.mxu0 0
      %568 = vmatpush.bf16.msra.mxu0 0
      %569 = vmatpush.bf16.msra.mxu0 0
      %570 = vmatpush.bf16.msra.mxu0 0
      %571 = vmatpush.bf16.msra.mxu0 0
      %572 = vmatpush.bf16.msra.mxu0 0
      %573 = vmatpush.bf16.msra.mxu0 0
      %574 = vmatpush.bf16.msra.mxu0 %v450
      %575 = vmatmul.bf16.gmra.mxu0 %v423
      %v576 = vpop.f32.mrf.mxu0
      %v577 = vadd.f32 %v399, %v576
      %v578 = vpop.f32.mrf.mxu0
      %v579 = vadd.f32 %v401, %v578
      %580 = vdwg.mxu0
      %581 = vmatpush.bf16.msra.mxu0 0
      %582 = vmatpush.bf16.msra.mxu0 0
      %583 = vmatpush.bf16.msra.mxu0 0
      %584 = vmatpush.bf16.msra.mxu0 0
      %585 = vmatpush.bf16.msra.mxu0 0
      %586 = vmatpush.bf16.msra.mxu0 0
      %587 = vmatpush.bf16.msra.mxu0 0
      %588 = vmatpush.bf16.msra.mxu0 %v453
      %589 = vmatmul.bf16.gmra.mxu0 %v423
      %v590 = vpop.f32.mrf.mxu0
      %v591 = vadd.f32 %v413, %v590
      %v592 = vpop.f32.mrf.mxu0
      %v593 = vadd.f32 %v415, %v592
      %594 = vdwg.mxu0
      %s595 = scalar_lea.vmem %s1, 16
      %v596 = vld [vmem:[%s595] sm:$0xf]
      %v597 = vld [vmem:[%s595 + $0x4] sm:$0x3]
      %v600 = vunpack.c.l.b16 %v596
      %v601 = vunpack.c.l.b16 %v597
      %v602 = vpack.c.b16 %v601, %v600
      %603 = vrot.lane.b32.xlu0 %v202, 126
      %v604 = vpop.permute.xlu0 %603
      %605 = vrot.lane.b32.xlu0 %v203, 126
      %v606 = vpop.permute.xlu0 %605
      %607 = vrot.lane.b32.xlu0 %v204, 126
      %v608 = vpop.permute.xlu0 %607
      %609 = vrot.lane.b32.xlu0 %v205, 126
      %v610 = vpop.permute.xlu0 %609
      %611 = vrot.lane.b32.xlu0 %v206, 126
      %v612 = vpop.permute.xlu0 %611
      %613 = vrot.lane.b32.xlu0 %v207, 126
      %v614 = vpop.permute.xlu0 %613
      %615 = vrot.lane.b32.xlu0 %v208, 126
      %v616 = vpop.permute.xlu0 %615
      %617 = vrot.lane.b32.xlu0 %v209, 126
      %v618 = vpop.permute.xlu0 %617
      %619 = vrot.lane.b32.xlu0 %v210, 126
      %v620 = vpop.permute.xlu0 %619
      %621 = vrot.lane.b32.xlu0 %v211, 126
      %v622 = vpop.permute.xlu0 %621
      %vm623 = vcmask 1031168
      %v624 = vsel %vm623, %v604, %v606
      %v625 = vsel %vm623, %v606, %v608
      %v626 = vsel %vm623, %v608, %v610
      %v627 = vsel %vm623, %v610, %v612
      %v628 = vsel %vm623, %v612, %v614
      %v629 = vsel %vm623, %v614, %v616
      %v630 = vsel %vm623, %v616, %v618
      %v631 = vsel %vm623, %v618, %v620
      %v632 = vsel %vm623, %v620, %v622
      %v634 = vsel %vm242, %v602, 0
      %v637 = vsel %vm246, %v624, 0
      %v640 = vsel %vm246, %v625, 0
      %v643 = vsel %vm246, %v626, 0
      %v646 = vsel %vm246, %v627, 0
      %v649 = vsel %vm246, %v628, 0
      %v652 = vsel %vm246, %v629, 0
      %v655 = vsel %vm246, %v630, 0
      %v658 = vsel %vm246, %v631, 0
      %v661 = vsel %vm246, %v632, 0
      %v664 = vsel %vm246, %v622, 0
      %666 = vmatpush.bf16.msra.mxu0 0
      %667 = vmatpush.bf16.msra.mxu0 0
      %668 = vmatpush.bf16.msra.mxu0 0
      %669 = vmatpush.bf16.msra.mxu0 0
      %670 = vmatpush.bf16.msra.mxu0 0
      %671 = vmatpush.bf16.msra.mxu0 0
      %672 = vmatpush.bf16.msra.mxu0 0
      %673 = vmatpush.bf16.msra.mxu0 %v637
      %674 = vmatmul.bf16.gmra.mxu0 %v634
      %v675 = vpop.f32.mrf.mxu0
      %v676 = vadd.f32 0.0, %v675
      %v677 = vpop.f32.mrf.mxu0
      %v678 = vadd.f32 0.0, %v677
      %679 = vdwg.mxu0
      %680 = vmatpush.bf16.msra.mxu0 0
      %681 = vmatpush.bf16.msra.mxu0 0
      %682 = vmatpush.bf16.msra.mxu0 0
      %683 = vmatpush.bf16.msra.mxu0 0
      %684 = vmatpush.bf16.msra.mxu0 0
      %685 = vmatpush.bf16.msra.mxu0 0
      %686 = vmatpush.bf16.msra.mxu0 0
      %687 = vmatpush.bf16.msra.mxu0 %v640
      %688 = vmatmul.bf16.gmra.mxu0 %v634
      %v689 = vpop.f32.mrf.mxu0
      %v690 = vadd.f32 0.0, %v689
      %v691 = vpop.f32.mrf.mxu0
      %v692 = vadd.f32 0.0, %v691
      %693 = vdwg.mxu0
      %694 = vmatpush.bf16.msra.mxu0 0
      %695 = vmatpush.bf16.msra.mxu0 0
      %696 = vmatpush.bf16.msra.mxu0 0
      %697 = vmatpush.bf16.msra.mxu0 0
      %698 = vmatpush.bf16.msra.mxu0 0
      %699 = vmatpush.bf16.msra.mxu0 0
      %700 = vmatpush.bf16.msra.mxu0 0
      %701 = vmatpush.bf16.msra.mxu0 %v643
      %702 = vmatmul.bf16.gmra.mxu0 %v634
      %v703 = vpop.f32.mrf.mxu0
      %v704 = vadd.f32 0.0, %v703
      %v705 = vpop.f32.mrf.mxu0
      %v706 = vadd.f32 0.0, %v705
      %707 = vdwg.mxu0
      %708 = vmatpush.bf16.msra.mxu0 0
      %709 = vmatpush.bf16.msra.mxu0 0
      %710 = vmatpush.bf16.msra.mxu0 0
      %711 = vmatpush.bf16.msra.mxu0 0
      %712 = vmatpush.bf16.msra.mxu0 0
      %713 = vmatpush.bf16.msra.mxu0 0
      %714 = vmatpush.bf16.msra.mxu0 0
      %715 = vmatpush.bf16.msra.mxu0 %v646
      %716 = vmatmul.bf16.gmra.mxu0 %v634
      %v717 = vpop.f32.mrf.mxu0
      %v718 = vadd.f32 0.0, %v717
      %v719 = vpop.f32.mrf.mxu0
      %v720 = vadd.f32 0.0, %v719
      %721 = vdwg.mxu0
      %722 = vmatpush.bf16.msra.mxu0 0
      %723 = vmatpush.bf16.msra.mxu0 0
      %724 = vmatpush.bf16.msra.mxu0 0
      %725 = vmatpush.bf16.msra.mxu0 0
      %726 = vmatpush.bf16.msra.mxu0 0
      %727 = vmatpush.bf16.msra.mxu0 0
      %728 = vmatpush.bf16.msra.mxu0 0
      %729 = vmatpush.bf16.msra.mxu0 %v649
      %730 = vmatmul.bf16.gmra.mxu0 %v634
      %v731 = vpop.f32.mrf.mxu0
      %v732 = vadd.f32 0.0, %v731
      %v733 = vpop.f32.mrf.mxu0
      %v734 = vadd.f32 0.0, %v733
      %735 = vdwg.mxu0
      %736 = vmatpush.bf16.msra.mxu0 0
      %737 = vmatpush.bf16.msra.mxu0 0
      %738 = vmatpush.bf16.msra.mxu0 0
      %739 = vmatpush.bf16.msra.mxu0 0
      %740 = vmatpush.bf16.msra.mxu0 0
      %741 = vmatpush.bf16.msra.mxu0 0
      %742 = vmatpush.bf16.msra.mxu0 0
      %743 = vmatpush.bf16.msra.mxu0 %v652
      %744 = vmatmul.bf16.gmra.mxu0 %v634
      %v745 = vpop.f32.mrf.mxu0
      %v746 = vadd.f32 0.0, %v745
      %v747 = vpop.f32.mrf.mxu0
      %v748 = vadd.f32 0.0, %v747
      %749 = vdwg.mxu0
      %750 = vmatpush.bf16.msra.mxu0 0
      %751 = vmatpush.bf16.msra.mxu0 0
      %752 = vmatpush.bf16.msra.mxu0 0
      %753 = vmatpush.bf16.msra.mxu0 0
      %754 = vmatpush.bf16.msra.mxu0 0
      %755 = vmatpush.bf16.msra.mxu0 0
      %756 = vmatpush.bf16.msra.mxu0 0
      %757 = vmatpush.bf16.msra.mxu0 %v655
      %758 = vmatmul.bf16.gmra.mxu0 %v634
      %v759 = vpop.f32.mrf.mxu0
      %v760 = vadd.f32 0.0, %v759
      %v761 = vpop.f32.mrf.mxu0
      %v762 = vadd.f32 0.0, %v761
      %763 = vdwg.mxu0
      %764 = vmatpush.bf16.msra.mxu0 0
      %765 = vmatpush.bf16.msra.mxu0 0
      %766 = vmatpush.bf16.msra.mxu0 0
      %767 = vmatpush.bf16.msra.mxu0 0
      %768 = vmatpush.bf16.msra.mxu0 0
      %769 = vmatpush.bf16.msra.mxu0 0
      %770 = vmatpush.bf16.msra.mxu0 0
      %771 = vmatpush.bf16.msra.mxu0 %v658
      %772 = vmatmul.bf16.gmra.mxu0 %v634
      %v773 = vpop.f32.mrf.mxu0
      %v774 = vadd.f32 0.0, %v773
      %v775 = vpop.f32.mrf.mxu0
      %v776 = vadd.f32 0.0, %v775
      %777 = vdwg.mxu0
      %778 = vmatpush.bf16.msra.mxu0 0
      %779 = vmatpush.bf16.msra.mxu0 0
      %780 = vmatpush.bf16.msra.mxu0 0
      %781 = vmatpush.bf16.msra.mxu0 0
      %782 = vmatpush.bf16.msra.mxu0 0
      %783 = vmatpush.bf16.msra.mxu0 0
      %784 = vmatpush.bf16.msra.mxu0 0
      %785 = vmatpush.bf16.msra.mxu0 %v661
      %786 = vmatmul.bf16.gmra.mxu0 %v634
      %v787 = vpop.f32.mrf.mxu0
      %v788 = vadd.f32 0.0, %v787
      %v789 = vpop.f32.mrf.mxu0
      %v790 = vadd.f32 0.0, %v789
      %791 = vdwg.mxu0
      %792 = vmatpush.bf16.msra.mxu0 0
      %793 = vmatpush.bf16.msra.mxu0 0
      %794 = vmatpush.bf16.msra.mxu0 0
      %795 = vmatpush.bf16.msra.mxu0 0
      %796 = vmatpush.bf16.msra.mxu0 0
      %797 = vmatpush.bf16.msra.mxu0 0
      %798 = vmatpush.bf16.msra.mxu0 0
      %799 = vmatpush.bf16.msra.mxu0 %v664
      %800 = vmatmul.bf16.gmra.mxu0 %v634
      %v801 = vpop.f32.mrf.mxu0
      %v802 = vadd.f32 0.0, %v801
      %v803 = vpop.f32.mrf.mxu0
      %v804 = vadd.f32 0.0, %v803
      %805 = vdwg.mxu0
      %v806 = vadd.f32 %v465, %v676
      %v807 = vadd.f32 %v479, %v690
      %v808 = vadd.f32 %v493, %v704
      %v809 = vadd.f32 %v507, %v718
      %v810 = vadd.f32 %v521, %v732
      %v811 = vadd.f32 %v535, %v746
      %v812 = vadd.f32 %v549, %v760
      %v813 = vadd.f32 %v563, %v774
      %v814 = vadd.f32 %v577, %v788
      %v815 = vadd.f32 %v591, %v802
      %v816 = vadd.f32 %v467, %v678
      %v817 = vadd.f32 %v481, %v692
      %v818 = vadd.f32 %v495, %v706
      %v819 = vadd.f32 %v509, %v720
      %v820 = vadd.f32 %v523, %v734
      %v821 = vadd.f32 %v537, %v748
      %v822 = vadd.f32 %v551, %v762
      %v823 = vadd.f32 %v565, %v776
      %v824 = vadd.f32 %v579, %v790
      %v825 = vadd.f32 %v593, %v804
      %s826 = scalar_lea.vmem %s1, 24
      %v827 = vld [vmem:[%s826] sm:$0xf]
      %v828 = vld [vmem:[%s826 + $0x4] sm:$0x3]
      %v831 = vunpack.c.l.b16 %v827
      %v832 = vunpack.c.l.b16 %v828
      %v833 = vpack.c.b16 %v832, %v831
      %834 = vrot.lane.b32.xlu0 %v202, 94
      %v835 = vpop.permute.xlu0 %834
      %836 = vrot.lane.b32.xlu0 %v203, 94
      %v837 = vpop.permute.xlu0 %836
      %838 = vrot.lane.b32.xlu0 %v204, 94
      %v839 = vpop.permute.xlu0 %838
      %840 = vrot.lane.b32.xlu0 %v205, 94
      %v841 = vpop.permute.xlu0 %840
      %842 = vrot.lane.b32.xlu0 %v206, 94
      %v843 = vpop.permute.xlu0 %842
      %844 = vrot.lane.b32.xlu0 %v207, 94
      %v845 = vpop.permute.xlu0 %844
      %846 = vrot.lane.b32.xlu0 %v208, 94
      %v847 = vpop.permute.xlu0 %846
      %848 = vrot.lane.b32.xlu0 %v209, 94
      %v849 = vpop.permute.xlu0 %848
      %850 = vrot.lane.b32.xlu0 %v210, 94
      %v851 = vpop.permute.xlu0 %850
      %852 = vrot.lane.b32.xlu0 %v211, 94
      %v853 = vpop.permute.xlu0 %852
      %vm854 = vcmask 769024
      %v855 = vsel %vm854, %v835, %v837
      %v856 = vsel %vm854, %v837, %v839
      %v857 = vsel %vm854, %v839, %v841
      %v858 = vsel %vm854, %v841, %v843
      %v859 = vsel %vm854, %v843, %v845
      %v860 = vsel %vm854, %v845, %v847
      %v861 = vsel %vm854, %v847, %v849
      %v862 = vsel %vm854, %v849, %v851
      %v863 = vsel %vm854, %v851, %v853
      %v865 = vsel %vm242, %v833, 0
      %v868 = vsel %vm246, %v855, 0
      %v871 = vsel %vm246, %v856, 0
      %v874 = vsel %vm246, %v857, 0
      %v877 = vsel %vm246, %v858, 0
      %v880 = vsel %vm246, %v859, 0
      %v883 = vsel %vm246, %v860, 0
      %v886 = vsel %vm246, %v861, 0
      %v889 = vsel %vm246, %v862, 0
      %v892 = vsel %vm246, %v863, 0
      %v895 = vsel %vm246, %v853, 0
      %897 = vmatpush.bf16.msra.mxu0 0
      %898 = vmatpush.bf16.msra.mxu0 0
      %899 = vmatpush.bf16.msra.mxu0 0
      %900 = vmatpush.bf16.msra.mxu0 0
      %901 = vmatpush.bf16.msra.mxu0 0
      %902 = vmatpush.bf16.msra.mxu0 0
      %903 = vmatpush.bf16.msra.mxu0 0
      %904 = vmatpush.bf16.msra.mxu0 %v868
      %905 = vmatmul.bf16.gmra.mxu0 %v865
      %v906 = vpop.f32.mrf.mxu0
      %v907 = vadd.f32 0.0, %v906
      %v908 = vpop.f32.mrf.mxu0
      %v909 = vadd.f32 0.0, %v908
      %910 = vdwg.mxu0
      %911 = vmatpush.bf16.msra.mxu0 0
      %912 = vmatpush.bf16.msra.mxu0 0
      %913 = vmatpush.bf16.msra.mxu0 0
      %914 = vmatpush.bf16.msra.mxu0 0
      %915 = vmatpush.bf16.msra.mxu0 0
      %916 = vmatpush.bf16.msra.mxu0 0
      %917 = vmatpush.bf16.msra.mxu0 0
      %918 = vmatpush.bf16.msra.mxu0 %v871
      %919 = vmatmul.bf16.gmra.mxu0 %v865
      %v920 = vpop.f32.mrf.mxu0
      %v921 = vadd.f32 0.0, %v920
      %v922 = vpop.f32.mrf.mxu0
      %v923 = vadd.f32 0.0, %v922
      %924 = vdwg.mxu0
      %925 = vmatpush.bf16.msra.mxu0 0
      %926 = vmatpush.bf16.msra.mxu0 0
      %927 = vmatpush.bf16.msra.mxu0 0
      %928 = vmatpush.bf16.msra.mxu0 0
      %929 = vmatpush.bf16.msra.mxu0 0
      %930 = vmatpush.bf16.msra.mxu0 0
      %931 = vmatpush.bf16.msra.mxu0 0
      %932 = vmatpush.bf16.msra.mxu0 %v874
      %933 = vmatmul.bf16.gmra.mxu0 %v865
      %v934 = vpop.f32.mrf.mxu0
      %v935 = vadd.f32 0.0, %v934
      %v936 = vpop.f32.mrf.mxu0
      %v937 = vadd.f32 0.0, %v936
      %938 = vdwg.mxu0
      %939 = vmatpush.bf16.msra.mxu0 0
      %940 = vmatpush.bf16.msra.mxu0 0
      %941 = vmatpush.bf16.msra.mxu0 0
      %942 = vmatpush.bf16.msra.mxu0 0
      %943 = vmatpush.bf16.msra.mxu0 0
      %944 = vmatpush.bf16.msra.mxu0 0
      %945 = vmatpush.bf16.msra.mxu0 0
      %946 = vmatpush.bf16.msra.mxu0 %v877
      %947 = vmatmul.bf16.gmra.mxu0 %v865
      %v948 = vpop.f32.mrf.mxu0
      %v949 = vadd.f32 0.0, %v948
      %v950 = vpop.f32.mrf.mxu0
      %v951 = vadd.f32 0.0, %v950
      %952 = vdwg.mxu0
      %953 = vmatpush.bf16.msra.mxu0 0
      %954 = vmatpush.bf16.msra.mxu0 0
      %955 = vmatpush.bf16.msra.mxu0 0
      %956 = vmatpush.bf16.msra.mxu0 0
      %957 = vmatpush.bf16.msra.mxu0 0
      %958 = vmatpush.bf16.msra.mxu0 0
      %959 = vmatpush.bf16.msra.mxu0 0
      %960 = vmatpush.bf16.msra.mxu0 %v880
      %961 = vmatmul.bf16.gmra.mxu0 %v865
      %v962 = vpop.f32.mrf.mxu0
      %v963 = vadd.f32 0.0, %v962
      %v964 = vpop.f32.mrf.mxu0
      %v965 = vadd.f32 0.0, %v964
      %966 = vdwg.mxu0
      %967 = vmatpush.bf16.msra.mxu0 0
      %968 = vmatpush.bf16.msra.mxu0 0
      %969 = vmatpush.bf16.msra.mxu0 0
      %970 = vmatpush.bf16.msra.mxu0 0
      %971 = vmatpush.bf16.msra.mxu0 0
      %972 = vmatpush.bf16.msra.mxu0 0
      %973 = vmatpush.bf16.msra.mxu0 0
      %974 = vmatpush.bf16.msra.mxu0 %v883
      %975 = vmatmul.bf16.gmra.mxu0 %v865
      %v976 = vpop.f32.mrf.mxu0
      %v977 = vadd.f32 0.0, %v976
      %v978 = vpop.f32.mrf.mxu0
      %v979 = vadd.f32 0.0, %v978
      %980 = vdwg.mxu0
      %981 = vmatpush.bf16.msra.mxu0 0
      %982 = vmatpush.bf16.msra.mxu0 0
      %983 = vmatpush.bf16.msra.mxu0 0
      %984 = vmatpush.bf16.msra.mxu0 0
      %985 = vmatpush.bf16.msra.mxu0 0
      %986 = vmatpush.bf16.msra.mxu0 0
      %987 = vmatpush.bf16.msra.mxu0 0
      %988 = vmatpush.bf16.msra.mxu0 %v886
      %989 = vmatmul.bf16.gmra.mxu0 %v865
      %v990 = vpop.f32.mrf.mxu0
      %v991 = vadd.f32 0.0, %v990
      %v992 = vpop.f32.mrf.mxu0
      %v993 = vadd.f32 0.0, %v992
      %994 = vdwg.mxu0
      %995 = vmatpush.bf16.msra.mxu0 0
      %996 = vmatpush.bf16.msra.mxu0 0
      %997 = vmatpush.bf16.msra.mxu0 0
      %998 = vmatpush.bf16.msra.mxu0 0
      %999 = vmatpush.bf16.msra.mxu0 0
      %1000 = vmatpush.bf16.msra.mxu0 0
      %1001 = vmatpush.bf16.msra.mxu0 0
      %1002 = vmatpush.bf16.msra.mxu0 %v889
      %1003 = vmatmul.bf16.gmra.mxu0 %v865
      %v1004 = vpop.f32.mrf.mxu0
      %v1005 = vadd.f32 0.0, %v1004
      %v1006 = vpop.f32.mrf.mxu0
      %v1007 = vadd.f32 0.0, %v1006
      %1008 = vdwg.mxu0
      %1009 = vmatpush.bf16.msra.mxu0 0
      %1010 = vmatpush.bf16.msra.mxu0 0
      %1011 = vmatpush.bf16.msra.mxu0 0
      %1012 = vmatpush.bf16.msra.mxu0 0
      %1013 = vmatpush.bf16.msra.mxu0 0
      %1014 = vmatpush.bf16.msra.mxu0 0
      %1015 = vmatpush.bf16.msra.mxu0 0
      %1016 = vmatpush.bf16.msra.mxu0 %v892
      %1017 = vmatmul.bf16.gmra.mxu0 %v865
      %v1018 = vpop.f32.mrf.mxu0
      %v1019 = vadd.f32 0.0, %v1018
      %v1020 = vpop.f32.mrf.mxu0
      %v1021 = vadd.f32 0.0, %v1020
      %1022 = vdwg.mxu0
      %1023 = vmatpush.bf16.msra.mxu0 0
      %1024 = vmatpush.bf16.msra.mxu0 0
      %1025 = vmatpush.bf16.msra.mxu0 0
      %1026 = vmatpush.bf16.msra.mxu0 0
      %1027 = vmatpush.bf16.msra.mxu0 0
      %1028 = vmatpush.bf16.msra.mxu0 0
      %1029 = vmatpush.bf16.msra.mxu0 0
      %1030 = vmatpush.bf16.msra.mxu0 %v895
      %1031 = vmatmul.bf16.gmra.mxu0 %v865
      %v1032 = vpop.f32.mrf.mxu0
      %v1033 = vadd.f32 0.0, %v1032
      %v1034 = vpop.f32.mrf.mxu0
      %v1035 = vadd.f32 0.0, %v1034
      %1036 = vdwg.mxu0
      %v1037 = vadd.f32 %v806, %v907
      %v1038 = vadd.f32 %v807, %v921
      %v1039 = vadd.f32 %v808, %v935
      %v1040 = vadd.f32 %v809, %v949
      %v1041 = vadd.f32 %v810, %v963
      %v1042 = vadd.f32 %v811, %v977
      %v1043 = vadd.f32 %v812, %v991
      %v1044 = vadd.f32 %v813, %v1005
      %v1045 = vadd.f32 %v814, %v1019
      %v1046 = vadd.f32 %v815, %v1033
      %v1047 = vadd.f32 %v816, %v909
      %v1048 = vadd.f32 %v817, %v923
      %v1049 = vadd.f32 %v818, %v937
      %v1050 = vadd.f32 %v819, %v951
      %v1051 = vadd.f32 %v820, %v965
      %v1052 = vadd.f32 %v821, %v979
      %v1053 = vadd.f32 %v822, %v993
      %v1054 = vadd.f32 %v823, %v1007
      %v1055 = vadd.f32 %v824, %v1021
      %v1056 = vadd.f32 %v825, %v1035
      %s1057 = scalar_lea.vmem %s1, 32
      %v1058 = vld [vmem:[%s1057] sm:$0xf]
      %v1059 = vld [vmem:[%s1057 + $0x4] sm:$0x3]
      %v1062 = vunpack.c.l.b16 %v1058
      %v1063 = vunpack.c.l.b16 %v1059
      %v1064 = vpack.c.b16 %v1063, %v1062
      %1065 = vrot.lane.b32.xlu0 %v202, 93
      %v1066 = vpop.permute.xlu0 %1065
      %1067 = vrot.lane.b32.xlu0 %v203, 93
      %v1068 = vpop.permute.xlu0 %1067
      %1069 = vrot.lane.b32.xlu0 %v204, 93
      %v1070 = vpop.permute.xlu0 %1069
      %1071 = vrot.lane.b32.xlu0 %v205, 93
      %v1072 = vpop.permute.xlu0 %1071
      %1073 = vrot.lane.b32.xlu0 %v206, 93
      %v1074 = vpop.permute.xlu0 %1073
      %1075 = vrot.lane.b32.xlu0 %v207, 93
      %v1076 = vpop.permute.xlu0 %1075
      %1077 = vrot.lane.b32.xlu0 %v208, 93
      %v1078 = vpop.permute.xlu0 %1077
      %1079 = vrot.lane.b32.xlu0 %v209, 93
      %v1080 = vpop.permute.xlu0 %1079
      %1081 = vrot.lane.b32.xlu0 %v210, 93
      %v1082 = vpop.permute.xlu0 %1081
      %1083 = vrot.lane.b32.xlu0 %v211, 93
      %v1084 = vpop.permute.xlu0 %1083
      %vm1085 = vcmask 760832
      %v1086 = vsel %vm1085, %v1066, %v1068
      %v1087 = vsel %vm1085, %v1068, %v1070
      %v1088 = vsel %vm1085, %v1070, %v1072
      %v1089 = vsel %vm1085, %v1072, %v1074
      %v1090 = vsel %vm1085, %v1074, %v1076
      %v1091 = vsel %vm1085, %v1076, %v1078
      %v1092 = vsel %vm1085, %v1078, %v1080
      %v1093 = vsel %vm1085, %v1080, %v1082
      %v1094 = vsel %vm1085, %v1082, %v1084
      %v1096 = vsel %vm242, %v1064, 0
      %v1099 = vsel %vm246, %v1086, 0
      %v1102 = vsel %vm246, %v1087, 0
      %v1105 = vsel %vm246, %v1088, 0
      %v1108 = vsel %vm246, %v1089, 0
      %v1111 = vsel %vm246, %v1090, 0
      %v1114 = vsel %vm246, %v1091, 0
      %v1117 = vsel %vm246, %v1092, 0
      %v1120 = vsel %vm246, %v1093, 0
      %v1123 = vsel %vm246, %v1094, 0
      %v1126 = vsel %vm246, %v1084, 0
      %1128 = vmatpush.bf16.msra.mxu0 0
      %1129 = vmatpush.bf16.msra.mxu0 0
      %1130 = vmatpush.bf16.msra.mxu0 0
      %1131 = vmatpush.bf16.msra.mxu0 0
      %1132 = vmatpush.bf16.msra.mxu0 0
      %1133 = vmatpush.bf16.msra.mxu0 0
      %1134 = vmatpush.bf16.msra.mxu0 0
      %1135 = vmatpush.bf16.msra.mxu0 %v1099
      %1136 = vmatmul.bf16.gmra.mxu0 %v1096
      %v1137 = vpop.f32.mrf.mxu0
      %v1138 = vadd.f32 0.0, %v1137
      %v1139 = vpop.f32.mrf.mxu0
      %v1140 = vadd.f32 0.0, %v1139
      %1141 = vdwg.mxu0
      %1142 = vmatpush.bf16.msra.mxu0 0
      %1143 = vmatpush.bf16.msra.mxu0 0
      %1144 = vmatpush.bf16.msra.mxu0 0
      %1145 = vmatpush.bf16.msra.mxu0 0
      %1146 = vmatpush.bf16.msra.mxu0 0
      %1147 = vmatpush.bf16.msra.mxu0 0
      %1148 = vmatpush.bf16.msra.mxu0 0
      %1149 = vmatpush.bf16.msra.mxu0 %v1102
      %1150 = vmatmul.bf16.gmra.mxu0 %v1096
      %v1151 = vpop.f32.mrf.mxu0
      %v1152 = vadd.f32 0.0, %v1151
      %v1153 = vpop.f32.mrf.mxu0
      %v1154 = vadd.f32 0.0, %v1153
      %1155 = vdwg.mxu0
      %1156 = vmatpush.bf16.msra.mxu0 0
      %1157 = vmatpush.bf16.msra.mxu0 0
      %1158 = vmatpush.bf16.msra.mxu0 0
      %1159 = vmatpush.bf16.msra.mxu0 0
      %1160 = vmatpush.bf16.msra.mxu0 0
      %1161 = vmatpush.bf16.msra.mxu0 0
      %1162 = vmatpush.bf16.msra.mxu0 0
      %1163 = vmatpush.bf16.msra.mxu0 %v1105
      %1164 = vmatmul.bf16.gmra.mxu0 %v1096
      %v1165 = vpop.f32.mrf.mxu0
      %v1166 = vadd.f32 0.0, %v1165
      %v1167 = vpop.f32.mrf.mxu0
      %v1168 = vadd.f32 0.0, %v1167
      %1169 = vdwg.mxu0
      %1170 = vmatpush.bf16.msra.mxu0 0
      %1171 = vmatpush.bf16.msra.mxu0 0
      %1172 = vmatpush.bf16.msra.mxu0 0
      %1173 = vmatpush.bf16.msra.mxu0 0
      %1174 = vmatpush.bf16.msra.mxu0 0
      %1175 = vmatpush.bf16.msra.mxu0 0
      %1176 = vmatpush.bf16.msra.mxu0 0
      %1177 = vmatpush.bf16.msra.mxu0 %v1108
      %1178 = vmatmul.bf16.gmra.mxu0 %v1096
      %v1179 = vpop.f32.mrf.mxu0
      %v1180 = vadd.f32 0.0, %v1179
      %v1181 = vpop.f32.mrf.mxu0
      %v1182 = vadd.f32 0.0, %v1181
      %1183 = vdwg.mxu0
      %1184 = vmatpush.bf16.msra.mxu0 0
      %1185 = vmatpush.bf16.msra.mxu0 0
      %1186 = vmatpush.bf16.msra.mxu0 0
      %1187 = vmatpush.bf16.msra.mxu0 0
      %1188 = vmatpush.bf16.msra.mxu0 0
      %1189 = vmatpush.bf16.msra.mxu0 0
      %1190 = vmatpush.bf16.msra.mxu0 0
      %1191 = vmatpush.bf16.msra.mxu0 %v1111
      %1192 = vmatmul.bf16.gmra.mxu0 %v1096
      %v1193 = vpop.f32.mrf.mxu0
      %v1194 = vadd.f32 0.0, %v1193
      %v1195 = vpop.f32.mrf.mxu0
      %v1196 = vadd.f32 0.0, %v1195
      %1197 = vdwg.mxu0
      %1198 = vmatpush.bf16.msra.mxu0 0
      %1199 = vmatpush.bf16.msra.mxu0 0
      %1200 = vmatpush.bf16.msra.mxu0 0
      %1201 = vmatpush.bf16.msra.mxu0 0
      %1202 = vmatpush.bf16.msra.mxu0 0
      %1203 = vmatpush.bf16.msra.mxu0 0
      %1204 = vmatpush.bf16.msra.mxu0 0
      %1205 = vmatpush.bf16.msra.mxu0 %v1114
      %1206 = vmatmul.bf16.gmra.mxu0 %v1096
      %v1207 = vpop.f32.mrf.mxu0
      %v1208 = vadd.f32 0.0, %v1207
      %v1209 = vpop.f32.mrf.mxu0
      %v1210 = vadd.f32 0.0, %v1209
      %1211 = vdwg.mxu0
      %1212 = vmatpush.bf16.msra.mxu0 0
      %1213 = vmatpush.bf16.msra.mxu0 0
      %1214 = vmatpush.bf16.msra.mxu0 0
      %1215 = vmatpush.bf16.msra.mxu0 0
      %1216 = vmatpush.bf16.msra.mxu0 0
      %1217 = vmatpush.bf16.msra.mxu0 0
      %1218 = vmatpush.bf16.msra.mxu0 0
      %1219 = vmatpush.bf16.msra.mxu0 %v1117
      %1220 = vmatmul.bf16.gmra.mxu0 %v1096
      %v1221 = vpop.f32.mrf.mxu0
      %v1222 = vadd.f32 0.0, %v1221
      %v1223 = vpop.f32.mrf.mxu0
      %v1224 = vadd.f32 0.0, %v1223
      %1225 = vdwg.mxu0
      %1226 = vmatpush.bf16.msra.mxu0 0
      %1227 = vmatpush.bf16.msra.mxu0 0
      %1228 = vmatpush.bf16.msra.mxu0 0
      %1229 = vmatpush.bf16.msra.mxu0 0
      %1230 = vmatpush.bf16.msra.mxu0 0
      %1231 = vmatpush.bf16.msra.mxu0 0
      %1232 = vmatpush.bf16.msra.mxu0 0
      %1233 = vmatpush.bf16.msra.mxu0 %v1120
      %1234 = vmatmul.bf16.gmra.mxu0 %v1096
      %v1235 = vpop.f32.mrf.mxu0
      %v1236 = vadd.f32 0.0, %v1235
      %v1237 = vpop.f32.mrf.mxu0
      %v1238 = vadd.f32 0.0, %v1237
      %1239 = vdwg.mxu0
      %1240 = vmatpush.bf16.msra.mxu0 0
      %1241 = vmatpush.bf16.msra.mxu0 0
      %1242 = vmatpush.bf16.msra.mxu0 0
      %1243 = vmatpush.bf16.msra.mxu0 0
      %1244 = vmatpush.bf16.msra.mxu0 0
      %1245 = vmatpush.bf16.msra.mxu0 0
      %1246 = vmatpush.bf16.msra.mxu0 0
      %1247 = vmatpush.bf16.msra.mxu0 %v1123
      %1248 = vmatmul.bf16.gmra.mxu0 %v1096
      %v1249 = vpop.f32.mrf.mxu0
      %v1250 = vadd.f32 0.0, %v1249
      %v1251 = vpop.f32.mrf.mxu0
      %v1252 = vadd.f32 0.0, %v1251
      %1253 = vdwg.mxu0
      %1254 = vmatpush.bf16.msra.mxu0 0
      %1255 = vmatpush.bf16.msra.mxu0 0
      %1256 = vmatpush.bf16.msra.mxu0 0
      %1257 = vmatpush.bf16.msra.mxu0 0
      %1258 = vmatpush.bf16.msra.mxu0 0
      %1259 = vmatpush.bf16.msra.mxu0 0
      %1260 = vmatpush.bf16.msra.mxu0 0
      %1261 = vmatpush.bf16.msra.mxu0 %v1126
      %1262 = vmatmul.bf16.gmra.mxu0 %v1096
      %v1263 = vpop.f32.mrf.mxu0
      %v1264 = vadd.f32 0.0, %v1263
      %v1265 = vpop.f32.mrf.mxu0
      %v1266 = vadd.f32 0.0, %v1265
      %1267 = vdwg.mxu0
      %v1268 = vadd.f32 %v1037, %v1138
      %v1269 = vadd.f32 %v1038, %v1152
      %v1270 = vadd.f32 %v1039, %v1166
      %v1271 = vadd.f32 %v1040, %v1180
      %v1272 = vadd.f32 %v1041, %v1194
      %v1273 = vadd.f32 %v1042, %v1208
      %v1274 = vadd.f32 %v1043, %v1222
      %v1275 = vadd.f32 %v1044, %v1236
      %v1276 = vadd.f32 %v1045, %v1250
      %v1277 = vadd.f32 %v1046, %v1264
      %v1278 = vadd.f32 %v1047, %v1140
      %v1279 = vadd.f32 %v1048, %v1154
      %v1280 = vadd.f32 %v1049, %v1168
      %v1281 = vadd.f32 %v1050, %v1182
      %v1282 = vadd.f32 %v1051, %v1196
      %v1283 = vadd.f32 %v1052, %v1210
      %v1284 = vadd.f32 %v1053, %v1224
      %v1285 = vadd.f32 %v1054, %v1238
      %v1286 = vadd.f32 %v1055, %v1252
      %v1287 = vadd.f32 %v1056, %v1266
      %s1288 = scalar_lea.vmem %s1, 40
      %v1289 = vld [vmem:[%s1288] sm:$0xf]
      %v1290 = vld [vmem:[%s1288 + $0x4] sm:$0x3]
      %v1293 = vunpack.c.l.b16 %v1289
      %v1294 = vunpack.c.l.b16 %v1290
      %v1295 = vpack.c.b16 %v1294, %v1293
      %1296 = vrot.lane.b32.xlu0 %v202, 92
      %v1297 = vpop.permute.xlu0 %1296
      %1298 = vrot.lane.b32.xlu0 %v203, 92
      %v1299 = vpop.permute.xlu0 %1298
      %1300 = vrot.lane.b32.xlu0 %v204, 92
      %v1301 = vpop.permute.xlu0 %1300
      %1302 = vrot.lane.b32.xlu0 %v205, 92
      %v1303 = vpop.permute.xlu0 %1302
      %1304 = vrot.lane.b32.xlu0 %v206, 92
      %v1305 = vpop.permute.xlu0 %1304
      %1306 = vrot.lane.b32.xlu0 %v207, 92
      %v1307 = vpop.permute.xlu0 %1306
      %1308 = vrot.lane.b32.xlu0 %v208, 92
      %v1309 = vpop.permute.xlu0 %1308
      %1310 = vrot.lane.b32.xlu0 %v209, 92
      %v1311 = vpop.permute.xlu0 %1310
      %1312 = vrot.lane.b32.xlu0 %v210, 92
      %v1313 = vpop.permute.xlu0 %1312
      %1314 = vrot.lane.b32.xlu0 %v211, 92
      %v1315 = vpop.permute.xlu0 %1314
      %vm1316 = vcmask 752640
      %v1317 = vsel %vm1316, %v1297, %v1299
      %v1318 = vsel %vm1316, %v1299, %v1301
      %v1319 = vsel %vm1316, %v1301, %v1303
      %v1320 = vsel %vm1316, %v1303, %v1305
      %v1321 = vsel %vm1316, %v1305, %v1307
      %v1322 = vsel %vm1316, %v1307, %v1309
      %v1323 = vsel %vm1316, %v1309, %v1311
      %v1324 = vsel %vm1316, %v1311, %v1313
      %v1325 = vsel %vm1316, %v1313, %v1315
      %v1327 = vsel %vm242, %v1295, 0
      %v1330 = vsel %vm246, %v1317, 0
      %v1333 = vsel %vm246, %v1318, 0
      %v1336 = vsel %vm246, %v1319, 0
      %v1339 = vsel %vm246, %v1320, 0
      %v1342 = vsel %vm246, %v1321, 0
      %v1345 = vsel %vm246, %v1322, 0
      %v1348 = vsel %vm246, %v1323, 0
      %v1351 = vsel %vm246, %v1324, 0
      %v1354 = vsel %vm246, %v1325, 0
      %v1357 = vsel %vm246, %v1315, 0
      %1359 = vmatpush.bf16.msra.mxu0 0
      %1360 = vmatpush.bf16.msra.mxu0 0
      %1361 = vmatpush.bf16.msra.mxu0 0
      %1362 = vmatpush.bf16.msra.mxu0 0
      %1363 = vmatpush.bf16.msra.mxu0 0
      %1364 = vmatpush.bf16.msra.mxu0 0
      %1365 = vmatpush.bf16.msra.mxu0 0
      %1366 = vmatpush.bf16.msra.mxu0 %v1330
      %1367 = vmatmul.bf16.gmra.mxu0 %v1327
      %v1368 = vpop.f32.mrf.mxu0
      %v1369 = vadd.f32 0.0, %v1368
      %v1370 = vpop.f32.mrf.mxu0
      %v1371 = vadd.f32 0.0, %v1370
      %1372 = vdwg.mxu0
      %1373 = vmatpush.bf16.msra.mxu0 0
      %1374 = vmatpush.bf16.msra.mxu0 0
      %1375 = vmatpush.bf16.msra.mxu0 0
      %1376 = vmatpush.bf16.msra.mxu0 0
      %1377 = vmatpush.bf16.msra.mxu0 0
      %1378 = vmatpush.bf16.msra.mxu0 0
      %1379 = vmatpush.bf16.msra.mxu0 0
      %1380 = vmatpush.bf16.msra.mxu0 %v1333
      %1381 = vmatmul.bf16.gmra.mxu0 %v1327
      %v1382 = vpop.f32.mrf.mxu0
      %v1383 = vadd.f32 0.0, %v1382
      %v1384 = vpop.f32.mrf.mxu0
      %v1385 = vadd.f32 0.0, %v1384
      %1386 = vdwg.mxu0
      %1387 = vmatpush.bf16.msra.mxu0 0
      %1388 = vmatpush.bf16.msra.mxu0 0
      %1389 = vmatpush.bf16.msra.mxu0 0
      %1390 = vmatpush.bf16.msra.mxu0 0
      %1391 = vmatpush.bf16.msra.mxu0 0
      %1392 = vmatpush.bf16.msra.mxu0 0
      %1393 = vmatpush.bf16.msra.mxu0 0
      %1394 = vmatpush.bf16.msra.mxu0 %v1336
      %1395 = vmatmul.bf16.gmra.mxu0 %v1327
      %v1396 = vpop.f32.mrf.mxu0
      %v1397 = vadd.f32 0.0, %v1396
      %v1398 = vpop.f32.mrf.mxu0
      %v1399 = vadd.f32 0.0, %v1398
      %1400 = vdwg.mxu0
      %1401 = vmatpush.bf16.msra.mxu0 0
      %1402 = vmatpush.bf16.msra.mxu0 0
      %1403 = vmatpush.bf16.msra.mxu0 0
      %1404 = vmatpush.bf16.msra.mxu0 0
      %1405 = vmatpush.bf16.msra.mxu0 0
      %1406 = vmatpush.bf16.msra.mxu0 0
      %1407 = vmatpush.bf16.msra.mxu0 0
      %1408 = vmatpush.bf16.msra.mxu0 %v1339
      %1409 = vmatmul.bf16.gmra.mxu0 %v1327
      %v1410 = vpop.f32.mrf.mxu0
      %v1411 = vadd.f32 0.0, %v1410
      %v1412 = vpop.f32.mrf.mxu0
      %v1413 = vadd.f32 0.0, %v1412
      %1414 = vdwg.mxu0
      %1415 = vmatpush.bf16.msra.mxu0 0
      %1416 = vmatpush.bf16.msra.mxu0 0
      %1417 = vmatpush.bf16.msra.mxu0 0
      %1418 = vmatpush.bf16.msra.mxu0 0
      %1419 = vmatpush.bf16.msra.mxu0 0
      %1420 = vmatpush.bf16.msra.mxu0 0
      %1421 = vmatpush.bf16.msra.mxu0 0
      %1422 = vmatpush.bf16.msra.mxu0 %v1342
      %1423 = vmatmul.bf16.gmra.mxu0 %v1327
      %v1424 = vpop.f32.mrf.mxu0
      %v1425 = vadd.f32 0.0, %v1424
      %v1426 = vpop.f32.mrf.mxu0
      %v1427 = vadd.f32 0.0, %v1426
      %1428 = vdwg.mxu0
      %1429 = vmatpush.bf16.msra.mxu0 0
      %1430 = vmatpush.bf16.msra.mxu0 0
      %1431 = vmatpush.bf16.msra.mxu0 0
      %1432 = vmatpush.bf16.msra.mxu0 0
      %1433 = vmatpush.bf16.msra.mxu0 0
      %1434 = vmatpush.bf16.msra.mxu0 0
      %1435 = vmatpush.bf16.msra.mxu0 0
      %1436 = vmatpush.bf16.msra.mxu0 %v1345
      %1437 = vmatmul.bf16.gmra.mxu0 %v1327
      %v1438 = vpop.f32.mrf.mxu0
      %v1439 = vadd.f32 0.0, %v1438
      %v1440 = vpop.f32.mrf.mxu0
      %v1441 = vadd.f32 0.0, %v1440
      %1442 = vdwg.mxu0
      %1443 = vmatpush.bf16.msra.mxu0 0
      %1444 = vmatpush.bf16.msra.mxu0 0
      %1445 = vmatpush.bf16.msra.mxu0 0
      %1446 = vmatpush.bf16.msra.mxu0 0
      %1447 = vmatpush.bf16.msra.mxu0 0
      %1448 = vmatpush.bf16.msra.mxu0 0
      %1449 = vmatpush.bf16.msra.mxu0 0
      %1450 = vmatpush.bf16.msra.mxu0 %v1348
      %1451 = vmatmul.bf16.gmra.mxu0 %v1327
      %v1452 = vpop.f32.mrf.mxu0
      %v1453 = vadd.f32 0.0, %v1452
      %v1454 = vpop.f32.mrf.mxu0
      %v1455 = vadd.f32 0.0, %v1454
      %1456 = vdwg.mxu0
      %1457 = vmatpush.bf16.msra.mxu0 0
      %1458 = vmatpush.bf16.msra.mxu0 0
      %1459 = vmatpush.bf16.msra.mxu0 0
      %1460 = vmatpush.bf16.msra.mxu0 0
      %1461 = vmatpush.bf16.msra.mxu0 0
      %1462 = vmatpush.bf16.msra.mxu0 0
      %1463 = vmatpush.bf16.msra.mxu0 0
      %1464 = vmatpush.bf16.msra.mxu0 %v1351
      %1465 = vmatmul.bf16.gmra.mxu0 %v1327
      %v1466 = vpop.f32.mrf.mxu0
      %v1467 = vadd.f32 0.0, %v1466
      %v1468 = vpop.f32.mrf.mxu0
      %v1469 = vadd.f32 0.0, %v1468
      %1470 = vdwg.mxu0
      %1471 = vmatpush.bf16.msra.mxu0 0
      %1472 = vmatpush.bf16.msra.mxu0 0
      %1473 = vmatpush.bf16.msra.mxu0 0
      %1474 = vmatpush.bf16.msra.mxu0 0
      %1475 = vmatpush.bf16.msra.mxu0 0
      %1476 = vmatpush.bf16.msra.mxu0 0
      %1477 = vmatpush.bf16.msra.mxu0 0
      %1478 = vmatpush.bf16.msra.mxu0 %v1354
      %1479 = vmatmul.bf16.gmra.mxu0 %v1327
      %v1480 = vpop.f32.mrf.mxu0
      %v1481 = vadd.f32 0.0, %v1480
      %v1482 = vpop.f32.mrf.mxu0
      %v1483 = vadd.f32 0.0, %v1482
      %1484 = vdwg.mxu0
      %1485 = vmatpush.bf16.msra.mxu0 0
      %1486 = vmatpush.bf16.msra.mxu0 0
      %1487 = vmatpush.bf16.msra.mxu0 0
      %1488 = vmatpush.bf16.msra.mxu0 0
      %1489 = vmatpush.bf16.msra.mxu0 0
      %1490 = vmatpush.bf16.msra.mxu0 0
      %1491 = vmatpush.bf16.msra.mxu0 0
      %1492 = vmatpush.bf16.msra.mxu0 %v1357
      %1493 = vmatmul.bf16.gmra.mxu0 %v1327
      %v1494 = vpop.f32.mrf.mxu0
      %v1495 = vadd.f32 0.0, %v1494
      %v1496 = vpop.f32.mrf.mxu0
      %v1497 = vadd.f32 0.0, %v1496
      %1498 = vdwg.mxu0
      %v1499 = vadd.f32 %v1268, %v1369
      %v1500 = vadd.f32 %v1269, %v1383
      %v1501 = vadd.f32 %v1270, %v1397
      %v1502 = vadd.f32 %v1271, %v1411
      %v1503 = vadd.f32 %v1272, %v1425
      %v1504 = vadd.f32 %v1273, %v1439
      %v1505 = vadd.f32 %v1274, %v1453
      %v1506 = vadd.f32 %v1275, %v1467
      %v1507 = vadd.f32 %v1276, %v1481
      %v1508 = vadd.f32 %v1277, %v1495
      %v1509 = vadd.f32 %v1278, %v1371
      %v1510 = vadd.f32 %v1279, %v1385
      %v1511 = vadd.f32 %v1280, %v1399
      %v1512 = vadd.f32 %v1281, %v1413
      %v1513 = vadd.f32 %v1282, %v1427
      %v1514 = vadd.f32 %v1283, %v1441
      %v1515 = vadd.f32 %v1284, %v1455
      %v1516 = vadd.f32 %v1285, %v1469
      %v1517 = vadd.f32 %v1286, %v1483
      %v1518 = vadd.f32 %v1287, %v1497
      %s1519 = scalar_lea.vmem %s1, 48
      %v1520 = vld [vmem:[%s1519] sm:$0xf]
      %v1521 = vld [vmem:[%s1519 + $0x4] sm:$0x3]
      %v1524 = vunpack.c.l.b16 %v1520
      %v1525 = vunpack.c.l.b16 %v1521
      %v1526 = vpack.c.b16 %v1525, %v1524
      %1527 = vrot.lane.b32.xlu0 %v202, 60
      %v1528 = vpop.permute.xlu0 %1527
      %1529 = vrot.lane.b32.xlu0 %v203, 60
      %v1530 = vpop.permute.xlu0 %1529
      %1531 = vrot.lane.b32.xlu0 %v204, 60
      %v1532 = vpop.permute.xlu0 %1531
      %1533 = vrot.lane.b32.xlu0 %v205, 60
      %v1534 = vpop.permute.xlu0 %1533
      %1535 = vrot.lane.b32.xlu0 %v206, 60
      %v1536 = vpop.permute.xlu0 %1535
      %1537 = vrot.lane.b32.xlu0 %v207, 60
      %v1538 = vpop.permute.xlu0 %1537
      %1539 = vrot.lane.b32.xlu0 %v208, 60
      %v1540 = vpop.permute.xlu0 %1539
      %1541 = vrot.lane.b32.xlu0 %v209, 60
      %v1542 = vpop.permute.xlu0 %1541
      %1543 = vrot.lane.b32.xlu0 %v210, 60
      %v1544 = vpop.permute.xlu0 %1543
      %1545 = vrot.lane.b32.xlu0 %v211, 60
      %v1546 = vpop.permute.xlu0 %1545
      %vm1547 = vcmask 490496
      %v1548 = vsel %vm1547, %v1528, %v1530
      %v1549 = vsel %vm1547, %v1530, %v1532
      %v1550 = vsel %vm1547, %v1532, %v1534
      %v1551 = vsel %vm1547, %v1534, %v1536
      %v1552 = vsel %vm1547, %v1536, %v1538
      %v1553 = vsel %vm1547, %v1538, %v1540
      %v1554 = vsel %vm1547, %v1540, %v1542
      %v1555 = vsel %vm1547, %v1542, %v1544
      %v1556 = vsel %vm1547, %v1544, %v1546
      %v1558 = vsel %vm242, %v1526, 0
      %v1561 = vsel %vm246, %v1548, 0
      %v1564 = vsel %vm246, %v1549, 0
      %v1567 = vsel %vm246, %v1550, 0
      %v1570 = vsel %vm246, %v1551, 0
      %v1573 = vsel %vm246, %v1552, 0
      %v1576 = vsel %vm246, %v1553, 0
      %v1579 = vsel %vm246, %v1554, 0
      %v1582 = vsel %vm246, %v1555, 0
      %v1585 = vsel %vm246, %v1556, 0
      %v1588 = vsel %vm246, %v1546, 0
      %1590 = vmatpush.bf16.msra.mxu0 0
      %1591 = vmatpush.bf16.msra.mxu0 0
      %1592 = vmatpush.bf16.msra.mxu0 0
      %1593 = vmatpush.bf16.msra.mxu0 0
      %1594 = vmatpush.bf16.msra.mxu0 0
      %1595 = vmatpush.bf16.msra.mxu0 0
      %1596 = vmatpush.bf16.msra.mxu0 0
      %1597 = vmatpush.bf16.msra.mxu0 %v1561
      %1598 = vmatmul.bf16.gmra.mxu0 %v1558
      %v1599 = vpop.f32.mrf.mxu0
      %v1600 = vadd.f32 0.0, %v1599
      %v1601 = vpop.f32.mrf.mxu0
      %v1602 = vadd.f32 0.0, %v1601
      %1603 = vdwg.mxu0
      %1604 = vmatpush.bf16.msra.mxu0 0
      %1605 = vmatpush.bf16.msra.mxu0 0
      %1606 = vmatpush.bf16.msra.mxu0 0
      %1607 = vmatpush.bf16.msra.mxu0 0
      %1608 = vmatpush.bf16.msra.mxu0 0
      %1609 = vmatpush.bf16.msra.mxu0 0
      %1610 = vmatpush.bf16.msra.mxu0 0
      %1611 = vmatpush.bf16.msra.mxu0 %v1564
      %1612 = vmatmul.bf16.gmra.mxu0 %v1558
      %v1613 = vpop.f32.mrf.mxu0
      %v1614 = vadd.f32 0.0, %v1613
      %v1615 = vpop.f32.mrf.mxu0
      %v1616 = vadd.f32 0.0, %v1615
      %1617 = vdwg.mxu0
      %1618 = vmatpush.bf16.msra.mxu0 0
      %1619 = vmatpush.bf16.msra.mxu0 0
      %1620 = vmatpush.bf16.msra.mxu0 0
      %1621 = vmatpush.bf16.msra.mxu0 0
      %1622 = vmatpush.bf16.msra.mxu0 0
      %1623 = vmatpush.bf16.msra.mxu0 0
      %1624 = vmatpush.bf16.msra.mxu0 0
      %1625 = vmatpush.bf16.msra.mxu0 %v1567
      %1626 = vmatmul.bf16.gmra.mxu0 %v1558
      %v1627 = vpop.f32.mrf.mxu0
      %v1628 = vadd.f32 0.0, %v1627
      %v1629 = vpop.f32.mrf.mxu0
      %v1630 = vadd.f32 0.0, %v1629
      %1631 = vdwg.mxu0
      %1632 = vmatpush.bf16.msra.mxu0 0
      %1633 = vmatpush.bf16.msra.mxu0 0
      %1634 = vmatpush.bf16.msra.mxu0 0
      %1635 = vmatpush.bf16.msra.mxu0 0
      %1636 = vmatpush.bf16.msra.mxu0 0
      %1637 = vmatpush.bf16.msra.mxu0 0
      %1638 = vmatpush.bf16.msra.mxu0 0
      %1639 = vmatpush.bf16.msra.mxu0 %v1570
      %1640 = vmatmul.bf16.gmra.mxu0 %v1558
      %v1641 = vpop.f32.mrf.mxu0
      %v1642 = vadd.f32 0.0, %v1641
      %v1643 = vpop.f32.mrf.mxu0
      %v1644 = vadd.f32 0.0, %v1643
      %1645 = vdwg.mxu0
      %1646 = vmatpush.bf16.msra.mxu0 0
      %1647 = vmatpush.bf16.msra.mxu0 0
      %1648 = vmatpush.bf16.msra.mxu0 0
      %1649 = vmatpush.bf16.msra.mxu0 0
      %1650 = vmatpush.bf16.msra.mxu0 0
      %1651 = vmatpush.bf16.msra.mxu0 0
      %1652 = vmatpush.bf16.msra.mxu0 0
      %1653 = vmatpush.bf16.msra.mxu0 %v1573
      %1654 = vmatmul.bf16.gmra.mxu0 %v1558
      %v1655 = vpop.f32.mrf.mxu0
      %v1656 = vadd.f32 0.0, %v1655
      %v1657 = vpop.f32.mrf.mxu0
      %v1658 = vadd.f32 0.0, %v1657
      %1659 = vdwg.mxu0
      %1660 = vmatpush.bf16.msra.mxu0 0
      %1661 = vmatpush.bf16.msra.mxu0 0
      %1662 = vmatpush.bf16.msra.mxu0 0
      %1663 = vmatpush.bf16.msra.mxu0 0
      %1664 = vmatpush.bf16.msra.mxu0 0
      %1665 = vmatpush.bf16.msra.mxu0 0
      %1666 = vmatpush.bf16.msra.mxu0 0
      %1667 = vmatpush.bf16.msra.mxu0 %v1576
      %1668 = vmatmul.bf16.gmra.mxu0 %v1558
      %v1669 = vpop.f32.mrf.mxu0
      %v1670 = vadd.f32 0.0, %v1669
      %v1671 = vpop.f32.mrf.mxu0
      %v1672 = vadd.f32 0.0, %v1671
      %1673 = vdwg.mxu0
      %1674 = vmatpush.bf16.msra.mxu0 0
      %1675 = vmatpush.bf16.msra.mxu0 0
      %1676 = vmatpush.bf16.msra.mxu0 0
      %1677 = vmatpush.bf16.msra.mxu0 0
      %1678 = vmatpush.bf16.msra.mxu0 0
      %1679 = vmatpush.bf16.msra.mxu0 0
      %1680 = vmatpush.bf16.msra.mxu0 0
      %1681 = vmatpush.bf16.msra.mxu0 %v1579
      %1682 = vmatmul.bf16.gmra.mxu0 %v1558
      %v1683 = vpop.f32.mrf.mxu0
      %v1684 = vadd.f32 0.0, %v1683
      %v1685 = vpop.f32.mrf.mxu0
      %v1686 = vadd.f32 0.0, %v1685
      %1687 = vdwg.mxu0
      %1688 = vmatpush.bf16.msra.mxu0 0
      %1689 = vmatpush.bf16.msra.mxu0 0
      %1690 = vmatpush.bf16.msra.mxu0 0
      %1691 = vmatpush.bf16.msra.mxu0 0
      %1692 = vmatpush.bf16.msra.mxu0 0
      %1693 = vmatpush.bf16.msra.mxu0 0
      %1694 = vmatpush.bf16.msra.mxu0 0
      %1695 = vmatpush.bf16.msra.mxu0 %v1582
      %1696 = vmatmul.bf16.gmra.mxu0 %v1558
      %v1697 = vpop.f32.mrf.mxu0
      %v1698 = vadd.f32 0.0, %v1697
      %v1699 = vpop.f32.mrf.mxu0
      %v1700 = vadd.f32 0.0, %v1699
      %1701 = vdwg.mxu0
      %1702 = vmatpush.bf16.msra.mxu0 0
      %1703 = vmatpush.bf16.msra.mxu0 0
      %1704 = vmatpush.bf16.msra.mxu0 0
      %1705 = vmatpush.bf16.msra.mxu0 0
      %1706 = vmatpush.bf16.msra.mxu0 0
      %1707 = vmatpush.bf16.msra.mxu0 0
      %1708 = vmatpush.bf16.msra.mxu0 0
      %1709 = vmatpush.bf16.msra.mxu0 %v1585
      %1710 = vmatmul.bf16.gmra.mxu0 %v1558
      %v1711 = vpop.f32.mrf.mxu0
      %v1712 = vadd.f32 0.0, %v1711
      %v1713 = vpop.f32.mrf.mxu0
      %v1714 = vadd.f32 0.0, %v1713
      %1715 = vdwg.mxu0
      %1716 = vmatpush.bf16.msra.mxu0 0
      %1717 = vmatpush.bf16.msra.mxu0 0
      %1718 = vmatpush.bf16.msra.mxu0 0
      %1719 = vmatpush.bf16.msra.mxu0 0
      %1720 = vmatpush.bf16.msra.mxu0 0
      %1721 = vmatpush.bf16.msra.mxu0 0
      %1722 = vmatpush.bf16.msra.mxu0 0
      %1723 = vmatpush.bf16.msra.mxu0 %v1588
      %1724 = vmatmul.bf16.gmra.mxu0 %v1558
      %v1725 = vpop.f32.mrf.mxu0
      %v1726 = vadd.f32 0.0, %v1725
      %v1727 = vpop.f32.mrf.mxu0
      %v1728 = vadd.f32 0.0, %v1727
      %1729 = vdwg.mxu0
      %v1730 = vadd.f32 %v1499, %v1600
      %v1731 = vadd.f32 %v1500, %v1614
      %v1732 = vadd.f32 %v1501, %v1628
      %v1733 = vadd.f32 %v1502, %v1642
      %v1734 = vadd.f32 %v1503, %v1656
      %v1735 = vadd.f32 %v1504, %v1670
      %v1736 = vadd.f32 %v1505, %v1684
      %v1737 = vadd.f32 %v1506, %v1698
      %v1738 = vadd.f32 %v1507, %v1712
      %v1739 = vadd.f32 %v1508, %v1726
      %v1740 = vadd.f32 %v1509, %v1602
      %v1741 = vadd.f32 %v1510, %v1616
      %v1742 = vadd.f32 %v1511, %v1630
      %v1743 = vadd.f32 %v1512, %v1644
      %v1744 = vadd.f32 %v1513, %v1658
      %v1745 = vadd.f32 %v1514, %v1672
      %v1746 = vadd.f32 %v1515, %v1686
      %v1747 = vadd.f32 %v1516, %v1700
      %v1748 = vadd.f32 %v1517, %v1714
      %v1749 = vadd.f32 %v1518, %v1728
      %s1750 = scalar_lea.vmem %s1, 56
      %v1751 = vld [vmem:[%s1750] sm:$0xf]
      %v1752 = vld [vmem:[%s1750 + $0x4] sm:$0x3]
      %v1755 = vunpack.c.l.b16 %v1751
      %v1756 = vunpack.c.l.b16 %v1752
      %v1757 = vpack.c.b16 %v1756, %v1755
      %1758 = vrot.lane.b32.xlu0 %v202, 59
      %v1759 = vpop.permute.xlu0 %1758
      %1760 = vrot.lane.b32.xlu0 %v203, 59
      %v1761 = vpop.permute.xlu0 %1760
      %1762 = vrot.lane.b32.xlu0 %v204, 59
      %v1763 = vpop.permute.xlu0 %1762
      %1764 = vrot.lane.b32.xlu0 %v205, 59
      %v1765 = vpop.permute.xlu0 %1764
      %1766 = vrot.lane.b32.xlu0 %v206, 59
      %v1767 = vpop.permute.xlu0 %1766
      %1768 = vrot.lane.b32.xlu0 %v207, 59
      %v1769 = vpop.permute.xlu0 %1768
      %1770 = vrot.lane.b32.xlu0 %v208, 59
      %v1771 = vpop.permute.xlu0 %1770
      %1772 = vrot.lane.b32.xlu0 %v209, 59
      %v1773 = vpop.permute.xlu0 %1772
      %1774 = vrot.lane.b32.xlu0 %v210, 59
      %v1775 = vpop.permute.xlu0 %1774
      %1776 = vrot.lane.b32.xlu0 %v211, 59
      %v1777 = vpop.permute.xlu0 %1776
      %vm1778 = vcmask 482304
      %v1779 = vsel %vm1778, %v1759, %v1761
      %v1780 = vsel %vm1778, %v1761, %v1763
      %v1781 = vsel %vm1778, %v1763, %v1765
      %v1782 = vsel %vm1778, %v1765, %v1767
      %v1783 = vsel %vm1778, %v1767, %v1769
      %v1784 = vsel %vm1778, %v1769, %v1771
      %v1785 = vsel %vm1778, %v1771, %v1773
      %v1786 = vsel %vm1778, %v1773, %v1775
      %v1787 = vsel %vm1778, %v1775, %v1777
      %v1789 = vsel %vm242, %v1757, 0
      %v1792 = vsel %vm246, %v1779, 0
      %v1795 = vsel %vm246, %v1780, 0
      %v1798 = vsel %vm246, %v1781, 0
      %v1801 = vsel %vm246, %v1782, 0
      %v1804 = vsel %vm246, %v1783, 0
      %v1807 = vsel %vm246, %v1784, 0
      %v1810 = vsel %vm246, %v1785, 0
      %v1813 = vsel %vm246, %v1786, 0
      %v1816 = vsel %vm246, %v1787, 0
      %v1819 = vsel %vm246, %v1777, 0
      %1821 = vmatpush.bf16.msra.mxu0 0
      %1822 = vmatpush.bf16.msra.mxu0 0
      %1823 = vmatpush.bf16.msra.mxu0 0
      %1824 = vmatpush.bf16.msra.mxu0 0
      %1825 = vmatpush.bf16.msra.mxu0 0
      %1826 = vmatpush.bf16.msra.mxu0 0
      %1827 = vmatpush.bf16.msra.mxu0 0
      %1828 = vmatpush.bf16.msra.mxu0 %v1792
      %1829 = vmatmul.bf16.gmra.mxu0 %v1789
      %v1830 = vpop.f32.mrf.mxu0
      %v1831 = vadd.f32 0.0, %v1830
      %v1832 = vpop.f32.mrf.mxu0
      %v1833 = vadd.f32 0.0, %v1832
      %1834 = vdwg.mxu0
      %1835 = vmatpush.bf16.msra.mxu0 0
      %1836 = vmatpush.bf16.msra.mxu0 0
      %1837 = vmatpush.bf16.msra.mxu0 0
      %1838 = vmatpush.bf16.msra.mxu0 0
      %1839 = vmatpush.bf16.msra.mxu0 0
      %1840 = vmatpush.bf16.msra.mxu0 0
      %1841 = vmatpush.bf16.msra.mxu0 0
      %1842 = vmatpush.bf16.msra.mxu0 %v1795
      %1843 = vmatmul.bf16.gmra.mxu0 %v1789
      %v1844 = vpop.f32.mrf.mxu0
      %v1845 = vadd.f32 0.0, %v1844
      %v1846 = vpop.f32.mrf.mxu0
      %v1847 = vadd.f32 0.0, %v1846
      %1848 = vdwg.mxu0
      %1849 = vmatpush.bf16.msra.mxu0 0
      %1850 = vmatpush.bf16.msra.mxu0 0
      %1851 = vmatpush.bf16.msra.mxu0 0
      %1852 = vmatpush.bf16.msra.mxu0 0
      %1853 = vmatpush.bf16.msra.mxu0 0
      %1854 = vmatpush.bf16.msra.mxu0 0
      %1855 = vmatpush.bf16.msra.mxu0 0
      %1856 = vmatpush.bf16.msra.mxu0 %v1798
      %1857 = vmatmul.bf16.gmra.mxu0 %v1789
      %v1858 = vpop.f32.mrf.mxu0
      %v1859 = vadd.f32 0.0, %v1858
      %v1860 = vpop.f32.mrf.mxu0
      %v1861 = vadd.f32 0.0, %v1860
      %1862 = vdwg.mxu0
      %1863 = vmatpush.bf16.msra.mxu0 0
      %1864 = vmatpush.bf16.msra.mxu0 0
      %1865 = vmatpush.bf16.msra.mxu0 0
      %1866 = vmatpush.bf16.msra.mxu0 0
      %1867 = vmatpush.bf16.msra.mxu0 0
      %1868 = vmatpush.bf16.msra.mxu0 0
      %1869 = vmatpush.bf16.msra.mxu0 0
      %1870 = vmatpush.bf16.msra.mxu0 %v1801
      %1871 = vmatmul.bf16.gmra.mxu0 %v1789
      %v1872 = vpop.f32.mrf.mxu0
      %v1873 = vadd.f32 0.0, %v1872
      %v1874 = vpop.f32.mrf.mxu0
      %v1875 = vadd.f32 0.0, %v1874
      %1876 = vdwg.mxu0
      %1877 = vmatpush.bf16.msra.mxu0 0
      %1878 = vmatpush.bf16.msra.mxu0 0
      %1879 = vmatpush.bf16.msra.mxu0 0
      %1880 = vmatpush.bf16.msra.mxu0 0
      %1881 = vmatpush.bf16.msra.mxu0 0
      %1882 = vmatpush.bf16.msra.mxu0 0
      %1883 = vmatpush.bf16.msra.mxu0 0
      %1884 = vmatpush.bf16.msra.mxu0 %v1804
      %1885 = vmatmul.bf16.gmra.mxu0 %v1789
      %v1886 = vpop.f32.mrf.mxu0
      %v1887 = vadd.f32 0.0, %v1886
      %v1888 = vpop.f32.mrf.mxu0
      %v1889 = vadd.f32 0.0, %v1888
      %1890 = vdwg.mxu0
      %1891 = vmatpush.bf16.msra.mxu0 0
      %1892 = vmatpush.bf16.msra.mxu0 0
      %1893 = vmatpush.bf16.msra.mxu0 0
      %1894 = vmatpush.bf16.msra.mxu0 0
      %1895 = vmatpush.bf16.msra.mxu0 0
      %1896 = vmatpush.bf16.msra.mxu0 0
      %1897 = vmatpush.bf16.msra.mxu0 0
      %1898 = vmatpush.bf16.msra.mxu0 %v1807
      %1899 = vmatmul.bf16.gmra.mxu0 %v1789
      %v1900 = vpop.f32.mrf.mxu0
      %v1901 = vadd.f32 0.0, %v1900
      %v1902 = vpop.f32.mrf.mxu0
      %v1903 = vadd.f32 0.0, %v1902
      %1904 = vdwg.mxu0
      %1905 = vmatpush.bf16.msra.mxu0 0
      %1906 = vmatpush.bf16.msra.mxu0 0
      %1907 = vmatpush.bf16.msra.mxu0 0
      %1908 = vmatpush.bf16.msra.mxu0 0
      %1909 = vmatpush.bf16.msra.mxu0 0
      %1910 = vmatpush.bf16.msra.mxu0 0
      %1911 = vmatpush.bf16.msra.mxu0 0
      %1912 = vmatpush.bf16.msra.mxu0 %v1810
      %1913 = vmatmul.bf16.gmra.mxu0 %v1789
      %v1914 = vpop.f32.mrf.mxu0
      %v1915 = vadd.f32 0.0, %v1914
      %v1916 = vpop.f32.mrf.mxu0
      %v1917 = vadd.f32 0.0, %v1916
      %1918 = vdwg.mxu0
      %1919 = vmatpush.bf16.msra.mxu0 0
      %1920 = vmatpush.bf16.msra.mxu0 0
      %1921 = vmatpush.bf16.msra.mxu0 0
      %1922 = vmatpush.bf16.msra.mxu0 0
      %1923 = vmatpush.bf16.msra.mxu0 0
      %1924 = vmatpush.bf16.msra.mxu0 0
      %1925 = vmatpush.bf16.msra.mxu0 0
      %1926 = vmatpush.bf16.msra.mxu0 %v1813
      %1927 = vmatmul.bf16.gmra.mxu0 %v1789
      %v1928 = vpop.f32.mrf.mxu0
      %v1929 = vadd.f32 0.0, %v1928
      %v1930 = vpop.f32.mrf.mxu0
      %v1931 = vadd.f32 0.0, %v1930
      %1932 = vdwg.mxu0
      %1933 = vmatpush.bf16.msra.mxu0 0
      %1934 = vmatpush.bf16.msra.mxu0 0
      %1935 = vmatpush.bf16.msra.mxu0 0
      %1936 = vmatpush.bf16.msra.mxu0 0
      %1937 = vmatpush.bf16.msra.mxu0 0
      %1938 = vmatpush.bf16.msra.mxu0 0
      %1939 = vmatpush.bf16.msra.mxu0 0
      %1940 = vmatpush.bf16.msra.mxu0 %v1816
      %1941 = vmatmul.bf16.gmra.mxu0 %v1789
      %v1942 = vpop.f32.mrf.mxu0
      %v1943 = vadd.f32 0.0, %v1942
      %v1944 = vpop.f32.mrf.mxu0
      %v1945 = vadd.f32 0.0, %v1944
      %1946 = vdwg.mxu0
      %1947 = vmatpush.bf16.msra.mxu0 0
      %1948 = vmatpush.bf16.msra.mxu0 0
      %1949 = vmatpush.bf16.msra.mxu0 0
      %1950 = vmatpush.bf16.msra.mxu0 0
      %1951 = vmatpush.bf16.msra.mxu0 0
      %1952 = vmatpush.bf16.msra.mxu0 0
      %1953 = vmatpush.bf16.msra.mxu0 0
      %1954 = vmatpush.bf16.msra.mxu0 %v1819
      %1955 = vmatmul.bf16.gmra.mxu0 %v1789
      %v1956 = vpop.f32.mrf.mxu0
      %v1957 = vadd.f32 0.0, %v1956
      %v1958 = vpop.f32.mrf.mxu0
      %v1959 = vadd.f32 0.0, %v1958
      %1960 = vdwg.mxu0
      %v1961 = vadd.f32 %v1730, %v1831
      %v1962 = vadd.f32 %v1731, %v1845
      %v1963 = vadd.f32 %v1732, %v1859
      %v1964 = vadd.f32 %v1733, %v1873
      %v1965 = vadd.f32 %v1734, %v1887
      %v1966 = vadd.f32 %v1735, %v1901
      %v1967 = vadd.f32 %v1736, %v1915
      %v1968 = vadd.f32 %v1737, %v1929
      %v1969 = vadd.f32 %v1738, %v1943
      %v1970 = vadd.f32 %v1739, %v1957
      %v1971 = vadd.f32 %v1740, %v1833
      %v1972 = vadd.f32 %v1741, %v1847
      %v1973 = vadd.f32 %v1742, %v1861
      %v1974 = vadd.f32 %v1743, %v1875
      %v1975 = vadd.f32 %v1744, %v1889
      %v1976 = vadd.f32 %v1745, %v1903
      %v1977 = vadd.f32 %v1746, %v1917
      %v1978 = vadd.f32 %v1747, %v1931
      %v1979 = vadd.f32 %v1748, %v1945
      %v1980 = vadd.f32 %v1749, %v1959
      %s1981 = scalar_lea.vmem %s1, 64
      %v1982 = vld [vmem:[%s1981] sm:$0xf]
      %v1983 = vld [vmem:[%s1981 + $0x4] sm:$0x3]
      %v1986 = vunpack.c.l.b16 %v1982
      %v1987 = vunpack.c.l.b16 %v1983
      %v1988 = vpack.c.b16 %v1987, %v1986
      %1989 = vrot.lane.b32.xlu0 %v202, 58
      %v1990 = vpop.permute.xlu0 %1989
      %1991 = vrot.lane.b32.xlu0 %v203, 58
      %v1992 = vpop.permute.xlu0 %1991
      %1993 = vrot.lane.b32.xlu0 %v204, 58
      %v1994 = vpop.permute.xlu0 %1993
      %1995 = vrot.lane.b32.xlu0 %v205, 58
      %v1996 = vpop.permute.xlu0 %1995
      %1997 = vrot.lane.b32.xlu0 %v206, 58
      %v1998 = vpop.permute.xlu0 %1997
      %1999 = vrot.lane.b32.xlu0 %v207, 58
      %v2000 = vpop.permute.xlu0 %1999
      %2001 = vrot.lane.b32.xlu0 %v208, 58
      %v2002 = vpop.permute.xlu0 %2001
      %2003 = vrot.lane.b32.xlu0 %v209, 58
      %v2004 = vpop.permute.xlu0 %2003
      %2005 = vrot.lane.b32.xlu0 %v210, 58
      %v2006 = vpop.permute.xlu0 %2005
      %2007 = vrot.lane.b32.xlu0 %v211, 58
      %v2008 = vpop.permute.xlu0 %2007
      %vm2009 = vcmask 474112
      %v2010 = vsel %vm2009, %v1990, %v1992
      %v2011 = vsel %vm2009, %v1992, %v1994
      %v2012 = vsel %vm2009, %v1994, %v1996
      %v2013 = vsel %vm2009, %v1996, %v1998
      %v2014 = vsel %vm2009, %v1998, %v2000
      %v2015 = vsel %vm2009, %v2000, %v2002
      %v2016 = vsel %vm2009, %v2002, %v2004
      %v2017 = vsel %vm2009, %v2004, %v2006
      %v2018 = vsel %vm2009, %v2006, %v2008
      %v2020 = vsel %vm242, %v1988, 0
      %v2023 = vsel %vm246, %v2010, 0
      %v2026 = vsel %vm246, %v2011, 0
      %v2029 = vsel %vm246, %v2012, 0
      %v2032 = vsel %vm246, %v2013, 0
      %v2035 = vsel %vm246, %v2014, 0
      %v2038 = vsel %vm246, %v2015, 0
      %v2041 = vsel %vm246, %v2016, 0
      %v2044 = vsel %vm246, %v2017, 0
      %v2047 = vsel %vm246, %v2018, 0
      %v2050 = vsel %vm246, %v2008, 0
      %2052 = vmatpush.bf16.msra.mxu0 0
      %2053 = vmatpush.bf16.msra.mxu0 0
      %2054 = vmatpush.bf16.msra.mxu0 0
      %2055 = vmatpush.bf16.msra.mxu0 0
      %2056 = vmatpush.bf16.msra.mxu0 0
      %2057 = vmatpush.bf16.msra.mxu0 0
      %2058 = vmatpush.bf16.msra.mxu0 0
      %2059 = vmatpush.bf16.msra.mxu0 %v2023
      %2060 = vmatmul.bf16.gmra.mxu0 %v2020
      %v2061 = vpop.f32.mrf.mxu0
      %v2062 = vadd.f32 0.0, %v2061
      %v2063 = vpop.f32.mrf.mxu0
      %v2064 = vadd.f32 0.0, %v2063
      %2065 = vdwg.mxu0
      %2066 = vmatpush.bf16.msra.mxu0 0
      %2067 = vmatpush.bf16.msra.mxu0 0
      %2068 = vmatpush.bf16.msra.mxu0 0
      %2069 = vmatpush.bf16.msra.mxu0 0
      %2070 = vmatpush.bf16.msra.mxu0 0
      %2071 = vmatpush.bf16.msra.mxu0 0
      %2072 = vmatpush.bf16.msra.mxu0 0
      %2073 = vmatpush.bf16.msra.mxu0 %v2026
      %2074 = vmatmul.bf16.gmra.mxu0 %v2020
      %v2075 = vpop.f32.mrf.mxu0
      %v2076 = vadd.f32 0.0, %v2075
      %v2077 = vpop.f32.mrf.mxu0
      %v2078 = vadd.f32 0.0, %v2077
      %2079 = vdwg.mxu0
      %2080 = vmatpush.bf16.msra.mxu0 0
      %2081 = vmatpush.bf16.msra.mxu0 0
      %2082 = vmatpush.bf16.msra.mxu0 0
      %2083 = vmatpush.bf16.msra.mxu0 0
      %2084 = vmatpush.bf16.msra.mxu0 0
      %2085 = vmatpush.bf16.msra.mxu0 0
      %2086 = vmatpush.bf16.msra.mxu0 0
      %2087 = vmatpush.bf16.msra.mxu0 %v2029
      %2088 = vmatmul.bf16.gmra.mxu0 %v2020
      %v2089 = vpop.f32.mrf.mxu0
      %v2090 = vadd.f32 0.0, %v2089
      %v2091 = vpop.f32.mrf.mxu0
      %v2092 = vadd.f32 0.0, %v2091
      %2093 = vdwg.mxu0
      %2094 = vmatpush.bf16.msra.mxu0 0
      %2095 = vmatpush.bf16.msra.mxu0 0
      %2096 = vmatpush.bf16.msra.mxu0 0
      %2097 = vmatpush.bf16.msra.mxu0 0
      %2098 = vmatpush.bf16.msra.mxu0 0
      %2099 = vmatpush.bf16.msra.mxu0 0
      %2100 = vmatpush.bf16.msra.mxu0 0
      %2101 = vmatpush.bf16.msra.mxu0 %v2032
      %2102 = vmatmul.bf16.gmra.mxu0 %v2020
      %v2103 = vpop.f32.mrf.mxu0
      %v2104 = vadd.f32 0.0, %v2103
      %v2105 = vpop.f32.mrf.mxu0
      %v2106 = vadd.f32 0.0, %v2105
      %2107 = vdwg.mxu0
      %2108 = vmatpush.bf16.msra.mxu0 0
      %2109 = vmatpush.bf16.msra.mxu0 0
      %2110 = vmatpush.bf16.msra.mxu0 0
      %2111 = vmatpush.bf16.msra.mxu0 0
      %2112 = vmatpush.bf16.msra.mxu0 0
      %2113 = vmatpush.bf16.msra.mxu0 0
      %2114 = vmatpush.bf16.msra.mxu0 0
      %2115 = vmatpush.bf16.msra.mxu0 %v2035
      %2116 = vmatmul.bf16.gmra.mxu0 %v2020
      %v2117 = vpop.f32.mrf.mxu0
      %v2118 = vadd.f32 0.0, %v2117
      %v2119 = vpop.f32.mrf.mxu0
      %v2120 = vadd.f32 0.0, %v2119
      %2121 = vdwg.mxu0
      %2122 = vmatpush.bf16.msra.mxu0 0
      %2123 = vmatpush.bf16.msra.mxu0 0
      %2124 = vmatpush.bf16.msra.mxu0 0
      %2125 = vmatpush.bf16.msra.mxu0 0
      %2126 = vmatpush.bf16.msra.mxu0 0
      %2127 = vmatpush.bf16.msra.mxu0 0
      %2128 = vmatpush.bf16.msra.mxu0 0
      %2129 = vmatpush.bf16.msra.mxu0 %v2038
      %2130 = vmatmul.bf16.gmra.mxu0 %v2020
      %v2131 = vpop.f32.mrf.mxu0
      %v2132 = vadd.f32 0.0, %v2131
      %v2133 = vpop.f32.mrf.mxu0
      %v2134 = vadd.f32 0.0, %v2133
      %2135 = vdwg.mxu0
      %2136 = vmatpush.bf16.msra.mxu0 0
      %2137 = vmatpush.bf16.msra.mxu0 0
      %2138 = vmatpush.bf16.msra.mxu0 0
      %2139 = vmatpush.bf16.msra.mxu0 0
      %2140 = vmatpush.bf16.msra.mxu0 0
      %2141 = vmatpush.bf16.msra.mxu0 0
      %2142 = vmatpush.bf16.msra.mxu0 0
      %2143 = vmatpush.bf16.msra.mxu0 %v2041
      %2144 = vmatmul.bf16.gmra.mxu0 %v2020
      %v2145 = vpop.f32.mrf.mxu0
      %v2146 = vadd.f32 0.0, %v2145
      %v2147 = vpop.f32.mrf.mxu0
      %v2148 = vadd.f32 0.0, %v2147
      %2149 = vdwg.mxu0
      %2150 = vmatpush.bf16.msra.mxu0 0
      %2151 = vmatpush.bf16.msra.mxu0 0
      %2152 = vmatpush.bf16.msra.mxu0 0
      %2153 = vmatpush.bf16.msra.mxu0 0
      %2154 = vmatpush.bf16.msra.mxu0 0
      %2155 = vmatpush.bf16.msra.mxu0 0
      %2156 = vmatpush.bf16.msra.mxu0 0
      %2157 = vmatpush.bf16.msra.mxu0 %v2044
      %2158 = vmatmul.bf16.gmra.mxu0 %v2020
      %v2159 = vpop.f32.mrf.mxu0
      %v2160 = vadd.f32 0.0, %v2159
      %v2161 = vpop.f32.mrf.mxu0
      %v2162 = vadd.f32 0.0, %v2161
      %2163 = vdwg.mxu0
      %2164 = vmatpush.bf16.msra.mxu0 0
      %2165 = vmatpush.bf16.msra.mxu0 0
      %2166 = vmatpush.bf16.msra.mxu0 0
      %2167 = vmatpush.bf16.msra.mxu0 0
      %2168 = vmatpush.bf16.msra.mxu0 0
      %2169 = vmatpush.bf16.msra.mxu0 0
      %2170 = vmatpush.bf16.msra.mxu0 0
      %2171 = vmatpush.bf16.msra.mxu0 %v2047
      %2172 = vmatmul.bf16.gmra.mxu0 %v2020
      %v2173 = vpop.f32.mrf.mxu0
      %v2174 = vadd.f32 0.0, %v2173
      %v2175 = vpop.f32.mrf.mxu0
      %v2176 = vadd.f32 0.0, %v2175
      %2177 = vdwg.mxu0
      %2178 = vmatpush.bf16.msra.mxu0 0
      %2179 = vmatpush.bf16.msra.mxu0 0
      %2180 = vmatpush.bf16.msra.mxu0 0
      %2181 = vmatpush.bf16.msra.mxu0 0
      %2182 = vmatpush.bf16.msra.mxu0 0
      %2183 = vmatpush.bf16.msra.mxu0 0
      %2184 = vmatpush.bf16.msra.mxu0 0
      %2185 = vmatpush.bf16.msra.mxu0 %v2050
      %2186 = vmatmul.bf16.gmra.mxu0 %v2020
      %v2187 = vpop.f32.mrf.mxu0
      %v2188 = vadd.f32 0.0, %v2187
      %v2189 = vpop.f32.mrf.mxu0
      %v2190 = vadd.f32 0.0, %v2189
      %2191 = vdwg.mxu0
      %v2192 = vadd.f32 %v1961, %v2062
      %v2193 = vadd.f32 %v1962, %v2076
      %v2194 = vadd.f32 %v1963, %v2090
      %v2195 = vadd.f32 %v1964, %v2104
      %v2196 = vadd.f32 %v1965, %v2118
      %v2197 = vadd.f32 %v1966, %v2132
      %v2198 = vadd.f32 %v1967, %v2146
      %v2199 = vadd.f32 %v1968, %v2160
      %v2200 = vadd.f32 %v1969, %v2174
      %v2201 = vadd.f32 %v1970, %v2188
      %v2202 = vadd.f32 %v1971, %v2064
      %v2203 = vadd.f32 %v1972, %v2078
      %v2204 = vadd.f32 %v1973, %v2092
      %v2205 = vadd.f32 %v1974, %v2106
      %v2206 = vadd.f32 %v1975, %v2120
      %v2207 = vadd.f32 %v1976, %v2134
      %v2208 = vadd.f32 %v1977, %v2148
      %v2209 = vadd.f32 %v1978, %v2162
      %v2210 = vadd.f32 %v1979, %v2176
      %v2211 = vadd.f32 %v1980, %v2190
      %v2212 = vld [vmem:[%s2] sm:$0xff]
      %v2213 = vld [vmem:[%s2 + $0x8] sm:$0xf]
      %2215 = vset.pattern.permute.xlu0 0
      %2216 = vperm.xlu0 %2215, %v2212
      %v2217 = vpop.permute.xlu0 %2216
      %2220 = vset.pattern.permute.xlu0 0
      %2221 = vperm.xlu0 %2220, %v2213
      %v2222 = vpop.permute.xlu0 %2221
      %v2224 = vadd.f32 %v2192, %v2217
      %v2225 = vadd.f32 %v2193, %v2217
      %v2226 = vadd.f32 %v2194, %v2217
      %v2227 = vadd.f32 %v2195, %v2217
      %v2228 = vadd.f32 %v2196, %v2217
      %v2229 = vadd.f32 %v2197, %v2217
      %v2230 = vadd.f32 %v2198, %v2217
      %v2231 = vadd.f32 %v2199, %v2217
      %v2232 = vadd.f32 %v2200, %v2217
      %v2233 = vadd.f32 %v2201, %v2217
      %v2234 = vadd.f32 %v2202, %v2222
      %v2235 = vadd.f32 %v2203, %v2222
      %v2236 = vadd.f32 %v2204, %v2222
      %v2237 = vadd.f32 %v2205, %v2222
      %v2238 = vadd.f32 %v2206, %v2222
      %v2239 = vadd.f32 %v2207, %v2222
      %v2240 = vadd.f32 %v2208, %v2222
      %v2241 = vadd.f32 %v2209, %v2222
      %v2242 = vadd.f32 %v2210, %v2222
      %v2243 = vadd.f32 %v2211, %v2222
      %v2244 = vtanh.pop %v2224
      %v2245 = vtanh.pop %v2225
      %v2246 = vtanh.pop %v2226
      %v2247 = vtanh.pop %v2227
      %v2248 = vtanh.pop %v2228
      %v2249 = vtanh.pop %v2229
      %v2250 = vtanh.pop %v2230
      %v2251 = vtanh.pop %v2231
      %v2252 = vtanh.pop %v2232
      %v2253 = vtanh.pop %v2233
      %v2254 = vtanh.pop %v2234
      %v2255 = vtanh.pop %v2235
      %v2256 = vtanh.pop %v2236
      %v2257 = vtanh.pop %v2237
      %v2258 = vtanh.pop %v2238
      %v2259 = vtanh.pop %v2239
      %v2260 = vtanh.pop %v2240
      %v2261 = vtanh.pop %v2241
      %v2262 = vtanh.pop %v2242
      %v2263 = vtanh.pop %v2243
      %2264 = vst [vmem:[%s170] sm:$0xff] %v2244
      %2265 = vst [vmem:[%s170 + $0x8] sm:$0xff] %v2245
      %2266 = vst [vmem:[%s170 + $0x10] sm:$0xff] %v2246
      %2267 = vst [vmem:[%s170 + $0x18] sm:$0xff] %v2247
      %2268 = vst [vmem:[%s170 + $0x20] sm:$0xff] %v2248
      %2269 = vst [vmem:[%s170 + $0x28] sm:$0xff] %v2249
      %2270 = vst [vmem:[%s170 + $0x30] sm:$0xff] %v2250
      %2271 = vst [vmem:[%s170 + $0x38] sm:$0xff] %v2251
      %2272 = vst [vmem:[%s170 + $0x40] sm:$0xff] %v2252
      %vm2273 = vcmask 31744
      %2274 = vst.msk [vmem:[%s170 + $0x48] sm:$0xff] %vm2273, %v2253
      %2275 = vst [vmem:[%s170 + $0x50] sm:$0xf] %v2254
      %2276 = vst [vmem:[%s170 + $0x58] sm:$0xf] %v2255
      %2277 = vst [vmem:[%s170 + $0x60] sm:$0xf] %v2256
      %2278 = vst [vmem:[%s170 + $0x68] sm:$0xf] %v2257
      %2279 = vst [vmem:[%s170 + $0x70] sm:$0xf] %v2258
      %2280 = vst [vmem:[%s170 + $0x78] sm:$0xf] %v2259
      %2281 = vst [vmem:[%s170 + $0x80] sm:$0xf] %v2260
      %2282 = vst [vmem:[%s170 + $0x88] sm:$0xf] %v2261
      %2283 = vst [vmem:[%s170 + $0x90] sm:$0xf] %v2262
      %vm2284 = vcmask 27648
      %2285 = vst.msk [vmem:[%s170 + $0x98] sm:$0xf] %vm2284, %v2263
      %p2286 = scmp.lt.s32.totalorder %s14, 1
      %s2287 = scalar_select %p2286, %s14, 1
      %s2288 = smul.addr %s2287, 20
      %s2289 = smul.addr %s2288, 8
      %s2290 = scalar_lea.vmem %s3, %s2289
      // Predicated region
      $region33: #{generator_forward.7} parent=31 // pred_check
        %p2291 = pneg %p100
      $region34: #{generator_forward.7} parent=31 // pred_check_branch
        %2293 = sbr.rel (%p2291) target = $region36
      $region35: #{generator_forward.7} parent=31 // pred_region
        _
      $region36: #{generator_forward.7} parent=31 // pred_fallthru
        _
    $region32: #{generator_forward.7} parent=5 // pred_fallthru
      _
    %p2294 = scmp.le.s32.totalorder 2, %s9
    // Predicated region
    $region37: #{generator_forward.7} parent=5 // pred_check
      %p2295 = pneg %p2294
    $region38: #{generator_forward.7} parent=5 // pred_check_branch
      %2297 = sbr.rel (%p2295) target = $region40
    $region39: #{generator_forward.7} parent=5 // pred_region
      %s2298 = ssub.s32 %s9, 2
      // Predicated region
      $region41: #{generator_forward.7} parent=39 // pred_check
        %p2299 = pneg %p106
      $region42: #{generator_forward.7} parent=39 // pred_check_branch
        %2301 = sbr.rel (%p2299) target = $region44
      $region43: #{generator_forward.7} parent=39 // pred_region
        %p2302 = scmp.lt.s32.totalorder %s15, 1
        %s2303 = scalar_select %p2302, %s15, 1
        %s2304 = smul.addr %s2303, 20
        %s2305 = smul.addr %s2304, 8
        %s2306 = scalar_lea.vmem %s3, %s2305
      $region44: #{generator_forward.7} parent=39 // pred_fallthru
        _
    $region40: #{generator_forward.7} parent=5 // pred_fallthru
      _
  $region6: #{generator_forward.7} parent=0 // loop_footer
    %s13 = sadd.s32 1, %s9
  $region7: #{generator_forward.7} parent=0 // loop_footer_branch
    %8 = sbr.rel target = $region3
  $region8: #{generator_forward.7} parent=0 // loop_exit
    _

</llo_original>
